<compile_context>
chip_gen: v7x
topology: tpu7x:2x2x1
jax: 0.10.0
libtpu: 0.0.40
codegen_flags: <defaults>
</compile_context>

<pallas_src>
from functools import partial

import jax
import jax.numpy as jnp
from jax.experimental import pallas as pl
from jax.experimental.pallas import tpu as pltpu

# ------------------------- small config (consistent with the module) -------------------------
IMG = 16               # small analogue of img_size (224/448 in the reference)
PATCH = 4              # patch_size
IN_CHANS = 3
EMBED_DIM = 32
DEPTH = 2
NUM_HEADS = 4
DEC_DIM = 32
DEC_DEPTH = 2          # single x2 upsample at index DEC_DEPTH - 2 (img_size==224 branch)
DEC_HEADS = 4
MLP_RATIO = 4.0
MASK_RATIO = 0.75      # -> K = 4 strategies
NORM_PIX_LOSS = True
LN_EPS = 1e-5

GRID = IMG // PATCH                  # 4
NUM_PATCHES = GRID * GRID            # 16
PATCH_DIM = PATCH * PATCH * IN_CHANS # 48

VMEM = pltpu.MemorySpace.VMEM
SMEM = pltpu.MemorySpace.SMEM


def _vmem_specs(n):
    return [pl.BlockSpec(memory_space=VMEM) for _ in range(n)]


# ------------------------------------ in-kernel helpers ------------------------------------
def _ln(x, g, b):
    mu = jnp.mean(x, axis=-1, keepdims=True)
    var = jnp.mean((x - mu) ** 2, axis=-1, keepdims=True)
    return (x - mu) * jax.lax.rsqrt(var + LN_EPS) * g + b


def _erf(x):
    # TODO(synk): Mosaic erf lowering support uncertain -> Abramowitz&Stegun 7.1.26
    # polynomial (|err| < 1.5e-7). Uses only VPU ops + one EUP exp, so it fuses for free.
    a1, a2, a3, a4, a5 = 0.254829592, -0.284496736, 1.421413741, -1.453152027, 1.061405429
    p = 0.3275911
    ax = jnp.abs(x)
    t = 1.0 / (1.0 + p * ax)
    poly = ((((a5 * t + a4) * t + a3) * t + a2) * t + a1) * t
    y = 1.0 - poly * jnp.exp(-ax * ax)
    return jnp.where(x >= 0, y, -y)


def _gelu_exact(x):
    return 0.5 * x * (1.0 + _erf(x * 0.7071067811865476))


# ------------------------------------ Pallas kernels ------------------------------------
def _block_kernel(x_ref, ln1g_ref, ln1b_ref, wqkv_ref, bqkv_ref, wproj_ref, bproj_ref,
                  ln2g_ref, ln2b_ref, wfc1_ref, bfc1_ref, wfc2_ref, bfc2_ref, o_ref,
                  *, num_heads, scale):
    """Whole timm Block for one sequence; everything stays in VMEM/registers."""
    x = x_ref[0]                                    # (L, D) f32 residual stream
    D = x.shape[-1]
    dh = D // num_heads

    # --- attention: LN1 -> qkv -> per-head softmax(QK^T)V -> proj -> +residual ---
    h = _ln(x, ln1g_ref[...], ln1b_ref[...])
    qkv = jnp.dot(h.astype(jnp.bfloat16), wqkv_ref[...],
                  preferred_element_type=jnp.float32) + bqkv_ref[...]   # (L, 3D)
    w_proj = wproj_ref[...]                         # (D, D) bf16
    attn = None
    for i in range(num_heads):
        q = qkv[:, i * dh:(i + 1) * dh]
        k = qkv[:, D + i * dh:D + (i + 1) * dh]
        v = qkv[:, 2 * D + i * dh:2 * D + (i + 1) * dh]
        s = jax.lax.dot_general(q.astype(jnp.bfloat16), k.astype(jnp.bfloat16),
                                (((1,), (1,)), ((), ())),
                                preferred_element_type=jnp.float32) * scale   # (L, L)
        s = s - jnp.max(s, axis=-1, keepdims=True)
        e = jnp.exp(s)
        p = e * pl.reciprocal(jnp.sum(e, axis=-1, keepdims=True), approx=True)
        o_h = jnp.dot(p.astype(jnp.bfloat16), v.astype(jnp.bfloat16),
                      preferred_element_type=jnp.float32)                     # (L, dh)
        # per-head slice of the proj weight -> avoids a lane concat of head outputs
        c = jnp.dot(o_h.astype(jnp.bfloat16), w_proj[i * dh:(i + 1) * dh, :],
                    preferred_element_type=jnp.float32)                       # (L, D)
        attn = c if attn is None else attn + c
    x = x + attn + bproj_ref[...]

    # --- MLP: LN2 -> fc1 -> exact-erf GELU -> fc2 -> +residual ---
    h2 = _ln(x, ln2g_ref[...], ln2b_ref[...])
    h2 = jnp.dot(h2.astype(jnp.bfloat16), wfc1_ref[...],
                 preferred_element_type=jnp.float32) + bfc1_ref[...]          # (L, 4D) lane-dense
    h2 = _gelu_exact(h2)
    x = x + jnp.dot(h2.astype(jnp.bfloat16), wfc2_ref[...],
                    preferred_element_type=jnp.float32) + bfc2_ref[...]
    o_ref[0] = x


def fused_transformer_block(x, bp, num_heads):
    # x: (B*K, L, D) f32. One grid step per sequence, weights resident across steps.
    BK, L, D = x.shape
    Dm = bp["w_fc1"].shape[1]
    dh = D // num_heads
    seq_spec = pl.BlockSpec((1, L, D), lambda b: (b, 0, 0))

    def res(shape):  # grid-invariant block: fetched once, stays resident
        return pl.BlockSpec(shape, lambda b: (0,) * len(shape))

    return pl.pallas_call(
        partial(_block_kernel, num_heads=num_heads, scale=dh ** -0.5),
        out_shape=jax.ShapeDtypeStruct((BK, L, D), jnp.float32),
        grid=(BK,),
        in_specs=[seq_spec,
                  res((1, D)), res((1, D)),
                  res((D, 3 * D)), res((1, 3 * D)),
                  res((D, D)), res((1, D)),
                  res((1, D)), res((1, D)),
                  res((D, Dm)), res((1, Dm)),
                  res((Dm, D)), res((1, D))],
        out_specs=seq_spec,
        compiler_params=pltpu.CompilerParams(dimension_semantics=("parallel",)),
    )(x,
      bp["ln1_g"], bp["ln1_b"], bp["w_qkv"], bp["b_qkv"], bp["w_proj"], bp["b_proj"],
      bp["ln2_g"], bp["ln2_b"], bp["w_fc1"], bp["b_fc1"], bp["w_fc2"], bp["b_fc2"])


def _patch_embed_kernel(x_ref, w_ref, b_ref, pos_ref, o_ref):
    x = x_ref[0].astype(jnp.bfloat16)                                    # (L, C*p*p)
    y = jnp.dot(x, w_ref[...], preferred_element_type=jnp.float32)
    o_ref[0] = y + b_ref[...] + pos_ref[...]


def pallas_patch_embed(x_patches, w, b, pos):
    # Conv-as-matmul patch embed fused with bias + positional embedding add.
    N, L, PD = x_patches.shape
    D = w.shape[1]
    return pl.pallas_call(
        _patch_embed_kernel,
        out_shape=jax.ShapeDtypeStruct((N, L, D), jnp.float32),
        grid=(N,),
        in_specs=[pl.BlockSpec((1, L, PD), lambda n: (n, 0, 0)),
                  pl.BlockSpec((PD, D), lambda n: (0, 0)),
                  pl.BlockSpec((1, D), lambda n: (0, 0)),
                  pl.BlockSpec((L, D), lambda n: (0, 0))],
        out_specs=pl.BlockSpec((1, L, D), lambda n: (n, 0, 0)),
        compiler_params=pltpu.CompilerParams(dimension_semantics=("parallel",)),
    )(x_patches, w, b, pos)


def _ln_linear_kernel(*refs, with_add):
    if with_add:
        x_ref, g_ref, b_ref, w_ref, bias_ref, add_ref, o_ref = refs
    else:
        x_ref, g_ref, b_ref, w_ref, bias_ref, o_ref = refs
        add_ref = None
    h = _ln(x_ref[...], g_ref[...], b_ref[...])
    y = jnp.dot(h.astype(jnp.bfloat16), w_ref[...],
                preferred_element_type=jnp.float32) + bias_ref[...]
    if add_ref is not None:
        y = y + add_ref[...]
    o_ref[...] = y


def pallas_ln_linear(x, g, b, w, bias, add=None):
    # LayerNorm folded into the consuming GEMM (optionally + an additive input).
    # TODO(synk): at reference scale (D=768..1024, ~785 tokens) replace these
    # whole-array-resident GEMMs with a (tm, tn, tk) tiled grid + f32 VMEM
    # accumulator sized against v7x's 64 MiB VMEM (set vmem_limit_bytes).
    M = x.shape[0]
    Nout = w.shape[1]
    args = [x, g, b, w, bias] + ([add] if add is not None else [])
    return pl.pallas_call(
        partial(_ln_linear_kernel, with_add=add is not None),
        out_shape=jax.ShapeDtypeStruct((M, Nout), jnp.float32),
        in_specs=_vmem_specs(len(args)),
        out_specs=pl.BlockSpec(memory_space=VMEM),
    )(*args)


def _linear_kernel(x_ref, w_ref, b_ref, o_ref):
    o_ref[...] = jnp.dot(x_ref[...].astype(jnp.bfloat16), w_ref[...],
                         preferred_element_type=jnp.float32) + b_ref[...]


def pallas_linear(x, w, b):
    M = x.shape[0]
    Nout = w.shape[1]
    return pl.pallas_call(
        _linear_kernel,
        out_shape=jax.ShapeDtypeStruct((M, Nout), jnp.float32),
        in_specs=_vmem_specs(3),
        out_specs=pl.BlockSpec(memory_space=VMEM),
    )(x, w, b)


def _loss_kernel(pred_ref, tgt_ref, mask_ref, o_ref, *, norm_pix):
    # Single fused reduction: masked norm-pix MSE + pairwise self-consistency.
    pred = pred_ref[...]                           # (N, K, L, P) f32
    tgt = tgt_ref[...]                             # (N, L, P)    f32
    mask = mask_ref[...]                           # (N, K, L)    f32, 1 = masked
    N, K, L, P = pred.shape
    if norm_pix:
        mu = jnp.mean(tgt, axis=-1, keepdims=True)
        var = jnp.sum((tgt - mu) ** 2, axis=-1, keepdims=True) / (P - 1)  # torch.var (unbiased)
        tgt = (tgt - mu) * jax.lax.rsqrt(var + 1e-6)
    se_sum = jnp.float32(0.0)
    for kk in range(K):
        se = jnp.mean((pred[:, kk] - tgt) ** 2, axis=-1)        # (N, L)
        se_sum = se_sum + jnp.sum(se * mask[:, kk])
    loss_whole = se_sum / jnp.sum(mask)

    total = jnp.float32(0.0)
    npairs = K * (K - 1) // 2
    for i in range(K):
        for j in range(i + 1, K):
            sij = mask[:, i, :] * mask[:, j, :]                 # (N, L)
            d = jnp.abs(pred[:, i] - pred[:, j])                # (N, L, P)
            total = total + jnp.sum(d * sij[:, :, None])
    loss_cons = 2.0 * total / jnp.float32(L * P * N * npairs)
    o_ref[0, 0] = loss_whole + loss_cons


def pallas_loss(pred4d, target3d, mask3d):
    out = pl.pallas_call(
        partial(_loss_kernel, norm_pix=NORM_PIX_LOSS),
        out_shape=jax.ShapeDtypeStruct((1, 1), jnp.float32),
        in_specs=_vmem_specs(3),
        out_specs=pl.BlockSpec(memory_space=SMEM),
    )(pred4d, target3d, mask3d)
    return out[0, 0]


# ------------------------------------ JAX glue ------------------------------------
def patchify_conv_order(imgs):
    # NCHW -> (N, L, C*p*p), flatten order (c, ph, pw) == Conv2d(kernel=p, stride=p)
    N, C, H, W = imgs.shape
    p = PATCH
    h, w = H // p, W // p
    x = imgs.reshape(N, C, h, p, w, p).transpose(0, 2, 4, 1, 3, 5)
    return x.reshape(N, h * w, C * p * p)


def patchify_target(imgs):
    # matches reference patchify: 'nchpwq->nhwpqc'
    N, C, H, W = imgs.shape
    p = PATCH
    h, w = H // p, W // p
    x = imgs.reshape(N, C, h, p, w, p).transpose(0, 2, 4, 3, 5, 1)
    return x.reshape(N, h * w, p * p * C)


def _sincos_1d(embed_dim, pos):
    omega = jnp.arange(embed_dim // 2, dtype=jnp.float32) / (embed_dim / 2.0)
    omega = 1.0 / (10000.0 ** omega)
    out = pos.reshape(-1)[:, None] * omega[None, :]
    return jnp.concatenate([jnp.sin(out), jnp.cos(out)], axis=1)


def get_2d_sincos_pos_embed(embed_dim, grid_size, cls_token=False):
    gh = jnp.arange(grid_size, dtype=jnp.float32)
    gw = jnp.arange(grid_size, dtype=jnp.float32)
    grid_w, grid_h = jnp.meshgrid(gw, gh)                 # same as np.meshgrid(grid_w, grid_h)
    emb = jnp.concatenate([_sincos_1d(embed_dim // 2, grid_w),
                           _sincos_1d(embed_dim // 2, grid_h)], axis=1)
    if cls_token:
        emb = jnp.concatenate([jnp.zeros((1, embed_dim), jnp.float32), emb], axis=0)
    return emb


def decoder_upsample(x, w_mat, b, r=2):
    # DecoderUpsampleBlock: cls split, 3x3 conv (pad=1) as im2col matmul, PixelShuffle(r).
    # TODO(synk): at real image sizes (784 tokens, D>=512) build the 9 conv taps in-kernel
    # from a padded VMEM-resident map instead of materializing the 9x im2col matrix in HBM.
    cls = x[:, :1, :]
    x_ = x[:, 1:, :]
    B, Nt, D = x_.shape
    H = W = int(round(Nt ** 0.5))
    xh = x_.reshape(B, H, W, D)                               # NHWC
    xp = jnp.pad(xh, ((0, 0), (1, 1), (1, 1), (0, 0)))
    cols = [xp[:, i:i + H, j:j + W, :] for i in range(3) for j in range(3)]
    col = jnp.concatenate(cols, axis=-1).reshape(B * H * W, 9 * D)
    y = pallas_linear(col, w_mat, b)                          # (B*H*W, D*r*r) -> 128 lane-dense
    # pixel shuffle: out[b, h*r+i, w*r+j, c] = conv[b, h, w, c*r*r + i*r + j]
    y = y.reshape(B, H, W, D, r, r).transpose(0, 1, 4, 2, 5, 3)
    y = y.reshape(B, H * r * W * r, D)
    return jnp.concatenate([cls, y], axis=1)


# ------------------------------------ parameters ------------------------------------
def init_params(key):
    it = iter(jax.random.split(key, 64))

    def rnd(shape, scale=0.02):
        return jax.random.normal(next(it), shape, jnp.float32) * scale

    def w(shape):  # matmul weights stored bf16 (MXU fast path, half the weight DMA bytes)
        return rnd(shape).astype(jnp.bfloat16)

    def block_params(D):
        Dm = int(D * MLP_RATIO)
        return dict(
            ln1_g=jnp.ones((1, D), jnp.float32), ln1_b=jnp.zeros((1, D), jnp.float32),
            w_qkv=w((D, 3 * D)), b_qkv=jnp.zeros((1, 3 * D), jnp.float32),
            w_proj=w((D, D)), b_proj=jnp.zeros((1, D), jnp.float32),
            ln2_g=jnp.ones((1, D), jnp.float32), ln2_b=jnp.zeros((1, D), jnp.float32),
            w_fc1=w((D, Dm)), b_fc1=jnp.zeros((1, Dm), jnp.float32),
            w_fc2=w((Dm, D)), b_fc2=jnp.zeros((1, D), jnp.float32),
        )

    pos = get_2d_sincos_pos_embed(EMBED_DIM, GRID, cls_token=True)[None]      # (1, L+1, D)
    dec_pos = get_2d_sincos_pos_embed(DEC_DIM, GRID, cls_token=True)[None]    # (1, L+1, Dd)

    return dict(
        patch_w=w((PATCH_DIM, EMBED_DIM)), patch_b=jnp.zeros((1, EMBED_DIM), jnp.float32),
        cls_token=rnd((1, 1, EMBED_DIM)),
        pos_embed=pos.astype(jnp.float32),
        enc_blocks=[block_params(EMBED_DIM) for _ in range(DEPTH)],
        norm_g=jnp.ones((1, EMBED_DIM), jnp.float32), norm_b=jnp.zeros((1, EMBED_DIM), jnp.float32),
        dec_embed_w=w((EMBED_DIM, DEC_DIM)), dec_embed_b=jnp.zeros((1, DEC_DIM), jnp.float32),
        dec_pos_embed=dec_pos.astype(jnp.float32),
        dec_blocks=[block_params(DEC_DIM) for _ in range(DEC_DEPTH)],
        ups_w=w((9 * DEC_DIM, DEC_DIM * 4)), ups_b=jnp.zeros((1, DEC_DIM * 4), jnp.float32),
        dec_norm_g=jnp.ones((1, DEC_DIM), jnp.float32), dec_norm_b=jnp.zeros((1, DEC_DIM), jnp.float32),
        dec_pred_w=w((DEC_DIM, PATCH_DIM)), dec_pred_b=jnp.zeros((1, PATCH_DIM), jnp.float32),
    )


# ------------------------------------ forward ------------------------------------
def forward(params, imgs, mask_ratio, noise_key):
    N = imgs.shape[0]
    L = NUM_PATCHES
    D = EMBED_DIM
    Dd = DEC_DIM

    # ---------------- encoder ----------------
    xp = patchify_conv_order(imgs)                                        # (N, L, 48)
    x = pallas_patch_embed(xp, params["patch_w"], params["patch_b"],
                           params["pos_embed"][0, 1:, :])                 # (N, L, D)

    # random masking (data-dependent shuffle/gather -> JAX glue)
    K = int(1.0 / (1.0 - mask_ratio))
    len_keep = int(L * (1.0 - mask_ratio))
    noise = jax.random.uniform(noise_key, (N, L))
    ids_shuffle = jnp.argsort(noise, axis=1)
    ids_restore = jnp.argsort(ids_shuffle, axis=1)
    ids_keep = ids_shuffle[:, :K * (L // K)].reshape(N, K, L // K)        # (N, K, len_keep)

    xb = jnp.broadcast_to(x[:, None], (N, K, L, D))
    idx = jnp.broadcast_to(ids_keep[..., None], (N, K, L // K, D))
    x_vis = jnp.take_along_axis(xb, idx, axis=2)                          # (N, K, len_keep, D)
    mask = (ids_restore[:, None, :] // (L // K)
            != jnp.arange(K)[None, :, None]).astype(jnp.float32)          # (N, K, L), 1 = masked

    cls = params["cls_token"] + params["pos_embed"][:, :1, :]             # (1, 1, D)
    cls = jnp.broadcast_to(cls[None], (N, K, 1, D))
    x = jnp.concatenate([cls, x_vis], axis=2)                             # (N, K, 1+len_keep, D)
    Lk = 1 + len_keep
    x = x.reshape(N * K, Lk, D)
    for bp in params["enc_blocks"]:
        x = fused_transformer_block(x, bp, NUM_HEADS)

    # ---------------- decoder ----------------
    # encoder final LN + decoder embed + aligned decoder pos-embed add, fused in one kernel
    dec_pos = params["dec_pos_embed"]                                     # (1, L+1, Dd)
    aligned = jnp.take(dec_pos[0, 1:, :], ids_keep, axis=0)               # (N, K, len_keep, Dd)
    cls_pos = jnp.broadcast_to(dec_pos[:, :1, :][None], (N, K, 1, Dd))
    pos_add = jnp.concatenate([cls_pos, aligned], axis=2).reshape(N * K * Lk, Dd)
    x = pallas_ln_linear(x.reshape(N * K * Lk, D),
                         params["norm_g"], params["norm_b"],
                         params["dec_embed_w"], params["dec_embed_b"],
                         add=pos_add)
    x = x.reshape(N * K, Lk, Dd)

    for i, bp in enumerate(params["dec_blocks"]):
        if i == DEC_DEPTH - 2:  # upsample layer placement (img_size==224 branch)
            x = decoder_upsample(x, params["ups_w"], params["ups_b"], r=2)
        x = fused_transformer_block(x, bp, DEC_HEADS)

    BKT, Lfull, _ = x.shape                                               # Lfull = 1 + L
    # decoder final LN + decoder pred, fused in one kernel
    x = pallas_ln_linear(x.reshape(BKT * Lfull, Dd),
                         params["dec_norm_g"], params["dec_norm_b"],
                         params["dec_pred_w"], params["dec_pred_b"])
    pred = x.reshape(BKT, Lfull, PATCH_DIM)[:, 1:, :]                     # (N*K, L, p*p*3)

    # ---------------- loss (single fused reduction kernel) ----------------
    target = patchify_target(imgs)                                        # (N, L, 48)
    loss = pallas_loss(pred.reshape(N, K, L, PATCH_DIM), target, mask)

    label = None
    return loss, pred, label, mask


# ------------------------------------ main ------------------------------------
if __name__ == "__main__":
    key = jax.random.PRNGKey(0)
    k_param, k_img, k_noise = jax.random.split(key, 3)
    params = init_params(k_param)
    imgs = jax.random.normal(k_img, (2, IN_CHANS, IMG, IMG), jnp.float32)   # NCHW, PyTorch convention

    fwd = jax.jit(forward, static_argnums=(2,))
    loss, pred, label, mask = fwd(params, imgs, MASK_RATIO, k_noise)
    jax.block_until_ready((loss, pred, mask))

    assert pred.shape == (2 * 4, NUM_PATCHES, PATCH_DIM)
    assert mask.shape == (2, 4, NUM_PATCHES)
    assert bool(jnp.isfinite(loss))
    print("KERNEL_OK")
</pallas_src>

<mosaic_0001>
module attributes {stable_mosaic.version = 11 : i64} {
  func.func @_patch_embed_kernel(%arg0: i32, %arg1: memref<1x16x48xf32, #tpu.memory_space<vmem>>, %arg2: memref<48x32xbf16, #tpu.memory_space<vmem>>, %arg3: memref<1x32xf32, #tpu.memory_space<vmem>>, %arg4: memref<16x32xf32, #tpu.memory_space<vmem>>, %arg5: memref<1x16x32xf32, #tpu.memory_space<vmem>>) attributes {dimension_semantics = [#tpu.dimension_semantics<parallel>], iteration_bounds = array<i64: 2>, scalar_prefetch = 0 : i64, scratch_operands = 0 : i64, tpu.core_type = #tpu.core_type<tc>, window_params = [{transform_indices = @transform_0, window_bounds = array<i64: 1, 16, 48>}, {pipeline_mode = #tpu.pipeline_mode<synchronous>, transform_indices = @transform_1, window_bounds = array<i64: 48, 32>}, {pipeline_mode = #tpu.pipeline_mode<synchronous>, transform_indices = @transform_2, window_bounds = array<i64: 1, 32>}, {pipeline_mode = #tpu.pipeline_mode<synchronous>, transform_indices = @transform_3, window_bounds = array<i64: 16, 32>}, {transform_indices = @transform_4, window_bounds = array<i64: 1, 16, 32>}]} {
    %c0 = arith.constant 0 : index
    %c0_0 = arith.constant 0 : index
    %c0_1 = arith.constant 0 : index
    %0 = vector.load %arg1[%c0, %c0_0, %c0_1] : memref<1x16x48xf32, #tpu.memory_space<vmem>>, vector<1x16x48xf32>
    %1 = vector.shape_cast %0 : vector<1x16x48xf32> to vector<16x48xf32>
    %2 = arith.truncf %1 : vector<16x48xf32> to vector<16x48xbf16>
    %c0_2 = arith.constant 0 : index
    %c0_3 = arith.constant 0 : index
    %3 = vector.load %arg2[%c0_2, %c0_3] : memref<48x32xbf16, #tpu.memory_space<vmem>>, vector<48x32xbf16>
    %cst = arith.constant dense<0.000000e+00> : vector<16x32xf32>
    %4 = tpu.matmul %2, %3, %cst {dimension_numbers = #tpu.dot_dimension_numbers<[1], [0], [0], [1], [0, 0, 1, 1], [], []>} : vector<16x48xbf16>, vector<48x32xbf16>, vector<16x32xf32> -> vector<16x32xf32>
    %c0_4 = arith.constant 0 : index
    %c0_5 = arith.constant 0 : index
    %5 = vector.load %arg3[%c0_4, %c0_5] : memref<1x32xf32, #tpu.memory_space<vmem>>, vector<1x32xf32>
    %6 = vector.broadcast %5 : vector<1x32xf32> to vector<16x32xf32>
    %7 = arith.addf %4, %6 : vector<16x32xf32>
    %c0_6 = arith.constant 0 : index
    %c0_7 = arith.constant 0 : index
    %8 = vector.load %arg4[%c0_6, %c0_7] : memref<16x32xf32, #tpu.memory_space<vmem>>, vector<16x32xf32>
    %9 = arith.addf %7, %8 : vector<16x32xf32>
    %c0_8 = arith.constant 0 : index
    %c0_9 = arith.constant 0 : index
    %c0_10 = arith.constant 0 : index
    %10 = vector.load %arg5[%c0_8, %c0_9, %c0_10] : memref<1x16x32xf32, #tpu.memory_space<vmem>>, vector<1x16x32xf32>
    %11 = vector.shape_cast %10 : vector<1x16x32xf32> to vector<16x32xf32>
    %12 = vector.shape_cast %9 : vector<16x32xf32> to vector<1x16x32xf32>
    tpu.vector_store %arg5[%c0_8, %c0_9, %c0_10], %12 {strides = array<i32>} : memref<1x16x32xf32, #tpu.memory_space<vmem>>, vector<1x16x32xf32>,
    return
  }
  func.func @transform_0(%arg0: i32) -> (i32, i32, i32) {
    %c0_i32 = arith.constant 0 : i32
    %c0_i32_0 = arith.constant 0 : i32
    %c0_i32_1 = arith.constant 0 : i32
    return %arg0, %c0_i32, %c0_i32_0 : i32, i32, i32
  }
  func.func @transform_1(%arg0: i32) -> (i32, i32) {
    %c0_i32 = arith.constant 0 : i32
    %c0_i32_0 = arith.constant 0 : i32
    %c0_i32_1 = arith.constant 0 : i32
    return %c0_i32, %c0_i32_0 : i32, i32
  }
  func.func @transform_2(%arg0: i32) -> (i32, i32) {
    %c0_i32 = arith.constant 0 : i32
    %c0_i32_0 = arith.constant 0 : i32
    %c0_i32_1 = arith.constant 0 : i32
    return %c0_i32, %c0_i32_0 : i32, i32
  }
  func.func @transform_3(%arg0: i32) -> (i32, i32) {
    %c0_i32 = arith.constant 0 : i32
    %c0_i32_0 = arith.constant 0 : i32
    %c0_i32_1 = arith.constant 0 : i32
    return %c0_i32, %c0_i32_0 : i32, i32
  }
  func.func @transform_4(%arg0: i32) -> (i32, i32, i32) {
    %c0_i32 = arith.constant 0 : i32
    %c0_i32_0 = arith.constant 0 : i32
    %c0_i32_1 = arith.constant 0 : i32
    return %arg0, %c0_i32, %c0_i32_0 : i32, i32, i32
  }
}

module attributes {stable_mosaic.version = 11 : i64} {
  func.func @_block_kernel(%arg0: i32, %arg1: memref<1x5x32xf32, #tpu.memory_space<vmem>>, %arg2: memref<1x32xf32, #tpu.memory_space<vmem>>, %arg3: memref<1x32xf32, #tpu.memory_space<vmem>>, %arg4: memref<32x96xbf16, #tpu.memory_space<vmem>>, %arg5: memref<1x96xf32, #tpu.memory_space<vmem>>, %arg6: memref<32x32xbf16, #tpu.memory_space<vmem>>, %arg7: memref<1x32xf32, #tpu.memory_space<vmem>>, %arg8: memref<1x32xf32, #tpu.memory_space<vmem>>, %arg9: memref<1x32xf32, #tpu.memory_space<vmem>>, %arg10: memref<32x128xbf16, #tpu.memory_space<vmem>>, %arg11: memref<1x128xf32, #tpu.memory_space<vmem>>, %arg12: memref<128x32xbf16, #tpu.memory_space<vmem>>, %arg13: memref<1x32xf32, #tpu.memory_space<vmem>>, %arg14: memref<1x5x32xf32, #tpu.memory_space<vmem>>) attributes {dimension_semantics = [#tpu.dimension_semantics<parallel>], iteration_bounds = array<i64: 8>, scalar_prefetch = 0 : i64, scratch_operands = 0 : i64, tpu.core_type = #tpu.core_type<tc>, window_params = [{transform_indices = @transform_0, window_bounds = array<i64: 1, 5, 32>}, {pipeline_mode = #tpu.pipeline_mode<synchronous>, transform_indices = @transform_1, window_bounds = array<i64: 1, 32>}, {pipeline_mode = #tpu.pipeline_mode<synchronous>, transform_indices = @transform_2, window_bounds = array<i64: 1, 32>}, {pipeline_mode = #tpu.pipeline_mode<synchronous>, transform_indices = @transform_3, window_bounds = array<i64: 32, 96>}, {pipeline_mode = #tpu.pipeline_mode<synchronous>, transform_indices = @transform_4, window_bounds = array<i64: 1, 96>}, {pipeline_mode = #tpu.pipeline_mode<synchronous>, transform_indices = @transform_5, window_bounds = array<i64: 32, 32>}, {pipeline_mode = #tpu.pipeline_mode<synchronous>, transform_indices = @transform_6, window_bounds = array<i64: 1, 32>}, {pipeline_mode = #tpu.pipeline_mode<synchronous>, transform_indices = @transform_7, window_bounds = array<i64: 1, 32>}, {pipeline_mode = #tpu.pipeline_mode<synchronous>, transform_indices = @transform_8, window_bounds = array<i64: 1, 32>}, {pipeline_mode = #tpu.pipeline_mode<synchronous>, transform_indices = @transform_9, window_bounds = array<i64: 32, 128>}, {pipeline_mode = #tpu.pipeline_mode<synchronous>, transform_indices = @transform_10, window_bounds = array<i64: 1, 128>}, {pipeline_mode = #tpu.pipeline_mode<synchronous>, transform_indices = @transform_11, window_bounds = array<i64: 128, 32>}, {pipeline_mode = #tpu.pipeline_mode<synchronous>, transform_indices = @transform_12, window_bounds = array<i64: 1, 32>}, {transform_indices = @transform_13, window_bounds = array<i64: 1, 5, 32>}]} {
    %c0 = arith.constant 0 : index
    %c0_0 = arith.constant 0 : index
    %c0_1 = arith.constant 0 : index
    %0 = vector.load %arg1[%c0, %c0_0, %c0_1] : memref<1x5x32xf32, #tpu.memory_space<vmem>>, vector<1x5x32xf32>
    %1 = vector.shape_cast %0 : vector<1x5x32xf32> to vector<5x32xf32>
    %c0_2 = arith.constant 0 : index
    %c0_3 = arith.constant 0 : index
    %2 = vector.load %arg2[%c0_2, %c0_3] : memref<1x32xf32, #tpu.memory_space<vmem>>, vector<1x32xf32>
    %c0_4 = arith.constant 0 : index
    %c0_5 = arith.constant 0 : index
    %3 = vector.load %arg3[%c0_4, %c0_5] : memref<1x32xf32, #tpu.memory_space<vmem>>, vector<1x32xf32>
    %cst = arith.constant dense<0.000000e+00> : vector<5xf32>
    %4 = vector.multi_reduction <add>, %1, %cst [1] : vector<5x32xf32> to vector<5xf32>
    %5 = vector.shape_cast %4 : vector<5xf32> to vector<5x1xf32>
    %cst_6 = arith.constant 3.200000e+01 : f32
    %6 = vector.broadcast %cst_6 : f32 to vector<5x1xf32>
    %7 = arith.divf %5, %6 : vector<5x1xf32>
    %8 = vector.broadcast %7 : vector<5x1xf32> to vector<5x32xf32>
    %9 = arith.subf %1, %8 : vector<5x32xf32>
    %10 = arith.mulf %9, %9 : vector<5x32xf32>
    %cst_7 = arith.constant dense<0.000000e+00> : vector<5xf32>
    %11 = vector.multi_reduction <add>, %10, %cst_7 [1] : vector<5x32xf32> to vector<5xf32>
    %12 = vector.shape_cast %11 : vector<5xf32> to vector<5x1xf32>
    %cst_8 = arith.constant 3.200000e+01 : f32
    %13 = vector.broadcast %cst_8 : f32 to vector<5x1xf32>
    %14 = arith.divf %12, %13 : vector<5x1xf32>
    %15 = vector.broadcast %7 : vector<5x1xf32> to vector<5x32xf32>
    %16 = arith.subf %1, %15 : vector<5x32xf32>
    %cst_9 = arith.constant 9.99999974E-6 : f32
    %17 = vector.broadcast %cst_9 : f32 to vector<5x1xf32>
    %18 = arith.addf %14, %17 : vector<5x1xf32>
    %19 = math.rsqrt %18 : vector<5x1xf32>
    %20 = vector.broadcast %19 : vector<5x1xf32> to vector<5x32xf32>
    %21 = arith.mulf %16, %20 : vector<5x32xf32>
    %22 = vector.broadcast %2 : vector<1x32xf32> to vector<5x32xf32>
    %23 = arith.mulf %21, %22 : vector<5x32xf32>
    %24 = vector.broadcast %3 : vector<1x32xf32> to vector<5x32xf32>
    %25 = arith.addf %23, %24 : vector<5x32xf32>
    %26 = arith.truncf %25 : vector<5x32xf32> to vector<5x32xbf16>
    %c0_10 = arith.constant 0 : index
    %c0_11 = arith.constant 0 : index
    %27 = vector.load %arg4[%c0_10, %c0_11] : memref<32x96xbf16, #tpu.memory_space<vmem>>, vector<32x96xbf16>
    %cst_12 = arith.constant dense<0.000000e+00> : vector<5x96xf32>
    %28 = tpu.matmul %26, %27, %cst_12 {dimension_numbers = #tpu.dot_dimension_numbers<[1], [0], [0], [1], [0, 0, 1, 1], [], []>} : vector<5x32xbf16>, vector<32x96xbf16>, vector<5x96xf32> -> vector<5x96xf32>
    %c0_13 = arith.constant 0 : index
    %c0_14 = arith.constant 0 : index
    %29 = vector.load %arg5[%c0_13, %c0_14] : memref<1x96xf32, #tpu.memory_space<vmem>>, vector<1x96xf32>
    %30 = vector.broadcast %29 : vector<1x96xf32> to vector<5x96xf32>
    %31 = arith.addf %28, %30 : vector<5x96xf32>
    %c0_15 = arith.constant 0 : index
    %c0_16 = arith.constant 0 : index
    %32 = vector.load %arg6[%c0_15, %c0_16] : memref<32x32xbf16, #tpu.memory_space<vmem>>, vector<32x32xbf16>
    %33 = vector.extract_strided_slice %31 {offsets = [0, 0], sizes = [5, 8], strides = [1, 1]} : vector<5x96xf32> to vector<5x8xf32>
    %34 = vector.extract_strided_slice %31 {offsets = [0, 32], sizes = [5, 8], strides = [1, 1]} : vector<5x96xf32> to vector<5x8xf32>
    %35 = vector.extract_strided_slice %31 {offsets = [0, 64], sizes = [5, 8], strides = [1, 1]} : vector<5x96xf32> to vector<5x8xf32>
    %36 = arith.truncf %33 : vector<5x8xf32> to vector<5x8xbf16>
    %37 = arith.truncf %34 : vector<5x8xf32> to vector<5x8xbf16>
    %cst_17 = arith.constant dense<0.000000e+00> : vector<5x5xf32>
    %38 = tpu.matmul %36, %37, %cst_17 {dimension_numbers = #tpu.dot_dimension_numbers<[1], [1], [0], [0], [0, 0, 1, 0], [], []>} : vector<5x8xbf16>, vector<5x8xbf16>, vector<5x5xf32> -> vector<5x5xf32>
    %cst_18 = arith.constant 0.353553385 : f32
    %39 = vector.broadcast %cst_18 : f32 to vector<5x5xf32>
    %40 = arith.mulf %38, %39 : vector<5x5xf32>
    %cst_19 = arith.constant dense<0xFF800000> : vector<5xf32>
    %41 = vector.multi_reduction <maximumf>, %40, %cst_19 [1] : vector<5x5xf32> to vector<5xf32>
    %42 = vector.shape_cast %41 : vector<5xf32> to vector<5x1xf32>
    %43 = vector.broadcast %42 : vector<5x1xf32> to vector<5x5xf32>
    %44 = arith.subf %40, %43 : vector<5x5xf32>
    %45 = math.exp %44 : vector<5x5xf32>
    %cst_20 = arith.constant dense<0.000000e+00> : vector<5xf32>
    %46 = vector.multi_reduction <add>, %45, %cst_20 [1] : vector<5x5xf32> to vector<5xf32>
    %47 = vector.shape_cast %46 : vector<5xf32> to vector<5x1xf32>
    %48 = tpu.reciprocal %47 {approx = true} : vector<5x1xf32> -> vector<5x1xf32>
    %49 = vector.broadcast %48 : vector<5x1xf32> to vector<5x5xf32>
    %50 = arith.mulf %45, %49 : vector<5x5xf32>
    %51 = arith.truncf %50 : vector<5x5xf32> to vector<5x5xbf16>
    %52 = arith.truncf %35 : vector<5x8xf32> to vector<5x8xbf16>
    %cst_21 = arith.constant dense<0.000000e+00> : vector<5x8xf32>
    %53 = tpu.matmul %51, %52, %cst_21 {dimension_numbers = #tpu.dot_dimension_numbers<[1], [0], [0], [1], [0, 0, 1, 1], [], []>} : vector<5x5xbf16>, vector<5x8xbf16>, vector<5x8xf32> -> vector<5x8xf32>
    %54 = arith.truncf %53 : vector<5x8xf32> to vector<5x8xbf16>
    %55 = vector.extract_strided_slice %32 {offsets = [0, 0], sizes = [8, 32], strides = [1, 1]} : vector<32x32xbf16> to vector<8x32xbf16>
    %cst_22 = arith.constant dense<0.000000e+00> : vector<5x32xf32>
    %56 = tpu.matmul %54, %55, %cst_22 {dimension_numbers = #tpu.dot_dimension_numbers<[1], [0], [0], [1], [0, 0, 1, 1], [], []>} : vector<5x8xbf16>, vector<8x32xbf16>, vector<5x32xf32> -> vector<5x32xf32>
    %57 = vector.extract_strided_slice %31 {offsets = [0, 8], sizes = [5, 8], strides = [1, 1]} : vector<5x96xf32> to vector<5x8xf32>
    %58 = vector.extract_strided_slice %31 {offsets = [0, 40], sizes = [5, 8], strides = [1, 1]} : vector<5x96xf32> to vector<5x8xf32>
    %59 = vector.extract_strided_slice %31 {offsets = [0, 72], sizes = [5, 8], strides = [1, 1]} : vector<5x96xf32> to vector<5x8xf32>
    %60 = arith.truncf %57 : vector<5x8xf32> to vector<5x8xbf16>
    %61 = arith.truncf %58 : vector<5x8xf32> to vector<5x8xbf16>
    %cst_23 = arith.constant dense<0.000000e+00> : vector<5x5xf32>
    %62 = tpu.matmul %60, %61, %cst_23 {dimension_numbers = #tpu.dot_dimension_numbers<[1], [1], [0], [0], [0, 0, 1, 0], [], []>} : vector<5x8xbf16>, vector<5x8xbf16>, vector<5x5xf32> -> vector<5x5xf32>
    %cst_24 = arith.constant 0.353553385 : f32
    %63 = vector.broadcast %cst_24 : f32 to vector<5x5xf32>
    %64 = arith.mulf %62, %63 : vector<5x5xf32>
    %cst_25 = arith.constant dense<0xFF800000> : vector<5xf32>
    %65 = vector.multi_reduction <maximumf>, %64, %cst_25 [1] : vector<5x5xf32> to vector<5xf32>
    %66 = vector.shape_cast %65 : vector<5xf32> to vector<5x1xf32>
    %67 = vector.broadcast %66 : vector<5x1xf32> to vector<5x5xf32>
    %68 = arith.subf %64, %67 : vector<5x5xf32>
    %69 = math.exp %68 : vector<5x5xf32>
    %cst_26 = arith.constant dense<0.000000e+00> : vector<5xf32>
    %70 = vector.multi_reduction <add>, %69, %cst_26 [1] : vector<5x5xf32> to vector<5xf32>
    %71 = vector.shape_cast %70 : vector<5xf32> to vector<5x1xf32>
    %72 = tpu.reciprocal %71 {approx = true} : vector<5x1xf32> -> vector<5x1xf32>
    %73 = vector.broadcast %72 : vector<5x1xf32> to vector<5x5xf32>
    %74 = arith.mulf %69, %73 : vector<5x5xf32>
    %75 = arith.truncf %74 : vector<5x5xf32> to vector<5x5xbf16>
    %76 = arith.truncf %59 : vector<5x8xf32> to vector<5x8xbf16>
    %cst_27 = arith.constant dense<0.000000e+00> : vector<5x8xf32>
    %77 = tpu.matmul %75, %76, %cst_27 {dimension_numbers = #tpu.dot_dimension_numbers<[1], [0], [0], [1], [0, 0, 1, 1], [], []>} : vector<5x5xbf16>, vector<5x8xbf16>, vector<5x8xf32> -> vector<5x8xf32>
    %78 = arith.truncf %77 : vector<5x8xf32> to vector<5x8xbf16>
    %79 = vector.extract_strided_slice %32 {offsets = [8, 0], sizes = [8, 32], strides = [1, 1]} : vector<32x32xbf16> to vector<8x32xbf16>
    %cst_28 = arith.constant dense<0.000000e+00> : vector<5x32xf32>
    %80 = tpu.matmul %78, %79, %cst_28 {dimension_numbers = #tpu.dot_dimension_numbers<[1], [0], [0], [1], [0, 0, 1, 1], [], []>} : vector<5x8xbf16>, vector<8x32xbf16>, vector<5x32xf32> -> vector<5x32xf32>
    %81 = arith.addf %56, %80 : vector<5x32xf32>
    %82 = vector.extract_strided_slice %31 {offsets = [0, 16], sizes = [5, 8], strides = [1, 1]} : vector<5x96xf32> to vector<5x8xf32>
    %83 = vector.extract_strided_slice %31 {offsets = [0, 48], sizes = [5, 8], strides = [1, 1]} : vector<5x96xf32> to vector<5x8xf32>
    %84 = vector.extract_strided_slice %31 {offsets = [0, 80], sizes = [5, 8], strides = [1, 1]} : vector<5x96xf32> to vector<5x8xf32>
    %85 = arith.truncf %82 : vector<5x8xf32> to vector<5x8xbf16>
    %86 = arith.truncf %83 : vector<5x8xf32> to vector<5x8xbf16>
    %cst_29 = arith.constant dense<0.000000e+00> : vector<5x5xf32>
    %87 = tpu.matmul %85, %86, %cst_29 {dimension_numbers = #tpu.dot_dimension_numbers<[1], [1], [0], [0], [0, 0, 1, 0], [], []>} : vector<5x8xbf16>, vector<5x8xbf16>, vector<5x5xf32> -> vector<5x5xf32>
    %cst_30 = arith.constant 0.353553385 : f32
    %88 = vector.broadcast %cst_30 : f32 to vector<5x5xf32>
    %89 = arith.mulf %87, %88 : vector<5x5xf32>
    %cst_31 = arith.constant dense<0xFF800000> : vector<5xf32>
    %90 = vector.multi_reduction <maximumf>, %89, %cst_31 [1] : vector<5x5xf32> to vector<5xf32>
    %91 = vector.shape_cast %90 : vector<5xf32> to vector<5x1xf32>
    %92 = vector.broadcast %91 : vector<5x1xf32> to vector<5x5xf32>
    %93 = arith.subf %89, %92 : vector<5x5xf32>
    %94 = math.exp %93 : vector<5x5xf32>
    %cst_32 = arith.constant dense<0.000000e+00> : vector<5xf32>
    %95 = vector.multi_reduction <add>, %94, %cst_32 [1] : vector<5x5xf32> to vector<5xf32>
    %96 = vector.shape_cast %95 : vector<5xf32> to vector<5x1xf32>
    %97 = tpu.reciprocal %96 {approx = true} : vector<5x1xf32> -> vector<5x1xf32>
    %98 = vector.broadcast %97 : vector<5x1xf32> to vector<5x5xf32>
    %99 = arith.mulf %94, %98 : vector<5x5xf32>
    %100 = arith.truncf %99 : vector<5x5xf32> to vector<5x5xbf16>
    %101 = arith.truncf %84 : vector<5x8xf32> to vector<5x8xbf16>
    %cst_33 = arith.constant dense<0.000000e+00> : vector<5x8xf32>
    %102 = tpu.matmul %100, %101, %cst_33 {dimension_numbers = #tpu.dot_dimension_numbers<[1], [0], [0], [1], [0, 0, 1, 1], [], []>} : vector<5x5xbf16>, vector<5x8xbf16>, vector<5x8xf32> -> vector<5x8xf32>
    %103 = arith.truncf %102 : vector<5x8xf32> to vector<5x8xbf16>
    %104 = vector.extract_strided_slice %32 {offsets = [16, 0], sizes = [8, 32], strides = [1, 1]} : vector<32x32xbf16> to vector<8x32xbf16>
    %cst_34 = arith.constant dense<0.000000e+00> : vector<5x32xf32>
    %105 = tpu.matmul %103, %104, %cst_34 {dimension_numbers = #tpu.dot_dimension_numbers<[1], [0], [0], [1], [0, 0, 1, 1], [], []>} : vector<5x8xbf16>, vector<8x32xbf16>, vector<5x32xf32> -> vector<5x32xf32>
    %106 = arith.addf %81, %105 : vector<5x32xf32>
    %107 = vector.extract_strided_slice %31 {offsets = [0, 24], sizes = [5, 8], strides = [1, 1]} : vector<5x96xf32> to vector<5x8xf32>
    %108 = vector.extract_strided_slice %31 {offsets = [0, 56], sizes = [5, 8], strides = [1, 1]} : vector<5x96xf32> to vector<5x8xf32>
    %109 = vector.extract_strided_slice %31 {offsets = [0, 88], sizes = [5, 8], strides = [1, 1]} : vector<5x96xf32> to vector<5x8xf32>
    %110 = arith.truncf %107 : vector<5x8xf32> to vector<5x8xbf16>
    %111 = arith.truncf %108 : vector<5x8xf32> to vector<5x8xbf16>
    %cst_35 = arith.constant dense<0.000000e+00> : vector<5x5xf32>
    %112 = tpu.matmul %110, %111, %cst_35 {dimension_numbers = #tpu.dot_dimension_numbers<[1], [1], [0], [0], [0, 0, 1, 0], [], []>} : vector<5x8xbf16>, vector<5x8xbf16>, vector<5x5xf32> -> vector<5x5xf32>
    %cst_36 = arith.constant 0.353553385 : f32
    %113 = vector.broadcast %cst_36 : f32 to vector<5x5xf32>
    %114 = arith.mulf %112, %113 : vector<5x5xf32>
    %cst_37 = arith.constant dense<0xFF800000> : vector<5xf32>
    %115 = vector.multi_reduction <maximumf>, %114, %cst_37 [1] : vector<5x5xf32> to vector<5xf32>
    %116 = vector.shape_cast %115 : vector<5xf32> to vector<5x1xf32>
    %117 = vector.broadcast %116 : vector<5x1xf32> to vector<5x5xf32>
    %118 = arith.subf %114, %117 : vector<5x5xf32>
    %119 = math.exp %118 : vector<5x5xf32>
    %cst_38 = arith.constant dense<0.000000e+00> : vector<5xf32>
    %120 = vector.multi_reduction <add>, %119, %cst_38 [1] : vector<5x5xf32> to vector<5xf32>
    %121 = vector.shape_cast %120 : vector<5xf32> to vector<5x1xf32>
    %122 = tpu.reciprocal %121 {approx = true} : vector<5x1xf32> -> vector<5x1xf32>
    %123 = vector.broadcast %122 : vector<5x1xf32> to vector<5x5xf32>
    %124 = arith.mulf %119, %123 : vector<5x5xf32>
    %125 = arith.truncf %124 : vector<5x5xf32> to vector<5x5xbf16>
    %126 = arith.truncf %109 : vector<5x8xf32> to vector<5x8xbf16>
    %cst_39 = arith.constant dense<0.000000e+00> : vector<5x8xf32>
    %127 = tpu.matmul %125, %126, %cst_39 {dimension_numbers = #tpu.dot_dimension_numbers<[1], [0], [0], [1], [0, 0, 1, 1], [], []>} : vector<5x5xbf16>, vector<5x8xbf16>, vector<5x8xf32> -> vector<5x8xf32>
    %128 = arith.truncf %127 : vector<5x8xf32> to vector<5x8xbf16>
    %129 = vector.extract_strided_slice %32 {offsets = [24, 0], sizes = [8, 32], strides = [1, 1]} : vector<32x32xbf16> to vector<8x32xbf16>
    %cst_40 = arith.constant dense<0.000000e+00> : vector<5x32xf32>
    %130 = tpu.matmul %128, %129, %cst_40 {dimension_numbers = #tpu.dot_dimension_numbers<[1], [0], [0], [1], [0, 0, 1, 1], [], []>} : vector<5x8xbf16>, vector<8x32xbf16>, vector<5x32xf32> -> vector<5x32xf32>
    %131 = arith.addf %106, %130 : vector<5x32xf32>
    %132 = arith.addf %1, %131 : vector<5x32xf32>
    %c0_41 = arith.constant 0 : index
    %c0_42 = arith.constant 0 : index
    %133 = vector.load %arg7[%c0_41, %c0_42] : memref<1x32xf32, #tpu.memory_space<vmem>>, vector<1x32xf32>
    %134 = vector.broadcast %133 : vector<1x32xf32> to vector<5x32xf32>
    %135 = arith.addf %132, %134 : vector<5x32xf32>
    %c0_43 = arith.constant 0 : index
    %c0_44 = arith.constant 0 : index
    %136 = vector.load %arg8[%c0_43, %c0_44] : memref<1x32xf32, #tpu.memory_space<vmem>>, vector<1x32xf32>
    %c0_45 = arith.constant 0 : index
    %c0_46 = arith.constant 0 : index
    %137 = vector.load %arg9[%c0_45, %c0_46] : memref<1x32xf32, #tpu.memory_space<vmem>>, vector<1x32xf32>
    %cst_47 = arith.constant dense<0.000000e+00> : vector<5xf32>
    %138 = vector.multi_reduction <add>, %135, %cst_47 [1] : vector<5x32xf32> to vector<5xf32>
    %139 = vector.shape_cast %138 : vector<5xf32> to vector<5x1xf32>
    %cst_48 = arith.constant 3.200000e+01 : f32
    %140 = vector.broadcast %cst_48 : f32 to vector<5x1xf32>
    %141 = arith.divf %139, %140 : vector<5x1xf32>
    %142 = vector.broadcast %141 : vector<5x1xf32> to vector<5x32xf32>
    %143 = arith.subf %135, %142 : vector<5x32xf32>
    %144 = arith.mulf %143, %143 : vector<5x32xf32>
    %cst_49 = arith.constant dense<0.000000e+00> : vector<5xf32>
    %145 = vector.multi_reduction <add>, %144, %cst_49 [1] : vector<5x32xf32> to vector<5xf32>
    %146 = vector.shape_cast %145 : vector<5xf32> to vector<5x1xf32>
    %cst_50 = arith.constant 3.200000e+01 : f32
    %147 = vector.broadcast %cst_50 : f32 to vector<5x1xf32>
    %148 = arith.divf %146, %147 : vector<5x1xf32>
    %149 = vector.broadcast %141 : vector<5x1xf32> to vector<5x32xf32>
    %150 = arith.subf %135, %149 : vector<5x32xf32>
    %cst_51 = arith.constant 9.99999974E-6 : f32
    %151 = vector.broadcast %cst_51 : f32 to vector<5x1xf32>
    %152 = arith.addf %148, %151 : vector<5x1xf32>
    %153 = math.rsqrt %152 : vector<5x1xf32>
    %154 = vector.broadcast %153 : vector<5x1xf32> to vector<5x32xf32>
    %155 = arith.mulf %150, %154 : vector<5x32xf32>
    %156 = vector.broadcast %136 : vector<1x32xf32> to vector<5x32xf32>
    %157 = arith.mulf %155, %156 : vector<5x32xf32>
    %158 = vector.broadcast %137 : vector<1x32xf32> to vector<5x32xf32>
    %159 = arith.addf %157, %158 : vector<5x32xf32>
    %160 = arith.truncf %159 : vector<5x32xf32> to vector<5x32xbf16>
    %c0_52 = arith.constant 0 : index
    %c0_53 = arith.constant 0 : index
    %161 = vector.load %arg10[%c0_52, %c0_53] : memref<32x128xbf16, #tpu.memory_space<vmem>>, vector<32x128xbf16>
    %cst_54 = arith.constant dense<0.000000e+00> : vector<5x128xf32>
    %162 = tpu.matmul %160, %161, %cst_54 {dimension_numbers = #tpu.dot_dimension_numbers<[1], [0], [0], [1], [0, 0, 1, 1], [], []>} : vector<5x32xbf16>, vector<32x128xbf16>, vector<5x128xf32> -> vector<5x128xf32>
    %c0_55 = arith.constant 0 : index
    %c0_56 = arith.constant 0 : index
    %163 = vector.load %arg11[%c0_55, %c0_56] : memref<1x128xf32, #tpu.memory_space<vmem>>, vector<1x128xf32>
    %164 = vector.broadcast %163 : vector<1x128xf32> to vector<5x128xf32>
    %165 = arith.addf %162, %164 : vector<5x128xf32>
    %cst_57 = arith.constant 5.000000e-01 : f32
    %166 = vector.broadcast %cst_57 : f32 to vector<5x128xf32>
    %167 = arith.mulf %166, %165 : vector<5x128xf32>
    %cst_58 = arith.constant 0.707106769 : f32
    %168 = vector.broadcast %cst_58 : f32 to vector<5x128xf32>
    %169 = arith.mulf %165, %168 : vector<5x128xf32>
    %170 = math.absf %169 : vector<5x128xf32>
    %cst_59 = arith.constant 0.327591091 : f32
    %171 = vector.broadcast %cst_59 : f32 to vector<5x128xf32>
    %172 = arith.mulf %171, %170 : vector<5x128xf32>
    %cst_60 = arith.constant 1.000000e+00 : f32
    %173 = vector.broadcast %cst_60 : f32 to vector<5x128xf32>
    %174 = arith.addf %173, %172 : vector<5x128xf32>
    %cst_61 = arith.constant 1.000000e+00 : f32
    %175 = vector.broadcast %cst_61 : f32 to vector<5x128xf32>
    %176 = arith.divf %175, %174 : vector<5x128xf32>
    %cst_62 = arith.constant 1.06140542 : f32
    %177 = vector.broadcast %cst_62 : f32 to vector<5x128xf32>
    %178 = arith.mulf %177, %176 : vector<5x128xf32>
    %cst_63 = arith.constant -1.45315206 : f32
    %179 = vector.broadcast %cst_63 : f32 to vector<5x128xf32>
    %180 = arith.addf %178, %179 : vector<5x128xf32>
    %181 = arith.mulf %180, %176 : vector<5x128xf32>
    %cst_64 = arith.constant 1.42141378 : f32
    %182 = vector.broadcast %cst_64 : f32 to vector<5x128xf32>
    %183 = arith.addf %181, %182 : vector<5x128xf32>
    %184 = arith.mulf %183, %176 : vector<5x128xf32>
    %cst_65 = arith.constant -0.284496725 : f32
    %185 = vector.broadcast %cst_65 : f32 to vector<5x128xf32>
    %186 = arith.addf %184, %185 : vector<5x128xf32>
    %187 = arith.mulf %186, %176 : vector<5x128xf32>
    %cst_66 = arith.constant 0.254829586 : f32
    %188 = vector.broadcast %cst_66 : f32 to vector<5x128xf32>
    %189 = arith.addf %187, %188 : vector<5x128xf32>
    %190 = arith.mulf %189, %176 : vector<5x128xf32>
    %cst_67 = arith.constant 0.000000e+00 : f32
    %191 = vector.broadcast %cst_67 : f32 to vector<5x128xf32>
    %192 = arith.subf %191, %170 : vector<5x128xf32>
    %193 = arith.mulf %192, %170 : vector<5x128xf32>
    %194 = math.exp %193 : vector<5x128xf32>
    %195 = arith.mulf %190, %194 : vector<5x128xf32>
    %cst_68 = arith.constant 1.000000e+00 : f32
    %196 = vector.broadcast %cst_68 : f32 to vector<5x128xf32>
    %197 = arith.subf %196, %195 : vector<5x128xf32>
    %cst_69 = arith.constant 0.000000e+00 : f32
    %198 = vector.broadcast %cst_69 : f32 to vector<5x128xf32>
    %199 = arith.cmpf oge, %169, %198 : vector<5x128xf32>
    %cst_70 = arith.constant 0.000000e+00 : f32
    %200 = vector.broadcast %cst_70 : f32 to vector<5x128xf32>
    %201 = arith.subf %200, %197 : vector<5x128xf32>
    %202 = arith.select %199, %197, %201 : vector<5x128xi1>, vector<5x128xf32>
    %cst_71 = arith.constant 1.000000e+00 : f32
    %203 = vector.broadcast %cst_71 : f32 to vector<5x128xf32>
    %204 = arith.addf %203, %202 : vector<5x128xf32>
    %205 = arith.mulf %167, %204 : vector<5x128xf32>
    %206 = arith.truncf %205 : vector<5x128xf32> to vector<5x128xbf16>
    %c0_72 = arith.constant 0 : index
    %c0_73 = arith.constant 0 : index
    %207 = vector.load %arg12[%c0_72, %c0_73] : memref<128x32xbf16, #tpu.memory_space<vmem>>, vector<128x32xbf16>
    %cst_74 = arith.constant dense<0.000000e+00> : vector<5x32xf32>
    %208 = tpu.matmul %206, %207, %cst_74 {dimension_numbers = #tpu.dot_dimension_numbers<[1], [0], [0], [1], [0, 0, 1, 1], [], []>} : vector<5x128xbf16>, vector<128x32xbf16>, vector<5x32xf32> -> vector<5x32xf32>
    %209 = arith.addf %135, %208 : vector<5x32xf32>
    %c0_75 = arith.constant 0 : index
    %c0_76 = arith.constant 0 : index
    %210 = vector.load %arg13[%c0_75, %c0_76] : memref<1x32xf32, #tpu.memory_space<vmem>>, vector<1x32xf32>
    %211 = vector.broadcast %210 : vector<1x32xf32> to vector<5x32xf32>
    %212 = arith.addf %209, %211 : vector<5x32xf32>
    %c0_77 = arith.constant 0 : index
    %c0_78 = arith.constant 0 : index
    %c0_79 = arith.constant 0 : index
    %213 = vector.load %arg14[%c0_77, %c0_78, %c0_79] : memref<1x5x32xf32, #tpu.memory_space<vmem>>, vector<1x5x32xf32>
    %214 = vector.shape_cast %213 : vector<1x5x32xf32> to vector<5x32xf32>
    %215 = vector.shape_cast %212 : vector<5x32xf32> to vector<1x5x32xf32>
    tpu.vector_store %arg14[%c0_77, %c0_78, %c0_79], %215 {strides = array<i32>} : memref<1x5x32xf32, #tpu.memory_space<vmem>>, vector<1x5x32xf32>,
    return
  }
  func.func @transform_0(%arg0: i32) -> (i32, i32, i32) {
    %c0_i32 = arith.constant 0 : i32
    %c0_i32_0 = arith.constant 0 : i32
    %c0_i32_1 = arith.constant 0 : i32
    return %arg0, %c0_i32, %c0_i32_0 : i32, i32, i32
  }
  func.func @transform_1(%arg0: i32) -> (i32, i32) {
    %c0_i32 = arith.constant 0 : i32
    %c0_i32_0 = arith.constant 0 : i32
    %c0_i32_1 = arith.constant 0 : i32
    return %c0_i32, %c0_i32_0 : i32, i32
  }
  func.func @transform_2(%arg0: i32) -> (i32, i32) {
    %c0_i32 = arith.constant 0 : i32
    %c0_i32_0 = arith.constant 0 : i32
    %c0_i32_1 = arith.constant 0 : i32
    return %c0_i32, %c0_i32_0 : i32, i32
  }
  func.func @transform_3(%arg0: i32) -> (i32, i32) {
    %c0_i32 = arith.constant 0 : i32
    %c0_i32_0 = arith.constant 0 : i32
    %c0_i32_1 = arith.constant 0 : i32
    return %c0_i32, %c0_i32_0 : i32, i32
  }
  func.func @transform_4(%arg0: i32) -> (i32, i32) {
    %c0_i32 = arith.constant 0 : i32
    %c0_i32_0 = arith.constant 0 : i32
    %c0_i32_1 = arith.constant 0 : i32
    return %c0_i32, %c0_i32_0 : i32, i32
  }
  func.func @transform_5(%arg0: i32) -> (i32, i32) {
    %c0_i32 = arith.constant 0 : i32
    %c0_i32_0 = arith.constant 0 : i32
    %c0_i32_1 = arith.constant 0 : i32
    return %c0_i32, %c0_i32_0 : i32, i32
  }
  func.func @transform_6(%arg0: i32) -> (i32, i32) {
    %c0_i32 = arith.constant 0 : i32
    %c0_i32_0 = arith.constant 0 : i32
    %c0_i32_1 = arith.constant 0 : i32
    return %c0_i32, %c0_i32_0 : i32, i32
  }
  func.func @transform_7(%arg0: i32) -> (i32, i32) {
    %c0_i32 = arith.constant 0 : i32
    %c0_i32_0 = arith.constant 0 : i32
    %c0_i32_1 = arith.constant 0 : i32
    return %c0_i32, %c0_i32_0 : i32, i32
  }
  func.func @transform_8(%arg0: i32) -> (i32, i32) {
    %c0_i32 = arith.constant 0 : i32
    %c0_i32_0 = arith.constant 0 : i32
    %c0_i32_1 = arith.constant 0 : i32
    return %c0_i32, %c0_i32_0 : i32, i32
  }
  func.func @transform_9(%arg0: i32) -> (i32, i32) {
    %c0_i32 = arith.constant 0 : i32
    %c0_i32_0 = arith.constant 0 : i32
    %c0_i32_1 = arith.constant 0 : i32
    return %c0_i32, %c0_i32_0 : i32, i32
  }
  func.func @transform_10(%arg0: i32) -> (i32, i32) {
    %c0_i32 = arith.constant 0 : i32
    %c0_i32_0 = arith.constant 0 : i32
    %c0_i32_1 = arith.constant 0 : i32
    return %c0_i32, %c0_i32_0 : i32, i32
  }
  func.func @transform_11(%arg0: i32) -> (i32, i32) {
    %c0_i32 = arith.constant 0 : i32
    %c0_i32_0 = arith.constant 0 : i32
    %c0_i32_1 = arith.constant 0 : i32
    return %c0_i32, %c0_i32_0 : i32, i32
  }
  func.func @transform_12(%arg0: i32) -> (i32, i32) {
    %c0_i32 = arith.constant 0 : i32
    %c0_i32_0 = arith.constant 0 : i32
    %c0_i32_1 = arith.constant 0 : i32
    return %c0_i32, %c0_i32_0 : i32, i32
  }
  func.func @transform_13(%arg0: i32) -> (i32, i32, i32) {
    %c0_i32 = arith.constant 0 : i32
    %c0_i32_0 = arith.constant 0 : i32
    %c0_i32_1 = arith.constant 0 : i32
    return %arg0, %c0_i32, %c0_i32_0 : i32, i32, i32
  }
}

module attributes {stable_mosaic.version = 11 : i64} {
  func.func @_ln_linear_kernel(%arg0: memref<40x32xf32, #tpu.memory_space<vmem>>, %arg1: memref<1x32xf32, #tpu.memory_space<vmem>>, %arg2: memref<1x32xf32, #tpu.memory_space<vmem>>, %arg3: memref<32x32xbf16, #tpu.memory_space<vmem>>, %arg4: memref<1x32xf32, #tpu.memory_space<vmem>>, %arg5: memref<40x32xf32, #tpu.memory_space<vmem>>, %arg6: memref<40x32xf32, #tpu.memory_space<vmem>>) attributes {dimension_semantics = [], scalar_prefetch = 0 : i64, scratch_operands = 0 : i64, tpu.core_type = #tpu.core_type<tc>} {
    %c0 = arith.constant 0 : index
    %c0_0 = arith.constant 0 : index
    %0 = vector.load %arg0[%c0, %c0_0] : memref<40x32xf32, #tpu.memory_space<vmem>>, vector<40x32xf32>
    %c0_1 = arith.constant 0 : index
    %c0_2 = arith.constant 0 : index
    %1 = vector.load %arg1[%c0_1, %c0_2] : memref<1x32xf32, #tpu.memory_space<vmem>>, vector<1x32xf32>
    %c0_3 = arith.constant 0 : index
    %c0_4 = arith.constant 0 : index
    %2 = vector.load %arg2[%c0_3, %c0_4] : memref<1x32xf32, #tpu.memory_space<vmem>>, vector<1x32xf32>
    %cst = arith.constant dense<0.000000e+00> : vector<40xf32>
    %3 = vector.multi_reduction <add>, %0, %cst [1] : vector<40x32xf32> to vector<40xf32>
    %4 = vector.shape_cast %3 : vector<40xf32> to vector<40x1xf32>
    %cst_5 = arith.constant 3.200000e+01 : f32
    %5 = vector.broadcast %cst_5 : f32 to vector<40x1xf32>
    %6 = arith.divf %4, %5 : vector<40x1xf32>
    %7 = vector.broadcast %6 : vector<40x1xf32> to vector<40x32xf32>
    %8 = arith.subf %0, %7 : vector<40x32xf32>
    %9 = arith.mulf %8, %8 : vector<40x32xf32>
    %cst_6 = arith.constant dense<0.000000e+00> : vector<40xf32>
    %10 = vector.multi_reduction <add>, %9, %cst_6 [1] : vector<40x32xf32> to vector<40xf32>
    %11 = vector.shape_cast %10 : vector<40xf32> to vector<40x1xf32>
    %cst_7 = arith.constant 3.200000e+01 : f32
    %12 = vector.broadcast %cst_7 : f32 to vector<40x1xf32>
    %13 = arith.divf %11, %12 : vector<40x1xf32>
    %14 = vector.broadcast %6 : vector<40x1xf32> to vector<40x32xf32>
    %15 = arith.subf %0, %14 : vector<40x32xf32>
    %cst_8 = arith.constant 9.99999974E-6 : f32
    %16 = vector.broadcast %cst_8 : f32 to vector<40x1xf32>
    %17 = arith.addf %13, %16 : vector<40x1xf32>
    %18 = math.rsqrt %17 : vector<40x1xf32>
    %19 = vector.broadcast %18 : vector<40x1xf32> to vector<40x32xf32>
    %20 = arith.mulf %15, %19 : vector<40x32xf32>
    %21 = vector.broadcast %1 : vector<1x32xf32> to vector<40x32xf32>
    %22 = arith.mulf %20, %21 : vector<40x32xf32>
    %23 = vector.broadcast %2 : vector<1x32xf32> to vector<40x32xf32>
    %24 = arith.addf %22, %23 : vector<40x32xf32>
    %25 = arith.truncf %24 : vector<40x32xf32> to vector<40x32xbf16>
    %c0_9 = arith.constant 0 : index
    %c0_10 = arith.constant 0 : index
    %26 = vector.load %arg3[%c0_9, %c0_10] : memref<32x32xbf16, #tpu.memory_space<vmem>>, vector<32x32xbf16>
    %cst_11 = arith.constant dense<0.000000e+00> : vector<40x32xf32>
    %27 = tpu.matmul %25, %26, %cst_11 {dimension_numbers = #tpu.dot_dimension_numbers<[1], [0], [0], [1], [0, 0, 1, 1], [], []>} : vector<40x32xbf16>, vector<32x32xbf16>, vector<40x32xf32> -> vector<40x32xf32>
    %c0_12 = arith.constant 0 : index
    %c0_13 = arith.constant 0 : index
    %28 = vector.load %arg4[%c0_12, %c0_13] : memref<1x32xf32, #tpu.memory_space<vmem>>, vector<1x32xf32>
    %29 = vector.broadcast %28 : vector<1x32xf32> to vector<40x32xf32>
    %30 = arith.addf %27, %29 : vector<40x32xf32>
    %c0_14 = arith.constant 0 : index
    %c0_15 = arith.constant 0 : index
    %31 = vector.load %arg5[%c0_14, %c0_15] : memref<40x32xf32, #tpu.memory_space<vmem>>, vector<40x32xf32>
    %32 = arith.addf %30, %31 : vector<40x32xf32>
    %c0_16 = arith.constant 0 : index
    %c0_17 = arith.constant 0 : index
    %33 = vector.load %arg6[%c0_16, %c0_17] : memref<40x32xf32, #tpu.memory_space<vmem>>, vector<40x32xf32>
    tpu.vector_store %arg6[%c0_16, %c0_17], %32 {strides = array<i32>} : memref<40x32xf32, #tpu.memory_space<vmem>>, vector<40x32xf32>,
    return
  }
}

module attributes {stable_mosaic.version = 11 : i64} {
  func.func @_linear_kernel(%arg0: memref<32x288xf32, #tpu.memory_space<vmem>>, %arg1: memref<288x128xbf16, #tpu.memory_space<vmem>>, %arg2: memref<1x128xf32, #tpu.memory_space<vmem>>, %arg3: memref<32x128xf32, #tpu.memory_space<vmem>>) attributes {dimension_semantics = [], scalar_prefetch = 0 : i64, scratch_operands = 0 : i64, tpu.core_type = #tpu.core_type<tc>} {
    %c0 = arith.constant 0 : index
    %c0_0 = arith.constant 0 : index
    %0 = vector.load %arg0[%c0, %c0_0] : memref<32x288xf32, #tpu.memory_space<vmem>>, vector<32x288xf32>
    %1 = arith.truncf %0 : vector<32x288xf32> to vector<32x288xbf16>
    %c0_1 = arith.constant 0 : index
    %c0_2 = arith.constant 0 : index
    %2 = vector.load %arg1[%c0_1, %c0_2] : memref<288x128xbf16, #tpu.memory_space<vmem>>, vector<288x128xbf16>
    %cst = arith.constant dense<0.000000e+00> : vector<32x128xf32>
    %3 = tpu.matmul %1, %2, %cst {dimension_numbers = #tpu.dot_dimension_numbers<[1], [0], [0], [1], [0, 0, 1, 1], [], []>} : vector<32x288xbf16>, vector<288x128xbf16>, vector<32x128xf32> -> vector<32x128xf32>
    %c0_3 = arith.constant 0 : index
    %c0_4 = arith.constant 0 : index
    %4 = vector.load %arg2[%c0_3, %c0_4] : memref<1x128xf32, #tpu.memory_space<vmem>>, vector<1x128xf32>
    %5 = vector.broadcast %4 : vector<1x128xf32> to vector<32x128xf32>
    %6 = arith.addf %3, %5 : vector<32x128xf32>
    %c0_5 = arith.constant 0 : index
    %c0_6 = arith.constant 0 : index
    %7 = vector.load %arg3[%c0_5, %c0_6] : memref<32x128xf32, #tpu.memory_space<vmem>>, vector<32x128xf32>
    tpu.vector_store %arg3[%c0_5, %c0_6], %6 {strides = array<i32>} : memref<32x128xf32, #tpu.memory_space<vmem>>, vector<32x128xf32>,
    return
  }
}

module attributes {stable_mosaic.version = 11 : i64} {
  func.func @_block_kernel(%arg0: i32, %arg1: memref<1x17x32xf32, #tpu.memory_space<vmem>>, %arg2: memref<1x32xf32, #tpu.memory_space<vmem>>, %arg3: memref<1x32xf32, #tpu.memory_space<vmem>>, %arg4: memref<32x96xbf16, #tpu.memory_space<vmem>>, %arg5: memref<1x96xf32, #tpu.memory_space<vmem>>, %arg6: memref<32x32xbf16, #tpu.memory_space<vmem>>, %arg7: memref<1x32xf32, #tpu.memory_space<vmem>>, %arg8: memref<1x32xf32, #tpu.memory_space<vmem>>, %arg9: memref<1x32xf32, #tpu.memory_space<vmem>>, %arg10: memref<32x128xbf16, #tpu.memory_space<vmem>>, %arg11: memref<1x128xf32, #tpu.memory_space<vmem>>, %arg12: memref<128x32xbf16, #tpu.memory_space<vmem>>, %arg13: memref<1x32xf32, #tpu.memory_space<vmem>>, %arg14: memref<1x17x32xf32, #tpu.memory_space<vmem>>) attributes {dimension_semantics = [#tpu.dimension_semantics<parallel>], iteration_bounds = array<i64: 8>, scalar_prefetch = 0 : i64, scratch_operands = 0 : i64, tpu.core_type = #tpu.core_type<tc>, window_params = [{transform_indices = @transform_0, window_bounds = array<i64: 1, 17, 32>}, {pipeline_mode = #tpu.pipeline_mode<synchronous>, transform_indices = @transform_1, window_bounds = array<i64: 1, 32>}, {pipeline_mode = #tpu.pipeline_mode<synchronous>, transform_indices = @transform_2, window_bounds = array<i64: 1, 32>}, {pipeline_mode = #tpu.pipeline_mode<synchronous>, transform_indices = @transform_3, window_bounds = array<i64: 32, 96>}, {pipeline_mode = #tpu.pipeline_mode<synchronous>, transform_indices = @transform_4, window_bounds = array<i64: 1, 96>}, {pipeline_mode = #tpu.pipeline_mode<synchronous>, transform_indices = @transform_5, window_bounds = array<i64: 32, 32>}, {pipeline_mode = #tpu.pipeline_mode<synchronous>, transform_indices = @transform_6, window_bounds = array<i64: 1, 32>}, {pipeline_mode = #tpu.pipeline_mode<synchronous>, transform_indices = @transform_7, window_bounds = array<i64: 1, 32>}, {pipeline_mode = #tpu.pipeline_mode<synchronous>, transform_indices = @transform_8, window_bounds = array<i64: 1, 32>}, {pipeline_mode = #tpu.pipeline_mode<synchronous>, transform_indices = @transform_9, window_bounds = array<i64: 32, 128>}, {pipeline_mode = #tpu.pipeline_mode<synchronous>, transform_indices = @transform_10, window_bounds = array<i64: 1, 128>}, {pipeline_mode = #tpu.pipeline_mode<synchronous>, transform_indices = @transform_11, window_bounds = array<i64: 128, 32>}, {pipeline_mode = #tpu.pipeline_mode<synchronous>, transform_indices = @transform_12, window_bounds = array<i64: 1, 32>}, {transform_indices = @transform_13, window_bounds = array<i64: 1, 17, 32>}]} {
    %c0 = arith.constant 0 : index
    %c0_0 = arith.constant 0 : index
    %c0_1 = arith.constant 0 : index
    %0 = vector.load %arg1[%c0, %c0_0, %c0_1] : memref<1x17x32xf32, #tpu.memory_space<vmem>>, vector<1x17x32xf32>
    %1 = vector.shape_cast %0 : vector<1x17x32xf32> to vector<17x32xf32>
    %c0_2 = arith.constant 0 : index
    %c0_3 = arith.constant 0 : index
    %2 = vector.load %arg2[%c0_2, %c0_3] : memref<1x32xf32, #tpu.memory_space<vmem>>, vector<1x32xf32>
    %c0_4 = arith.constant 0 : index
    %c0_5 = arith.constant 0 : index
    %3 = vector.load %arg3[%c0_4, %c0_5] : memref<1x32xf32, #tpu.memory_space<vmem>>, vector<1x32xf32>
    %cst = arith.constant dense<0.000000e+00> : vector<17xf32>
    %4 = vector.multi_reduction <add>, %1, %cst [1] : vector<17x32xf32> to vector<17xf32>
    %5 = vector.shape_cast %4 : vector<17xf32> to vector<17x1xf32>
    %cst_6 = arith.constant 3.200000e+01 : f32
    %6 = vector.broadcast %cst_6 : f32 to vector<17x1xf32>
    %7 = arith.divf %5, %6 : vector<17x1xf32>
    %8 = vector.broadcast %7 : vector<17x1xf32> to vector<17x32xf32>
    %9 = arith.subf %1, %8 : vector<17x32xf32>
    %10 = arith.mulf %9, %9 : vector<17x32xf32>
    %cst_7 = arith.constant dense<0.000000e+00> : vector<17xf32>
    %11 = vector.multi_reduction <add>, %10, %cst_7 [1] : vector<17x32xf32> to vector<17xf32>
    %12 = vector.shape_cast %11 : vector<17xf32> to vector<17x1xf32>
    %cst_8 = arith.constant 3.200000e+01 : f32
    %13 = vector.broadcast %cst_8 : f32 to vector<17x1xf32>
    %14 = arith.divf %12, %13 : vector<17x1xf32>
    %15 = vector.broadcast %7 : vector<17x1xf32> to vector<17x32xf32>
    %16 = arith.subf %1, %15 : vector<17x32xf32>
    %cst_9 = arith.constant 9.99999974E-6 : f32
    %17 = vector.broadcast %cst_9 : f32 to vector<17x1xf32>
    %18 = arith.addf %14, %17 : vector<17x1xf32>
    %19 = math.rsqrt %18 : vector<17x1xf32>
    %20 = vector.broadcast %19 : vector<17x1xf32> to vector<17x32xf32>
    %21 = arith.mulf %16, %20 : vector<17x32xf32>
    %22 = vector.broadcast %2 : vector<1x32xf32> to vector<17x32xf32>
    %23 = arith.mulf %21, %22 : vector<17x32xf32>
    %24 = vector.broadcast %3 : vector<1x32xf32> to vector<17x32xf32>
    %25 = arith.addf %23, %24 : vector<17x32xf32>
    %26 = arith.truncf %25 : vector<17x32xf32> to vector<17x32xbf16>
    %c0_10 = arith.constant 0 : index
    %c0_11 = arith.constant 0 : index
    %27 = vector.load %arg4[%c0_10, %c0_11] : memref<32x96xbf16, #tpu.memory_space<vmem>>, vector<32x96xbf16>
    %cst_12 = arith.constant dense<0.000000e+00> : vector<17x96xf32>
    %28 = tpu.matmul %26, %27, %cst_12 {dimension_numbers = #tpu.dot_dimension_numbers<[1], [0], [0], [1], [0, 0, 1, 1], [], []>} : vector<17x32xbf16>, vector<32x96xbf16>, vector<17x96xf32> -> vector<17x96xf32>
    %c0_13 = arith.constant 0 : index
    %c0_14 = arith.constant 0 : index
    %29 = vector.load %arg5[%c0_13, %c0_14] : memref<1x96xf32, #tpu.memory_space<vmem>>, vector<1x96xf32>
    %30 = vector.broadcast %29 : vector<1x96xf32> to vector<17x96xf32>
    %31 = arith.addf %28, %30 : vector<17x96xf32>
    %c0_15 = arith.constant 0 : index
    %c0_16 = arith.constant 0 : index
    %32 = vector.load %arg6[%c0_15, %c0_16] : memref<32x32xbf16, #tpu.memory_space<vmem>>, vector<32x32xbf16>
    %33 = vector.extract_strided_slice %31 {offsets = [0, 0], sizes = [17, 8], strides = [1, 1]} : vector<17x96xf32> to vector<17x8xf32>
    %34 = vector.extract_strided_slice %31 {offsets = [0, 32], sizes = [17, 8], strides = [1, 1]} : vector<17x96xf32> to vector<17x8xf32>
    %35 = vector.extract_strided_slice %31 {offsets = [0, 64], sizes = [17, 8], strides = [1, 1]} : vector<17x96xf32> to vector<17x8xf32>
    %36 = arith.truncf %33 : vector<17x8xf32> to vector<17x8xbf16>
    %37 = arith.truncf %34 : vector<17x8xf32> to vector<17x8xbf16>
    %cst_17 = arith.constant dense<0.000000e+00> : vector<17x17xf32>
    %38 = tpu.matmul %36, %37, %cst_17 {dimension_numbers = #tpu.dot_dimension_numbers<[1], [1], [0], [0], [0, 0, 1, 0], [], []>} : vector<17x8xbf16>, vector<17x8xbf16>, vector<17x17xf32> -> vector<17x17xf32>
    %cst_18 = arith.constant 0.353553385 : f32
    %39 = vector.broadcast %cst_18 : f32 to vector<17x17xf32>
    %40 = arith.mulf %38, %39 : vector<17x17xf32>
    %cst_19 = arith.constant dense<0xFF800000> : vector<17xf32>
    %41 = vector.multi_reduction <maximumf>, %40, %cst_19 [1] : vector<17x17xf32> to vector<17xf32>
    %42 = vector.shape_cast %41 : vector<17xf32> to vector<17x1xf32>
    %43 = vector.broadcast %42 : vector<17x1xf32> to vector<17x17xf32>
    %44 = arith.subf %40, %43 : vector<17x17xf32>
    %45 = math.exp %44 : vector<17x17xf32>
    %cst_20 = arith.constant dense<0.000000e+00> : vector<17xf32>
    %46 = vector.multi_reduction <add>, %45, %cst_20 [1] : vector<17x17xf32> to vector<17xf32>
    %47 = vector.shape_cast %46 : vector<17xf32> to vector<17x1xf32>
    %48 = tpu.reciprocal %47 {approx = true} : vector<17x1xf32> -> vector<17x1xf32>
    %49 = vector.broadcast %48 : vector<17x1xf32> to vector<17x17xf32>
    %50 = arith.mulf %45, %49 : vector<17x17xf32>
    %51 = arith.truncf %50 : vector<17x17xf32> to vector<17x17xbf16>
    %52 = arith.truncf %35 : vector<17x8xf32> to vector<17x8xbf16>
    %cst_21 = arith.constant dense<0.000000e+00> : vector<17x8xf32>
    %53 = tpu.matmul %51, %52, %cst_21 {dimension_numbers = #tpu.dot_dimension_numbers<[1], [0], [0], [1], [0, 0, 1, 1], [], []>} : vector<17x17xbf16>, vector<17x8xbf16>, vector<17x8xf32> -> vector<17x8xf32>
    %54 = arith.truncf %53 : vector<17x8xf32> to vector<17x8xbf16>
    %55 = vector.extract_strided_slice %32 {offsets = [0, 0], sizes = [8, 32], strides = [1, 1]} : vector<32x32xbf16> to vector<8x32xbf16>
    %cst_22 = arith.constant dense<0.000000e+00> : vector<17x32xf32>
    %56 = tpu.matmul %54, %55, %cst_22 {dimension_numbers = #tpu.dot_dimension_numbers<[1], [0], [0], [1], [0, 0, 1, 1], [], []>} : vector<17x8xbf16>, vector<8x32xbf16>, vector<17x32xf32> -> vector<17x32xf32>
    %57 = vector.extract_strided_slice %31 {offsets = [0, 8], sizes = [17, 8], strides = [1, 1]} : vector<17x96xf32> to vector<17x8xf32>
    %58 = vector.extract_strided_slice %31 {offsets = [0, 40], sizes = [17, 8], strides = [1, 1]} : vector<17x96xf32> to vector<17x8xf32>
    %59 = vector.extract_strided_slice %31 {offsets = [0, 72], sizes = [17, 8], strides = [1, 1]} : vector<17x96xf32> to vector<17x8xf32>
    %60 = arith.truncf %57 : vector<17x8xf32> to vector<17x8xbf16>
    %61 = arith.truncf %58 : vector<17x8xf32> to vector<17x8xbf16>
    %cst_23 = arith.constant dense<0.000000e+00> : vector<17x17xf32>
    %62 = tpu.matmul %60, %61, %cst_23 {dimension_numbers = #tpu.dot_dimension_numbers<[1], [1], [0], [0], [0, 0, 1, 0], [], []>} : vector<17x8xbf16>, vector<17x8xbf16>, vector<17x17xf32> -> vector<17x17xf32>
    %cst_24 = arith.constant 0.353553385 : f32
    %63 = vector.broadcast %cst_24 : f32 to vector<17x17xf32>
    %64 = arith.mulf %62, %63 : vector<17x17xf32>
    %cst_25 = arith.constant dense<0xFF800000> : vector<17xf32>
    %65 = vector.multi_reduction <maximumf>, %64, %cst_25 [1] : vector<17x17xf32> to vector<17xf32>
    %66 = vector.shape_cast %65 : vector<17xf32> to vector<17x1xf32>
    %67 = vector.broadcast %66 : vector<17x1xf32> to vector<17x17xf32>
    %68 = arith.subf %64, %67 : vector<17x17xf32>
    %69 = math.exp %68 : vector<17x17xf32>
    %cst_26 = arith.constant dense<0.000000e+00> : vector<17xf32>
    %70 = vector.multi_reduction <add>, %69, %cst_26 [1] : vector<17x17xf32> to vector<17xf32>
    %71 = vector.shape_cast %70 : vector<17xf32> to vector<17x1xf32>
    %72 = tpu.reciprocal %71 {approx = true} : vector<17x1xf32> -> vector<17x1xf32>
    %73 = vector.broadcast %72 : vector<17x1xf32> to vector<17x17xf32>
    %74 = arith.mulf %69, %73 : vector<17x17xf32>
    %75 = arith.truncf %74 : vector<17x17xf32> to vector<17x17xbf16>
    %76 = arith.truncf %59 : vector<17x8xf32> to vector<17x8xbf16>
    %cst_27 = arith.constant dense<0.000000e+00> : vector<17x8xf32>
    %77 = tpu.matmul %75, %76, %cst_27 {dimension_numbers = #tpu.dot_dimension_numbers<[1], [0], [0], [1], [0, 0, 1, 1], [], []>} : vector<17x17xbf16>, vector<17x8xbf16>, vector<17x8xf32> -> vector<17x8xf32>
    %78 = arith.truncf %77 : vector<17x8xf32> to vector<17x8xbf16>
    %79 = vector.extract_strided_slice %32 {offsets = [8, 0], sizes = [8, 32], strides = [1, 1]} : vector<32x32xbf16> to vector<8x32xbf16>
    %cst_28 = arith.constant dense<0.000000e+00> : vector<17x32xf32>
    %80 = tpu.matmul %78, %79, %cst_28 {dimension_numbers = #tpu.dot_dimension_numbers<[1], [0], [0], [1], [0, 0, 1, 1], [], []>} : vector<17x8xbf16>, vector<8x32xbf16>, vector<17x32xf32> -> vector<17x32xf32>
    %81 = arith.addf %56, %80 : vector<17x32xf32>
    %82 = vector.extract_strided_slice %31 {offsets = [0, 16], sizes = [17, 8], strides = [1, 1]} : vector<17x96xf32> to vector<17x8xf32>
    %83 = vector.extract_strided_slice %31 {offsets = [0, 48], sizes = [17, 8], strides = [1, 1]} : vector<17x96xf32> to vector<17x8xf32>
    %84 = vector.extract_strided_slice %31 {offsets = [0, 80], sizes = [17, 8], strides = [1, 1]} : vector<17x96xf32> to vector<17x8xf32>
    %85 = arith.truncf %82 : vector<17x8xf32> to vector<17x8xbf16>
    %86 = arith.truncf %83 : vector<17x8xf32> to vector<17x8xbf16>
    %cst_29 = arith.constant dense<0.000000e+00> : vector<17x17xf32>
    %87 = tpu.matmul %85, %86, %cst_29 {dimension_numbers = #tpu.dot_dimension_numbers<[1], [1], [0], [0], [0, 0, 1, 0], [], []>} : vector<17x8xbf16>, vector<17x8xbf16>, vector<17x17xf32> -> vector<17x17xf32>
    %cst_30 = arith.constant 0.353553385 : f32
    %88 = vector.broadcast %cst_30 : f32 to vector<17x17xf32>
    %89 = arith.mulf %87, %88 : vector<17x17xf32>
    %cst_31 = arith.constant dense<0xFF800000> : vector<17xf32>
    %90 = vector.multi_reduction <maximumf>, %89, %cst_31 [1] : vector<17x17xf32> to vector<17xf32>
    %91 = vector.shape_cast %90 : vector<17xf32> to vector<17x1xf32>
    %92 = vector.broadcast %91 : vector<17x1xf32> to vector<17x17xf32>
    %93 = arith.subf %89, %92 : vector<17x17xf32>
    %94 = math.exp %93 : vector<17x17xf32>
    %cst_32 = arith.constant dense<0.000000e+00> : vector<17xf32>
    %95 = vector.multi_reduction <add>, %94, %cst_32 [1] : vector<17x17xf32> to vector<17xf32>
    %96 = vector.shape_cast %95 : vector<17xf32> to vector<17x1xf32>
    %97 = tpu.reciprocal %96 {approx = true} : vector<17x1xf32> -> vector<17x1xf32>
    %98 = vector.broadcast %97 : vector<17x1xf32> to vector<17x17xf32>
    %99 = arith.mulf %94, %98 : vector<17x17xf32>
    %100 = arith.truncf %99 : vector<17x17xf32> to vector<17x17xbf16>
    %101 = arith.truncf %84 : vector<17x8xf32> to vector<17x8xbf16>
    %cst_33 = arith.constant dense<0.000000e+00> : vector<17x8xf32>
    %102 = tpu.matmul %100, %101, %cst_33 {dimension_numbers = #tpu.dot_dimension_numbers<[1], [0], [0], [1], [0, 0, 1, 1], [], []>} : vector<17x17xbf16>, vector<17x8xbf16>, vector<17x8xf32> -> vector<17x8xf32>
    %103 = arith.truncf %102 : vector<17x8xf32> to vector<17x8xbf16>
    %104 = vector.extract_strided_slice %32 {offsets = [16, 0], sizes = [8, 32], strides = [1, 1]} : vector<32x32xbf16> to vector<8x32xbf16>
    %cst_34 = arith.constant dense<0.000000e+00> : vector<17x32xf32>
    %105 = tpu.matmul %103, %104, %cst_34 {dimension_numbers = #tpu.dot_dimension_numbers<[1], [0], [0], [1], [0, 0, 1, 1], [], []>} : vector<17x8xbf16>, vector<8x32xbf16>, vector<17x32xf32> -> vector<17x32xf32>
    %106 = arith.addf %81, %105 : vector<17x32xf32>
    %107 = vector.extract_strided_slice %31 {offsets = [0, 24], sizes = [17, 8], strides = [1, 1]} : vector<17x96xf32> to vector<17x8xf32>
    %108 = vector.extract_strided_slice %31 {offsets = [0, 56], sizes = [17, 8], strides = [1, 1]} : vector<17x96xf32> to vector<17x8xf32>
    %109 = vector.extract_strided_slice %31 {offsets = [0, 88], sizes = [17, 8], strides = [1, 1]} : vector<17x96xf32> to vector<17x8xf32>
    %110 = arith.truncf %107 : vector<17x8xf32> to vector<17x8xbf16>
    %111 = arith.truncf %108 : vector<17x8xf32> to vector<17x8xbf16>
    %cst_35 = arith.constant dense<0.000000e+00> : vector<17x17xf32>
    %112 = tpu.matmul %110, %111, %cst_35 {dimension_numbers = #tpu.dot_dimension_numbers<[1], [1], [0], [0], [0, 0, 1, 0], [], []>} : vector<17x8xbf16>, vector<17x8xbf16>, vector<17x17xf32> -> vector<17x17xf32>
    %cst_36 = arith.constant 0.353553385 : f32
    %113 = vector.broadcast %cst_36 : f32 to vector<17x17xf32>
    %114 = arith.mulf %112, %113 : vector<17x17xf32>
    %cst_37 = arith.constant dense<0xFF800000> : vector<17xf32>
    %115 = vector.multi_reduction <maximumf>, %114, %cst_37 [1] : vector<17x17xf32> to vector<17xf32>
    %116 = vector.shape_cast %115 : vector<17xf32> to vector<17x1xf32>
    %117 = vector.broadcast %116 : vector<17x1xf32> to vector<17x17xf32>
    %118 = arith.subf %114, %117 : vector<17x17xf32>
    %119 = math.exp %118 : vector<17x17xf32>
    %cst_38 = arith.constant dense<0.000000e+00> : vector<17xf32>
    %120 = vector.multi_reduction <add>, %119, %cst_38 [1] : vector<17x17xf32> to vector<17xf32>
    %121 = vector.shape_cast %120 : vector<17xf32> to vector<17x1xf32>
    %122 = tpu.reciprocal %121 {approx = true} : vector<17x1xf32> -> vector<17x1xf32>
    %123 = vector.broadcast %122 : vector<17x1xf32> to vector<17x17xf32>
    %124 = arith.mulf %119, %123 : vector<17x17xf32>
    %125 = arith.truncf %124 : vector<17x17xf32> to vector<17x17xbf16>
    %126 = arith.truncf %109 : vector<17x8xf32> to vector<17x8xbf16>
    %cst_39 = arith.constant dense<0.000000e+00> : vector<17x8xf32>
    %127 = tpu.matmul %125, %126, %cst_39 {dimension_numbers = #tpu.dot_dimension_numbers<[1], [0], [0], [1], [0, 0, 1, 1], [], []>} : vector<17x17xbf16>, vector<17x8xbf16>, vector<17x8xf32> -> vector<17x8xf32>
    %128 = arith.truncf %127 : vector<17x8xf32> to vector<17x8xbf16>
    %129 = vector.extract_strided_slice %32 {offsets = [24, 0], sizes = [8, 32], strides = [1, 1]} : vector<32x32xbf16> to vector<8x32xbf16>
    %cst_40 = arith.constant dense<0.000000e+00> : vector<17x32xf32>
    %130 = tpu.matmul %128, %129, %cst_40 {dimension_numbers = #tpu.dot_dimension_numbers<[1], [0], [0], [1], [0, 0, 1, 1], [], []>} : vector<17x8xbf16>, vector<8x32xbf16>, vector<17x32xf32> -> vector<17x32xf32>
    %131 = arith.addf %106, %130 : vector<17x32xf32>
    %132 = arith.addf %1, %131 : vector<17x32xf32>
    %c0_41 = arith.constant 0 : index
    %c0_42 = arith.constant 0 : index
    %133 = vector.load %arg7[%c0_41, %c0_42] : memref<1x32xf32, #tpu.memory_space<vmem>>, vector<1x32xf32>
    %134 = vector.broadcast %133 : vector<1x32xf32> to vector<17x32xf32>
    %135 = arith.addf %132, %134 : vector<17x32xf32>
    %c0_43 = arith.constant 0 : index
    %c0_44 = arith.constant 0 : index
    %136 = vector.load %arg8[%c0_43, %c0_44] : memref<1x32xf32, #tpu.memory_space<vmem>>, vector<1x32xf32>
    %c0_45 = arith.constant 0 : index
    %c0_46 = arith.constant 0 : index
    %137 = vector.load %arg9[%c0_45, %c0_46] : memref<1x32xf32, #tpu.memory_space<vmem>>, vector<1x32xf32>
    %cst_47 = arith.constant dense<0.000000e+00> : vector<17xf32>
    %138 = vector.multi_reduction <add>, %135, %cst_47 [1] : vector<17x32xf32> to vector<17xf32>
    %139 = vector.shape_cast %138 : vector<17xf32> to vector<17x1xf32>
    %cst_48 = arith.constant 3.200000e+01 : f32
    %140 = vector.broadcast %cst_48 : f32 to vector<17x1xf32>
    %141 = arith.divf %139, %140 : vector<17x1xf32>
    %142 = vector.broadcast %141 : vector<17x1xf32> to vector<17x32xf32>
    %143 = arith.subf %135, %142 : vector<17x32xf32>
    %144 = arith.mulf %143, %143 : vector<17x32xf32>
    %cst_49 = arith.constant dense<0.000000e+00> : vector<17xf32>
    %145 = vector.multi_reduction <add>, %144, %cst_49 [1] : vector<17x32xf32> to vector<17xf32>
    %146 = vector.shape_cast %145 : vector<17xf32> to vector<17x1xf32>
    %cst_50 = arith.constant 3.200000e+01 : f32
    %147 = vector.broadcast %cst_50 : f32 to vector<17x1xf32>
    %148 = arith.divf %146, %147 : vector<17x1xf32>
    %149 = vector.broadcast %141 : vector<17x1xf32> to vector<17x32xf32>
    %150 = arith.subf %135, %149 : vector<17x32xf32>
    %cst_51 = arith.constant 9.99999974E-6 : f32
    %151 = vector.broadcast %cst_51 : f32 to vector<17x1xf32>
    %152 = arith.addf %148, %151 : vector<17x1xf32>
    %153 = math.rsqrt %152 : vector<17x1xf32>
    %154 = vector.broadcast %153 : vector<17x1xf32> to vector<17x32xf32>
    %155 = arith.mulf %150, %154 : vector<17x32xf32>
    %156 = vector.broadcast %136 : vector<1x32xf32> to vector<17x32xf32>
    %157 = arith.mulf %155, %156 : vector<17x32xf32>
    %158 = vector.broadcast %137 : vector<1x32xf32> to vector<17x32xf32>
    %159 = arith.addf %157, %158 : vector<17x32xf32>
    %160 = arith.truncf %159 : vector<17x32xf32> to vector<17x32xbf16>
    %c0_52 = arith.constant 0 : index
    %c0_53 = arith.constant 0 : index
    %161 = vector.load %arg10[%c0_52, %c0_53] : memref<32x128xbf16, #tpu.memory_space<vmem>>, vector<32x128xbf16>
    %cst_54 = arith.constant dense<0.000000e+00> : vector<17x128xf32>
    %162 = tpu.matmul %160, %161, %cst_54 {dimension_numbers = #tpu.dot_dimension_numbers<[1], [0], [0], [1], [0, 0, 1, 1], [], []>} : vector<17x32xbf16>, vector<32x128xbf16>, vector<17x128xf32> -> vector<17x128xf32>
    %c0_55 = arith.constant 0 : index
    %c0_56 = arith.constant 0 : index
    %163 = vector.load %arg11[%c0_55, %c0_56] : memref<1x128xf32, #tpu.memory_space<vmem>>, vector<1x128xf32>
    %164 = vector.broadcast %163 : vector<1x128xf32> to vector<17x128xf32>
    %165 = arith.addf %162, %164 : vector<17x128xf32>
    %cst_57 = arith.constant 5.000000e-01 : f32
    %166 = vector.broadcast %cst_57 : f32 to vector<17x128xf32>
    %167 = arith.mulf %166, %165 : vector<17x128xf32>
    %cst_58 = arith.constant 0.707106769 : f32
    %168 = vector.broadcast %cst_58 : f32 to vector<17x128xf32>
    %169 = arith.mulf %165, %168 : vector<17x128xf32>
    %170 = math.absf %169 : vector<17x128xf32>
    %cst_59 = arith.constant 0.327591091 : f32
    %171 = vector.broadcast %cst_59 : f32 to vector<17x128xf32>
    %172 = arith.mulf %171, %170 : vector<17x128xf32>
    %cst_60 = arith.constant 1.000000e+00 : f32
    %173 = vector.broadcast %cst_60 : f32 to vector<17x128xf32>
    %174 = arith.addf %173, %172 : vector<17x128xf32>
    %cst_61 = arith.constant 1.000000e+00 : f32
    %175 = vector.broadcast %cst_61 : f32 to vector<17x128xf32>
    %176 = arith.divf %175, %174 : vector<17x128xf32>
    %cst_62 = arith.constant 1.06140542 : f32
    %177 = vector.broadcast %cst_62 : f32 to vector<17x128xf32>
    %178 = arith.mulf %177, %176 : vector<17x128xf32>
    %cst_63 = arith.constant -1.45315206 : f32
    %179 = vector.broadcast %cst_63 : f32 to vector<17x128xf32>
    %180 = arith.addf %178, %179 : vector<17x128xf32>
    %181 = arith.mulf %180, %176 : vector<17x128xf32>
    %cst_64 = arith.constant 1.42141378 : f32
    %182 = vector.broadcast %cst_64 : f32 to vector<17x128xf32>
    %183 = arith.addf %181, %182 : vector<17x128xf32>
    %184 = arith.mulf %183, %176 : vector<17x128xf32>
    %cst_65 = arith.constant -0.284496725 : f32
    %185 = vector.broadcast %cst_65 : f32 to vector<17x128xf32>
    %186 = arith.addf %184, %185 : vector<17x128xf32>
    %187 = arith.mulf %186, %176 : vector<17x128xf32>
    %cst_66 = arith.constant 0.254829586 : f32
    %188 = vector.broadcast %cst_66 : f32 to vector<17x128xf32>
    %189 = arith.addf %187, %188 : vector<17x128xf32>
    %190 = arith.mulf %189, %176 : vector<17x128xf32>
    %cst_67 = arith.constant 0.000000e+00 : f32
    %191 = vector.broadcast %cst_67 : f32 to vector<17x128xf32>
    %192 = arith.subf %191, %170 : vector<17x128xf32>
    %193 = arith.mulf %192, %170 : vector<17x128xf32>
    %194 = math.exp %193 : vector<17x128xf32>
    %195 = arith.mulf %190, %194 : vector<17x128xf32>
    %cst_68 = arith.constant 1.000000e+00 : f32
    %196 = vector.broadcast %cst_68 : f32 to vector<17x128xf32>
    %197 = arith.subf %196, %195 : vector<17x128xf32>
    %cst_69 = arith.constant 0.000000e+00 : f32
    %198 = vector.broadcast %cst_69 : f32 to vector<17x128xf32>
    %199 = arith.cmpf oge, %169, %198 : vector<17x128xf32>
    %cst_70 = arith.constant 0.000000e+00 : f32
    %200 = vector.broadcast %cst_70 : f32 to vector<17x128xf32>
    %201 = arith.subf %200, %197 : vector<17x128xf32>
    %202 = arith.select %199, %197, %201 : vector<17x128xi1>, vector<17x128xf32>
    %cst_71 = arith.constant 1.000000e+00 : f32
    %203 = vector.broadcast %cst_71 : f32 to vector<17x128xf32>
    %204 = arith.addf %203, %202 : vector<17x128xf32>
    %205 = arith.mulf %167, %204 : vector<17x128xf32>
    %206 = arith.truncf %205 : vector<17x128xf32> to vector<17x128xbf16>
    %c0_72 = arith.constant 0 : index
    %c0_73 = arith.constant 0 : index
    %207 = vector.load %arg12[%c0_72, %c0_73] : memref<128x32xbf16, #tpu.memory_space<vmem>>, vector<128x32xbf16>
    %cst_74 = arith.constant dense<0.000000e+00> : vector<17x32xf32>
    %208 = tpu.matmul %206, %207, %cst_74 {dimension_numbers = #tpu.dot_dimension_numbers<[1], [0], [0], [1], [0, 0, 1, 1], [], []>} : vector<17x128xbf16>, vector<128x32xbf16>, vector<17x32xf32> -> vector<17x32xf32>
    %209 = arith.addf %135, %208 : vector<17x32xf32>
    %c0_75 = arith.constant 0 : index
    %c0_76 = arith.constant 0 : index
    %210 = vector.load %arg13[%c0_75, %c0_76] : memref<1x32xf32, #tpu.memory_space<vmem>>, vector<1x32xf32>
    %211 = vector.broadcast %210 : vector<1x32xf32> to vector<17x32xf32>
    %212 = arith.addf %209, %211 : vector<17x32xf32>
    %c0_77 = arith.constant 0 : index
    %c0_78 = arith.constant 0 : index
    %c0_79 = arith.constant 0 : index
    %213 = vector.load %arg14[%c0_77, %c0_78, %c0_79] : memref<1x17x32xf32, #tpu.memory_space<vmem>>, vector<1x17x32xf32>
    %214 = vector.shape_cast %213 : vector<1x17x32xf32> to vector<17x32xf32>
    %215 = vector.shape_cast %212 : vector<17x32xf32> to vector<1x17x32xf32>
    tpu.vector_store %arg14[%c0_77, %c0_78, %c0_79], %215 {strides = array<i32>} : memref<1x17x32xf32, #tpu.memory_space<vmem>>, vector<1x17x32xf32>,
    return
  }
  func.func @transform_0(%arg0: i32) -> (i32, i32, i32) {
    %c0_i32 = arith.constant 0 : i32
    %c0_i32_0 = arith.constant 0 : i32
    %c0_i32_1 = arith.constant 0 : i32
    return %arg0, %c0_i32, %c0_i32_0 : i32, i32, i32
  }
  func.func @transform_1(%arg0: i32) -> (i32, i32) {
    %c0_i32 = arith.constant 0 : i32
    %c0_i32_0 = arith.constant 0 : i32
    %c0_i32_1 = arith.constant 0 : i32
    return %c0_i32, %c0_i32_0 : i32, i32
  }
  func.func @transform_2(%arg0: i32) -> (i32, i32) {
    %c0_i32 = arith.constant 0 : i32
    %c0_i32_0 = arith.constant 0 : i32
    %c0_i32_1 = arith.constant 0 : i32
    return %c0_i32, %c0_i32_0 : i32, i32
  }
  func.func @transform_3(%arg0: i32) -> (i32, i32) {
    %c0_i32 = arith.constant 0 : i32
    %c0_i32_0 = arith.constant 0 : i32
    %c0_i32_1 = arith.constant 0 : i32
    return %c0_i32, %c0_i32_0 : i32, i32
  }
  func.func @transform_4(%arg0: i32) -> (i32, i32) {
    %c0_i32 = arith.constant 0 : i32
    %c0_i32_0 = arith.constant 0 : i32
    %c0_i32_1 = arith.constant 0 : i32
    return %c0_i32, %c0_i32_0 : i32, i32
  }
  func.func @transform_5(%arg0: i32) -> (i32, i32) {
    %c0_i32 = arith.constant 0 : i32
    %c0_i32_0 = arith.constant 0 : i32
    %c0_i32_1 = arith.constant 0 : i32
    return %c0_i32, %c0_i32_0 : i32, i32
  }
  func.func @transform_6(%arg0: i32) -> (i32, i32) {
    %c0_i32 = arith.constant 0 : i32
    %c0_i32_0 = arith.constant 0 : i32
    %c0_i32_1 = arith.constant 0 : i32
    return %c0_i32, %c0_i32_0 : i32, i32
  }
  func.func @transform_7(%arg0: i32) -> (i32, i32) {
    %c0_i32 = arith.constant 0 : i32
    %c0_i32_0 = arith.constant 0 : i32
    %c0_i32_1 = arith.constant 0 : i32
    return %c0_i32, %c0_i32_0 : i32, i32
  }
  func.func @transform_8(%arg0: i32) -> (i32, i32) {
    %c0_i32 = arith.constant 0 : i32
    %c0_i32_0 = arith.constant 0 : i32
    %c0_i32_1 = arith.constant 0 : i32
    return %c0_i32, %c0_i32_0 : i32, i32
  }
  func.func @transform_9(%arg0: i32) -> (i32, i32) {
    %c0_i32 = arith.constant 0 : i32
    %c0_i32_0 = arith.constant 0 : i32
    %c0_i32_1 = arith.constant 0 : i32
    return %c0_i32, %c0_i32_0 : i32, i32
  }
  func.func @transform_10(%arg0: i32) -> (i32, i32) {
    %c0_i32 = arith.constant 0 : i32
    %c0_i32_0 = arith.constant 0 : i32
    %c0_i32_1 = arith.constant 0 : i32
    return %c0_i32, %c0_i32_0 : i32, i32
  }
  func.func @transform_11(%arg0: i32) -> (i32, i32) {
    %c0_i32 = arith.constant 0 : i32
    %c0_i32_0 = arith.constant 0 : i32
    %c0_i32_1 = arith.constant 0 : i32
    return %c0_i32, %c0_i32_0 : i32, i32
  }
  func.func @transform_12(%arg0: i32) -> (i32, i32) {
    %c0_i32 = arith.constant 0 : i32
    %c0_i32_0 = arith.constant 0 : i32
    %c0_i32_1 = arith.constant 0 : i32
    return %c0_i32, %c0_i32_0 : i32, i32
  }
  func.func @transform_13(%arg0: i32) -> (i32, i32, i32) {
    %c0_i32 = arith.constant 0 : i32
    %c0_i32_0 = arith.constant 0 : i32
    %c0_i32_1 = arith.constant 0 : i32
    return %arg0, %c0_i32, %c0_i32_0 : i32, i32, i32
  }
}

module attributes {stable_mosaic.version = 11 : i64} {
  func.func @_ln_linear_kernel(%arg0: memref<136x32xf32, #tpu.memory_space<vmem>>, %arg1: memref<1x32xf32, #tpu.memory_space<vmem>>, %arg2: memref<1x32xf32, #tpu.memory_space<vmem>>, %arg3: memref<32x48xbf16, #tpu.memory_space<vmem>>, %arg4: memref<1x48xf32, #tpu.memory_space<vmem>>, %arg5: memref<136x48xf32, #tpu.memory_space<vmem>>) attributes {dimension_semantics = [], scalar_prefetch = 0 : i64, scratch_operands = 0 : i64, tpu.core_type = #tpu.core_type<tc>} {
    %c0 = arith.constant 0 : index
    %c0_0 = arith.constant 0 : index
    %0 = vector.load %arg0[%c0, %c0_0] : memref<136x32xf32, #tpu.memory_space<vmem>>, vector<136x32xf32>
    %c0_1 = arith.constant 0 : index
    %c0_2 = arith.constant 0 : index
    %1 = vector.load %arg1[%c0_1, %c0_2] : memref<1x32xf32, #tpu.memory_space<vmem>>, vector<1x32xf32>
    %c0_3 = arith.constant 0 : index
    %c0_4 = arith.constant 0 : index
    %2 = vector.load %arg2[%c0_3, %c0_4] : memref<1x32xf32, #tpu.memory_space<vmem>>, vector<1x32xf32>
    %cst = arith.constant dense<0.000000e+00> : vector<136xf32>
    %3 = vector.multi_reduction <add>, %0, %cst [1] : vector<136x32xf32> to vector<136xf32>
    %4 = vector.shape_cast %3 : vector<136xf32> to vector<136x1xf32>
    %cst_5 = arith.constant 3.200000e+01 : f32
    %5 = vector.broadcast %cst_5 : f32 to vector<136x1xf32>
    %6 = arith.divf %4, %5 : vector<136x1xf32>
    %7 = vector.broadcast %6 : vector<136x1xf32> to vector<136x32xf32>
    %8 = arith.subf %0, %7 : vector<136x32xf32>
    %9 = arith.mulf %8, %8 : vector<136x32xf32>
    %cst_6 = arith.constant dense<0.000000e+00> : vector<136xf32>
    %10 = vector.multi_reduction <add>, %9, %cst_6 [1] : vector<136x32xf32> to vector<136xf32>
    %11 = vector.shape_cast %10 : vector<136xf32> to vector<136x1xf32>
    %cst_7 = arith.constant 3.200000e+01 : f32
    %12 = vector.broadcast %cst_7 : f32 to vector<136x1xf32>
    %13 = arith.divf %11, %12 : vector<136x1xf32>
    %14 = vector.broadcast %6 : vector<136x1xf32> to vector<136x32xf32>
    %15 = arith.subf %0, %14 : vector<136x32xf32>
    %cst_8 = arith.constant 9.99999974E-6 : f32
    %16 = vector.broadcast %cst_8 : f32 to vector<136x1xf32>
    %17 = arith.addf %13, %16 : vector<136x1xf32>
    %18 = math.rsqrt %17 : vector<136x1xf32>
    %19 = vector.broadcast %18 : vector<136x1xf32> to vector<136x32xf32>
    %20 = arith.mulf %15, %19 : vector<136x32xf32>
    %21 = vector.broadcast %1 : vector<1x32xf32> to vector<136x32xf32>
    %22 = arith.mulf %20, %21 : vector<136x32xf32>
    %23 = vector.broadcast %2 : vector<1x32xf32> to vector<136x32xf32>
    %24 = arith.addf %22, %23 : vector<136x32xf32>
    %25 = arith.truncf %24 : vector<136x32xf32> to vector<136x32xbf16>
    %c0_9 = arith.constant 0 : index
    %c0_10 = arith.constant 0 : index
    %26 = vector.load %arg3[%c0_9, %c0_10] : memref<32x48xbf16, #tpu.memory_space<vmem>>, vector<32x48xbf16>
    %cst_11 = arith.constant dense<0.000000e+00> : vector<136x48xf32>
    %27 = tpu.matmul %25, %26, %cst_11 {dimension_numbers = #tpu.dot_dimension_numbers<[1], [0], [0], [1], [0, 0, 1, 1], [], []>} : vector<136x32xbf16>, vector<32x48xbf16>, vector<136x48xf32> -> vector<136x48xf32>
    %c0_12 = arith.constant 0 : index
    %c0_13 = arith.constant 0 : index
    %28 = vector.load %arg4[%c0_12, %c0_13] : memref<1x48xf32, #tpu.memory_space<vmem>>, vector<1x48xf32>
    %29 = vector.broadcast %28 : vector<1x48xf32> to vector<136x48xf32>
    %30 = arith.addf %27, %29 : vector<136x48xf32>
    %c0_14 = arith.constant 0 : index
    %c0_15 = arith.constant 0 : index
    %31 = vector.load %arg5[%c0_14, %c0_15] : memref<136x48xf32, #tpu.memory_space<vmem>>, vector<136x48xf32>
    tpu.vector_store %arg5[%c0_14, %c0_15], %30 {strides = array<i32>} : memref<136x48xf32, #tpu.memory_space<vmem>>, vector<136x48xf32>,
    return
  }
}

module attributes {stable_mosaic.version = 11 : i64} {
  func.func @_loss_kernel(%arg0: memref<2x4x16x48xf32, #tpu.memory_space<vmem>>, %arg1: memref<2x16x48xf32, #tpu.memory_space<vmem>>, %arg2: memref<2x4x16xf32, #tpu.memory_space<vmem>>, %arg3: memref<1x1xf32, #tpu.memory_space<smem>>) attributes {dimension_semantics = [], scalar_prefetch = 0 : i64, scratch_operands = 0 : i64, tpu.core_type = #tpu.core_type<tc>} {
    %c0 = arith.constant 0 : index
    %c0_0 = arith.constant 0 : index
    %c0_1 = arith.constant 0 : index
    %c0_2 = arith.constant 0 : index
    %0 = vector.load %arg0[%c0, %c0_0, %c0_1, %c0_2] : memref<2x4x16x48xf32, #tpu.memory_space<vmem>>, vector<2x4x16x48xf32>
    %c0_3 = arith.constant 0 : index
    %c0_4 = arith.constant 0 : index
    %c0_5 = arith.constant 0 : index
    %1 = vector.load %arg1[%c0_3, %c0_4, %c0_5] : memref<2x16x48xf32, #tpu.memory_space<vmem>>, vector<2x16x48xf32>
    %c0_6 = arith.constant 0 : index
    %c0_7 = arith.constant 0 : index
    %c0_8 = arith.constant 0 : index
    %2 = vector.load %arg2[%c0_6, %c0_7, %c0_8] : memref<2x4x16xf32, #tpu.memory_space<vmem>>, vector<2x4x16xf32>
    %cst = arith.constant dense<0.000000e+00> : vector<2x16xf32>
    %3 = vector.multi_reduction <add>, %1, %cst [2] : vector<2x16x48xf32> to vector<2x16xf32>
    %4 = vector.shape_cast %3 : vector<2x16xf32> to vector<2x16x1xf32>
    %cst_9 = arith.constant 4.800000e+01 : f32
    %5 = vector.broadcast %cst_9 : f32 to vector<2x16x1xf32>
    %6 = arith.divf %4, %5 : vector<2x16x1xf32>
    %7 = vector.broadcast %6 : vector<2x16x1xf32> to vector<2x16x48xf32>
    %8 = arith.subf %1, %7 : vector<2x16x48xf32>
    %9 = arith.mulf %8, %8 : vector<2x16x48xf32>
    %cst_10 = arith.constant dense<0.000000e+00> : vector<2x16xf32>
    %10 = vector.multi_reduction <add>, %9, %cst_10 [2] : vector<2x16x48xf32> to vector<2x16xf32>
    %11 = vector.shape_cast %10 : vector<2x16xf32> to vector<2x16x1xf32>
    %cst_11 = arith.constant 4.700000e+01 : f32
    %12 = vector.broadcast %cst_11 : f32 to vector<2x16x1xf32>
    %13 = arith.divf %11, %12 : vector<2x16x1xf32>
    %14 = vector.broadcast %6 : vector<2x16x1xf32> to vector<2x16x48xf32>
    %15 = arith.subf %1, %14 : vector<2x16x48xf32>
    %cst_12 = arith.constant 9.99999997E-7 : f32
    %16 = vector.broadcast %cst_12 : f32 to vector<2x16x1xf32>
    %17 = arith.addf %13, %16 : vector<2x16x1xf32>
    %18 = math.rsqrt %17 : vector<2x16x1xf32>
    %19 = vector.broadcast %18 : vector<2x16x1xf32> to vector<2x16x48xf32>
    %20 = arith.mulf %15, %19 : vector<2x16x48xf32>
    %21 = vector.extract_strided_slice %0 {offsets = [0, 0, 0, 0], sizes = [2, 1, 16, 48], strides = [1, 1, 1, 1]} : vector<2x4x16x48xf32> to vector<2x1x16x48xf32>
    %22 = vector.shape_cast %21 : vector<2x1x16x48xf32> to vector<2x16x48xf32>
    %23 = arith.subf %22, %20 : vector<2x16x48xf32>
    %24 = arith.mulf %23, %23 : vector<2x16x48xf32>
    %cst_13 = arith.constant dense<0.000000e+00> : vector<2x16xf32>
    %25 = vector.multi_reduction <add>, %24, %cst_13 [2] : vector<2x16x48xf32> to vector<2x16xf32>
    %cst_14 = arith.constant 4.800000e+01 : f32
    %26 = vector.broadcast %cst_14 : f32 to vector<2x16xf32>
    %27 = arith.divf %25, %26 : vector<2x16xf32>
    %28 = vector.extract_strided_slice %2 {offsets = [0, 0, 0], sizes = [2, 1, 16], strides = [1, 1, 1]} : vector<2x4x16xf32> to vector<2x1x16xf32>
    %29 = vector.shape_cast %28 : vector<2x1x16xf32> to vector<2x16xf32>
    %30 = arith.mulf %27, %29 : vector<2x16xf32>
    %31 = vector.shape_cast %30 : vector<2x16xf32> to vector<1x2x16xf32>
    %cst_15 = arith.constant dense<0.000000e+00> : vector<1xf32>
    %32 = vector.multi_reduction <add>, %31, %cst_15 [1, 2] : vector<1x2x16xf32> to vector<1xf32>
    %33 = vector.shape_cast %32 : vector<1xf32> to vector<1x1x1xf32>
    %34 = vector.extract %33[0, 0, 0] : f32 from vector<1x1x1xf32>
    %cst_16 = arith.constant 0.000000e+00 : f32
    %35 = arith.addf %cst_16, %34 : f32
    %36 = vector.extract_strided_slice %0 {offsets = [0, 1, 0, 0], sizes = [2, 1, 16, 48], strides = [1, 1, 1, 1]} : vector<2x4x16x48xf32> to vector<2x1x16x48xf32>
    %37 = vector.shape_cast %36 : vector<2x1x16x48xf32> to vector<2x16x48xf32>
    %38 = arith.subf %37, %20 : vector<2x16x48xf32>
    %39 = arith.mulf %38, %38 : vector<2x16x48xf32>
    %cst_17 = arith.constant dense<0.000000e+00> : vector<2x16xf32>
    %40 = vector.multi_reduction <add>, %39, %cst_17 [2] : vector<2x16x48xf32> to vector<2x16xf32>
    %cst_18 = arith.constant 4.800000e+01 : f32
    %41 = vector.broadcast %cst_18 : f32 to vector<2x16xf32>
    %42 = arith.divf %40, %41 : vector<2x16xf32>
    %43 = vector.extract_strided_slice %2 {offsets = [0, 1, 0], sizes = [2, 1, 16], strides = [1, 1, 1]} : vector<2x4x16xf32> to vector<2x1x16xf32>
    %44 = vector.shape_cast %43 : vector<2x1x16xf32> to vector<2x16xf32>
    %45 = arith.mulf %42, %44 : vector<2x16xf32>
    %46 = vector.shape_cast %45 : vector<2x16xf32> to vector<1x2x16xf32>
    %cst_19 = arith.constant dense<0.000000e+00> : vector<1xf32>
    %47 = vector.multi_reduction <add>, %46, %cst_19 [1, 2] : vector<1x2x16xf32> to vector<1xf32>
    %48 = vector.shape_cast %47 : vector<1xf32> to vector<1x1x1xf32>
    %49 = vector.extract %48[0, 0, 0] : f32 from vector<1x1x1xf32>
    %50 = arith.addf %35, %49 : f32
    %51 = vector.extract_strided_slice %0 {offsets = [0, 2, 0, 0], sizes = [2, 1, 16, 48], strides = [1, 1, 1, 1]} : vector<2x4x16x48xf32> to vector<2x1x16x48xf32>
    %52 = vector.shape_cast %51 : vector<2x1x16x48xf32> to vector<2x16x48xf32>
    %53 = arith.subf %52, %20 : vector<2x16x48xf32>
    %54 = arith.mulf %53, %53 : vector<2x16x48xf32>
    %cst_20 = arith.constant dense<0.000000e+00> : vector<2x16xf32>
    %55 = vector.multi_reduction <add>, %54, %cst_20 [2] : vector<2x16x48xf32> to vector<2x16xf32>
    %cst_21 = arith.constant 4.800000e+01 : f32
    %56 = vector.broadcast %cst_21 : f32 to vector<2x16xf32>
    %57 = arith.divf %55, %56 : vector<2x16xf32>
    %58 = vector.extract_strided_slice %2 {offsets = [0, 2, 0], sizes = [2, 1, 16], strides = [1, 1, 1]} : vector<2x4x16xf32> to vector<2x1x16xf32>
    %59 = vector.shape_cast %58 : vector<2x1x16xf32> to vector<2x16xf32>
    %60 = arith.mulf %57, %59 : vector<2x16xf32>
    %61 = vector.shape_cast %60 : vector<2x16xf32> to vector<1x2x16xf32>
    %cst_22 = arith.constant dense<0.000000e+00> : vector<1xf32>
    %62 = vector.multi_reduction <add>, %61, %cst_22 [1, 2] : vector<1x2x16xf32> to vector<1xf32>
    %63 = vector.shape_cast %62 : vector<1xf32> to vector<1x1x1xf32>
    %64 = vector.extract %63[0, 0, 0] : f32 from vector<1x1x1xf32>
    %65 = arith.addf %50, %64 : f32
    %66 = vector.extract_strided_slice %0 {offsets = [0, 3, 0, 0], sizes = [2, 1, 16, 48], strides = [1, 1, 1, 1]} : vector<2x4x16x48xf32> to vector<2x1x16x48xf32>
    %67 = vector.shape_cast %66 : vector<2x1x16x48xf32> to vector<2x16x48xf32>
    %68 = arith.subf %67, %20 : vector<2x16x48xf32>
    %69 = arith.mulf %68, %68 : vector<2x16x48xf32>
    %cst_23 = arith.constant dense<0.000000e+00> : vector<2x16xf32>
    %70 = vector.multi_reduction <add>, %69, %cst_23 [2] : vector<2x16x48xf32> to vector<2x16xf32>
    %cst_24 = arith.constant 4.800000e+01 : f32
    %71 = vector.broadcast %cst_24 : f32 to vector<2x16xf32>
    %72 = arith.divf %70, %71 : vector<2x16xf32>
    %73 = vector.extract_strided_slice %2 {offsets = [0, 3, 0], sizes = [2, 1, 16], strides = [1, 1, 1]} : vector<2x4x16xf32> to vector<2x1x16xf32>
    %74 = vector.shape_cast %73 : vector<2x1x16xf32> to vector<2x16xf32>
    %75 = arith.mulf %72, %74 : vector<2x16xf32>
    %76 = vector.shape_cast %75 : vector<2x16xf32> to vector<1x2x16xf32>
    %cst_25 = arith.constant dense<0.000000e+00> : vector<1xf32>
    %77 = vector.multi_reduction <add>, %76, %cst_25 [1, 2] : vector<1x2x16xf32> to vector<1xf32>
    %78 = vector.shape_cast %77 : vector<1xf32> to vector<1x1x1xf32>
    %79 = vector.extract %78[0, 0, 0] : f32 from vector<1x1x1xf32>
    %80 = arith.addf %65, %79 : f32
    %81 = vector.shape_cast %2 : vector<2x4x16xf32> to vector<1x2x4x16xf32>
    %cst_26 = arith.constant dense<0.000000e+00> : vector<1xf32>
    %82 = vector.multi_reduction <add>, %81, %cst_26 [1, 2, 3] : vector<1x2x4x16xf32> to vector<1xf32>
    %83 = vector.shape_cast %82 : vector<1xf32> to vector<1x1x1x1xf32>
    %84 = vector.extract %83[0, 0, 0, 0] : f32 from vector<1x1x1x1xf32>
    %85 = arith.divf %80, %84 : f32
    %86 = vector.extract_strided_slice %2 {offsets = [0, 0, 0], sizes = [2, 1, 16], strides = [1, 1, 1]} : vector<2x4x16xf32> to vector<2x1x16xf32>
    %87 = vector.shape_cast %86 : vector<2x1x16xf32> to vector<2x16xf32>
    %88 = vector.extract_strided_slice %2 {offsets = [0, 1, 0], sizes = [2, 1, 16], strides = [1, 1, 1]} : vector<2x4x16xf32> to vector<2x1x16xf32>
    %89 = vector.shape_cast %88 : vector<2x1x16xf32> to vector<2x16xf32>
    %90 = arith.mulf %87, %89 : vector<2x16xf32>
    %91 = vector.extract_strided_slice %0 {offsets = [0, 0, 0, 0], sizes = [2, 1, 16, 48], strides = [1, 1, 1, 1]} : vector<2x4x16x48xf32> to vector<2x1x16x48xf32>
    %92 = vector.shape_cast %91 : vector<2x1x16x48xf32> to vector<2x16x48xf32>
    %93 = vector.extract_strided_slice %0 {offsets = [0, 1, 0, 0], sizes = [2, 1, 16, 48], strides = [1, 1, 1, 1]} : vector<2x4x16x48xf32> to vector<2x1x16x48xf32>
    %94 = vector.shape_cast %93 : vector<2x1x16x48xf32> to vector<2x16x48xf32>
    %95 = arith.subf %92, %94 : vector<2x16x48xf32>
    %96 = math.absf %95 : vector<2x16x48xf32>
    %97 = vector.shape_cast %90 : vector<2x16xf32> to vector<2x16x1xf32>
    %98 = vector.broadcast %97 : vector<2x16x1xf32> to vector<2x16x48xf32>
    %99 = arith.mulf %96, %98 : vector<2x16x48xf32>
    %100 = vector.shape_cast %99 : vector<2x16x48xf32> to vector<1x2x16x48xf32>
    %cst_27 = arith.constant dense<0.000000e+00> : vector<1xf32>
    %101 = vector.multi_reduction <add>, %100, %cst_27 [1, 2, 3] : vector<1x2x16x48xf32> to vector<1xf32>
    %102 = vector.shape_cast %101 : vector<1xf32> to vector<1x1x1x1xf32>
    %103 = vector.extract %102[0, 0, 0, 0] : f32 from vector<1x1x1x1xf32>
    %cst_28 = arith.constant 0.000000e+00 : f32
    %104 = arith.addf %cst_28, %103 : f32
    %105 = vector.extract_strided_slice %2 {offsets = [0, 0, 0], sizes = [2, 1, 16], strides = [1, 1, 1]} : vector<2x4x16xf32> to vector<2x1x16xf32>
    %106 = vector.shape_cast %105 : vector<2x1x16xf32> to vector<2x16xf32>
    %107 = vector.extract_strided_slice %2 {offsets = [0, 2, 0], sizes = [2, 1, 16], strides = [1, 1, 1]} : vector<2x4x16xf32> to vector<2x1x16xf32>
    %108 = vector.shape_cast %107 : vector<2x1x16xf32> to vector<2x16xf32>
    %109 = arith.mulf %106, %108 : vector<2x16xf32>
    %110 = vector.extract_strided_slice %0 {offsets = [0, 0, 0, 0], sizes = [2, 1, 16, 48], strides = [1, 1, 1, 1]} : vector<2x4x16x48xf32> to vector<2x1x16x48xf32>
    %111 = vector.shape_cast %110 : vector<2x1x16x48xf32> to vector<2x16x48xf32>
    %112 = vector.extract_strided_slice %0 {offsets = [0, 2, 0, 0], sizes = [2, 1, 16, 48], strides = [1, 1, 1, 1]} : vector<2x4x16x48xf32> to vector<2x1x16x48xf32>
    %113 = vector.shape_cast %112 : vector<2x1x16x48xf32> to vector<2x16x48xf32>
    %114 = arith.subf %111, %113 : vector<2x16x48xf32>
    %115 = math.absf %114 : vector<2x16x48xf32>
    %116 = vector.shape_cast %109 : vector<2x16xf32> to vector<2x16x1xf32>
    %117 = vector.broadcast %116 : vector<2x16x1xf32> to vector<2x16x48xf32>
    %118 = arith.mulf %115, %117 : vector<2x16x48xf32>
    %119 = vector.shape_cast %118 : vector<2x16x48xf32> to vector<1x2x16x48xf32>
    %cst_29 = arith.constant dense<0.000000e+00> : vector<1xf32>
    %120 = vector.multi_reduction <add>, %119, %cst_29 [1, 2, 3] : vector<1x2x16x48xf32> to vector<1xf32>
    %121 = vector.shape_cast %120 : vector<1xf32> to vector<1x1x1x1xf32>
    %122 = vector.extract %121[0, 0, 0, 0] : f32 from vector<1x1x1x1xf32>
    %123 = arith.addf %104, %122 : f32
    %124 = vector.extract_strided_slice %2 {offsets = [0, 0, 0], sizes = [2, 1, 16], strides = [1, 1, 1]} : vector<2x4x16xf32> to vector<2x1x16xf32>
    %125 = vector.shape_cast %124 : vector<2x1x16xf32> to vector<2x16xf32>
    %126 = vector.extract_strided_slice %2 {offsets = [0, 3, 0], sizes = [2, 1, 16], strides = [1, 1, 1]} : vector<2x4x16xf32> to vector<2x1x16xf32>
    %127 = vector.shape_cast %126 : vector<2x1x16xf32> to vector<2x16xf32>
    %128 = arith.mulf %125, %127 : vector<2x16xf32>
    %129 = vector.extract_strided_slice %0 {offsets = [0, 0, 0, 0], sizes = [2, 1, 16, 48], strides = [1, 1, 1, 1]} : vector<2x4x16x48xf32> to vector<2x1x16x48xf32>
    %130 = vector.shape_cast %129 : vector<2x1x16x48xf32> to vector<2x16x48xf32>
    %131 = vector.extract_strided_slice %0 {offsets = [0, 3, 0, 0], sizes = [2, 1, 16, 48], strides = [1, 1, 1, 1]} : vector<2x4x16x48xf32> to vector<2x1x16x48xf32>
    %132 = vector.shape_cast %131 : vector<2x1x16x48xf32> to vector<2x16x48xf32>
    %133 = arith.subf %130, %132 : vector<2x16x48xf32>
    %134 = math.absf %133 : vector<2x16x48xf32>
    %135 = vector.shape_cast %128 : vector<2x16xf32> to vector<2x16x1xf32>
    %136 = vector.broadcast %135 : vector<2x16x1xf32> to vector<2x16x48xf32>
    %137 = arith.mulf %134, %136 : vector<2x16x48xf32>
    %138 = vector.shape_cast %137 : vector<2x16x48xf32> to vector<1x2x16x48xf32>
    %cst_30 = arith.constant dense<0.000000e+00> : vector<1xf32>
    %139 = vector.multi_reduction <add>, %138, %cst_30 [1, 2, 3] : vector<1x2x16x48xf32> to vector<1xf32>
    %140 = vector.shape_cast %139 : vector<1xf32> to vector<1x1x1x1xf32>
    %141 = vector.extract %140[0, 0, 0, 0] : f32 from vector<1x1x1x1xf32>
    %142 = arith.addf %123, %141 : f32
    %143 = vector.extract_strided_slice %2 {offsets = [0, 1, 0], sizes = [2, 1, 16], strides = [1, 1, 1]} : vector<2x4x16xf32> to vector<2x1x16xf32>
    %144 = vector.shape_cast %143 : vector<2x1x16xf32> to vector<2x16xf32>
    %145 = vector.extract_strided_slice %2 {offsets = [0, 2, 0], sizes = [2, 1, 16], strides = [1, 1, 1]} : vector<2x4x16xf32> to vector<2x1x16xf32>
    %146 = vector.shape_cast %145 : vector<2x1x16xf32> to vector<2x16xf32>
    %147 = arith.mulf %144, %146 : vector<2x16xf32>
    %148 = vector.extract_strided_slice %0 {offsets = [0, 1, 0, 0], sizes = [2, 1, 16, 48], strides = [1, 1, 1, 1]} : vector<2x4x16x48xf32> to vector<2x1x16x48xf32>
    %149 = vector.shape_cast %148 : vector<2x1x16x48xf32> to vector<2x16x48xf32>
    %150 = vector.extract_strided_slice %0 {offsets = [0, 2, 0, 0], sizes = [2, 1, 16, 48], strides = [1, 1, 1, 1]} : vector<2x4x16x48xf32> to vector<2x1x16x48xf32>
    %151 = vector.shape_cast %150 : vector<2x1x16x48xf32> to vector<2x16x48xf32>
    %152 = arith.subf %149, %151 : vector<2x16x48xf32>
    %153 = math.absf %152 : vector<2x16x48xf32>
    %154 = vector.shape_cast %147 : vector<2x16xf32> to vector<2x16x1xf32>
    %155 = vector.broadcast %154 : vector<2x16x1xf32> to vector<2x16x48xf32>
    %156 = arith.mulf %153, %155 : vector<2x16x48xf32>
    %157 = vector.shape_cast %156 : vector<2x16x48xf32> to vector<1x2x16x48xf32>
    %cst_31 = arith.constant dense<0.000000e+00> : vector<1xf32>
    %158 = vector.multi_reduction <add>, %157, %cst_31 [1, 2, 3] : vector<1x2x16x48xf32> to vector<1xf32>
    %159 = vector.shape_cast %158 : vector<1xf32> to vector<1x1x1x1xf32>
    %160 = vector.extract %159[0, 0, 0, 0] : f32 from vector<1x1x1x1xf32>
    %161 = arith.addf %142, %160 : f32
    %162 = vector.extract_strided_slice %2 {offsets = [0, 1, 0], sizes = [2, 1, 16], strides = [1, 1, 1]} : vector<2x4x16xf32> to vector<2x1x16xf32>
    %163 = vector.shape_cast %162 : vector<2x1x16xf32> to vector<2x16xf32>
    %164 = vector.extract_strided_slice %2 {offsets = [0, 3, 0], sizes = [2, 1, 16], strides = [1, 1, 1]} : vector<2x4x16xf32> to vector<2x1x16xf32>
    %165 = vector.shape_cast %164 : vector<2x1x16xf32> to vector<2x16xf32>
    %166 = arith.mulf %163, %165 : vector<2x16xf32>
    %167 = vector.extract_strided_slice %0 {offsets = [0, 1, 0, 0], sizes = [2, 1, 16, 48], strides = [1, 1, 1, 1]} : vector<2x4x16x48xf32> to vector<2x1x16x48xf32>
    %168 = vector.shape_cast %167 : vector<2x1x16x48xf32> to vector<2x16x48xf32>
    %169 = vector.extract_strided_slice %0 {offsets = [0, 3, 0, 0], sizes = [2, 1, 16, 48], strides = [1, 1, 1, 1]} : vector<2x4x16x48xf32> to vector<2x1x16x48xf32>
    %170 = vector.shape_cast %169 : vector<2x1x16x48xf32> to vector<2x16x48xf32>
    %171 = arith.subf %168, %170 : vector<2x16x48xf32>
    %172 = math.absf %171 : vector<2x16x48xf32>
    %173 = vector.shape_cast %166 : vector<2x16xf32> to vector<2x16x1xf32>
    %174 = vector.broadcast %173 : vector<2x16x1xf32> to vector<2x16x48xf32>
    %175 = arith.mulf %172, %174 : vector<2x16x48xf32>
    %176 = vector.shape_cast %175 : vector<2x16x48xf32> to vector<1x2x16x48xf32>
    %cst_32 = arith.constant dense<0.000000e+00> : vector<1xf32>
    %177 = vector.multi_reduction <add>, %176, %cst_32 [1, 2, 3] : vector<1x2x16x48xf32> to vector<1xf32>
    %178 = vector.shape_cast %177 : vector<1xf32> to vector<1x1x1x1xf32>
    %179 = vector.extract %178[0, 0, 0, 0] : f32 from vector<1x1x1x1xf32>
    %180 = arith.addf %161, %179 : f32
    %181 = vector.extract_strided_slice %2 {offsets = [0, 2, 0], sizes = [2, 1, 16], strides = [1, 1, 1]} : vector<2x4x16xf32> to vector<2x1x16xf32>
    %182 = vector.shape_cast %181 : vector<2x1x16xf32> to vector<2x16xf32>
    %183 = vector.extract_strided_slice %2 {offsets = [0, 3, 0], sizes = [2, 1, 16], strides = [1, 1, 1]} : vector<2x4x16xf32> to vector<2x1x16xf32>
    %184 = vector.shape_cast %183 : vector<2x1x16xf32> to vector<2x16xf32>
    %185 = arith.mulf %182, %184 : vector<2x16xf32>
    %186 = vector.extract_strided_slice %0 {offsets = [0, 2, 0, 0], sizes = [2, 1, 16, 48], strides = [1, 1, 1, 1]} : vector<2x4x16x48xf32> to vector<2x1x16x48xf32>
    %187 = vector.shape_cast %186 : vector<2x1x16x48xf32> to vector<2x16x48xf32>
    %188 = vector.extract_strided_slice %0 {offsets = [0, 3, 0, 0], sizes = [2, 1, 16, 48], strides = [1, 1, 1, 1]} : vector<2x4x16x48xf32> to vector<2x1x16x48xf32>
    %189 = vector.shape_cast %188 : vector<2x1x16x48xf32> to vector<2x16x48xf32>
    %190 = arith.subf %187, %189 : vector<2x16x48xf32>
    %191 = math.absf %190 : vector<2x16x48xf32>
    %192 = vector.shape_cast %185 : vector<2x16xf32> to vector<2x16x1xf32>
    %193 = vector.broadcast %192 : vector<2x16x1xf32> to vector<2x16x48xf32>
    %194 = arith.mulf %191, %193 : vector<2x16x48xf32>
    %195 = vector.shape_cast %194 : vector<2x16x48xf32> to vector<1x2x16x48xf32>
    %cst_33 = arith.constant dense<0.000000e+00> : vector<1xf32>
    %196 = vector.multi_reduction <add>, %195, %cst_33 [1, 2, 3] : vector<1x2x16x48xf32> to vector<1xf32>
    %197 = vector.shape_cast %196 : vector<1xf32> to vector<1x1x1x1xf32>
    %198 = vector.extract %197[0, 0, 0, 0] : f32 from vector<1x1x1x1xf32>
    %199 = arith.addf %180, %198 : f32
    %cst_34 = arith.constant 2.000000e+00 : f32
    %200 = arith.mulf %cst_34, %199 : f32
    %cst_35 = arith.constant 9.216000e+03 : f32
    %201 = arith.divf %200, %cst_35 : f32
    %202 = arith.addf %85, %201 : f32
    %c0_36 = arith.constant 0 : index
    %c0_37 = arith.constant 0 : index
    %203 = memref.load %arg3[%c0_36, %c0_37] : memref<1x1xf32, #tpu.memory_space<smem>>
    memref.store %202, %arg3[%c0_36, %c0_37] : memref<1x1xf32, #tpu.memory_space<smem>>
    return
  }
}

</mosaic_0001>

<llo_original>
// kernel: forward.9
$region0: #{forward.9}
  #allocation0 [shape = 'u32[]', space=smem, size = 0x4, offset = 0x4, fixed_abs, tag = 'smem constant byte address 0x4 - core index']
  #allocation1 [shape = 'u32[144,128]{1,0:T(1,128)}', space=vmem, size = 0x12000, scoped, tag = 'internal scratch']
  %s0 = inlined_call_operand.vmem [shape: f32[2,16,48], index: 0, kind: input, shape index: {}]
  %s1 = inlined_call_operand.vmem [shape: bf16[48,32], index: 1, kind: input, shape index: {}]
  %s2 = inlined_call_operand.vmem [shape: f32[1,32], index: 2, kind: input, shape index: {}]
  %s3 = inlined_call_operand.vmem [shape: f32[16,32], index: 3, kind: input, shape index: {}]
  %s4 = inlined_call_operand.vmem [shape: f32[2,16,32], index: 4, kind: output, shape index: {}]
  %s5 = sld [smem:[#allocation0]]
  $region49: #{forward.9} parent=0
    _
  %s7 = ssub.s32 1, %s5
  %s8 = scalar_select 0, %s7, %s5
  loop: start=0, step=1, limit=4
  $region2: #{forward.9} parent=0 // loop_pre_header
    _
  $region3: #{forward.9} parent=0 // loop_header
    %s10 = sphi 0, %s14
    %p11 = scmp.ge.s32.totalorder %s10, 4
    %s20 = sphi 0, %s22
    %s23 = sphi 0, %s20
    %s24 = sphi 0, %s23
    %s40 = sphi 0, %s24
    %s44 = sphi 0, %s44
    %s46 = sphi 0, %s44
    %s47 = sphi 0, %s46
    %s61 = sphi 0, %s47
    %s65 = sphi 0, %s65
    %s67 = sphi 0, %s65
    %s68 = sphi 0, %s67
    %s82 = sphi 0, %s68
    %s86 = sphi 0, %s86
    %s88 = sphi 0, %s86
    %s89 = sphi 0, %s88
    %s103 = sphi 0, %s89
    %s109 = sphi 0, %s111
    %s112 = sphi 0, %s109
    %s113 = sphi 0, %s112
    %s129 = sphi 0, %s113
  $region4: #{forward.9} parent=0 // loop_header_branch
    %13 = sbr.rel (%p11) target = $region8
  $region5: #{forward.9} parent=0 // loop_body
    %s15 = ssub.s32 %s10, 1
    %s16 = ssub.s32 %s10, 2
    %s17 = sadd.s32 %s10, 1
    %s18 = ssub.s32 %s10, %s17
    %p19 = scmp.eq.s32.totalorder %s18, 0
    %s21 = sadd.s32 %s20, 1
    %s22 = scalar_select %p19, %s20, %s21
    %p25 = pneg %p19
    %p26 = scmp.eq.s32.totalorder %s10, 1
    %p27 = por %p25, %p26
    %p28 = scmp.ne.s32.totalorder %s20, %s23
    %p29 = scmp.eq.s32.totalorder %s10, 0
    %p30 = por %p28, %p29
    %p31 = scmp.ne.s32.totalorder %s20, %s23
    %p32 = scmp.eq.s32.totalorder %s15, 1
    %p33 = por %p31, %p32
    %p34 = scmp.ne.s32.totalorder %s23, %s24
    %p35 = scmp.eq.s32.totalorder %s15, 0
    %p36 = por %p34, %p35
    %p37 = scmp.ne.s32.totalorder %s23, %s24
    %p38 = scmp.eq.s32.totalorder %s16, 1
    %p39 = por %p37, %p38
    %p41 = scmp.ne.s32.totalorder %s24, %s40
    %p42 = scmp.eq.s32.totalorder %s16, 0
    %p43 = por %p41, %p42
    %s45 = sadd.s32 %s44, 1
    %p48 = scmp.eq.s32.totalorder %s10, 1
    %p49 = scmp.ne.s32.totalorder %s44, %s46
    %p50 = scmp.eq.s32.totalorder %s10, 0
    %p51 = por %p49, %p50
    %p52 = scmp.ne.s32.totalorder %s44, %s46
    %p53 = scmp.eq.s32.totalorder %s15, 1
    %p54 = por %p52, %p53
    %p55 = scmp.ne.s32.totalorder %s46, %s47
    %p56 = scmp.eq.s32.totalorder %s15, 0
    %p57 = por %p55, %p56
    %p58 = scmp.ne.s32.totalorder %s46, %s47
    %p59 = scmp.eq.s32.totalorder %s16, 1
    %p60 = por %p58, %p59
    %p62 = scmp.ne.s32.totalorder %s47, %s61
    %p63 = scmp.eq.s32.totalorder %s16, 0
    %p64 = por %p62, %p63
    %s66 = sadd.s32 %s65, 1
    %p69 = scmp.eq.s32.totalorder %s10, 1
    %p70 = scmp.ne.s32.totalorder %s65, %s67
    %p71 = scmp.eq.s32.totalorder %s10, 0
    %p72 = por %p70, %p71
    %p73 = scmp.ne.s32.totalorder %s65, %s67
    %p74 = scmp.eq.s32.totalorder %s15, 1
    %p75 = por %p73, %p74
    %p76 = scmp.ne.s32.totalorder %s67, %s68
    %p77 = scmp.eq.s32.totalorder %s15, 0
    %p78 = por %p76, %p77
    %p79 = scmp.ne.s32.totalorder %s67, %s68
    %p80 = scmp.eq.s32.totalorder %s16, 1
    %p81 = por %p79, %p80
    %p83 = scmp.ne.s32.totalorder %s68, %s82
    %p84 = scmp.eq.s32.totalorder %s16, 0
    %p85 = por %p83, %p84
    %s87 = sadd.s32 %s86, 1
    %p90 = scmp.eq.s32.totalorder %s10, 1
    %p91 = scmp.ne.s32.totalorder %s86, %s88
    %p92 = scmp.eq.s32.totalorder %s10, 0
    %p93 = por %p91, %p92
    %p94 = scmp.ne.s32.totalorder %s86, %s88
    %p95 = scmp.eq.s32.totalorder %s15, 1
    %p96 = por %p94, %p95
    %p97 = scmp.ne.s32.totalorder %s88, %s89
    %p98 = scmp.eq.s32.totalorder %s15, 0
    %p99 = por %p97, %p98
    %p100 = scmp.ne.s32.totalorder %s88, %s89
    %p101 = scmp.eq.s32.totalorder %s16, 1
    %p102 = por %p100, %p101
    %p104 = scmp.ne.s32.totalorder %s89, %s103
    %p105 = scmp.eq.s32.totalorder %s16, 0
    %p106 = por %p104, %p105
    %s107 = ssub.s32 %s10, %s17
    %p108 = scmp.eq.s32.totalorder %s107, 0
    %s110 = sadd.s32 %s109, 1
    %s111 = scalar_select %p108, %s109, %s110
    %p114 = pneg %p108
    %p115 = scmp.eq.s32.totalorder %s10, 1
    %p116 = por %p114, %p115
    %p117 = scmp.ne.s32.totalorder %s109, %s112
    %p118 = scmp.eq.s32.totalorder %s10, 0
    %p119 = por %p117, %p118
    %p120 = scmp.ne.s32.totalorder %s109, %s112
    %p121 = scmp.eq.s32.totalorder %s15, 1
    %p122 = por %p120, %p121
    %p123 = scmp.ne.s32.totalorder %s112, %s113
    %p124 = scmp.eq.s32.totalorder %s15, 0
    %p125 = por %p123, %p124
    %p126 = scmp.ne.s32.totalorder %s112, %s113
    %p127 = scmp.eq.s32.totalorder %s16, 1
    %p128 = por %p126, %p127
    %p130 = scmp.ne.s32.totalorder %s113, %s129
    %p131 = scmp.eq.s32.totalorder %s16, 0
    %p132 = por %p130, %p131
    %p133 = scmp.le.s32.totalorder 1, %s10
    %p134 = scmp.lt.s32.totalorder %s10, 3
    %p135 = pnand %p133, %p134
    %p136 = pneg %p135
    // Predicated region
    $region9: #{forward.9} parent=5 // pred_check
      _
    $region10: #{forward.9} parent=5 // pred_check_branch
      %138 = sbr.rel (%p135) target = $region12
    $region11: #{forward.9} parent=5 // pred_region
      %s139 = ssub.s32 %s10, 1
      // Predicated region
      $region13: #{forward.9} parent=11 // pred_check
        %p140 = pneg %p57
      $region14: #{forward.9} parent=11 // pred_check_branch
        %142 = sbr.rel (%p140) target = $region16
      $region15: #{forward.9} parent=11 // pred_region
        _
      $region16: #{forward.9} parent=11 // pred_fallthru
        _
      // Predicated region
      $region17: #{forward.9} parent=11 // pred_check
        %p143 = pneg %p78
      $region18: #{forward.9} parent=11 // pred_check_branch
        %145 = sbr.rel (%p143) target = $region20
      $region19: #{forward.9} parent=11 // pred_region
        _
      $region20: #{forward.9} parent=11 // pred_fallthru
        _
      // Predicated region
      $region21: #{forward.9} parent=11 // pred_check
        %p146 = pneg %p99
      $region22: #{forward.9} parent=11 // pred_check_branch
        %148 = sbr.rel (%p146) target = $region24
      $region23: #{forward.9} parent=11 // pred_region
        _
      $region24: #{forward.9} parent=11 // pred_fallthru
        _
    $region12: #{forward.9} parent=5 // pred_fallthru
      _
    %p149 = scmp.lt.s32.totalorder %s10, 2
    // Predicated region
    $region25: #{forward.9} parent=5 // pred_check
      %p150 = pneg %p149
    $region26: #{forward.9} parent=5 // pred_check_branch
      %152 = sbr.rel (%p150) target = $region28
    $region27: #{forward.9} parent=5 // pred_region
      // Predicated region
      $region29: #{forward.9} parent=27 // pred_check
        %p153 = pneg %p30
      $region30: #{forward.9} parent=27 // pred_check_branch
        %155 = sbr.rel (%p153) target = $region32
      $region31: #{forward.9} parent=27 // pred_region
        %p156 = scmp.lt.s32.totalorder %s10, 1
        %s157 = scalar_select %p156, %s10, 1
        %s158 = smul.addr %s157, 2
        %s159 = smul.addr %s158, 8
        %s160 = scalar_lea.vmem %s0, %s159
      $region32: #{forward.9} parent=27 // pred_fallthru
        _
    $region28: #{forward.9} parent=5 // pred_fallthru
      _
    %p161 = scmp.le.s32.totalorder 1, %s10
    %p162 = scmp.lt.s32.totalorder %s10, 3
    %p163 = pnand %p161, %p162
    %p164 = pneg %p163
    // Predicated region
    $region33: #{forward.9} parent=5 // pred_check
      _
    $region34: #{forward.9} parent=5 // pred_check_branch
      %166 = sbr.rel (%p163) target = $region36
    $region35: #{forward.9} parent=5 // pred_region
      %s167 = ssub.s32 %s10, 1
      %p168 = scmp.lt.s32.totalorder %s15, 1
      %s169 = scalar_select %p168, %s15, 1
      %s170 = smul.addr %s169, 2
      %s171 = smul.addr %s170, 8
      %s172 = scalar_lea.vmem %s0, %s171
      %p173 = pneg %p36
      %p174 = pneg %p33
      %p175 = pneg %p57
      %p176 = pneg %p54
      %p177 = pneg %p78
      %p178 = pneg %p75
      %p179 = pneg %p99
      %p180 = pneg %p96
      %p181 = pneg %p125
      %p182 = pneg %p122
      %p183 = scmp.lt.s32.totalorder %s15, 1
      %s184 = scalar_select %p183, %s15, 1
      %s185 = smul.addr %s184, 2
      %s186 = smul.addr %s185, 8
      %s187 = scalar_lea.vmem %s4, %s186
      %p188 = scmp.lt.s32.totalorder %s15, 1
      %s189 = scalar_select %p188, %s15, 1
      %s190 = smul.addr %s189, 2
      %s191 = smul.addr %s190, 8
      %s192 = scalar_lea.vmem %s0, %s191
      %p193 = scmp.lt.s32.totalorder %s15, 1
      %s194 = scalar_select %p193, %s15, 1
      %s195 = smul.addr %s194, 2
      %s196 = smul.addr %s195, 8
      %s197 = scalar_lea.vmem %s4, %s196
      %v199 = vld [vmem:[%s192] sm:$0xff]
      %v200 = vld [vmem:[%s192 + $0x8] sm:$0xff]
      %v201 = vpack.c.bf16 %v200, %v199
      %v202 = vld [vmem:[%s1] sm:$0xf]
      %v203 = vld [vmem:[%s1 + $0x4] sm:$0xf]
      %v204 = vld [vmem:[%s1 + $0x8] sm:$0xf]
      %v205 = vld [vmem:[%s1 + $0xc] sm:$0xf]
      %v206 = vld [vmem:[%s1 + $0x10] sm:$0xf]
      %v207 = vld [vmem:[%s1 + $0x14] sm:$0xf]
      %v208 = vld [vmem:[%s2] sm:$0x1]
      %v210 = vlaneseq
      %v211 = vshrl.u32 %v210, 7
      %v212 = vsub.s32 0, %v211
      %v213 = vrot.slane %v208, %v212
      %v221 = vunpack.c.l.b16 %v202
      %v222 = vunpack.c.l.b16 %v203
      %v223 = vunpack.c.l.b16 %v204
      %v224 = vunpack.c.l.b16 %v205
      %v225 = vunpack.c.l.b16 %v206
      %v226 = vunpack.c.l.b16 %v207
      %v227 = vpack.c.b16 %v222, %v221
      %v228 = vpack.c.b16 %v224, %v223
      %v229 = vpack.c.b16 %v226, %v225
      %vm233 = vcmask 392192
      %v235 = vsel %vm233, %v201, 0
      %237 = vmatprep.subr.bf16.mxu0 0
      %238 = vmatpush1.bf16.msra.mxu0 %v227
      %239 = vmatprep.subr.bf16.mxu0 0
      %240 = vmatpush1.bf16.msra.mxu0 %v228
      %241 = vmatprep.subr.bf16.mxu0 0
      %242 = vmatpush1.bf16.msra.mxu0 %v229
      %243 = vmatprep.subr.bf16.mxu0 0
      %244 = vmatpush1.bf16.msra.mxu0 0
      %245 = vmatprep.subr.bf16.mxu0 0
      %246 = vmatpush1.bf16.msra.mxu0 0
      %247 = vmatprep.subr.bf16.mxu0 0
      %248 = vmatpush1.bf16.msra.mxu0 0
      %249 = vmatprep.subr.bf16.mxu0 0
      %250 = vmatpush1.bf16.msra.mxu0 0
      %251 = vmatprep.subr.bf16.mxu0 0
      %252 = vmatpush1.bf16.msra.mxu0 0
      %253 = vmatprep.subr.bf16.mxu0 0
      %254 = vmatpush1.bf16.msra.mxu0 0
      %255 = vmatprep.subr.bf16.mxu0 0
      %256 = vmatpush1.bf16.msra.mxu0 0
      %257 = vmatprep.subr.bf16.mxu0 0
      %258 = vmatpush1.bf16.msra.mxu0 0
      %259 = vmatprep.subr.bf16.mxu0 0
      %260 = vmatpush1.bf16.msra.mxu0 0
      %261 = vmatprep.subr.bf16.mxu0 0
      %262 = vmatpush1.bf16.msra.mxu0 0
      %263 = vmatprep.subr.bf16.mxu0 0
      %264 = vmatpush1.bf16.msra.mxu0 0
      %265 = vmatprep.subr.bf16.mxu0 0
      %266 = vmatpush1.bf16.msra.mxu0 0
      %267 = vmatprep.subr.bf16.mxu0 0
      %268 = vmatpush1.bf16.msra.mxu0 0
      %269 = vmatprep.mubr.bf16.mxu0 0
      %270 = vmatmul.mubr.bf16.gmra.mrb[0].mxu0 %v235
      %v271 = vpop.f32.mrb[0].mxu0
      %v272 = vadd.f32 %v213, %v271
      %v273 = vpop.f32.mrb[0].mxu0
      %v274 = vpop.f32.mrb[0].mxu0
      %v275 = vadd.f32 %v213, %v274
      %v276 = vpop.f32.mrb[0].mxu0
      %277 = vdwg.mxu0
      %v278 = vld [vmem:[%s3] sm:$0xff]
      %v279 = vld [vmem:[%s3 + $0x8] sm:$0xff]
      %v280 = vadd.f32 %v272, %v278
      %v281 = vadd.f32 %v275, %v279
      %vm282 = vcmask 261120
      %283 = vst.msk [vmem:[%s197] sm:$0xff] %vm282, %v280
      %284 = vst.msk [vmem:[%s197 + $0x8] sm:$0xff] %vm282, %v281
      %p285 = scmp.lt.s32.totalorder %s15, 1
      %s286 = scalar_select %p285, %s15, 1
      %s287 = smul.addr %s286, 2
      %s288 = smul.addr %s287, 8
      %s289 = scalar_lea.vmem %s4, %s288
      // Predicated region
      $region37: #{forward.9} parent=35 // pred_check
        %p290 = pneg %p122
      $region38: #{forward.9} parent=35 // pred_check_branch
        %292 = sbr.rel (%p290) target = $region40
      $region39: #{forward.9} parent=35 // pred_region
        _
      $region40: #{forward.9} parent=35 // pred_fallthru
        _
    $region36: #{forward.9} parent=5 // pred_fallthru
      _
    %p293 = scmp.le.s32.totalorder 2, %s10
    // Predicated region
    $region41: #{forward.9} parent=5 // pred_check
      %p294 = pneg %p293
    $region42: #{forward.9} parent=5 // pred_check_branch
      %296 = sbr.rel (%p294) target = $region44
    $region43: #{forward.9} parent=5 // pred_region
      %s297 = ssub.s32 %s10, 2
      // Predicated region
      $region45: #{forward.9} parent=43 // pred_check
        %p298 = pneg %p128
      $region46: #{forward.9} parent=43 // pred_check_branch
        %300 = sbr.rel (%p298) target = $region48
      $region47: #{forward.9} parent=43 // pred_region
        %p301 = scmp.lt.s32.totalorder %s16, 1
        %s302 = scalar_select %p301, %s16, 1
        %s303 = smul.addr %s302, 2
        %s304 = smul.addr %s303, 8
        %s305 = scalar_lea.vmem %s4, %s304
      $region48: #{forward.9} parent=43 // pred_fallthru
        _
    $region44: #{forward.9} parent=5 // pred_fallthru
      _
  $region6: #{forward.9} parent=0 // loop_footer
    %s14 = sadd.s32 1, %s10
  $region7: #{forward.9} parent=0 // loop_footer_branch
    %9 = sbr.rel target = $region3
  $region8: #{forward.9} parent=0 // loop_exit
    _

// kernel: forward.12
$region0: #{forward.12}
  #allocation0 [shape = 'u32[]', space=smem, size = 0x4, offset = 0x4, fixed_abs, tag = 'smem constant byte address 0x4 - core index']
  #allocation1 [shape = 'u32[144,128]{1,0:T(1,128)}', space=vmem, size = 0x12000, scoped, tag = 'internal scratch']
  %s0 = inlined_call_operand.vmem [shape: f32[40,32], index: 0, kind: input, shape index: {}]
  %s1 = inlined_call_operand.vmem [shape: f32[1,32], index: 1, kind: input, shape index: {}]
  %s2 = inlined_call_operand.vmem [shape: f32[1,32], index: 2, kind: input, shape index: {}]
  %s3 = inlined_call_operand.vmem [shape: bf16[32,32], index: 3, kind: input, shape index: {}]
  %s4 = inlined_call_operand.vmem [shape: f32[1,32], index: 4, kind: input, shape index: {}]
  %s5 = inlined_call_operand.vmem [shape: f32[40,32], index: 5, kind: input, shape index: {}]
  %s6 = inlined_call_operand.vmem [shape: f32[40,32], index: 6, kind: output, shape index: {}]
  %s7 = sld [smem:[#allocation0]]
  $region34: #{forward.12} parent=0
    _
  %s9 = ssub.s32 1, %s7
  %s10 = scalar_select 0, %s9, %s7
  // Predicated region
  $region2: #{forward.12} parent=0 // pred_check
    _
  $region3: #{forward.12} parent=0 // pred_check_branch
    %12 = sbr.rel (0) target = $region5
  $region4: #{forward.12} parent=0 // pred_region
    _
  $region5: #{forward.12} parent=0 // pred_fallthru
    _
  // Predicated region
  $region6: #{forward.12} parent=0 // pred_check
    _
  $region7: #{forward.12} parent=0 // pred_check_branch
    %14 = sbr.rel (0) target = $region9
  $region8: #{forward.12} parent=0 // pred_region
    _
  $region9: #{forward.12} parent=0 // pred_fallthru
    _
  // Predicated region
  $region10: #{forward.12} parent=0 // pred_check
    _
  $region11: #{forward.12} parent=0 // pred_check_branch
    %16 = sbr.rel (0) target = $region13
  $region12: #{forward.12} parent=0 // pred_region
    _
  $region13: #{forward.12} parent=0 // pred_fallthru
    _
  // Predicated region
  $region14: #{forward.12} parent=0 // pred_check
    _
  $region15: #{forward.12} parent=0 // pred_check_branch
    %18 = sbr.rel (0) target = $region17
  $region16: #{forward.12} parent=0 // pred_region
    _
  $region17: #{forward.12} parent=0 // pred_fallthru
    _
  // Predicated region
  $region18: #{forward.12} parent=0 // pred_check
    _
  $region19: #{forward.12} parent=0 // pred_check_branch
    %20 = sbr.rel (0) target = $region21
  $region20: #{forward.12} parent=0 // pred_region
    _
  $region21: #{forward.12} parent=0 // pred_fallthru
    _
  // Predicated region
  $region22: #{forward.12} parent=0 // pred_check
    _
  $region23: #{forward.12} parent=0 // pred_check_branch
    %22 = sbr.rel (0) target = $region25
  $region24: #{forward.12} parent=0 // pred_region
    _
  $region25: #{forward.12} parent=0 // pred_fallthru
    _
  %v24 = vld [vmem:[%s0] sm:$0xff]
  %v25 = vld [vmem:[%s0 + $0x8] sm:$0xff]
  %v26 = vld [vmem:[%s0 + $0x10] sm:$0xff]
  %v27 = vld [vmem:[%s0 + $0x18] sm:$0xff]
  %v28 = vld [vmem:[%s0 + $0x20] sm:$0xff]
  %v29 = vld [vmem:[%s1] sm:$0x1]
  %v30 = vld [vmem:[%s2] sm:$0x1]
  %vm31 = vcmask 261120
  %v32 = vsel %vm31, %v24, 0.0
  %33 = vadd.xlane.f32.xlu0 %v32
  %v34 = vpop.xlane.xlu0 %33
  %v35 = vsel %vm31, %v25, 0.0
  %36 = vadd.xlane.f32.xlu0 %v35
  %v37 = vpop.xlane.xlu0 %36
  %v38 = vsel %vm31, %v26, 0.0
  %39 = vadd.xlane.f32.xlu0 %v38
  %v40 = vpop.xlane.xlu0 %39
  %v41 = vsel %vm31, %v27, 0.0
  %42 = vadd.xlane.f32.xlu0 %v41
  %v43 = vpop.xlane.xlu0 %42
  %v44 = vsel %vm31, %v28, 0.0
  %45 = vadd.xlane.f32.xlu0 %v44
  %v46 = vpop.xlane.xlu0 %45
  %v47 = vrcp.pop 32.0
  %v48 = vmul.f32 %v34, %v47
  %v49 = vmul.f32 %v37, %v47
  %v50 = vmul.f32 %v40, %v47
  %v51 = vmul.f32 %v43, %v47
  %v52 = vmul.f32 %v46, %v47
  %v53 = vsub.f32 %v24, %v48
  %v54 = vsub.f32 %v25, %v49
  %v55 = vsub.f32 %v26, %v50
  %v56 = vsub.f32 %v27, %v51
  %v57 = vsub.f32 %v28, %v52
  %v58 = vmul.f32 %v53, %v53
  %v59 = vmul.f32 %v54, %v54
  %v60 = vmul.f32 %v55, %v55
  %v61 = vmul.f32 %v56, %v56
  %v62 = vmul.f32 %v57, %v57
  %v63 = vsel %vm31, %v58, 0.0
  %64 = vadd.xlane.f32.xlu0 %v63
  %v65 = vpop.xlane.xlu0 %64
  %v66 = vsel %vm31, %v59, 0.0
  %67 = vadd.xlane.f32.xlu0 %v66
  %v68 = vpop.xlane.xlu0 %67
  %v69 = vsel %vm31, %v60, 0.0
  %70 = vadd.xlane.f32.xlu0 %v69
  %v71 = vpop.xlane.xlu0 %70
  %v72 = vsel %vm31, %v61, 0.0
  %73 = vadd.xlane.f32.xlu0 %v72
  %v74 = vpop.xlane.xlu0 %73
  %v75 = vsel %vm31, %v62, 0.0
  %76 = vadd.xlane.f32.xlu0 %v75
  %v77 = vpop.xlane.xlu0 %76
  %v78 = vmul.f32 %v65, %v47
  %v79 = vmul.f32 %v68, %v47
  %v80 = vmul.f32 %v71, %v47
  %v81 = vmul.f32 %v74, %v47
  %v82 = vmul.f32 %v77, %v47
  %v83 = vadd.f32 %v78, 1e-05
  %v84 = vadd.f32 %v79, 1e-05
  %v85 = vadd.f32 %v80, 1e-05
  %v86 = vadd.f32 %v81, 1e-05
  %v87 = vadd.f32 %v82, 1e-05
  %v88 = vrsqrt.pop %v83
  %v89 = vrsqrt.pop %v84
  %v90 = vrsqrt.pop %v85
  %v91 = vrsqrt.pop %v86
  %v92 = vrsqrt.pop %v87
  %v93 = vmul.f32 %v53, %v88
  %v94 = vmul.f32 %v54, %v89
  %v95 = vmul.f32 %v55, %v90
  %v96 = vmul.f32 %v56, %v91
  %v97 = vmul.f32 %v57, %v92
  %v99 = vlaneseq
  %v100 = vshrl.u32 %v99, 7
  %v101 = vsub.s32 0, %v100
  %v102 = vrot.slane %v29, %v101
  %v104 = vmul.f32 %v93, %v102
  %v105 = vmul.f32 %v94, %v102
  %v106 = vmul.f32 %v95, %v102
  %v107 = vmul.f32 %v96, %v102
  %v108 = vmul.f32 %v97, %v102
  %v110 = vlaneseq
  %v111 = vshrl.u32 %v110, 7
  %v112 = vsub.s32 0, %v111
  %v113 = vrot.slane %v30, %v112
  %v115 = vadd.f32 %v104, %v113
  %v116 = vadd.f32 %v105, %v113
  %v117 = vadd.f32 %v106, %v113
  %v118 = vadd.f32 %v107, %v113
  %v119 = vadd.f32 %v108, %v113
  %v120 = vpack.c.bf16 %v116, %v115
  %v121 = vpack.c.bf16 %v118, %v117
  %v122 = vpack.c.bf16 %v119, %v119
  %v123 = vld [vmem:[%s3] sm:$0xf]
  %v124 = vld [vmem:[%s3 + $0x4] sm:$0xf]
  %v125 = vld [vmem:[%s3 + $0x8] sm:$0xf]
  %v126 = vld [vmem:[%s3 + $0xc] sm:$0xf]
  %v127 = vld [vmem:[%s4] sm:$0x1]
  %v129 = vlaneseq
  %v130 = vshrl.u32 %v129, 7
  %v131 = vsub.s32 0, %v130
  %v132 = vrot.slane %v127, %v131
  %v138 = vunpack.c.l.b16 %v123
  %v139 = vunpack.c.l.b16 %v124
  %v140 = vunpack.c.l.b16 %v125
  %v141 = vunpack.c.l.b16 %v126
  %v142 = vpack.c.b16 %v139, %v138
  %v143 = vpack.c.b16 %v141, %v140
  %v147 = vsel %vm31, %v120, 0
  %v150 = vsel %vm31, %v121, 0
  %v153 = vsel %vm31, %v122, 0
  %155 = vmatprep.subr.bf16.mxu0 0
  %156 = vmatpush1.bf16.msra.mxu0 %v142
  %157 = vmatprep.subr.bf16.mxu0 0
  %158 = vmatpush1.bf16.msra.mxu0 %v143
  %159 = vmatprep.subr.bf16.mxu0 0
  %160 = vmatpush1.bf16.msra.mxu0 0
  %161 = vmatprep.subr.bf16.mxu0 0
  %162 = vmatpush1.bf16.msra.mxu0 0
  %163 = vmatprep.subr.bf16.mxu0 0
  %164 = vmatpush1.bf16.msra.mxu0 0
  %165 = vmatprep.subr.bf16.mxu0 0
  %166 = vmatpush1.bf16.msra.mxu0 0
  %167 = vmatprep.subr.bf16.mxu0 0
  %168 = vmatpush1.bf16.msra.mxu0 0
  %169 = vmatprep.subr.bf16.mxu0 0
  %170 = vmatpush1.bf16.msra.mxu0 0
  %171 = vmatprep.subr.bf16.mxu0 0
  %172 = vmatpush1.bf16.msra.mxu0 0
  %173 = vmatprep.subr.bf16.mxu0 0
  %174 = vmatpush1.bf16.msra.mxu0 0
  %175 = vmatprep.subr.bf16.mxu0 0
  %176 = vmatpush1.bf16.msra.mxu0 0
  %177 = vmatprep.subr.bf16.mxu0 0
  %178 = vmatpush1.bf16.msra.mxu0 0
  %179 = vmatprep.subr.bf16.mxu0 0
  %180 = vmatpush1.bf16.msra.mxu0 0
  %181 = vmatprep.subr.bf16.mxu0 0
  %182 = vmatpush1.bf16.msra.mxu0 0
  %183 = vmatprep.subr.bf16.mxu0 0
  %184 = vmatpush1.bf16.msra.mxu0 0
  %185 = vmatprep.subr.bf16.mxu0 0
  %186 = vmatpush1.bf16.msra.mxu0 0
  %187 = vmatprep.mubr.bf16.mxu0 0
  %188 = vmatmul.mubr.bf16.gmra.mrb[0].mxu0 %v147
  %v189 = vpop.f32.mrb[0].mxu0
  %v190 = vadd.f32 %v132, %v189
  %v191 = vpop.f32.mrb[0].mxu0
  %v192 = vpop.f32.mrb[0].mxu0
  %v193 = vadd.f32 %v132, %v192
  %v194 = vpop.f32.mrb[0].mxu0
  %195 = vmatprep.mubr.bf16.mxu0 0
  %196 = vmatmul.mubr.bf16.gmra.mrb[0].mxu0 %v150
  %v197 = vpop.f32.mrb[0].mxu0
  %v198 = vadd.f32 %v132, %v197
  %v199 = vpop.f32.mrb[0].mxu0
  %v200 = vpop.f32.mrb[0].mxu0
  %v201 = vadd.f32 %v132, %v200
  %v202 = vpop.f32.mrb[0].mxu0
  %203 = vmatprep.mubr.bf16.mxu0 0
  %204 = vmatmul.mubr.bf16.gmra.mrb[0].mxu0 %v153
  %v205 = vpop.f32.mrb[0].mxu0
  %v206 = vadd.f32 %v132, %v205
  %v207 = vpop.f32.mrb[0].mxu0
  %v208 = vpop.f32.mrb[0].mxu0
  %v209 = vpop.f32.mrb[0].mxu0
  %210 = vdwg.mxu0
  %v211 = vld [vmem:[%s5] sm:$0xff]
  %v212 = vld [vmem:[%s5 + $0x8] sm:$0xff]
  %v213 = vld [vmem:[%s5 + $0x10] sm:$0xff]
  %v214 = vld [vmem:[%s5 + $0x18] sm:$0xff]
  %v215 = vld [vmem:[%s5 + $0x20] sm:$0xff]
  %v216 = vadd.f32 %v190, %v211
  %v217 = vadd.f32 %v193, %v212
  %v218 = vadd.f32 %v198, %v213
  %v219 = vadd.f32 %v201, %v214
  %v220 = vadd.f32 %v206, %v215
  %221 = vst.msk [vmem:[%s6] sm:$0xff] %vm31, %v216
  %222 = vst.msk [vmem:[%s6 + $0x8] sm:$0xff] %vm31, %v217
  %223 = vst.msk [vmem:[%s6 + $0x10] sm:$0xff] %vm31, %v218
  %224 = vst.msk [vmem:[%s6 + $0x18] sm:$0xff] %vm31, %v219
  %225 = vst.msk [vmem:[%s6 + $0x20] sm:$0xff] %vm31, %v220
  // Predicated region
  $region26: #{forward.12} parent=0 // pred_check
    _
  $region27: #{forward.12} parent=0 // pred_check_branch
    %227 = sbr.rel (0) target = $region29
  $region28: #{forward.12} parent=0 // pred_region
    _
  $region29: #{forward.12} parent=0 // pred_fallthru
    _
  // Predicated region
  $region30: #{forward.12} parent=0 // pred_check
    _
  $region31: #{forward.12} parent=0 // pred_check_branch
    %229 = sbr.rel (0) target = $region33
  $region32: #{forward.12} parent=0 // pred_region
    _
  $region33: #{forward.12} parent=0 // pred_fallthru
    _

// kernel: forward.10
$region0: #{forward.10}
  #allocation0 [shape = 'u32[]', space=smem, size = 0x4, offset = 0x4, fixed_abs, tag = 'smem constant byte address 0x4 - core index']
  #allocation1 [shape = 'u32[144,128]{1,0:T(1,128)}', space=vmem, size = 0x12000, scoped, tag = 'internal scratch']
  %s0 = inlined_call_operand.vmem [shape: f32[8,5,32], index: 0, kind: input, shape index: {}]
  %s1 = inlined_call_operand.vmem [shape: f32[1,32], index: 1, kind: input, shape index: {}]
  %s2 = inlined_call_operand.vmem [shape: f32[1,32], index: 2, kind: input, shape index: {}]
  %s3 = inlined_call_operand.vmem [shape: bf16[32,96], index: 3, kind: input, shape index: {}]
  %s4 = inlined_call_operand.vmem [shape: f32[1,96], index: 4, kind: input, shape index: {}]
  %s5 = inlined_call_operand.vmem [shape: bf16[32,32], index: 5, kind: input, shape index: {}]
  %s6 = inlined_call_operand.vmem [shape: f32[1,32], index: 6, kind: input, shape index: {}]
  %s7 = inlined_call_operand.vmem [shape: f32[1,32], index: 7, kind: input, shape index: {}]
  %s8 = inlined_call_operand.vmem [shape: f32[1,32], index: 8, kind: input, shape index: {}]
  %s9 = inlined_call_operand.vmem [shape: bf16[32,128], index: 9, kind: input, shape index: {}]
  %s10 = inlined_call_operand.vmem [shape: f32[1,128], index: 10, kind: input, shape index: {}]
  %s11 = inlined_call_operand.vmem [shape: bf16[128,32], index: 11, kind: input, shape index: {}]
  %s12 = inlined_call_operand.vmem [shape: f32[1,32], index: 12, kind: input, shape index: {}]
  %s13 = inlined_call_operand.vmem [shape: f32[8,5,32], index: 13, kind: output, shape index: {}]
  %s14 = sld [smem:[#allocation0]]
  $region85: #{forward.10} parent=0
    _
  %s16 = ssub.s32 1, %s14
  %s17 = scalar_select 0, %s16, %s14
  loop: start=0, step=1, limit=10
  $region2: #{forward.10} parent=0 // loop_pre_header
    _
  $region3: #{forward.10} parent=0 // loop_header
    %s19 = sphi 0, %s23
    %p20 = scmp.ge.s32.totalorder %s19, 10
    %s29 = sphi 0, %s31
    %s32 = sphi 0, %s29
    %s33 = sphi 0, %s32
    %s49 = sphi 0, %s33
    %s53 = sphi 0, %s53
    %s55 = sphi 0, %s53
    %s56 = sphi 0, %s55
    %s70 = sphi 0, %s56
    %s74 = sphi 0, %s74
    %s76 = sphi 0, %s74
    %s77 = sphi 0, %s76
    %s91 = sphi 0, %s77
    %s95 = sphi 0, %s95
    %s97 = sphi 0, %s95
    %s98 = sphi 0, %s97
    %s112 = sphi 0, %s98
    %s116 = sphi 0, %s116
    %s118 = sphi 0, %s116
    %s119 = sphi 0, %s118
    %s133 = sphi 0, %s119
    %s137 = sphi 0, %s137
    %s139 = sphi 0, %s137
    %s140 = sphi 0, %s139
    %s154 = sphi 0, %s140
    %s158 = sphi 0, %s158
    %s160 = sphi 0, %s158
    %s161 = sphi 0, %s160
    %s175 = sphi 0, %s161
    %s179 = sphi 0, %s179
    %s181 = sphi 0, %s179
    %s182 = sphi 0, %s181
    %s196 = sphi 0, %s182
    %s200 = sphi 0, %s200
    %s202 = sphi 0, %s200
    %s203 = sphi 0, %s202
    %s217 = sphi 0, %s203
    %s221 = sphi 0, %s221
    %s223 = sphi 0, %s221
    %s224 = sphi 0, %s223
    %s238 = sphi 0, %s224
    %s242 = sphi 0, %s242
    %s244 = sphi 0, %s242
    %s245 = sphi 0, %s244
    %s259 = sphi 0, %s245
    %s263 = sphi 0, %s263
    %s265 = sphi 0, %s263
    %s266 = sphi 0, %s265
    %s280 = sphi 0, %s266
    %s284 = sphi 0, %s284
    %s286 = sphi 0, %s284
    %s287 = sphi 0, %s286
    %s301 = sphi 0, %s287
    %s307 = sphi 0, %s309
    %s310 = sphi 0, %s307
    %s311 = sphi 0, %s310
    %s327 = sphi 0, %s311
  $region4: #{forward.10} parent=0 // loop_header_branch
    %22 = sbr.rel (%p20) target = $region8
  $region5: #{forward.10} parent=0 // loop_body
    %s24 = ssub.s32 %s19, 1
    %s25 = ssub.s32 %s19, 2
    %s26 = sadd.s32 %s19, 1
    %s27 = ssub.s32 %s19, %s26
    %p28 = scmp.eq.s32.totalorder %s27, 0
    %s30 = sadd.s32 %s29, 1
    %s31 = scalar_select %p28, %s29, %s30
    %p34 = pneg %p28
    %p35 = scmp.eq.s32.totalorder %s19, 7
    %p36 = por %p34, %p35
    %p37 = scmp.ne.s32.totalorder %s29, %s32
    %p38 = scmp.eq.s32.totalorder %s19, 0
    %p39 = por %p37, %p38
    %p40 = scmp.ne.s32.totalorder %s29, %s32
    %p41 = scmp.eq.s32.totalorder %s24, 7
    %p42 = por %p40, %p41
    %p43 = scmp.ne.s32.totalorder %s32, %s33
    %p44 = scmp.eq.s32.totalorder %s24, 0
    %p45 = por %p43, %p44
    %p46 = scmp.ne.s32.totalorder %s32, %s33
    %p47 = scmp.eq.s32.totalorder %s25, 7
    %p48 = por %p46, %p47
    %p50 = scmp.ne.s32.totalorder %s33, %s49
    %p51 = scmp.eq.s32.totalorder %s25, 0
    %p52 = por %p50, %p51
    %s54 = sadd.s32 %s53, 1
    %p57 = scmp.eq.s32.totalorder %s19, 7
    %p58 = scmp.ne.s32.totalorder %s53, %s55
    %p59 = scmp.eq.s32.totalorder %s19, 0
    %p60 = por %p58, %p59
    %p61 = scmp.ne.s32.totalorder %s53, %s55
    %p62 = scmp.eq.s32.totalorder %s24, 7
    %p63 = por %p61, %p62
    %p64 = scmp.ne.s32.totalorder %s55, %s56
    %p65 = scmp.eq.s32.totalorder %s24, 0
    %p66 = por %p64, %p65
    %p67 = scmp.ne.s32.totalorder %s55, %s56
    %p68 = scmp.eq.s32.totalorder %s25, 7
    %p69 = por %p67, %p68
    %p71 = scmp.ne.s32.totalorder %s56, %s70
    %p72 = scmp.eq.s32.totalorder %s25, 0
    %p73 = por %p71, %p72
    %s75 = sadd.s32 %s74, 1
    %p78 = scmp.eq.s32.totalorder %s19, 7
    %p79 = scmp.ne.s32.totalorder %s74, %s76
    %p80 = scmp.eq.s32.totalorder %s19, 0
    %p81 = por %p79, %p80
    %p82 = scmp.ne.s32.totalorder %s74, %s76
    %p83 = scmp.eq.s32.totalorder %s24, 7
    %p84 = por %p82, %p83
    %p85 = scmp.ne.s32.totalorder %s76, %s77
    %p86 = scmp.eq.s32.totalorder %s24, 0
    %p87 = por %p85, %p86
    %p88 = scmp.ne.s32.totalorder %s76, %s77
    %p89 = scmp.eq.s32.totalorder %s25, 7
    %p90 = por %p88, %p89
    %p92 = scmp.ne.s32.totalorder %s77, %s91
    %p93 = scmp.eq.s32.totalorder %s25, 0
    %p94 = por %p92, %p93
    %s96 = sadd.s32 %s95, 1
    %p99 = scmp.eq.s32.totalorder %s19, 7
    %p100 = scmp.ne.s32.totalorder %s95, %s97
    %p101 = scmp.eq.s32.totalorder %s19, 0
    %p102 = por %p100, %p101
    %p103 = scmp.ne.s32.totalorder %s95, %s97
    %p104 = scmp.eq.s32.totalorder %s24, 7
    %p105 = por %p103, %p104
    %p106 = scmp.ne.s32.totalorder %s97, %s98
    %p107 = scmp.eq.s32.totalorder %s24, 0
    %p108 = por %p106, %p107
    %p109 = scmp.ne.s32.totalorder %s97, %s98
    %p110 = scmp.eq.s32.totalorder %s25, 7
    %p111 = por %p109, %p110
    %p113 = scmp.ne.s32.totalorder %s98, %s112
    %p114 = scmp.eq.s32.totalorder %s25, 0
    %p115 = por %p113, %p114
    %s117 = sadd.s32 %s116, 1
    %p120 = scmp.eq.s32.totalorder %s19, 7
    %p121 = scmp.ne.s32.totalorder %s116, %s118
    %p122 = scmp.eq.s32.totalorder %s19, 0
    %p123 = por %p121, %p122
    %p124 = scmp.ne.s32.totalorder %s116, %s118
    %p125 = scmp.eq.s32.totalorder %s24, 7
    %p126 = por %p124, %p125
    %p127 = scmp.ne.s32.totalorder %s118, %s119
    %p128 = scmp.eq.s32.totalorder %s24, 0
    %p129 = por %p127, %p128
    %p130 = scmp.ne.s32.totalorder %s118, %s119
    %p131 = scmp.eq.s32.totalorder %s25, 7
    %p132 = por %p130, %p131
    %p134 = scmp.ne.s32.totalorder %s119, %s133
    %p135 = scmp.eq.s32.totalorder %s25, 0
    %p136 = por %p134, %p135
    %s138 = sadd.s32 %s137, 1
    %p141 = scmp.eq.s32.totalorder %s19, 7
    %p142 = scmp.ne.s32.totalorder %s137, %s139
    %p143 = scmp.eq.s32.totalorder %s19, 0
    %p144 = por %p142, %p143
    %p145 = scmp.ne.s32.totalorder %s137, %s139
    %p146 = scmp.eq.s32.totalorder %s24, 7
    %p147 = por %p145, %p146
    %p148 = scmp.ne.s32.totalorder %s139, %s140
    %p149 = scmp.eq.s32.totalorder %s24, 0
    %p150 = por %p148, %p149
    %p151 = scmp.ne.s32.totalorder %s139, %s140
    %p152 = scmp.eq.s32.totalorder %s25, 7
    %p153 = por %p151, %p152
    %p155 = scmp.ne.s32.totalorder %s140, %s154
    %p156 = scmp.eq.s32.totalorder %s25, 0
    %p157 = por %p155, %p156
    %s159 = sadd.s32 %s158, 1
    %p162 = scmp.eq.s32.totalorder %s19, 7
    %p163 = scmp.ne.s32.totalorder %s158, %s160
    %p164 = scmp.eq.s32.totalorder %s19, 0
    %p165 = por %p163, %p164
    %p166 = scmp.ne.s32.totalorder %s158, %s160
    %p167 = scmp.eq.s32.totalorder %s24, 7
    %p168 = por %p166, %p167
    %p169 = scmp.ne.s32.totalorder %s160, %s161
    %p170 = scmp.eq.s32.totalorder %s24, 0
    %p171 = por %p169, %p170
    %p172 = scmp.ne.s32.totalorder %s160, %s161
    %p173 = scmp.eq.s32.totalorder %s25, 7
    %p174 = por %p172, %p173
    %p176 = scmp.ne.s32.totalorder %s161, %s175
    %p177 = scmp.eq.s32.totalorder %s25, 0
    %p178 = por %p176, %p177
    %s180 = sadd.s32 %s179, 1
    %p183 = scmp.eq.s32.totalorder %s19, 7
    %p184 = scmp.ne.s32.totalorder %s179, %s181
    %p185 = scmp.eq.s32.totalorder %s19, 0
    %p186 = por %p184, %p185
    %p187 = scmp.ne.s32.totalorder %s179, %s181
    %p188 = scmp.eq.s32.totalorder %s24, 7
    %p189 = por %p187, %p188
    %p190 = scmp.ne.s32.totalorder %s181, %s182
    %p191 = scmp.eq.s32.totalorder %s24, 0
    %p192 = por %p190, %p191
    %p193 = scmp.ne.s32.totalorder %s181, %s182
    %p194 = scmp.eq.s32.totalorder %s25, 7
    %p195 = por %p193, %p194
    %p197 = scmp.ne.s32.totalorder %s182, %s196
    %p198 = scmp.eq.s32.totalorder %s25, 0
    %p199 = por %p197, %p198
    %s201 = sadd.s32 %s200, 1
    %p204 = scmp.eq.s32.totalorder %s19, 7
    %p205 = scmp.ne.s32.totalorder %s200, %s202
    %p206 = scmp.eq.s32.totalorder %s19, 0
    %p207 = por %p205, %p206
    %p208 = scmp.ne.s32.totalorder %s200, %s202
    %p209 = scmp.eq.s32.totalorder %s24, 7
    %p210 = por %p208, %p209
    %p211 = scmp.ne.s32.totalorder %s202, %s203
    %p212 = scmp.eq.s32.totalorder %s24, 0
    %p213 = por %p211, %p212
    %p214 = scmp.ne.s32.totalorder %s202, %s203
    %p215 = scmp.eq.s32.totalorder %s25, 7
    %p216 = por %p214, %p215
    %p218 = scmp.ne.s32.totalorder %s203, %s217
    %p219 = scmp.eq.s32.totalorder %s25, 0
    %p220 = por %p218, %p219
    %s222 = sadd.s32 %s221, 1
    %p225 = scmp.eq.s32.totalorder %s19, 7
    %p226 = scmp.ne.s32.totalorder %s221, %s223
    %p227 = scmp.eq.s32.totalorder %s19, 0
    %p228 = por %p226, %p227
    %p229 = scmp.ne.s32.totalorder %s221, %s223
    %p230 = scmp.eq.s32.totalorder %s24, 7
    %p231 = por %p229, %p230
    %p232 = scmp.ne.s32.totalorder %s223, %s224
    %p233 = scmp.eq.s32.totalorder %s24, 0
    %p234 = por %p232, %p233
    %p235 = scmp.ne.s32.totalorder %s223, %s224
    %p236 = scmp.eq.s32.totalorder %s25, 7
    %p237 = por %p235, %p236
    %p239 = scmp.ne.s32.totalorder %s224, %s238
    %p240 = scmp.eq.s32.totalorder %s25, 0
    %p241 = por %p239, %p240
    %s243 = sadd.s32 %s242, 1
    %p246 = scmp.eq.s32.totalorder %s19, 7
    %p247 = scmp.ne.s32.totalorder %s242, %s244
    %p248 = scmp.eq.s32.totalorder %s19, 0
    %p249 = por %p247, %p248
    %p250 = scmp.ne.s32.totalorder %s242, %s244
    %p251 = scmp.eq.s32.totalorder %s24, 7
    %p252 = por %p250, %p251
    %p253 = scmp.ne.s32.totalorder %s244, %s245
    %p254 = scmp.eq.s32.totalorder %s24, 0
    %p255 = por %p253, %p254
    %p256 = scmp.ne.s32.totalorder %s244, %s245
    %p257 = scmp.eq.s32.totalorder %s25, 7
    %p258 = por %p256, %p257
    %p260 = scmp.ne.s32.totalorder %s245, %s259
    %p261 = scmp.eq.s32.totalorder %s25, 0
    %p262 = por %p260, %p261
    %s264 = sadd.s32 %s263, 1
    %p267 = scmp.eq.s32.totalorder %s19, 7
    %p268 = scmp.ne.s32.totalorder %s263, %s265
    %p269 = scmp.eq.s32.totalorder %s19, 0
    %p270 = por %p268, %p269
    %p271 = scmp.ne.s32.totalorder %s263, %s265
    %p272 = scmp.eq.s32.totalorder %s24, 7
    %p273 = por %p271, %p272
    %p274 = scmp.ne.s32.totalorder %s265, %s266
    %p275 = scmp.eq.s32.totalorder %s24, 0
    %p276 = por %p274, %p275
    %p277 = scmp.ne.s32.totalorder %s265, %s266
    %p278 = scmp.eq.s32.totalorder %s25, 7
    %p279 = por %p277, %p278
    %p281 = scmp.ne.s32.totalorder %s266, %s280
    %p282 = scmp.eq.s32.totalorder %s25, 0
    %p283 = por %p281, %p282
    %s285 = sadd.s32 %s284, 1
    %p288 = scmp.eq.s32.totalorder %s19, 7
    %p289 = scmp.ne.s32.totalorder %s284, %s286
    %p290 = scmp.eq.s32.totalorder %s19, 0
    %p291 = por %p289, %p290
    %p292 = scmp.ne.s32.totalorder %s284, %s286
    %p293 = scmp.eq.s32.totalorder %s24, 7
    %p294 = por %p292, %p293
    %p295 = scmp.ne.s32.totalorder %s286, %s287
    %p296 = scmp.eq.s32.totalorder %s24, 0
    %p297 = por %p295, %p296
    %p298 = scmp.ne.s32.totalorder %s286, %s287
    %p299 = scmp.eq.s32.totalorder %s25, 7
    %p300 = por %p298, %p299
    %p302 = scmp.ne.s32.totalorder %s287, %s301
    %p303 = scmp.eq.s32.totalorder %s25, 0
    %p304 = por %p302, %p303
    %s305 = ssub.s32 %s19, %s26
    %p306 = scmp.eq.s32.totalorder %s305, 0
    %s308 = sadd.s32 %s307, 1
    %s309 = scalar_select %p306, %s307, %s308
    %p312 = pneg %p306
    %p313 = scmp.eq.s32.totalorder %s19, 7
    %p314 = por %p312, %p313
    %p315 = scmp.ne.s32.totalorder %s307, %s310
    %p316 = scmp.eq.s32.totalorder %s19, 0
    %p317 = por %p315, %p316
    %p318 = scmp.ne.s32.totalorder %s307, %s310
    %p319 = scmp.eq.s32.totalorder %s24, 7
    %p320 = por %p318, %p319
    %p321 = scmp.ne.s32.totalorder %s310, %s311
    %p322 = scmp.eq.s32.totalorder %s24, 0
    %p323 = por %p321, %p322
    %p324 = scmp.ne.s32.totalorder %s310, %s311
    %p325 = scmp.eq.s32.totalorder %s25, 7
    %p326 = por %p324, %p325
    %p328 = scmp.ne.s32.totalorder %s311, %s327
    %p329 = scmp.eq.s32.totalorder %s25, 0
    %p330 = por %p328, %p329
    %p331 = scmp.le.s32.totalorder 1, %s19
    %p332 = scmp.lt.s32.totalorder %s19, 9
    %p333 = pnand %p331, %p332
    %p334 = pneg %p333
    // Predicated region
    $region9: #{forward.10} parent=5 // pred_check
      _
    $region10: #{forward.10} parent=5 // pred_check_branch
      %336 = sbr.rel (%p333) target = $region12
    $region11: #{forward.10} parent=5 // pred_region
      %s337 = ssub.s32 %s19, 1
      // Predicated region
      $region13: #{forward.10} parent=11 // pred_check
        %p338 = pneg %p66
      $region14: #{forward.10} parent=11 // pred_check_branch
        %340 = sbr.rel (%p338) target = $region16
      $region15: #{forward.10} parent=11 // pred_region
        _
      $region16: #{forward.10} parent=11 // pred_fallthru
        _
      // Predicated region
      $region17: #{forward.10} parent=11 // pred_check
        %p341 = pneg %p87
      $region18: #{forward.10} parent=11 // pred_check_branch
        %343 = sbr.rel (%p341) target = $region20
      $region19: #{forward.10} parent=11 // pred_region
        _
      $region20: #{forward.10} parent=11 // pred_fallthru
        _
      // Predicated region
      $region21: #{forward.10} parent=11 // pred_check
        %p344 = pneg %p108
      $region22: #{forward.10} parent=11 // pred_check_branch
        %346 = sbr.rel (%p344) target = $region24
      $region23: #{forward.10} parent=11 // pred_region
        _
      $region24: #{forward.10} parent=11 // pred_fallthru
        _
      // Predicated region
      $region25: #{forward.10} parent=11 // pred_check
        %p347 = pneg %p129
      $region26: #{forward.10} parent=11 // pred_check_branch
        %349 = sbr.rel (%p347) target = $region28
      $region27: #{forward.10} parent=11 // pred_region
        _
      $region28: #{forward.10} parent=11 // pred_fallthru
        _
      // Predicated region
      $region29: #{forward.10} parent=11 // pred_check
        %p350 = pneg %p150
      $region30: #{forward.10} parent=11 // pred_check_branch
        %352 = sbr.rel (%p350) target = $region32
      $region31: #{forward.10} parent=11 // pred_region
        _
      $region32: #{forward.10} parent=11 // pred_fallthru
        _
      // Predicated region
      $region33: #{forward.10} parent=11 // pred_check
        %p353 = pneg %p171
      $region34: #{forward.10} parent=11 // pred_check_branch
        %355 = sbr.rel (%p353) target = $region36
      $region35: #{forward.10} parent=11 // pred_region
        _
      $region36: #{forward.10} parent=11 // pred_fallthru
        _
      // Predicated region
      $region37: #{forward.10} parent=11 // pred_check
        %p356 = pneg %p192
      $region38: #{forward.10} parent=11 // pred_check_branch
        %358 = sbr.rel (%p356) target = $region40
      $region39: #{forward.10} parent=11 // pred_region
        _
      $region40: #{forward.10} parent=11 // pred_fallthru
        _
      // Predicated region
      $region41: #{forward.10} parent=11 // pred_check
        %p359 = pneg %p213
      $region42: #{forward.10} parent=11 // pred_check_branch
        %361 = sbr.rel (%p359) target = $region44
      $region43: #{forward.10} parent=11 // pred_region
        _
      $region44: #{forward.10} parent=11 // pred_fallthru
        _
      // Predicated region
      $region45: #{forward.10} parent=11 // pred_check
        %p362 = pneg %p234
      $region46: #{forward.10} parent=11 // pred_check_branch
        %364 = sbr.rel (%p362) target = $region48
      $region47: #{forward.10} parent=11 // pred_region
        _
      $region48: #{forward.10} parent=11 // pred_fallthru
        _
      // Predicated region
      $region49: #{forward.10} parent=11 // pred_check
        %p365 = pneg %p255
      $region50: #{forward.10} parent=11 // pred_check_branch
        %367 = sbr.rel (%p365) target = $region52
      $region51: #{forward.10} parent=11 // pred_region
        _
      $region52: #{forward.10} parent=11 // pred_fallthru
        _
      // Predicated region
      $region53: #{forward.10} parent=11 // pred_check
        %p368 = pneg %p276
      $region54: #{forward.10} parent=11 // pred_check_branch
        %370 = sbr.rel (%p368) target = $region56
      $region55: #{forward.10} parent=11 // pred_region
        _
      $region56: #{forward.10} parent=11 // pred_fallthru
        _
      // Predicated region
      $region57: #{forward.10} parent=11 // pred_check
        %p371 = pneg %p297
      $region58: #{forward.10} parent=11 // pred_check_branch
        %373 = sbr.rel (%p371) target = $region60
      $region59: #{forward.10} parent=11 // pred_region
        _
      $region60: #{forward.10} parent=11 // pred_fallthru
        _
    $region12: #{forward.10} parent=5 // pred_fallthru
      _
    %p374 = scmp.lt.s32.totalorder %s19, 8
    // Predicated region
    $region61: #{forward.10} parent=5 // pred_check
      %p375 = pneg %p374
    $region62: #{forward.10} parent=5 // pred_check_branch
      %377 = sbr.rel (%p375) target = $region64
    $region63: #{forward.10} parent=5 // pred_region
      // Predicated region
      $region65: #{forward.10} parent=63 // pred_check
        %p378 = pneg %p39
      $region66: #{forward.10} parent=63 // pred_check_branch
        %380 = sbr.rel (%p378) target = $region68
      $region67: #{forward.10} parent=63 // pred_region
        %p381 = scmp.lt.s32.totalorder %s19, 7
        %s382 = scalar_select %p381, %s19, 7
        %s383 = smul.addr %s382, 8
        %s384 = scalar_lea.vmem %s0, %s383
      $region68: #{forward.10} parent=63 // pred_fallthru
        _
    $region64: #{forward.10} parent=5 // pred_fallthru
      _
    %p385 = scmp.le.s32.totalorder 1, %s19
    %p386 = scmp.lt.s32.totalorder %s19, 9
    %p387 = pnand %p385, %p386
    %p388 = pneg %p387
    // Predicated region
    $region69: #{forward.10} parent=5 // pred_check
      _
    $region70: #{forward.10} parent=5 // pred_check_branch
      %390 = sbr.rel (%p387) target = $region72
    $region71: #{forward.10} parent=5 // pred_region
      %s391 = ssub.s32 %s19, 1
      %p392 = scmp.lt.s32.totalorder %s24, 7
      %s393 = scalar_select %p392, %s24, 7
      %s394 = smul.addr %s393, 8
      %s395 = scalar_lea.vmem %s0, %s394
      %p396 = pneg %p45
      %p397 = pneg %p42
      %p398 = pneg %p66
      %p399 = pneg %p63
      %p400 = pneg %p87
      %p401 = pneg %p84
      %p402 = pneg %p108
      %p403 = pneg %p105
      %p404 = pneg %p129
      %p405 = pneg %p126
      %p406 = pneg %p150
      %p407 = pneg %p147
      %p408 = pneg %p171
      %p409 = pneg %p168
      %p410 = pneg %p192
      %p411 = pneg %p189
      %p412 = pneg %p213
      %p413 = pneg %p210
      %p414 = pneg %p234
      %p415 = pneg %p231
      %p416 = pneg %p255
      %p417 = pneg %p252
      %p418 = pneg %p276
      %p419 = pneg %p273
      %p420 = pneg %p297
      %p421 = pneg %p294
      %p422 = pneg %p323
      %p423 = pneg %p320
      %p424 = scmp.lt.s32.totalorder %s24, 7
      %s425 = scalar_select %p424, %s24, 7
      %s426 = smul.addr %s425, 8
      %s427 = scalar_lea.vmem %s13, %s426
      %p428 = scmp.lt.s32.totalorder %s24, 7
      %s429 = scalar_select %p428, %s24, 7
      %s430 = smul.addr %s429, 8
      %s431 = scalar_lea.vmem %s0, %s430
      %p432 = scmp.lt.s32.totalorder %s24, 7
      %s433 = scalar_select %p432, %s24, 7
      %s434 = smul.addr %s433, 8
      %s435 = scalar_lea.vmem %s13, %s434
      %v437 = vld [vmem:[%s431] sm:$0x1f]
      %v438 = vld [vmem:[%s1] sm:$0x1]
      %v439 = vld [vmem:[%s2] sm:$0x1]
      %vm440 = vcmask 258048
      %v441 = vsel %vm440, %v437, 0.0
      %442 = vadd.xlane.f32.xlu0 %v441
      %v443 = vpop.xlane.xlu0 %442
      %v444 = vrcp.pop 32.0
      %v445 = vmul.f32 %v443, %v444
      %v446 = vsub.f32 %v437, %v445
      %v447 = vmul.f32 %v446, %v446
      %v448 = vsel %vm440, %v447, 0.0
      %449 = vadd.xlane.f32.xlu0 %v448
      %v450 = vpop.xlane.xlu0 %449
      %v451 = vmul.f32 %v450, %v444
      %v452 = vadd.f32 %v451, 1e-05
      %v453 = vrsqrt.pop %v452
      %v454 = vmul.f32 %v446, %v453
      %v456 = vlaneseq
      %v457 = vshrl.u32 %v456, 7
      %v458 = vsub.s32 0, %v457
      %v459 = vrot.slane %v438, %v458
      %v461 = vmul.f32 %v454, %v459
      %v463 = vlaneseq
      %v464 = vshrl.u32 %v463, 7
      %v465 = vsub.s32 0, %v464
      %v466 = vrot.slane %v439, %v465
      %v468 = vadd.f32 %v461, %v466
      %v469 = vpack.c.bf16 %v468, %v468
      %v470 = vld [vmem:[%s3] sm:$0xf]
      %v471 = vld [vmem:[%s3 + $0x4] sm:$0xf]
      %v472 = vld [vmem:[%s3 + $0x8] sm:$0xf]
      %v473 = vld [vmem:[%s3 + $0xc] sm:$0xf]
      %v474 = vld [vmem:[%s4] sm:$0x1]
      %v476 = vlaneseq
      %v477 = vshrl.u32 %v476, 7
      %v478 = vsub.s32 0, %v477
      %v479 = vrot.slane %v474, %v478
      %v485 = vunpack.c.l.b16 %v470
      %v486 = vunpack.c.l.b16 %v471
      %v487 = vunpack.c.l.b16 %v472
      %v488 = vunpack.c.l.b16 %v473
      %v489 = vpack.c.b16 %v486, %v485
      %v490 = vpack.c.b16 %v488, %v487
      %vm493 = vcmask 261120
      %v495 = vsel %vm493, %v469, 0
      %497 = vmatprep.subr.bf16.mxu0 0
      %498 = vmatpush1.bf16.msra.mxu0 %v489
      %499 = vmatprep.subr.bf16.mxu0 0
      %500 = vmatpush1.bf16.msra.mxu0 %v490
      %501 = vmatprep.subr.bf16.mxu0 0
      %502 = vmatpush1.bf16.msra.mxu0 0
      %503 = vmatprep.subr.bf16.mxu0 0
      %504 = vmatpush1.bf16.msra.mxu0 0
      %505 = vmatprep.subr.bf16.mxu0 0
      %506 = vmatpush1.bf16.msra.mxu0 0
      %507 = vmatprep.subr.bf16.mxu0 0
      %508 = vmatpush1.bf16.msra.mxu0 0
      %509 = vmatprep.subr.bf16.mxu0 0
      %510 = vmatpush1.bf16.msra.mxu0 0
      %511 = vmatprep.subr.bf16.mxu0 0
      %512 = vmatpush1.bf16.msra.mxu0 0
      %513 = vmatprep.subr.bf16.mxu0 0
      %514 = vmatpush1.bf16.msra.mxu0 0
      %515 = vmatprep.subr.bf16.mxu0 0
      %516 = vmatpush1.bf16.msra.mxu0 0
      %517 = vmatprep.subr.bf16.mxu0 0
      %518 = vmatpush1.bf16.msra.mxu0 0
      %519 = vmatprep.subr.bf16.mxu0 0
      %520 = vmatpush1.bf16.msra.mxu0 0
      %521 = vmatprep.subr.bf16.mxu0 0
      %522 = vmatpush1.bf16.msra.mxu0 0
      %523 = vmatprep.subr.bf16.mxu0 0
      %524 = vmatpush1.bf16.msra.mxu0 0
      %525 = vmatprep.subr.bf16.mxu0 0
      %526 = vmatpush1.bf16.msra.mxu0 0
      %527 = vmatprep.subr.bf16.mxu0 0
      %528 = vmatpush1.bf16.msra.mxu0 0
      %529 = vmatprep.mubr.bf16.mxu0 0
      %530 = vmatmul.mubr.bf16.gmra.mrb[0].mxu0 %v495
      %v531 = vpop.f32.mrb[0].mxu0
      %v532 = vadd.f32 %v479, %v531
      %v533 = vpop.f32.mrb[0].mxu0
      %v534 = vpop.f32.mrb[0].mxu0
      %v535 = vpop.f32.mrb[0].mxu0
      %536 = vdwg.mxu0
      %v537 = vld [vmem:[%s5] sm:$0xf]
      %v538 = vld [vmem:[%s5 + $0x4] sm:$0xf]
      %v539 = vld [vmem:[%s5 + $0x8] sm:$0xf]
      %v540 = vld [vmem:[%s5 + $0xc] sm:$0xf]
      %v541 = vpack.c.bf16 %v532, %v532
      %543 = vrot.lane.b32.xlu0 %v541, 96
      %v544 = vpop.permute.xlu0 %543
      %vm545 = vcmask 64512
      %v547 = vsel %vm545, %v541, 0
      %v550 = vsel %vm545, %v544, 0
      %552 = vmatprep.subr.bf16.mxu0 0
      %553 = vmatpush1.bf16.xpose.msra.mxu0 %v550
      %554 = vmatprep.subr.bf16.mxu0 0
      %555 = vmatpush1.bf16.xpose.msra.mxu0 0
      %556 = vmatprep.subr.bf16.mxu0 0
      %557 = vmatpush1.bf16.xpose.msra.mxu0 0
      %558 = vmatprep.subr.bf16.mxu0 0
      %559 = vmatpush1.bf16.xpose.msra.mxu0 0
      %560 = vmatprep.subr.bf16.mxu0 0
      %561 = vmatpush1.bf16.xpose.msra.mxu0 0
      %562 = vmatprep.subr.bf16.mxu0 0
      %563 = vmatpush1.bf16.xpose.msra.mxu0 0
      %564 = vmatprep.subr.bf16.mxu0 0
      %565 = vmatpush1.bf16.xpose.msra.mxu0 0
      %566 = vmatprep.subr.bf16.mxu0 0
      %567 = vmatpush1.bf16.xpose.msra.mxu0 0
      %568 = vmatprep.subr.bf16.mxu0 0
      %569 = vmatpush1.bf16.xpose.msra.mxu0 0
      %570 = vmatprep.subr.bf16.mxu0 0
      %571 = vmatpush1.bf16.xpose.msra.mxu0 0
      %572 = vmatprep.subr.bf16.mxu0 0
      %573 = vmatpush1.bf16.xpose.msra.mxu0 0
      %574 = vmatprep.subr.bf16.mxu0 0
      %575 = vmatpush1.bf16.xpose.msra.mxu0 0
      %576 = vmatprep.subr.bf16.mxu0 0
      %577 = vmatpush1.bf16.xpose.msra.mxu0 0
      %578 = vmatprep.subr.bf16.mxu0 0
      %579 = vmatpush1.bf16.xpose.msra.mxu0 0
      %580 = vmatprep.subr.bf16.mxu0 0
      %581 = vmatpush1.bf16.xpose.msra.mxu0 0
      %582 = vmatprep.subr.bf16.mxu0 0
      %583 = vmatpush1.bf16.xpose.msra.mxu0 0
      %584 = vmatprep.mubr.bf16.mxu0 0
      %585 = vmatmul.mubr.bf16.gmra.mrb[0].mxu0 %v547
      %v586 = vpop.f32.mrb[0].mxu0
      %v587 = vadd.f32 0.0, %v586
      %v588 = vpop.f32.mrb[0].mxu0
      %v589 = vpop.f32.mrb[0].mxu0
      %v590 = vpop.f32.mrb[0].mxu0
      %591 = vdwg.mxu0
      %v592 = vmul.f32 %v587, 0.35355338
      %vm593 = vcmask 36864
      %v594 = vsel %vm593, %v592, -inf
      %595 = vmax.xlane.f32.xlu0 %v594
      %v596 = vpop.xlane.xlu0 %595
      %v597 = vsub.f32 %v592, %v596
      %v598 = vmul.f32 %v597, 1.442695
      %v599 = vpow.pop %v598
      %v600 = vsel %vm593, %v599, 0.0
      %601 = vadd.xlane.f32.xlu0 %v600
      %v602 = vpop.xlane.xlu0 %601
      %v603 = vrcp.pop %v602
      %v604 = vmul.f32 %v599, %v603
      %v605 = vpack.c.bf16 %v604, %v604
      %606 = vrot.lane.b32.xlu0 %v541, 64
      %v607 = vpop.permute.xlu0 %606
      %vm608 = vcmask 39936
      %v610 = vsel %vm608, %v605, 0
      %vm612 = vcmask 1041408
      %vm613 = vcmask 1042432
      %v614 = vsel %vm612, 4294967295, 65535
      %v615 = vsel %vm613, %v614, 0
      %v617 = vand.u32 %v607, %v615
      %619 = vmatprep.subr.bf16.mxu0 0
      %620 = vmatpush1.bf16.msra.mxu0 %v617
      %621 = vmatprep.subr.bf16.mxu0 0
      %622 = vmatpush1.bf16.msra.mxu0 0
      %623 = vmatprep.subr.bf16.mxu0 0
      %624 = vmatpush1.bf16.msra.mxu0 0
      %625 = vmatprep.subr.bf16.mxu0 0
      %626 = vmatpush1.bf16.msra.mxu0 0
      %627 = vmatprep.subr.bf16.mxu0 0
      %628 = vmatpush1.bf16.msra.mxu0 0
      %629 = vmatprep.subr.bf16.mxu0 0
      %630 = vmatpush1.bf16.msra.mxu0 0
      %631 = vmatprep.subr.bf16.mxu0 0
      %632 = vmatpush1.bf16.msra.mxu0 0
      %633 = vmatprep.subr.bf16.mxu0 0
      %634 = vmatpush1.bf16.msra.mxu0 0
      %635 = vmatprep.subr.bf16.mxu0 0
      %636 = vmatpush1.bf16.msra.mxu0 0
      %637 = vmatprep.subr.bf16.mxu0 0
      %638 = vmatpush1.bf16.msra.mxu0 0
      %639 = vmatprep.subr.bf16.mxu0 0
      %640 = vmatpush1.bf16.msra.mxu0 0
      %641 = vmatprep.subr.bf16.mxu0 0
      %642 = vmatpush1.bf16.msra.mxu0 0
      %643 = vmatprep.subr.bf16.mxu0 0
      %644 = vmatpush1.bf16.msra.mxu0 0
      %645 = vmatprep.subr.bf16.mxu0 0
      %646 = vmatpush1.bf16.msra.mxu0 0
      %647 = vmatprep.subr.bf16.mxu0 0
      %648 = vmatpush1.bf16.msra.mxu0 0
      %649 = vmatprep.subr.bf16.mxu0 0
      %650 = vmatpush1.bf16.msra.mxu0 0
      %651 = vmatprep.mubr.bf16.mxu0 0
      %652 = vmatmul.mubr.bf16.gmra.mrb[0].mxu0 %v610
      %v653 = vpop.f32.mrb[0].mxu0
      %v654 = vadd.f32 0.0, %v653
      %v655 = vpop.f32.mrb[0].mxu0
      %v656 = vpop.f32.mrb[0].mxu0
      %v657 = vpop.f32.mrb[0].mxu0
      %658 = vdwg.mxu0
      %v659 = vpack.c.bf16 %v654, %v654
      %660 = vrot.lane.b32.xlu0 %v541, 120
      %v661 = vpop.permute.xlu0 %660
      %662 = vrot.lane.b32.xlu0 %v541, 88
      %v663 = vpop.permute.xlu0 %662
      %v665 = vsel %vm545, %v661, 0
      %v668 = vsel %vm545, %v663, 0
      %670 = vmatprep.subr.bf16.mxu0 0
      %671 = vmatpush1.bf16.xpose.msra.mxu0 %v668
      %672 = vmatprep.subr.bf16.mxu0 0
      %673 = vmatpush1.bf16.xpose.msra.mxu0 0
      %674 = vmatprep.subr.bf16.mxu0 0
      %675 = vmatpush1.bf16.xpose.msra.mxu0 0
      %676 = vmatprep.subr.bf16.mxu0 0
      %677 = vmatpush1.bf16.xpose.msra.mxu0 0
      %678 = vmatprep.subr.bf16.mxu0 0
      %679 = vmatpush1.bf16.xpose.msra.mxu0 0
      %680 = vmatprep.subr.bf16.mxu0 0
      %681 = vmatpush1.bf16.xpose.msra.mxu0 0
      %682 = vmatprep.subr.bf16.mxu0 0
      %683 = vmatpush1.bf16.xpose.msra.mxu0 0
      %684 = vmatprep.subr.bf16.mxu0 0
      %685 = vmatpush1.bf16.xpose.msra.mxu0 0
      %686 = vmatprep.subr.bf16.mxu0 0
      %687 = vmatpush1.bf16.xpose.msra.mxu0 0
      %688 = vmatprep.subr.bf16.mxu0 0
      %689 = vmatpush1.bf16.xpose.msra.mxu0 0
      %690 = vmatprep.subr.bf16.mxu0 0
      %691 = vmatpush1.bf16.xpose.msra.mxu0 0
      %692 = vmatprep.subr.bf16.mxu0 0
      %693 = vmatpush1.bf16.xpose.msra.mxu0 0
      %694 = vmatprep.subr.bf16.mxu0 0
      %695 = vmatpush1.bf16.xpose.msra.mxu0 0
      %696 = vmatprep.subr.bf16.mxu0 0
      %697 = vmatpush1.bf16.xpose.msra.mxu0 0
      %698 = vmatprep.subr.bf16.mxu0 0
      %699 = vmatpush1.bf16.xpose.msra.mxu0 0
      %700 = vmatprep.subr.bf16.mxu0 0
      %701 = vmatpush1.bf16.xpose.msra.mxu0 0
      %702 = vmatprep.mubr.bf16.mxu0 0
      %703 = vmatmul.mubr.bf16.gmra.mrb[0].mxu0 %v665
      %v704 = vpop.f32.mrb[0].mxu0
      %v705 = vadd.f32 0.0, %v704
      %v706 = vpop.f32.mrb[0].mxu0
      %v707 = vpop.f32.mrb[0].mxu0
      %v708 = vpop.f32.mrb[0].mxu0
      %709 = vdwg.mxu0
      %v710 = vmul.f32 %v705, 0.35355338
      %v711 = vsel %vm593, %v710, -inf
      %712 = vmax.xlane.f32.xlu0 %v711
      %v713 = vpop.xlane.xlu0 %712
      %v714 = vsub.f32 %v710, %v713
      %v715 = vmul.f32 %v714, 1.442695
      %v716 = vpow.pop %v715
      %v717 = vsel %vm593, %v716, 0.0
      %718 = vadd.xlane.f32.xlu0 %v717
      %v719 = vpop.xlane.xlu0 %718
      %v720 = vrcp.pop %v719
      %v721 = vmul.f32 %v716, %v720
      %v722 = vpack.c.bf16 %v721, %v721
      %723 = vrot.lane.b32.xlu0 %v541, 56
      %v724 = vpop.permute.xlu0 %723
      %v726 = vsel %vm608, %v722, 0
      %v729 = vand.u32 %v724, %v615
      %731 = vmatprep.subr.bf16.mxu0 0
      %732 = vmatpush1.bf16.msra.mxu0 %v729
      %733 = vmatprep.subr.bf16.mxu0 0
      %734 = vmatpush1.bf16.msra.mxu0 0
      %735 = vmatprep.subr.bf16.mxu0 0
      %736 = vmatpush1.bf16.msra.mxu0 0
      %737 = vmatprep.subr.bf16.mxu0 0
      %738 = vmatpush1.bf16.msra.mxu0 0
      %739 = vmatprep.subr.bf16.mxu0 0
      %740 = vmatpush1.bf16.msra.mxu0 0
      %741 = vmatprep.subr.bf16.mxu0 0
      %742 = vmatpush1.bf16.msra.mxu0 0
      %743 = vmatprep.subr.bf16.mxu0 0
      %744 = vmatpush1.bf16.msra.mxu0 0
      %745 = vmatprep.subr.bf16.mxu0 0
      %746 = vmatpush1.bf16.msra.mxu0 0
      %747 = vmatprep.subr.bf16.mxu0 0
      %748 = vmatpush1.bf16.msra.mxu0 0
      %749 = vmatprep.subr.bf16.mxu0 0
      %750 = vmatpush1.bf16.msra.mxu0 0
      %751 = vmatprep.subr.bf16.mxu0 0
      %752 = vmatpush1.bf16.msra.mxu0 0
      %753 = vmatprep.subr.bf16.mxu0 0
      %754 = vmatpush1.bf16.msra.mxu0 0
      %755 = vmatprep.subr.bf16.mxu0 0
      %756 = vmatpush1.bf16.msra.mxu0 0
      %757 = vmatprep.subr.bf16.mxu0 0
      %758 = vmatpush1.bf16.msra.mxu0 0
      %759 = vmatprep.subr.bf16.mxu0 0
      %760 = vmatpush1.bf16.msra.mxu0 0
      %761 = vmatprep.subr.bf16.mxu0 0
      %762 = vmatpush1.bf16.msra.mxu0 0
      %763 = vmatprep.mubr.bf16.mxu0 0
      %764 = vmatmul.mubr.bf16.gmra.mrb[0].mxu0 %v726
      %v765 = vpop.f32.mrb[0].mxu0
      %v766 = vadd.f32 0.0, %v765
      %v767 = vpop.f32.mrb[0].mxu0
      %v768 = vpop.f32.mrb[0].mxu0
      %v769 = vpop.f32.mrb[0].mxu0
      %770 = vdwg.mxu0
      %v771 = vpack.c.bf16 %v766, %v766
      %v773 = vsel %vm545, %v771, 0
      %vm775 = vcmask 1043456
      %v777 = vsel %vm775, %v538, 0
      %779 = vmatprep.subr.bf16.mxu0 0
      %780 = vmatpush1.bf16.msra.mxu0 %v777
      %781 = vmatprep.subr.bf16.mxu0 0
      %782 = vmatpush1.bf16.msra.mxu0 0
      %783 = vmatprep.subr.bf16.mxu0 0
      %784 = vmatpush1.bf16.msra.mxu0 0
      %785 = vmatprep.subr.bf16.mxu0 0
      %786 = vmatpush1.bf16.msra.mxu0 0
      %787 = vmatprep.subr.bf16.mxu0 0
      %788 = vmatpush1.bf16.msra.mxu0 0
      %789 = vmatprep.subr.bf16.mxu0 0
      %790 = vmatpush1.bf16.msra.mxu0 0
      %791 = vmatprep.subr.bf16.mxu0 0
      %792 = vmatpush1.bf16.msra.mxu0 0
      %793 = vmatprep.subr.bf16.mxu0 0
      %794 = vmatpush1.bf16.msra.mxu0 0
      %795 = vmatprep.subr.bf16.mxu0 0
      %796 = vmatpush1.bf16.msra.mxu0 0
      %797 = vmatprep.subr.bf16.mxu0 0
      %798 = vmatpush1.bf16.msra.mxu0 0
      %799 = vmatprep.subr.bf16.mxu0 0
      %800 = vmatpush1.bf16.msra.mxu0 0
      %801 = vmatprep.subr.bf16.mxu0 0
      %802 = vmatpush1.bf16.msra.mxu0 0
      %803 = vmatprep.subr.bf16.mxu0 0
      %804 = vmatpush1.bf16.msra.mxu0 0
      %805 = vmatprep.subr.bf16.mxu0 0
      %806 = vmatpush1.bf16.msra.mxu0 0
      %807 = vmatprep.subr.bf16.mxu0 0
      %808 = vmatpush1.bf16.msra.mxu0 0
      %809 = vmatprep.subr.bf16.mxu0 0
      %810 = vmatpush1.bf16.msra.mxu0 0
      %811 = vmatprep.mubr.bf16.mxu0 0
      %812 = vmatmul.mubr.bf16.gmra.mrb[0].mxu0 %v773
      %v813 = vpop.f32.mrb[0].mxu0
      %v814 = vadd.f32 0.0, %v813
      %v815 = vpop.f32.mrb[0].mxu0
      %v816 = vpop.f32.mrb[0].mxu0
      %v817 = vpop.f32.mrb[0].mxu0
      %818 = vdwg.mxu0
      %v820 = vsel %vm545, %v659, 0
      %v823 = vsel %vm775, %v537, 0
      %825 = vmatprep.subr.bf16.mxu0 0
      %826 = vmatpush1.bf16.msra.mxu0 %v823
      %827 = vmatprep.subr.bf16.mxu0 0
      %828 = vmatpush1.bf16.msra.mxu0 0
      %829 = vmatprep.subr.bf16.mxu0 0
      %830 = vmatpush1.bf16.msra.mxu0 0
      %831 = vmatprep.subr.bf16.mxu0 0
      %832 = vmatpush1.bf16.msra.mxu0 0
      %833 = vmatprep.subr.bf16.mxu0 0
      %834 = vmatpush1.bf16.msra.mxu0 0
      %835 = vmatprep.subr.bf16.mxu0 0
      %836 = vmatpush1.bf16.msra.mxu0 0
      %837 = vmatprep.subr.bf16.mxu0 0
      %838 = vmatpush1.bf16.msra.mxu0 0
      %839 = vmatprep.subr.bf16.mxu0 0
      %840 = vmatpush1.bf16.msra.mxu0 0
      %841 = vmatprep.subr.bf16.mxu0 0
      %842 = vmatpush1.bf16.msra.mxu0 0
      %843 = vmatprep.subr.bf16.mxu0 0
      %844 = vmatpush1.bf16.msra.mxu0 0
      %845 = vmatprep.subr.bf16.mxu0 0
      %846 = vmatpush1.bf16.msra.mxu0 0
      %847 = vmatprep.subr.bf16.mxu0 0
      %848 = vmatpush1.bf16.msra.mxu0 0
      %849 = vmatprep.subr.bf16.mxu0 0
      %850 = vmatpush1.bf16.msra.mxu0 0
      %851 = vmatprep.subr.bf16.mxu0 0
      %852 = vmatpush1.bf16.msra.mxu0 0
      %853 = vmatprep.subr.bf16.mxu0 0
      %854 = vmatpush1.bf16.msra.mxu0 0
      %855 = vmatprep.subr.bf16.mxu0 0
      %856 = vmatpush1.bf16.msra.mxu0 0
      %857 = vmatprep.mubr.bf16.mxu0 0
      %858 = vmatmul.mubr.bf16.gmra.mrb[0].mxu0 %v820
      %v859 = vpop.f32.mrb[0].mxu0
      %v860 = vadd.f32 %v814, %v859
      %v861 = vpop.f32.mrb[0].mxu0
      %v862 = vpop.f32.mrb[0].mxu0
      %v863 = vpop.f32.mrb[0].mxu0
      %864 = vdwg.mxu0
      %865 = vrot.lane.b32.xlu0 %v541, 112
      %v866 = vpop.permute.xlu0 %865
      %867 = vrot.lane.b32.xlu0 %v541, 80
      %v868 = vpop.permute.xlu0 %867
      %v870 = vsel %vm545, %v866, 0
      %v873 = vsel %vm545, %v868, 0
      %875 = vmatprep.subr.bf16.mxu0 0
      %876 = vmatpush1.bf16.xpose.msra.mxu0 %v873
      %877 = vmatprep.subr.bf16.mxu0 0
      %878 = vmatpush1.bf16.xpose.msra.mxu0 0
      %879 = vmatprep.subr.bf16.mxu0 0
      %880 = vmatpush1.bf16.xpose.msra.mxu0 0
      %881 = vmatprep.subr.bf16.mxu0 0
      %882 = vmatpush1.bf16.xpose.msra.mxu0 0
      %883 = vmatprep.subr.bf16.mxu0 0
      %884 = vmatpush1.bf16.xpose.msra.mxu0 0
      %885 = vmatprep.subr.bf16.mxu0 0
      %886 = vmatpush1.bf16.xpose.msra.mxu0 0
      %887 = vmatprep.subr.bf16.mxu0 0
      %888 = vmatpush1.bf16.xpose.msra.mxu0 0
      %889 = vmatprep.subr.bf16.mxu0 0
      %890 = vmatpush1.bf16.xpose.msra.mxu0 0
      %891 = vmatprep.subr.bf16.mxu0 0
      %892 = vmatpush1.bf16.xpose.msra.mxu0 0
      %893 = vmatprep.subr.bf16.mxu0 0
      %894 = vmatpush1.bf16.xpose.msra.mxu0 0
      %895 = vmatprep.subr.bf16.mxu0 0
      %896 = vmatpush1.bf16.xpose.msra.mxu0 0
      %897 = vmatprep.subr.bf16.mxu0 0
      %898 = vmatpush1.bf16.xpose.msra.mxu0 0
      %899 = vmatprep.subr.bf16.mxu0 0
      %900 = vmatpush1.bf16.xpose.msra.mxu0 0
      %901 = vmatprep.subr.bf16.mxu0 0
      %902 = vmatpush1.bf16.xpose.msra.mxu0 0
      %903 = vmatprep.subr.bf16.mxu0 0
      %904 = vmatpush1.bf16.xpose.msra.mxu0 0
      %905 = vmatprep.subr.bf16.mxu0 0
      %906 = vmatpush1.bf16.xpose.msra.mxu0 0
      %907 = vmatprep.mubr.bf16.mxu0 0
      %908 = vmatmul.mubr.bf16.gmra.mrb[0].mxu0 %v870
      %v909 = vpop.f32.mrb[0].mxu0
      %v910 = vadd.f32 0.0, %v909
      %v911 = vpop.f32.mrb[0].mxu0
      %v912 = vpop.f32.mrb[0].mxu0
      %v913 = vpop.f32.mrb[0].mxu0
      %914 = vdwg.mxu0
      %v915 = vmul.f32 %v910, 0.35355338
      %v916 = vsel %vm593, %v915, -inf
      %917 = vmax.xlane.f32.xlu0 %v916
      %v918 = vpop.xlane.xlu0 %917
      %v919 = vsub.f32 %v915, %v918
      %v920 = vmul.f32 %v919, 1.442695
      %v921 = vpow.pop %v920
      %v922 = vsel %vm593, %v921, 0.0
      %923 = vadd.xlane.f32.xlu0 %v922
      %v924 = vpop.xlane.xlu0 %923
      %v925 = vrcp.pop %v924
      %v926 = vmul.f32 %v921, %v925
      %v927 = vpack.c.bf16 %v926, %v926
      %928 = vrot.lane.b32.xlu0 %v541, 48
      %v929 = vpop.permute.xlu0 %928
      %v931 = vsel %vm608, %v927, 0
      %v934 = vand.u32 %v929, %v615
      %936 = vmatprep.subr.bf16.mxu0 0
      %937 = vmatpush1.bf16.msra.mxu0 %v934
      %938 = vmatprep.subr.bf16.mxu0 0
      %939 = vmatpush1.bf16.msra.mxu0 0
      %940 = vmatprep.subr.bf16.mxu0 0
      %941 = vmatpush1.bf16.msra.mxu0 0
      %942 = vmatprep.subr.bf16.mxu0 0
      %943 = vmatpush1.bf16.msra.mxu0 0
      %944 = vmatprep.subr.bf16.mxu0 0
      %945 = vmatpush1.bf16.msra.mxu0 0
      %946 = vmatprep.subr.bf16.mxu0 0
      %947 = vmatpush1.bf16.msra.mxu0 0
      %948 = vmatprep.subr.bf16.mxu0 0
      %949 = vmatpush1.bf16.msra.mxu0 0
      %950 = vmatprep.subr.bf16.mxu0 0
      %951 = vmatpush1.bf16.msra.mxu0 0
      %952 = vmatprep.subr.bf16.mxu0 0
      %953 = vmatpush1.bf16.msra.mxu0 0
      %954 = vmatprep.subr.bf16.mxu0 0
      %955 = vmatpush1.bf16.msra.mxu0 0
      %956 = vmatprep.subr.bf16.mxu0 0
      %957 = vmatpush1.bf16.msra.mxu0 0
      %958 = vmatprep.subr.bf16.mxu0 0
      %959 = vmatpush1.bf16.msra.mxu0 0
      %960 = vmatprep.subr.bf16.mxu0 0
      %961 = vmatpush1.bf16.msra.mxu0 0
      %962 = vmatprep.subr.bf16.mxu0 0
      %963 = vmatpush1.bf16.msra.mxu0 0
      %964 = vmatprep.subr.bf16.mxu0 0
      %965 = vmatpush1.bf16.msra.mxu0 0
      %966 = vmatprep.subr.bf16.mxu0 0
      %967 = vmatpush1.bf16.msra.mxu0 0
      %968 = vmatprep.mubr.bf16.mxu0 0
      %969 = vmatmul.mubr.bf16.gmra.mrb[0].mxu0 %v931
      %v970 = vpop.f32.mrb[0].mxu0
      %v971 = vadd.f32 0.0, %v970
      %v972 = vpop.f32.mrb[0].mxu0
      %v973 = vpop.f32.mrb[0].mxu0
      %v974 = vpop.f32.mrb[0].mxu0
      %975 = vdwg.mxu0
      %v976 = vpack.c.bf16 %v971, %v971
      %v978 = vsel %vm545, %v976, 0
      %v981 = vsel %vm775, %v539, 0
      %983 = vmatprep.subr.bf16.mxu0 0
      %984 = vmatpush1.bf16.msra.mxu0 %v981
      %985 = vmatprep.subr.bf16.mxu0 0
      %986 = vmatpush1.bf16.msra.mxu0 0
      %987 = vmatprep.subr.bf16.mxu0 0
      %988 = vmatpush1.bf16.msra.mxu0 0
      %989 = vmatprep.subr.bf16.mxu0 0
      %990 = vmatpush1.bf16.msra.mxu0 0
      %991 = vmatprep.subr.bf16.mxu0 0
      %992 = vmatpush1.bf16.msra.mxu0 0
      %993 = vmatprep.subr.bf16.mxu0 0
      %994 = vmatpush1.bf16.msra.mxu0 0
      %995 = vmatprep.subr.bf16.mxu0 0
      %996 = vmatpush1.bf16.msra.mxu0 0
      %997 = vmatprep.subr.bf16.mxu0 0
      %998 = vmatpush1.bf16.msra.mxu0 0
      %999 = vmatprep.subr.bf16.mxu0 0
      %1000 = vmatpush1.bf16.msra.mxu0 0
      %1001 = vmatprep.subr.bf16.mxu0 0
      %1002 = vmatpush1.bf16.msra.mxu0 0
      %1003 = vmatprep.subr.bf16.mxu0 0
      %1004 = vmatpush1.bf16.msra.mxu0 0
      %1005 = vmatprep.subr.bf16.mxu0 0
      %1006 = vmatpush1.bf16.msra.mxu0 0
      %1007 = vmatprep.subr.bf16.mxu0 0
      %1008 = vmatpush1.bf16.msra.mxu0 0
      %1009 = vmatprep.subr.bf16.mxu0 0
      %1010 = vmatpush1.bf16.msra.mxu0 0
      %1011 = vmatprep.subr.bf16.mxu0 0
      %1012 = vmatpush1.bf16.msra.mxu0 0
      %1013 = vmatprep.subr.bf16.mxu0 0
      %1014 = vmatpush1.bf16.msra.mxu0 0
      %1015 = vmatprep.mubr.bf16.mxu0 0
      %1016 = vmatmul.mubr.bf16.gmra.mrb[0].mxu0 %v978
      %v1017 = vpop.f32.mrb[0].mxu0
      %v1018 = vadd.f32 0.0, %v1017
      %v1019 = vpop.f32.mrb[0].mxu0
      %v1020 = vpop.f32.mrb[0].mxu0
      %v1021 = vpop.f32.mrb[0].mxu0
      %1022 = vdwg.mxu0
      %v1023 = vadd.f32 %v860, %v1018
      %1024 = vrot.lane.b32.xlu0 %v541, 104
      %v1025 = vpop.permute.xlu0 %1024
      %1026 = vrot.lane.b32.xlu0 %v541, 72
      %v1027 = vpop.permute.xlu0 %1026
      %v1029 = vsel %vm545, %v1025, 0
      %v1032 = vsel %vm545, %v1027, 0
      %1034 = vmatprep.subr.bf16.mxu0 0
      %1035 = vmatpush1.bf16.xpose.msra.mxu0 %v1032
      %1036 = vmatprep.subr.bf16.mxu0 0
      %1037 = vmatpush1.bf16.xpose.msra.mxu0 0
      %1038 = vmatprep.subr.bf16.mxu0 0
      %1039 = vmatpush1.bf16.xpose.msra.mxu0 0
      %1040 = vmatprep.subr.bf16.mxu0 0
      %1041 = vmatpush1.bf16.xpose.msra.mxu0 0
      %1042 = vmatprep.subr.bf16.mxu0 0
      %1043 = vmatpush1.bf16.xpose.msra.mxu0 0
      %1044 = vmatprep.subr.bf16.mxu0 0
      %1045 = vmatpush1.bf16.xpose.msra.mxu0 0
      %1046 = vmatprep.subr.bf16.mxu0 0
      %1047 = vmatpush1.bf16.xpose.msra.mxu0 0
      %1048 = vmatprep.subr.bf16.mxu0 0
      %1049 = vmatpush1.bf16.xpose.msra.mxu0 0
      %1050 = vmatprep.subr.bf16.mxu0 0
      %1051 = vmatpush1.bf16.xpose.msra.mxu0 0
      %1052 = vmatprep.subr.bf16.mxu0 0
      %1053 = vmatpush1.bf16.xpose.msra.mxu0 0
      %1054 = vmatprep.subr.bf16.mxu0 0
      %1055 = vmatpush1.bf16.xpose.msra.mxu0 0
      %1056 = vmatprep.subr.bf16.mxu0 0
      %1057 = vmatpush1.bf16.xpose.msra.mxu0 0
      %1058 = vmatprep.subr.bf16.mxu0 0
      %1059 = vmatpush1.bf16.xpose.msra.mxu0 0
      %1060 = vmatprep.subr.bf16.mxu0 0
      %1061 = vmatpush1.bf16.xpose.msra.mxu0 0
      %1062 = vmatprep.subr.bf16.mxu0 0
      %1063 = vmatpush1.bf16.xpose.msra.mxu0 0
      %1064 = vmatprep.subr.bf16.mxu0 0
      %1065 = vmatpush1.bf16.xpose.msra.mxu0 0
      %1066 = vmatprep.mubr.bf16.mxu0 0
      %1067 = vmatmul.mubr.bf16.gmra.mrb[0].mxu0 %v1029
      %v1068 = vpop.f32.mrb[0].mxu0
      %v1069 = vadd.f32 0.0, %v1068
      %v1070 = vpop.f32.mrb[0].mxu0
      %v1071 = vpop.f32.mrb[0].mxu0
      %v1072 = vpop.f32.mrb[0].mxu0
      %1073 = vdwg.mxu0
      %v1074 = vmul.f32 %v1069, 0.35355338
      %v1075 = vsel %vm593, %v1074, -inf
      %1076 = vmax.xlane.f32.xlu0 %v1075
      %v1077 = vpop.xlane.xlu0 %1076
      %v1078 = vsub.f32 %v1074, %v1077
      %v1079 = vmul.f32 %v1078, 1.442695
      %v1080 = vpow.pop %v1079
      %v1081 = vsel %vm593, %v1080, 0.0
      %1082 = vadd.xlane.f32.xlu0 %v1081
      %v1083 = vpop.xlane.xlu0 %1082
      %v1084 = vrcp.pop %v1083
      %v1085 = vmul.f32 %v1080, %v1084
      %v1086 = vpack.c.bf16 %v1085, %v1085
      %1087 = vrot.lane.b32.xlu0 %v541, 40
      %v1088 = vpop.permute.xlu0 %1087
      %v1090 = vsel %vm608, %v1086, 0
      %v1093 = vand.u32 %v1088, %v615
      %1095 = vmatprep.subr.bf16.mxu0 0
      %1096 = vmatpush1.bf16.msra.mxu0 %v1093
      %1097 = vmatprep.subr.bf16.mxu0 0
      %1098 = vmatpush1.bf16.msra.mxu0 0
      %1099 = vmatprep.subr.bf16.mxu0 0
      %1100 = vmatpush1.bf16.msra.mxu0 0
      %1101 = vmatprep.subr.bf16.mxu0 0
      %1102 = vmatpush1.bf16.msra.mxu0 0
      %1103 = vmatprep.subr.bf16.mxu0 0
      %1104 = vmatpush1.bf16.msra.mxu0 0
      %1105 = vmatprep.subr.bf16.mxu0 0
      %1106 = vmatpush1.bf16.msra.mxu0 0
      %1107 = vmatprep.subr.bf16.mxu0 0
      %1108 = vmatpush1.bf16.msra.mxu0 0
      %1109 = vmatprep.subr.bf16.mxu0 0
      %1110 = vmatpush1.bf16.msra.mxu0 0
      %1111 = vmatprep.subr.bf16.mxu0 0
      %1112 = vmatpush1.bf16.msra.mxu0 0
      %1113 = vmatprep.subr.bf16.mxu0 0
      %1114 = vmatpush1.bf16.msra.mxu0 0
      %1115 = vmatprep.subr.bf16.mxu0 0
      %1116 = vmatpush1.bf16.msra.mxu0 0
      %1117 = vmatprep.subr.bf16.mxu0 0
      %1118 = vmatpush1.bf16.msra.mxu0 0
      %1119 = vmatprep.subr.bf16.mxu0 0
      %1120 = vmatpush1.bf16.msra.mxu0 0
      %1121 = vmatprep.subr.bf16.mxu0 0
      %1122 = vmatpush1.bf16.msra.mxu0 0
      %1123 = vmatprep.subr.bf16.mxu0 0
      %1124 = vmatpush1.bf16.msra.mxu0 0
      %1125 = vmatprep.subr.bf16.mxu0 0
      %1126 = vmatpush1.bf16.msra.mxu0 0
      %1127 = vmatprep.mubr.bf16.mxu0 0
      %1128 = vmatmul.mubr.bf16.gmra.mrb[0].mxu0 %v1090
      %v1129 = vpop.f32.mrb[0].mxu0
      %v1130 = vadd.f32 0.0, %v1129
      %v1131 = vpop.f32.mrb[0].mxu0
      %v1132 = vpop.f32.mrb[0].mxu0
      %v1133 = vpop.f32.mrb[0].mxu0
      %1134 = vdwg.mxu0
      %v1135 = vpack.c.bf16 %v1130, %v1130
      %v1137 = vsel %vm545, %v1135, 0
      %v1140 = vsel %vm775, %v540, 0
      %1142 = vmatprep.subr.bf16.mxu0 0
      %1143 = vmatpush1.bf16.msra.mxu0 %v1140
      %1144 = vmatprep.subr.bf16.mxu0 0
      %1145 = vmatpush1.bf16.msra.mxu0 0
      %1146 = vmatprep.subr.bf16.mxu0 0
      %1147 = vmatpush1.bf16.msra.mxu0 0
      %1148 = vmatprep.subr.bf16.mxu0 0
      %1149 = vmatpush1.bf16.msra.mxu0 0
      %1150 = vmatprep.subr.bf16.mxu0 0
      %1151 = vmatpush1.bf16.msra.mxu0 0
      %1152 = vmatprep.subr.bf16.mxu0 0
      %1153 = vmatpush1.bf16.msra.mxu0 0
      %1154 = vmatprep.subr.bf16.mxu0 0
      %1155 = vmatpush1.bf16.msra.mxu0 0
      %1156 = vmatprep.subr.bf16.mxu0 0
      %1157 = vmatpush1.bf16.msra.mxu0 0
      %1158 = vmatprep.subr.bf16.mxu0 0
      %1159 = vmatpush1.bf16.msra.mxu0 0
      %1160 = vmatprep.subr.bf16.mxu0 0
      %1161 = vmatpush1.bf16.msra.mxu0 0
      %1162 = vmatprep.subr.bf16.mxu0 0
      %1163 = vmatpush1.bf16.msra.mxu0 0
      %1164 = vmatprep.subr.bf16.mxu0 0
      %1165 = vmatpush1.bf16.msra.mxu0 0
      %1166 = vmatprep.subr.bf16.mxu0 0
      %1167 = vmatpush1.bf16.msra.mxu0 0
      %1168 = vmatprep.subr.bf16.mxu0 0
      %1169 = vmatpush1.bf16.msra.mxu0 0
      %1170 = vmatprep.subr.bf16.mxu0 0
      %1171 = vmatpush1.bf16.msra.mxu0 0
      %1172 = vmatprep.subr.bf16.mxu0 0
      %1173 = vmatpush1.bf16.msra.mxu0 0
      %1174 = vmatprep.mubr.bf16.mxu0 0
      %1175 = vmatmul.mubr.bf16.gmra.mrb[0].mxu0 %v1137
      %v1176 = vpop.f32.mrb[0].mxu0
      %v1177 = vadd.f32 0.0, %v1176
      %v1178 = vpop.f32.mrb[0].mxu0
      %v1179 = vpop.f32.mrb[0].mxu0
      %v1180 = vpop.f32.mrb[0].mxu0
      %1181 = vdwg.mxu0
      %v1182 = vadd.f32 %v1023, %v1177
      %v1183 = vadd.f32 %v437, %v1182
      %v1184 = vld [vmem:[%s6] sm:$0x1]
      %v1186 = vlaneseq
      %v1187 = vshrl.u32 %v1186, 7
      %v1188 = vsub.s32 0, %v1187
      %v1189 = vrot.slane %v1184, %v1188
      %v1191 = vadd.f32 %v1183, %v1189
      %v1192 = vld [vmem:[%s7] sm:$0x1]
      %v1193 = vld [vmem:[%s8] sm:$0x1]
      %v1194 = vsel %vm440, %v1191, 0.0
      %1195 = vadd.xlane.f32.xlu0 %v1194
      %v1196 = vpop.xlane.xlu0 %1195
      %v1197 = vmul.f32 %v1196, %v444
      %v1198 = vsub.f32 %v1191, %v1197
      %v1199 = vmul.f32 %v1198, %v1198
      %v1200 = vsel %vm440, %v1199, 0.0
      %1201 = vadd.xlane.f32.xlu0 %v1200
      %v1202 = vpop.xlane.xlu0 %1201
      %v1203 = vmul.f32 %v1202, %v444
      %v1204 = vadd.f32 %v1203, 1e-05
      %v1205 = vrsqrt.pop %v1204
      %v1206 = vmul.f32 %v1198, %v1205
      %v1208 = vlaneseq
      %v1209 = vshrl.u32 %v1208, 7
      %v1210 = vsub.s32 0, %v1209
      %v1211 = vrot.slane %v1192, %v1210
      %v1213 = vmul.f32 %v1206, %v1211
      %v1215 = vlaneseq
      %v1216 = vshrl.u32 %v1215, 7
      %v1217 = vsub.s32 0, %v1216
      %v1218 = vrot.slane %v1193, %v1217
      %v1220 = vadd.f32 %v1213, %v1218
      %v1221 = vpack.c.bf16 %v1220, %v1220
      %v1222 = vld [vmem:[%s9] sm:$0xf]
      %v1223 = vld [vmem:[%s9 + $0x4] sm:$0xf]
      %v1224 = vld [vmem:[%s9 + $0x8] sm:$0xf]
      %v1225 = vld [vmem:[%s9 + $0xc] sm:$0xf]
      %v1226 = vld [vmem:[%s10] sm:$0x1]
      %v1228 = vlaneseq
      %v1229 = vshrl.u32 %v1228, 7
      %v1230 = vsub.s32 0, %v1229
      %v1231 = vrot.slane %v1226, %v1230
      %v1237 = vunpack.c.l.b16 %v1222
      %v1238 = vunpack.c.l.b16 %v1223
      %v1239 = vunpack.c.l.b16 %v1224
      %v1240 = vunpack.c.l.b16 %v1225
      %v1241 = vpack.c.b16 %v1238, %v1237
      %v1242 = vpack.c.b16 %v1240, %v1239
      %v1246 = vsel %vm493, %v1221, 0
      %1248 = vmatprep.subr.bf16.mxu0 0
      %1249 = vmatpush1.bf16.msra.mxu0 %v1241
      %1250 = vmatprep.subr.bf16.mxu0 0
      %1251 = vmatpush1.bf16.msra.mxu0 %v1242
      %1252 = vmatprep.subr.bf16.mxu0 0
      %1253 = vmatpush1.bf16.msra.mxu0 0
      %1254 = vmatprep.subr.bf16.mxu0 0
      %1255 = vmatpush1.bf16.msra.mxu0 0
      %1256 = vmatprep.subr.bf16.mxu0 0
      %1257 = vmatpush1.bf16.msra.mxu0 0
      %1258 = vmatprep.subr.bf16.mxu0 0
      %1259 = vmatpush1.bf16.msra.mxu0 0
      %1260 = vmatprep.subr.bf16.mxu0 0
      %1261 = vmatpush1.bf16.msra.mxu0 0
      %1262 = vmatprep.subr.bf16.mxu0 0
      %1263 = vmatpush1.bf16.msra.mxu0 0
      %1264 = vmatprep.subr.bf16.mxu0 0
      %1265 = vmatpush1.bf16.msra.mxu0 0
      %1266 = vmatprep.subr.bf16.mxu0 0
      %1267 = vmatpush1.bf16.msra.mxu0 0
      %1268 = vmatprep.subr.bf16.mxu0 0
      %1269 = vmatpush1.bf16.msra.mxu0 0
      %1270 = vmatprep.subr.bf16.mxu0 0
      %1271 = vmatpush1.bf16.msra.mxu0 0
      %1272 = vmatprep.subr.bf16.mxu0 0
      %1273 = vmatpush1.bf16.msra.mxu0 0
      %1274 = vmatprep.subr.bf16.mxu0 0
      %1275 = vmatpush1.bf16.msra.mxu0 0
      %1276 = vmatprep.subr.bf16.mxu0 0
      %1277 = vmatpush1.bf16.msra.mxu0 0
      %1278 = vmatprep.subr.bf16.mxu0 0
      %1279 = vmatpush1.bf16.msra.mxu0 0
      %1280 = vmatprep.mubr.bf16.mxu0 0
      %1281 = vmatmul.mubr.bf16.gmra.mrb[0].mxu0 %v1246
      %v1282 = vpop.f32.mrb[0].mxu0
      %v1283 = vadd.f32 %v1231, %v1282
      %v1284 = vpop.f32.mrb[0].mxu0
      %v1285 = vpop.f32.mrb[0].mxu0
      %v1286 = vpop.f32.mrb[0].mxu0
      %1287 = vdwg.mxu0
      %v1288 = vmul.f32 %v1283, 0.5
      %v1289 = vmul.f32 %v1283, 0.70710677
      %v1290 = vand.u32 2147483647, %v1289
      %v1291 = vmul.f32 %v1290, 0.3275911
      %v1292 = vadd.f32 %v1291, 1.0
      %v1293 = vrcp.pop %v1292
      %v1294 = vmul.f32 1.0, %v1293
      %v1295 = vmul.f32 %v1294, 1.0614054
      %v1296 = vadd.f32 %v1295, -1.4531521
      %v1297 = vmul.f32 %v1296, %v1294
      %v1298 = vadd.f32 %v1297, 1.4214138
      %v1299 = vmul.f32 %v1298, %v1294
      %v1300 = vadd.f32 %v1299, -0.28449672
      %v1301 = vmul.f32 %v1300, %v1294
      %v1302 = vadd.f32 %v1301, 0.2548296
      %v1303 = vmul.f32 %v1302, %v1294
      %v1304 = vsub.f32 0.0, %v1290
      %v1305 = vmul.f32 %v1304, %v1290
      %v1306 = vmul.f32 %v1305, 1.442695
      %v1307 = vpow.pop %v1306
      %v1308 = vmul.f32 %v1303, %v1307
      %v1309 = vsub.f32 1.0, %v1308
      %vm1310 = vcmp.ge.f32.partialorder %v1289, 0.0
      %v1311 = vsub.f32 0.0, %v1309
      %v1312 = vsel %vm1310, %v1309, %v1311
      %v1313 = vadd.f32 %v1312, 1.0
      %v1314 = vmul.f32 %v1288, %v1313
      %v1315 = vpack.c.bf16 %v1314, %v1314
      %v1316 = vld [vmem:[%s11] sm:$0xf]
      %v1317 = vld [vmem:[%s11 + $0x4] sm:$0xf]
      %v1318 = vld [vmem:[%s11 + $0x8] sm:$0xf]
      %v1319 = vld [vmem:[%s11 + $0xc] sm:$0xf]
      %v1320 = vld [vmem:[%s11 + $0x10] sm:$0xf]
      %v1321 = vld [vmem:[%s11 + $0x14] sm:$0xf]
      %v1322 = vld [vmem:[%s11 + $0x18] sm:$0xf]
      %v1323 = vld [vmem:[%s11 + $0x1c] sm:$0xf]
      %v1324 = vld [vmem:[%s11 + $0x20] sm:$0xf]
      %v1325 = vld [vmem:[%s11 + $0x24] sm:$0xf]
      %v1326 = vld [vmem:[%s11 + $0x28] sm:$0xf]
      %v1327 = vld [vmem:[%s11 + $0x2c] sm:$0xf]
      %v1328 = vld [vmem:[%s11 + $0x30] sm:$0xf]
      %v1329 = vld [vmem:[%s11 + $0x34] sm:$0xf]
      %v1330 = vld [vmem:[%s11 + $0x38] sm:$0xf]
      %v1331 = vld [vmem:[%s11 + $0x3c] sm:$0xf]
      %v1348 = vunpack.c.l.b16 %v1316
      %v1349 = vunpack.c.l.b16 %v1317
      %v1350 = vunpack.c.l.b16 %v1318
      %v1351 = vunpack.c.l.b16 %v1319
      %v1352 = vunpack.c.l.b16 %v1320
      %v1353 = vunpack.c.l.b16 %v1321
      %v1354 = vunpack.c.l.b16 %v1322
      %v1355 = vunpack.c.l.b16 %v1323
      %v1356 = vunpack.c.l.b16 %v1324
      %v1357 = vunpack.c.l.b16 %v1325
      %v1358 = vunpack.c.l.b16 %v1326
      %v1359 = vunpack.c.l.b16 %v1327
      %v1360 = vunpack.c.l.b16 %v1328
      %v1361 = vunpack.c.l.b16 %v1329
      %v1362 = vunpack.c.l.b16 %v1330
      %v1363 = vunpack.c.l.b16 %v1331
      %v1364 = vpack.c.b16 %v1349, %v1348
      %v1365 = vpack.c.b16 %v1351, %v1350
      %v1366 = vpack.c.b16 %v1353, %v1352
      %v1367 = vpack.c.b16 %v1355, %v1354
      %v1368 = vpack.c.b16 %v1357, %v1356
      %v1369 = vpack.c.b16 %v1359, %v1358
      %v1370 = vpack.c.b16 %v1361, %v1360
      %v1371 = vpack.c.b16 %v1363, %v1362
      %1380 = vmatprep.subr.bf16.mxu0 0
      %1381 = vmatpush1.bf16.msra.mxu0 %v1364
      %1382 = vmatprep.subr.bf16.mxu0 0
      %1383 = vmatpush1.bf16.msra.mxu0 %v1365
      %1384 = vmatprep.subr.bf16.mxu0 0
      %1385 = vmatpush1.bf16.msra.mxu0 %v1366
      %1386 = vmatprep.subr.bf16.mxu0 0
      %1387 = vmatpush1.bf16.msra.mxu0 %v1367
      %1388 = vmatprep.subr.bf16.mxu0 0
      %1389 = vmatpush1.bf16.msra.mxu0 %v1368
      %1390 = vmatprep.subr.bf16.mxu0 0
      %1391 = vmatpush1.bf16.msra.mxu0 %v1369
      %1392 = vmatprep.subr.bf16.mxu0 0
      %1393 = vmatpush1.bf16.msra.mxu0 %v1370
      %1394 = vmatprep.subr.bf16.mxu0 0
      %1395 = vmatpush1.bf16.msra.mxu0 %v1371
      %1396 = vmatprep.subr.bf16.mxu0 0
      %1397 = vmatpush1.bf16.msra.mxu0 0
      %1398 = vmatprep.subr.bf16.mxu0 0
      %1399 = vmatpush1.bf16.msra.mxu0 0
      %1400 = vmatprep.subr.bf16.mxu0 0
      %1401 = vmatpush1.bf16.msra.mxu0 0
      %1402 = vmatprep.subr.bf16.mxu0 0
      %1403 = vmatpush1.bf16.msra.mxu0 0
      %1404 = vmatprep.subr.bf16.mxu0 0
      %1405 = vmatpush1.bf16.msra.mxu0 0
      %1406 = vmatprep.subr.bf16.mxu0 0
      %1407 = vmatpush1.bf16.msra.mxu0 0
      %1408 = vmatprep.subr.bf16.mxu0 0
      %1409 = vmatpush1.bf16.msra.mxu0 0
      %1410 = vmatprep.subr.bf16.mxu0 0
      %1411 = vmatpush1.bf16.msra.mxu0 0
      %1412 = vmatprep.mubr.bf16.mxu0 0
      %1413 = vmatmul.mubr.bf16.gmra.mrb[0].mxu0 %v1315
      %v1414 = vpop.f32.mrb[0].mxu0
      %v1415 = vadd.f32 0.0, %v1414
      %v1416 = vpop.f32.mrb[0].mxu0
      %v1417 = vpop.f32.mrb[0].mxu0
      %v1418 = vpop.f32.mrb[0].mxu0
      %1419 = vdwg.mxu0
      %v1420 = vadd.f32 %v1191, %v1415
      %v1421 = vld [vmem:[%s12] sm:$0x1]
      %v1423 = vlaneseq
      %v1424 = vshrl.u32 %v1423, 7
      %v1425 = vsub.s32 0, %v1424
      %v1426 = vrot.slane %v1421, %v1425
      %v1428 = vadd.f32 %v1420, %v1426
      %1429 = vst.msk [vmem:[%s435] sm:$0x1f] %vm440, %v1428
      %p1430 = scmp.lt.s32.totalorder %s24, 7
      %s1431 = scalar_select %p1430, %s24, 7
      %s1432 = smul.addr %s1431, 8
      %s1433 = scalar_lea.vmem %s13, %s1432
      // Predicated region
      $region73: #{forward.10} parent=71 // pred_check
        %p1434 = pneg %p320
      $region74: #{forward.10} parent=71 // pred_check_branch
        %1436 = sbr.rel (%p1434) target = $region76
      $region75: #{forward.10} parent=71 // pred_region
        _
      $region76: #{forward.10} parent=71 // pred_fallthru
        _
    $region72: #{forward.10} parent=5 // pred_fallthru
      _
    %p1437 = scmp.le.s32.totalorder 2, %s19
    // Predicated region
    $region77: #{forward.10} parent=5 // pred_check
      %p1438 = pneg %p1437
    $region78: #{forward.10} parent=5 // pred_check_branch
      %1440 = sbr.rel (%p1438) target = $region80
    $region79: #{forward.10} parent=5 // pred_region
      %s1441 = ssub.s32 %s19, 2
      // Predicated region
      $region81: #{forward.10} parent=79 // pred_check
        %p1442 = pneg %p326
      $region82: #{forward.10} parent=79 // pred_check_branch
        %1444 = sbr.rel (%p1442) target = $region84
      $region83: #{forward.10} parent=79 // pred_region
        %p1445 = scmp.lt.s32.totalorder %s25, 7
        %s1446 = scalar_select %p1445, %s25, 7
        %s1447 = smul.addr %s1446, 8
        %s1448 = scalar_lea.vmem %s13, %s1447
      $region84: #{forward.10} parent=79 // pred_fallthru
        _
    $region80: #{forward.10} parent=5 // pred_fallthru
      _
  $region6: #{forward.10} parent=0 // loop_footer
    %s23 = sadd.s32 1, %s19
  $region7: #{forward.10} parent=0 // loop_footer_branch
    %18 = sbr.rel target = $region3
  $region8: #{forward.10} parent=0 // loop_exit
    _

// kernel: forward.13
$region0: #{forward.13}
  #allocation0 [shape = 'u32[]', space=smem, size = 0x4, offset = 0x4, fixed_abs, tag = 'smem constant byte address 0x4 - core index']
  #allocation1 [shape = 'u32[144,128]{1,0:T(1,128)}', space=vmem, size = 0x12000, scoped, tag = 'internal scratch']
  %s0 = inlined_call_operand.vmem [shape: f32[32,288], index: 0, kind: input, shape index: {}]
  %s1 = inlined_call_operand.vmem [shape: bf16[288,128], index: 1, kind: input, shape index: {}]
  %s2 = inlined_call_operand.vmem [shape: f32[1,128], index: 2, kind: input, shape index: {}]
  %s3 = inlined_call_operand.vmem [shape: f32[32,128], index: 3, kind: output, shape index: {}]
  %s4 = sld [smem:[#allocation0]]
  $region22: #{forward.13} parent=0
    _
  %s6 = ssub.s32 1, %s4
  %s7 = scalar_select 0, %s6, %s4
  // Predicated region
  $region2: #{forward.13} parent=0 // pred_check
    _
  $region3: #{forward.13} parent=0 // pred_check_branch
    %9 = sbr.rel (0) target = $region5
  $region4: #{forward.13} parent=0 // pred_region
    _
  $region5: #{forward.13} parent=0 // pred_fallthru
    _
  // Predicated region
  $region6: #{forward.13} parent=0 // pred_check
    _
  $region7: #{forward.13} parent=0 // pred_check_branch
    %11 = sbr.rel (0) target = $region9
  $region8: #{forward.13} parent=0 // pred_region
    _
  $region9: #{forward.13} parent=0 // pred_fallthru
    _
  // Predicated region
  $region10: #{forward.13} parent=0 // pred_check
    _
  $region11: #{forward.13} parent=0 // pred_check_branch
    %13 = sbr.rel (0) target = $region13
  $region12: #{forward.13} parent=0 // pred_region
    _
  $region13: #{forward.13} parent=0 // pred_fallthru
    _
  %v15 = vld [vmem:[%s0] sm:$0xff]
  %v16 = vld [vmem:[%s0 + $0x8] sm:$0xff]
  %v17 = vld [vmem:[%s0 + $0x10] sm:$0xff]
  %v18 = vld [vmem:[%s0 + $0x18] sm:$0xff]
  %v19 = vld [vmem:[%s0 + $0x20] sm:$0xff]
  %v20 = vld [vmem:[%s0 + $0x28] sm:$0xff]
  %v21 = vld [vmem:[%s0 + $0x30] sm:$0xff]
  %v22 = vld [vmem:[%s0 + $0x38] sm:$0xff]
  %v23 = vld [vmem:[%s0 + $0x40] sm:$0xff]
  %v24 = vld [vmem:[%s0 + $0x48] sm:$0xff]
  %v25 = vld [vmem:[%s0 + $0x50] sm:$0xff]
  %v26 = vld [vmem:[%s0 + $0x58] sm:$0xff]
  %v27 = vpack.c.bf16 %v18, %v15
  %v28 = vpack.c.bf16 %v19, %v16
  %v29 = vpack.c.bf16 %v20, %v17
  %v30 = vpack.c.bf16 %v24, %v21
  %v31 = vpack.c.bf16 %v25, %v22
  %v32 = vpack.c.bf16 %v26, %v23
  %v33 = vld [vmem:[%s1] sm:$0xf]
  %v34 = vld [vmem:[%s1 + $0x4] sm:$0xf]
  %v35 = vld [vmem:[%s1 + $0x8] sm:$0xf]
  %v36 = vld [vmem:[%s1 + $0xc] sm:$0xf]
  %v37 = vld [vmem:[%s1 + $0x10] sm:$0xf]
  %v38 = vld [vmem:[%s1 + $0x14] sm:$0xf]
  %v39 = vld [vmem:[%s1 + $0x18] sm:$0xf]
  %v40 = vld [vmem:[%s1 + $0x1c] sm:$0xf]
  %v41 = vld [vmem:[%s1 + $0x20] sm:$0xf]
  %v42 = vld [vmem:[%s1 + $0x24] sm:$0xf]
  %v43 = vld [vmem:[%s1 + $0x28] sm:$0xf]
  %v44 = vld [vmem:[%s1 + $0x2c] sm:$0xf]
  %v45 = vld [vmem:[%s1 + $0x30] sm:$0xf]
  %v46 = vld [vmem:[%s1 + $0x34] sm:$0xf]
  %v47 = vld [vmem:[%s1 + $0x38] sm:$0xf]
  %v48 = vld [vmem:[%s1 + $0x3c] sm:$0xf]
  %v49 = vld [vmem:[%s1 + $0x40] sm:$0xf]
  %v50 = vld [vmem:[%s1 + $0x44] sm:$0xf]
  %v51 = vld [vmem:[%s1 + $0x48] sm:$0xf]
  %v52 = vld [vmem:[%s1 + $0x4c] sm:$0xf]
  %v53 = vld [vmem:[%s1 + $0x50] sm:$0xf]
  %v54 = vld [vmem:[%s1 + $0x54] sm:$0xf]
  %v55 = vld [vmem:[%s1 + $0x58] sm:$0xf]
  %v56 = vld [vmem:[%s1 + $0x5c] sm:$0xf]
  %v57 = vld [vmem:[%s1 + $0x60] sm:$0xf]
  %v58 = vld [vmem:[%s1 + $0x64] sm:$0xf]
  %v59 = vld [vmem:[%s1 + $0x68] sm:$0xf]
  %v60 = vld [vmem:[%s1 + $0x6c] sm:$0xf]
  %v61 = vld [vmem:[%s1 + $0x70] sm:$0xf]
  %v62 = vld [vmem:[%s1 + $0x74] sm:$0xf]
  %v63 = vld [vmem:[%s1 + $0x78] sm:$0xf]
  %v64 = vld [vmem:[%s1 + $0x7c] sm:$0xf]
  %v65 = vld [vmem:[%s1 + $0x80] sm:$0xf]
  %v66 = vld [vmem:[%s1 + $0x84] sm:$0xf]
  %v67 = vld [vmem:[%s1 + $0x88] sm:$0xf]
  %v68 = vld [vmem:[%s1 + $0x8c] sm:$0xf]
  %v69 = vld [vmem:[%s2] sm:$0x1]
  %v71 = vlaneseq
  %v72 = vshrl.u32 %v71, 7
  %v73 = vsub.s32 0, %v72
  %v74 = vrot.slane %v69, %v73
  %v112 = vunpack.c.l.b16 %v33
  %v113 = vunpack.c.l.b16 %v34
  %v114 = vunpack.c.l.b16 %v35
  %v115 = vunpack.c.l.b16 %v36
  %v116 = vunpack.c.l.b16 %v37
  %v117 = vunpack.c.l.b16 %v38
  %v118 = vunpack.c.l.b16 %v39
  %v119 = vunpack.c.l.b16 %v40
  %v120 = vunpack.c.l.b16 %v41
  %v121 = vunpack.c.l.b16 %v42
  %v122 = vunpack.c.l.b16 %v43
  %v123 = vunpack.c.l.b16 %v44
  %v124 = vunpack.c.l.b16 %v45
  %v125 = vunpack.c.l.b16 %v46
  %v126 = vunpack.c.l.b16 %v47
  %v127 = vunpack.c.l.b16 %v48
  %v128 = vunpack.c.l.b16 %v49
  %v129 = vunpack.c.l.b16 %v50
  %v130 = vunpack.c.l.b16 %v51
  %v131 = vunpack.c.l.b16 %v52
  %v132 = vunpack.c.l.b16 %v53
  %v133 = vunpack.c.l.b16 %v54
  %v134 = vunpack.c.l.b16 %v55
  %v135 = vunpack.c.l.b16 %v56
  %v136 = vunpack.c.l.b16 %v57
  %v137 = vunpack.c.l.b16 %v58
  %v138 = vunpack.c.l.b16 %v59
  %v139 = vunpack.c.l.b16 %v60
  %v140 = vunpack.c.l.b16 %v61
  %v141 = vunpack.c.l.b16 %v62
  %v142 = vunpack.c.l.b16 %v63
  %v143 = vunpack.c.l.b16 %v64
  %v144 = vunpack.c.l.b16 %v65
  %v145 = vunpack.c.l.b16 %v66
  %v146 = vunpack.c.l.b16 %v67
  %v147 = vunpack.c.l.b16 %v68
  %v148 = vpack.c.b16 %v113, %v112
  %v149 = vpack.c.b16 %v115, %v114
  %v150 = vpack.c.b16 %v117, %v116
  %v151 = vpack.c.b16 %v119, %v118
  %v152 = vpack.c.b16 %v121, %v120
  %v153 = vpack.c.b16 %v123, %v122
  %v154 = vpack.c.b16 %v125, %v124
  %v155 = vpack.c.b16 %v127, %v126
  %v156 = vpack.c.b16 %v129, %v128
  %v157 = vpack.c.b16 %v131, %v130
  %v158 = vpack.c.b16 %v133, %v132
  %v159 = vpack.c.b16 %v135, %v134
  %v160 = vpack.c.b16 %v137, %v136
  %v161 = vpack.c.b16 %v139, %v138
  %v162 = vpack.c.b16 %v141, %v140
  %v163 = vpack.c.b16 %v143, %v142
  %v164 = vpack.c.b16 %v145, %v144
  %v165 = vpack.c.b16 %v147, %v146
  %vm184 = vcmask 261120
  %v186 = vsel %vm184, %v29, 0
  %v189 = vsel %vm184, %v32, 0
  %191 = vmatprep.subr.bf16.mxu0 0
  %192 = vmatpush1.bf16.msra.mxu0 %v148
  %193 = vmatprep.subr.bf16.mxu0 0
  %194 = vmatpush1.bf16.msra.mxu0 %v149
  %195 = vmatprep.subr.bf16.mxu0 0
  %196 = vmatpush1.bf16.msra.mxu0 %v150
  %197 = vmatprep.subr.bf16.mxu0 0
  %198 = vmatpush1.bf16.msra.mxu0 %v151
  %199 = vmatprep.subr.bf16.mxu0 0
  %200 = vmatpush1.bf16.msra.mxu0 %v152
  %201 = vmatprep.subr.bf16.mxu0 0
  %202 = vmatpush1.bf16.msra.mxu0 %v153
  %203 = vmatprep.subr.bf16.mxu0 0
  %204 = vmatpush1.bf16.msra.mxu0 %v154
  %205 = vmatprep.subr.bf16.mxu0 0
  %206 = vmatpush1.bf16.msra.mxu0 %v155
  %207 = vmatprep.subr.bf16.mxu0 0
  %208 = vmatpush1.bf16.msra.mxu0 %v156
  %209 = vmatprep.subr.bf16.mxu0 0
  %210 = vmatpush1.bf16.msra.mxu0 %v157
  %211 = vmatprep.subr.bf16.mxu0 0
  %212 = vmatpush1.bf16.msra.mxu0 %v158
  %213 = vmatprep.subr.bf16.mxu0 0
  %214 = vmatpush1.bf16.msra.mxu0 %v159
  %215 = vmatprep.subr.bf16.mxu0 0
  %216 = vmatpush1.bf16.msra.mxu0 %v160
  %217 = vmatprep.subr.bf16.mxu0 0
  %218 = vmatpush1.bf16.msra.mxu0 %v161
  %219 = vmatprep.subr.bf16.mxu0 0
  %220 = vmatpush1.bf16.msra.mxu0 %v162
  %221 = vmatprep.subr.bf16.mxu0 0
  %222 = vmatpush1.bf16.msra.mxu0 %v163
  %223 = vmatprep.mubr.bf16.mxu0 %v28
  %224 = vmatmul.mubr.bf16.gmra.mrb[0].mxu0 %v27
  %v225 = vpop.f32.mrb[0].mxu0
  %v226 = vadd.f32 %v74, %v225
  %v227 = vpop.f32.mrb[0].mxu0
  %v228 = vpop.f32.mrb[0].mxu0
  %v229 = vadd.f32 %v74, %v228
  %v230 = vpop.f32.mrb[0].mxu0
  %231 = vmatprep.mubr.bf16.mxu0 %v31
  %232 = vmatmul.mubr.bf16.gmra.mrb[0].mxu0 %v30
  %v233 = vpop.f32.mrb[0].mxu0
  %v234 = vadd.f32 %v74, %v233
  %v235 = vpop.f32.mrb[0].mxu0
  %v236 = vpop.f32.mrb[0].mxu0
  %v237 = vadd.f32 %v74, %v236
  %v238 = vpop.f32.mrb[0].mxu0
  %239 = vdwg.mxu0
  %240 = vmatprep.subr.bf16.mxu0 0
  %241 = vmatpush1.bf16.msra.mxu0 %v164
  %242 = vmatprep.subr.bf16.mxu0 0
  %243 = vmatpush1.bf16.msra.mxu0 %v165
  %244 = vmatprep.subr.bf16.mxu0 0
  %245 = vmatpush1.bf16.msra.mxu0 0
  %246 = vmatprep.subr.bf16.mxu0 0
  %247 = vmatpush1.bf16.msra.mxu0 0
  %248 = vmatprep.subr.bf16.mxu0 0
  %249 = vmatpush1.bf16.msra.mxu0 0
  %250 = vmatprep.subr.bf16.mxu0 0
  %251 = vmatpush1.bf16.msra.mxu0 0
  %252 = vmatprep.subr.bf16.mxu0 0
  %253 = vmatpush1.bf16.msra.mxu0 0
  %254 = vmatprep.subr.bf16.mxu0 0
  %255 = vmatpush1.bf16.msra.mxu0 0
  %256 = vmatprep.subr.bf16.mxu0 0
  %257 = vmatpush1.bf16.msra.mxu0 0
  %258 = vmatprep.subr.bf16.mxu0 0
  %259 = vmatpush1.bf16.msra.mxu0 0
  %260 = vmatprep.subr.bf16.mxu0 0
  %261 = vmatpush1.bf16.msra.mxu0 0
  %262 = vmatprep.subr.bf16.mxu0 0
  %263 = vmatpush1.bf16.msra.mxu0 0
  %264 = vmatprep.subr.bf16.mxu0 0
  %265 = vmatpush1.bf16.msra.mxu0 0
  %266 = vmatprep.subr.bf16.mxu0 0
  %267 = vmatpush1.bf16.msra.mxu0 0
  %268 = vmatprep.subr.bf16.mxu0 0
  %269 = vmatpush1.bf16.msra.mxu0 0
  %270 = vmatprep.subr.bf16.mxu0 0
  %271 = vmatpush1.bf16.msra.mxu0 0
  %272 = vmatprep.mubr.bf16.mxu0 0
  %273 = vmatmul.mubr.bf16.gmra.mrb[0].mxu0 %v186
  %v274 = vpop.f32.mrb[0].mxu0
  %v275 = vadd.f32 %v226, %v274
  %v276 = vpop.f32.mrb[0].mxu0
  %v277 = vpop.f32.mrb[0].mxu0
  %v278 = vadd.f32 %v229, %v277
  %v279 = vpop.f32.mrb[0].mxu0
  %280 = vmatprep.mubr.bf16.mxu0 0
  %281 = vmatmul.mubr.bf16.gmra.mrb[0].mxu0 %v189
  %v282 = vpop.f32.mrb[0].mxu0
  %v283 = vadd.f32 %v234, %v282
  %v284 = vpop.f32.mrb[0].mxu0
  %v285 = vpop.f32.mrb[0].mxu0
  %v286 = vadd.f32 %v237, %v285
  %v287 = vpop.f32.mrb[0].mxu0
  %288 = vdwg.mxu0
  %289 = vst [vmem:[%s3] sm:$0xff] %v275
  %290 = vst [vmem:[%s3 + $0x8] sm:$0xff] %v278
  %291 = vst [vmem:[%s3 + $0x10] sm:$0xff] %v283
  %292 = vst [vmem:[%s3 + $0x18] sm:$0xff] %v286
  // Predicated region
  $region14: #{forward.13} parent=0 // pred_check
    _
  $region15: #{forward.13} parent=0 // pred_check_branch
    %294 = sbr.rel (0) target = $region17
  $region16: #{forward.13} parent=0 // pred_region
    _
  $region17: #{forward.13} parent=0 // pred_fallthru
    _
  // Predicated region
  $region18: #{forward.13} parent=0 // pred_check
    _
  $region19: #{forward.13} parent=0 // pred_check_branch
    %296 = sbr.rel (0) target = $region21
  $region20: #{forward.13} parent=0 // pred_region
    _
  $region21: #{forward.13} parent=0 // pred_fallthru
    _

// kernel: forward.16
$region0: #{forward.16}
  #allocation0 [shape = 'u32[]', space=smem, size = 0x4, offset = 0x4, fixed_abs, tag = 'smem constant byte address 0x4 - core index']
  #allocation1 [shape = 'u32[144,128]{1,0:T(1,128)}', space=vmem, size = 0x12000, scoped, tag = 'internal scratch']
  %s0 = inlined_call_operand.vmem [shape: f32[136,32], index: 0, kind: input, shape index: {}]
  %s1 = inlined_call_operand.vmem [shape: f32[1,32], index: 1, kind: input, shape index: {}]
  %s2 = inlined_call_operand.vmem [shape: f32[1,32], index: 2, kind: input, shape index: {}]
  %s3 = inlined_call_operand.vmem [shape: bf16[32,48], index: 3, kind: input, shape index: {}]
  %s4 = inlined_call_operand.vmem [shape: f32[1,48], index: 4, kind: input, shape index: {}]
  %s5 = inlined_call_operand.vmem [shape: f32[136,48], index: 5, kind: output, shape index: {}]
  %s6 = sld [smem:[#allocation0]]
  $region30: #{forward.16} parent=0
    _
  %s8 = ssub.s32 1, %s6
  %s9 = scalar_select 0, %s8, %s6
  // Predicated region
  $region2: #{forward.16} parent=0 // pred_check
    _
  $region3: #{forward.16} parent=0 // pred_check_branch
    %11 = sbr.rel (0) target = $region5
  $region4: #{forward.16} parent=0 // pred_region
    _
  $region5: #{forward.16} parent=0 // pred_fallthru
    _
  // Predicated region
  $region6: #{forward.16} parent=0 // pred_check
    _
  $region7: #{forward.16} parent=0 // pred_check_branch
    %13 = sbr.rel (0) target = $region9
  $region8: #{forward.16} parent=0 // pred_region
    _
  $region9: #{forward.16} parent=0 // pred_fallthru
    _
  // Predicated region
  $region10: #{forward.16} parent=0 // pred_check
    _
  $region11: #{forward.16} parent=0 // pred_check_branch
    %15 = sbr.rel (0) target = $region13
  $region12: #{forward.16} parent=0 // pred_region
    _
  $region13: #{forward.16} parent=0 // pred_fallthru
    _
  // Predicated region
  $region14: #{forward.16} parent=0 // pred_check
    _
  $region15: #{forward.16} parent=0 // pred_check_branch
    %17 = sbr.rel (0) target = $region17
  $region16: #{forward.16} parent=0 // pred_region
    _
  $region17: #{forward.16} parent=0 // pred_fallthru
    _
  // Predicated region
  $region18: #{forward.16} parent=0 // pred_check
    _
  $region19: #{forward.16} parent=0 // pred_check_branch
    %19 = sbr.rel (0) target = $region21
  $region20: #{forward.16} parent=0 // pred_region
    _
  $region21: #{forward.16} parent=0 // pred_fallthru
    _
  %v21 = vld [vmem:[%s0] sm:$0xff]
  %v22 = vld [vmem:[%s0 + $0x8] sm:$0xff]
  %v23 = vld [vmem:[%s0 + $0x10] sm:$0xff]
  %v24 = vld [vmem:[%s0 + $0x18] sm:$0xff]
  %v25 = vld [vmem:[%s0 + $0x20] sm:$0xff]
  %v26 = vld [vmem:[%s0 + $0x28] sm:$0xff]
  %v27 = vld [vmem:[%s0 + $0x30] sm:$0xff]
  %v28 = vld [vmem:[%s0 + $0x38] sm:$0xff]
  %v29 = vld [vmem:[%s0 + $0x40] sm:$0xff]
  %v30 = vld [vmem:[%s0 + $0x48] sm:$0xff]
  %v31 = vld [vmem:[%s0 + $0x50] sm:$0xff]
  %v32 = vld [vmem:[%s0 + $0x58] sm:$0xff]
  %v33 = vld [vmem:[%s0 + $0x60] sm:$0xff]
  %v34 = vld [vmem:[%s0 + $0x68] sm:$0xff]
  %v35 = vld [vmem:[%s0 + $0x70] sm:$0xff]
  %v36 = vld [vmem:[%s0 + $0x78] sm:$0xff]
  %v37 = vld [vmem:[%s0 + $0x80] sm:$0xff]
  %v38 = vld [vmem:[%s1] sm:$0x1]
  %v39 = vld [vmem:[%s2] sm:$0x1]
  %vm40 = vcmask 261120
  %v41 = vsel %vm40, %v21, 0.0
  %42 = vadd.xlane.f32.xlu0 %v41
  %v43 = vpop.xlane.xlu0 %42
  %v44 = vsel %vm40, %v22, 0.0
  %45 = vadd.xlane.f32.xlu0 %v44
  %v46 = vpop.xlane.xlu0 %45
  %v47 = vsel %vm40, %v23, 0.0
  %48 = vadd.xlane.f32.xlu0 %v47
  %v49 = vpop.xlane.xlu0 %48
  %v50 = vsel %vm40, %v24, 0.0
  %51 = vadd.xlane.f32.xlu0 %v50
  %v52 = vpop.xlane.xlu0 %51
  %v53 = vsel %vm40, %v25, 0.0
  %54 = vadd.xlane.f32.xlu0 %v53
  %v55 = vpop.xlane.xlu0 %54
  %v56 = vsel %vm40, %v26, 0.0
  %57 = vadd.xlane.f32.xlu0 %v56
  %v58 = vpop.xlane.xlu0 %57
  %v59 = vsel %vm40, %v27, 0.0
  %60 = vadd.xlane.f32.xlu0 %v59
  %v61 = vpop.xlane.xlu0 %60
  %v62 = vsel %vm40, %v28, 0.0
  %63 = vadd.xlane.f32.xlu0 %v62
  %v64 = vpop.xlane.xlu0 %63
  %v65 = vsel %vm40, %v29, 0.0
  %66 = vadd.xlane.f32.xlu0 %v65
  %v67 = vpop.xlane.xlu0 %66
  %v68 = vsel %vm40, %v30, 0.0
  %69 = vadd.xlane.f32.xlu0 %v68
  %v70 = vpop.xlane.xlu0 %69
  %v71 = vsel %vm40, %v31, 0.0
  %72 = vadd.xlane.f32.xlu0 %v71
  %v73 = vpop.xlane.xlu0 %72
  %v74 = vsel %vm40, %v32, 0.0
  %75 = vadd.xlane.f32.xlu0 %v74
  %v76 = vpop.xlane.xlu0 %75
  %v77 = vsel %vm40, %v33, 0.0
  %78 = vadd.xlane.f32.xlu0 %v77
  %v79 = vpop.xlane.xlu0 %78
  %v80 = vsel %vm40, %v34, 0.0
  %81 = vadd.xlane.f32.xlu0 %v80
  %v82 = vpop.xlane.xlu0 %81
  %v83 = vsel %vm40, %v35, 0.0
  %84 = vadd.xlane.f32.xlu0 %v83
  %v85 = vpop.xlane.xlu0 %84
  %v86 = vsel %vm40, %v36, 0.0
  %87 = vadd.xlane.f32.xlu0 %v86
  %v88 = vpop.xlane.xlu0 %87
  %v89 = vsel %vm40, %v37, 0.0
  %90 = vadd.xlane.f32.xlu0 %v89
  %v91 = vpop.xlane.xlu0 %90
  %v92 = vrcp.pop 32.0
  %v93 = vmul.f32 %v43, %v92
  %v94 = vmul.f32 %v46, %v92
  %v95 = vmul.f32 %v49, %v92
  %v96 = vmul.f32 %v52, %v92
  %v97 = vmul.f32 %v55, %v92
  %v98 = vmul.f32 %v58, %v92
  %v99 = vmul.f32 %v61, %v92
  %v100 = vmul.f32 %v64, %v92
  %v101 = vmul.f32 %v67, %v92
  %v102 = vmul.f32 %v70, %v92
  %v103 = vmul.f32 %v73, %v92
  %v104 = vmul.f32 %v76, %v92
  %v105 = vmul.f32 %v79, %v92
  %v106 = vmul.f32 %v82, %v92
  %v107 = vmul.f32 %v85, %v92
  %v108 = vmul.f32 %v88, %v92
  %v109 = vmul.f32 %v91, %v92
  %v110 = vsub.f32 %v21, %v93
  %v111 = vsub.f32 %v22, %v94
  %v112 = vsub.f32 %v23, %v95
  %v113 = vsub.f32 %v24, %v96
  %v114 = vsub.f32 %v25, %v97
  %v115 = vsub.f32 %v26, %v98
  %v116 = vsub.f32 %v27, %v99
  %v117 = vsub.f32 %v28, %v100
  %v118 = vsub.f32 %v29, %v101
  %v119 = vsub.f32 %v30, %v102
  %v120 = vsub.f32 %v31, %v103
  %v121 = vsub.f32 %v32, %v104
  %v122 = vsub.f32 %v33, %v105
  %v123 = vsub.f32 %v34, %v106
  %v124 = vsub.f32 %v35, %v107
  %v125 = vsub.f32 %v36, %v108
  %v126 = vsub.f32 %v37, %v109
  %v127 = vmul.f32 %v110, %v110
  %v128 = vmul.f32 %v111, %v111
  %v129 = vmul.f32 %v112, %v112
  %v130 = vmul.f32 %v113, %v113
  %v131 = vmul.f32 %v114, %v114
  %v132 = vmul.f32 %v115, %v115
  %v133 = vmul.f32 %v116, %v116
  %v134 = vmul.f32 %v117, %v117
  %v135 = vmul.f32 %v118, %v118
  %v136 = vmul.f32 %v119, %v119
  %v137 = vmul.f32 %v120, %v120
  %v138 = vmul.f32 %v121, %v121
  %v139 = vmul.f32 %v122, %v122
  %v140 = vmul.f32 %v123, %v123
  %v141 = vmul.f32 %v124, %v124
  %v142 = vmul.f32 %v125, %v125
  %v143 = vmul.f32 %v126, %v126
  %v144 = vsel %vm40, %v127, 0.0
  %145 = vadd.xlane.f32.xlu0 %v144
  %v146 = vpop.xlane.xlu0 %145
  %v147 = vsel %vm40, %v128, 0.0
  %148 = vadd.xlane.f32.xlu0 %v147
  %v149 = vpop.xlane.xlu0 %148
  %v150 = vsel %vm40, %v129, 0.0
  %151 = vadd.xlane.f32.xlu0 %v150
  %v152 = vpop.xlane.xlu0 %151
  %v153 = vsel %vm40, %v130, 0.0
  %154 = vadd.xlane.f32.xlu0 %v153
  %v155 = vpop.xlane.xlu0 %154
  %v156 = vsel %vm40, %v131, 0.0
  %157 = vadd.xlane.f32.xlu0 %v156
  %v158 = vpop.xlane.xlu0 %157
  %v159 = vsel %vm40, %v132, 0.0
  %160 = vadd.xlane.f32.xlu0 %v159
  %v161 = vpop.xlane.xlu0 %160
  %v162 = vsel %vm40, %v133, 0.0
  %163 = vadd.xlane.f32.xlu0 %v162
  %v164 = vpop.xlane.xlu0 %163
  %v165 = vsel %vm40, %v134, 0.0
  %166 = vadd.xlane.f32.xlu0 %v165
  %v167 = vpop.xlane.xlu0 %166
  %v168 = vsel %vm40, %v135, 0.0
  %169 = vadd.xlane.f32.xlu0 %v168
  %v170 = vpop.xlane.xlu0 %169
  %v171 = vsel %vm40, %v136, 0.0
  %172 = vadd.xlane.f32.xlu0 %v171
  %v173 = vpop.xlane.xlu0 %172
  %v174 = vsel %vm40, %v137, 0.0
  %175 = vadd.xlane.f32.xlu0 %v174
  %v176 = vpop.xlane.xlu0 %175
  %v177 = vsel %vm40, %v138, 0.0
  %178 = vadd.xlane.f32.xlu0 %v177
  %v179 = vpop.xlane.xlu0 %178
  %v180 = vsel %vm40, %v139, 0.0
  %181 = vadd.xlane.f32.xlu0 %v180
  %v182 = vpop.xlane.xlu0 %181
  %v183 = vsel %vm40, %v140, 0.0
  %184 = vadd.xlane.f32.xlu0 %v183
  %v185 = vpop.xlane.xlu0 %184
  %v186 = vsel %vm40, %v141, 0.0
  %187 = vadd.xlane.f32.xlu0 %v186
  %v188 = vpop.xlane.xlu0 %187
  %v189 = vsel %vm40, %v142, 0.0
  %190 = vadd.xlane.f32.xlu0 %v189
  %v191 = vpop.xlane.xlu0 %190
  %v192 = vsel %vm40, %v143, 0.0
  %193 = vadd.xlane.f32.xlu0 %v192
  %v194 = vpop.xlane.xlu0 %193
  %v195 = vmul.f32 %v146, %v92
  %v196 = vmul.f32 %v149, %v92
  %v197 = vmul.f32 %v152, %v92
  %v198 = vmul.f32 %v155, %v92
  %v199 = vmul.f32 %v158, %v92
  %v200 = vmul.f32 %v161, %v92
  %v201 = vmul.f32 %v164, %v92
  %v202 = vmul.f32 %v167, %v92
  %v203 = vmul.f32 %v170, %v92
  %v204 = vmul.f32 %v173, %v92
  %v205 = vmul.f32 %v176, %v92
  %v206 = vmul.f32 %v179, %v92
  %v207 = vmul.f32 %v182, %v92
  %v208 = vmul.f32 %v185, %v92
  %v209 = vmul.f32 %v188, %v92
  %v210 = vmul.f32 %v191, %v92
  %v211 = vmul.f32 %v194, %v92
  %v212 = vadd.f32 %v195, 1e-05
  %v213 = vadd.f32 %v196, 1e-05
  %v214 = vadd.f32 %v197, 1e-05
  %v215 = vadd.f32 %v198, 1e-05
  %v216 = vadd.f32 %v199, 1e-05
  %v217 = vadd.f32 %v200, 1e-05
  %v218 = vadd.f32 %v201, 1e-05
  %v219 = vadd.f32 %v202, 1e-05
  %v220 = vadd.f32 %v203, 1e-05
  %v221 = vadd.f32 %v204, 1e-05
  %v222 = vadd.f32 %v205, 1e-05
  %v223 = vadd.f32 %v206, 1e-05
  %v224 = vadd.f32 %v207, 1e-05
  %v225 = vadd.f32 %v208, 1e-05
  %v226 = vadd.f32 %v209, 1e-05
  %v227 = vadd.f32 %v210, 1e-05
  %v228 = vadd.f32 %v211, 1e-05
  %v229 = vrsqrt.pop %v212
  %v230 = vrsqrt.pop %v213
  %v231 = vrsqrt.pop %v214
  %v232 = vrsqrt.pop %v215
  %v233 = vrsqrt.pop %v216
  %v234 = vrsqrt.pop %v217
  %v235 = vrsqrt.pop %v218
  %v236 = vrsqrt.pop %v219
  %v237 = vrsqrt.pop %v220
  %v238 = vrsqrt.pop %v221
  %v239 = vrsqrt.pop %v222
  %v240 = vrsqrt.pop %v223
  %v241 = vrsqrt.pop %v224
  %v242 = vrsqrt.pop %v225
  %v243 = vrsqrt.pop %v226
  %v244 = vrsqrt.pop %v227
  %v245 = vrsqrt.pop %v228
  %v246 = vmul.f32 %v110, %v229
  %v247 = vmul.f32 %v111, %v230
  %v248 = vmul.f32 %v112, %v231
  %v249 = vmul.f32 %v113, %v232
  %v250 = vmul.f32 %v114, %v233
  %v251 = vmul.f32 %v115, %v234
  %v252 = vmul.f32 %v116, %v235
  %v253 = vmul.f32 %v117, %v236
  %v254 = vmul.f32 %v118, %v237
  %v255 = vmul.f32 %v119, %v238
  %v256 = vmul.f32 %v120, %v239
  %v257 = vmul.f32 %v121, %v240
  %v258 = vmul.f32 %v122, %v241
  %v259 = vmul.f32 %v123, %v242
  %v260 = vmul.f32 %v124, %v243
  %v261 = vmul.f32 %v125, %v244
  %v262 = vmul.f32 %v126, %v245
  %v264 = vlaneseq
  %v265 = vshrl.u32 %v264, 7
  %v266 = vsub.s32 0, %v265
  %v267 = vrot.slane %v38, %v266
  %v269 = vmul.f32 %v246, %v267
  %v270 = vmul.f32 %v247, %v267
  %v271 = vmul.f32 %v248, %v267
  %v272 = vmul.f32 %v249, %v267
  %v273 = vmul.f32 %v250, %v267
  %v274 = vmul.f32 %v251, %v267
  %v275 = vmul.f32 %v252, %v267
  %v276 = vmul.f32 %v253, %v267
  %v277 = vmul.f32 %v254, %v267
  %v278 = vmul.f32 %v255, %v267
  %v279 = vmul.f32 %v256, %v267
  %v280 = vmul.f32 %v257, %v267
  %v281 = vmul.f32 %v258, %v267
  %v282 = vmul.f32 %v259, %v267
  %v283 = vmul.f32 %v260, %v267
  %v284 = vmul.f32 %v261, %v267
  %v285 = vmul.f32 %v262, %v267
  %v287 = vlaneseq
  %v288 = vshrl.u32 %v287, 7
  %v289 = vsub.s32 0, %v288
  %v290 = vrot.slane %v39, %v289
  %v292 = vadd.f32 %v269, %v290
  %v293 = vadd.f32 %v270, %v290
  %v294 = vadd.f32 %v271, %v290
  %v295 = vadd.f32 %v272, %v290
  %v296 = vadd.f32 %v273, %v290
  %v297 = vadd.f32 %v274, %v290
  %v298 = vadd.f32 %v275, %v290
  %v299 = vadd.f32 %v276, %v290
  %v300 = vadd.f32 %v277, %v290
  %v301 = vadd.f32 %v278, %v290
  %v302 = vadd.f32 %v279, %v290
  %v303 = vadd.f32 %v280, %v290
  %v304 = vadd.f32 %v281, %v290
  %v305 = vadd.f32 %v282, %v290
  %v306 = vadd.f32 %v283, %v290
  %v307 = vadd.f32 %v284, %v290
  %v308 = vadd.f32 %v285, %v290
  %v309 = vpack.c.bf16 %v293, %v292
  %v310 = vpack.c.bf16 %v295, %v294
  %v311 = vpack.c.bf16 %v297, %v296
  %v312 = vpack.c.bf16 %v299, %v298
  %v313 = vpack.c.bf16 %v301, %v300
  %v314 = vpack.c.bf16 %v303, %v302
  %v315 = vpack.c.bf16 %v305, %v304
  %v316 = vpack.c.bf16 %v307, %v306
  %v317 = vpack.c.bf16 %v308, %v308
  %v318 = vld [vmem:[%s3] sm:$0xf]
  %v319 = vld [vmem:[%s3 + $0x4] sm:$0xf]
  %v320 = vld [vmem:[%s3 + $0x8] sm:$0xf]
  %v321 = vld [vmem:[%s3 + $0xc] sm:$0xf]
  %v322 = vld [vmem:[%s4] sm:$0x1]
  %v324 = vlaneseq
  %v325 = vshrl.u32 %v324, 7
  %v326 = vsub.s32 0, %v325
  %v327 = vrot.slane %v322, %v326
  %v333 = vunpack.c.l.b16 %v318
  %v334 = vunpack.c.l.b16 %v319
  %v335 = vunpack.c.l.b16 %v320
  %v336 = vunpack.c.l.b16 %v321
  %v337 = vpack.c.b16 %v334, %v333
  %v338 = vpack.c.b16 %v336, %v335
  %v342 = vsel %vm40, %v309, 0
  %v345 = vsel %vm40, %v310, 0
  %v348 = vsel %vm40, %v311, 0
  %v351 = vsel %vm40, %v312, 0
  %v354 = vsel %vm40, %v313, 0
  %v357 = vsel %vm40, %v314, 0
  %v360 = vsel %vm40, %v315, 0
  %v363 = vsel %vm40, %v316, 0
  %v366 = vsel %vm40, %v317, 0
  %368 = vmatprep.subr.bf16.mxu0 0
  %369 = vmatpush1.bf16.msra.mxu0 %v337
  %370 = vmatprep.subr.bf16.mxu0 0
  %371 = vmatpush1.bf16.msra.mxu0 %v338
  %372 = vmatprep.subr.bf16.mxu0 0
  %373 = vmatpush1.bf16.msra.mxu0 0
  %374 = vmatprep.subr.bf16.mxu0 0
  %375 = vmatpush1.bf16.msra.mxu0 0
  %376 = vmatprep.subr.bf16.mxu0 0
  %377 = vmatpush1.bf16.msra.mxu0 0
  %378 = vmatprep.subr.bf16.mxu0 0
  %379 = vmatpush1.bf16.msra.mxu0 0
  %380 = vmatprep.subr.bf16.mxu0 0
  %381 = vmatpush1.bf16.msra.mxu0 0
  %382 = vmatprep.subr.bf16.mxu0 0
  %383 = vmatpush1.bf16.msra.mxu0 0
  %384 = vmatprep.subr.bf16.mxu0 0
  %385 = vmatpush1.bf16.msra.mxu0 0
  %386 = vmatprep.subr.bf16.mxu0 0
  %387 = vmatpush1.bf16.msra.mxu0 0
  %388 = vmatprep.subr.bf16.mxu0 0
  %389 = vmatpush1.bf16.msra.mxu0 0
  %390 = vmatprep.subr.bf16.mxu0 0
  %391 = vmatpush1.bf16.msra.mxu0 0
  %392 = vmatprep.subr.bf16.mxu0 0
  %393 = vmatpush1.bf16.msra.mxu0 0
  %394 = vmatprep.subr.bf16.mxu0 0
  %395 = vmatpush1.bf16.msra.mxu0 0
  %396 = vmatprep.subr.bf16.mxu0 0
  %397 = vmatpush1.bf16.msra.mxu0 0
  %398 = vmatprep.subr.bf16.mxu0 0
  %399 = vmatpush1.bf16.msra.mxu0 0
  %400 = vmatprep.mubr.bf16.mxu0 0
  %401 = vmatmul.mubr.bf16.gmra.mrb[0].mxu0 %v342
  %v402 = vpop.f32.mrb[0].mxu0
  %v403 = vadd.f32 %v327, %v402
  %v404 = vpop.f32.mrb[0].mxu0
  %v405 = vpop.f32.mrb[0].mxu0
  %v406 = vadd.f32 %v327, %v405
  %v407 = vpop.f32.mrb[0].mxu0
  %408 = vmatprep.mubr.bf16.mxu0 0
  %409 = vmatmul.mubr.bf16.gmra.mrb[0].mxu0 %v345
  %v410 = vpop.f32.mrb[0].mxu0
  %v411 = vadd.f32 %v327, %v410
  %v412 = vpop.f32.mrb[0].mxu0
  %v413 = vpop.f32.mrb[0].mxu0
  %v414 = vadd.f32 %v327, %v413
  %v415 = vpop.f32.mrb[0].mxu0
  %416 = vmatprep.mubr.bf16.mxu0 0
  %417 = vmatmul.mubr.bf16.gmra.mrb[0].mxu0 %v348
  %v418 = vpop.f32.mrb[0].mxu0
  %v419 = vadd.f32 %v327, %v418
  %v420 = vpop.f32.mrb[0].mxu0
  %v421 = vpop.f32.mrb[0].mxu0
  %v422 = vadd.f32 %v327, %v421
  %v423 = vpop.f32.mrb[0].mxu0
  %424 = vmatprep.mubr.bf16.mxu0 0
  %425 = vmatmul.mubr.bf16.gmra.mrb[0].mxu0 %v351
  %v426 = vpop.f32.mrb[0].mxu0
  %v427 = vadd.f32 %v327, %v426
  %v428 = vpop.f32.mrb[0].mxu0
  %v429 = vpop.f32.mrb[0].mxu0
  %v430 = vadd.f32 %v327, %v429
  %v431 = vpop.f32.mrb[0].mxu0
  %432 = vmatprep.mubr.bf16.mxu0 0
  %433 = vmatmul.mubr.bf16.gmra.mrb[0].mxu0 %v354
  %v434 = vpop.f32.mrb[0].mxu0
  %v435 = vadd.f32 %v327, %v434
  %v436 = vpop.f32.mrb[0].mxu0
  %v437 = vpop.f32.mrb[0].mxu0
  %v438 = vadd.f32 %v327, %v437
  %v439 = vpop.f32.mrb[0].mxu0
  %440 = vmatprep.mubr.bf16.mxu0 0
  %441 = vmatmul.mubr.bf16.gmra.mrb[0].mxu0 %v357
  %v442 = vpop.f32.mrb[0].mxu0
  %v443 = vadd.f32 %v327, %v442
  %v444 = vpop.f32.mrb[0].mxu0
  %v445 = vpop.f32.mrb[0].mxu0
  %v446 = vadd.f32 %v327, %v445
  %v447 = vpop.f32.mrb[0].mxu0
  %448 = vmatprep.mubr.bf16.mxu0 0
  %449 = vmatmul.mubr.bf16.gmra.mrb[0].mxu0 %v360
  %v450 = vpop.f32.mrb[0].mxu0
  %v451 = vadd.f32 %v327, %v450
  %v452 = vpop.f32.mrb[0].mxu0
  %v453 = vpop.f32.mrb[0].mxu0
  %v454 = vadd.f32 %v327, %v453
  %v455 = vpop.f32.mrb[0].mxu0
  %456 = vmatprep.mubr.bf16.mxu0 0
  %457 = vmatmul.mubr.bf16.gmra.mrb[0].mxu0 %v363
  %v458 = vpop.f32.mrb[0].mxu0
  %v459 = vadd.f32 %v327, %v458
  %v460 = vpop.f32.mrb[0].mxu0
  %v461 = vpop.f32.mrb[0].mxu0
  %v462 = vadd.f32 %v327, %v461
  %v463 = vpop.f32.mrb[0].mxu0
  %464 = vmatprep.mubr.bf16.mxu0 0
  %465 = vmatmul.mubr.bf16.gmra.mrb[0].mxu0 %v366
  %v466 = vpop.f32.mrb[0].mxu0
  %v467 = vadd.f32 %v327, %v466
  %v468 = vpop.f32.mrb[0].mxu0
  %v469 = vpop.f32.mrb[0].mxu0
  %v470 = vpop.f32.mrb[0].mxu0
  %471 = vdwg.mxu0
  %vm472 = vcmask 392192
  %473 = vst.msk [vmem:[%s5] sm:$0xff] %vm472, %v403
  %474 = vst.msk [vmem:[%s5 + $0x8] sm:$0xff] %vm472, %v406
  %475 = vst.msk [vmem:[%s5 + $0x10] sm:$0xff] %vm472, %v411
  %476 = vst.msk [vmem:[%s5 + $0x18] sm:$0xff] %vm472, %v414
  %477 = vst.msk [vmem:[%s5 + $0x20] sm:$0xff] %vm472, %v419
  %478 = vst.msk [vmem:[%s5 + $0x28] sm:$0xff] %vm472, %v422
  %479 = vst.msk [vmem:[%s5 + $0x30] sm:$0xff] %vm472, %v427
  %480 = vst.msk [vmem:[%s5 + $0x38] sm:$0xff] %vm472, %v430
  %481 = vst.msk [vmem:[%s5 + $0x40] sm:$0xff] %vm472, %v435
  %482 = vst.msk [vmem:[%s5 + $0x48] sm:$0xff] %vm472, %v438
  %483 = vst.msk [vmem:[%s5 + $0x50] sm:$0xff] %vm472, %v443
  %484 = vst.msk [vmem:[%s5 + $0x58] sm:$0xff] %vm472, %v446
  %485 = vst.msk [vmem:[%s5 + $0x60] sm:$0xff] %vm472, %v451
  %486 = vst.msk [vmem:[%s5 + $0x68] sm:$0xff] %vm472, %v454
  %487 = vst.msk [vmem:[%s5 + $0x70] sm:$0xff] %vm472, %v459
  %488 = vst.msk [vmem:[%s5 + $0x78] sm:$0xff] %vm472, %v462
  %489 = vst.msk [vmem:[%s5 + $0x80] sm:$0xff] %vm472, %v467
  // Predicated region
  $region22: #{forward.16} parent=0 // pred_check
    _
  $region23: #{forward.16} parent=0 // pred_check_branch
    %491 = sbr.rel (0) target = $region25
  $region24: #{forward.16} parent=0 // pred_region
    _
  $region25: #{forward.16} parent=0 // pred_fallthru
    _
  // Predicated region
  $region26: #{forward.16} parent=0 // pred_check
    _
  $region27: #{forward.16} parent=0 // pred_check_branch
    %493 = sbr.rel (0) target = $region29
  $region28: #{forward.16} parent=0 // pred_region
    _
  $region29: #{forward.16} parent=0 // pred_fallthru
    _

// kernel: forward.14
$region0: #{forward.14}
  #allocation0 [shape = 'u32[]', space=smem, size = 0x4, offset = 0x4, fixed_abs, tag = 'smem constant byte address 0x4 - core index']
  #allocation1 [shape = 'u32[144,128]{1,0:T(1,128)}', space=vmem, size = 0x12000, scoped, tag = 'internal scratch']
  %s0 = inlined_call_operand.vmem [shape: f32[8,17,32], index: 0, kind: input, shape index: {}]
  %s1 = inlined_call_operand.vmem [shape: f32[1,32], index: 1, kind: input, shape index: {}]
  %s2 = inlined_call_operand.vmem [shape: f32[1,32], index: 2, kind: input, shape index: {}]
  %s3 = inlined_call_operand.vmem [shape: bf16[32,96], index: 3, kind: input, shape index: {}]
  %s4 = inlined_call_operand.vmem [shape: f32[1,96], index: 4, kind: input, shape index: {}]
  %s5 = inlined_call_operand.vmem [shape: bf16[32,32], index: 5, kind: input, shape index: {}]
  %s6 = inlined_call_operand.vmem [shape: f32[1,32], index: 6, kind: input, shape index: {}]
  %s7 = inlined_call_operand.vmem [shape: f32[1,32], index: 7, kind: input, shape index: {}]
  %s8 = inlined_call_operand.vmem [shape: f32[1,32], index: 8, kind: input, shape index: {}]
  %s9 = inlined_call_operand.vmem [shape: bf16[32,128], index: 9, kind: input, shape index: {}]
  %s10 = inlined_call_operand.vmem [shape: f32[1,128], index: 10, kind: input, shape index: {}]
  %s11 = inlined_call_operand.vmem [shape: bf16[128,32], index: 11, kind: input, shape index: {}]
  %s12 = inlined_call_operand.vmem [shape: f32[1,32], index: 12, kind: input, shape index: {}]
  %s13 = inlined_call_operand.vmem [shape: f32[8,17,32], index: 13, kind: output, shape index: {}]
  %s14 = sld [smem:[#allocation0]]
  $region85: #{forward.14} parent=0
    _
  %s16 = ssub.s32 1, %s14
  %s17 = scalar_select 0, %s16, %s14
  loop: start=0, step=1, limit=10
  $region2: #{forward.14} parent=0 // loop_pre_header
    _
  $region3: #{forward.14} parent=0 // loop_header
    %s19 = sphi 0, %s23
    %p20 = scmp.ge.s32.totalorder %s19, 10
    %s29 = sphi 0, %s31
    %s32 = sphi 0, %s29
    %s33 = sphi 0, %s32
    %s49 = sphi 0, %s33
    %s53 = sphi 0, %s53
    %s55 = sphi 0, %s53
    %s56 = sphi 0, %s55
    %s70 = sphi 0, %s56
    %s74 = sphi 0, %s74
    %s76 = sphi 0, %s74
    %s77 = sphi 0, %s76
    %s91 = sphi 0, %s77
    %s95 = sphi 0, %s95
    %s97 = sphi 0, %s95
    %s98 = sphi 0, %s97
    %s112 = sphi 0, %s98
    %s116 = sphi 0, %s116
    %s118 = sphi 0, %s116
    %s119 = sphi 0, %s118
    %s133 = sphi 0, %s119
    %s137 = sphi 0, %s137
    %s139 = sphi 0, %s137
    %s140 = sphi 0, %s139
    %s154 = sphi 0, %s140
    %s158 = sphi 0, %s158
    %s160 = sphi 0, %s158
    %s161 = sphi 0, %s160
    %s175 = sphi 0, %s161
    %s179 = sphi 0, %s179
    %s181 = sphi 0, %s179
    %s182 = sphi 0, %s181
    %s196 = sphi 0, %s182
    %s200 = sphi 0, %s200
    %s202 = sphi 0, %s200
    %s203 = sphi 0, %s202
    %s217 = sphi 0, %s203
    %s221 = sphi 0, %s221
    %s223 = sphi 0, %s221
    %s224 = sphi 0, %s223
    %s238 = sphi 0, %s224
    %s242 = sphi 0, %s242
    %s244 = sphi 0, %s242
    %s245 = sphi 0, %s244
    %s259 = sphi 0, %s245
    %s263 = sphi 0, %s263
    %s265 = sphi 0, %s263
    %s266 = sphi 0, %s265
    %s280 = sphi 0, %s266
    %s284 = sphi 0, %s284
    %s286 = sphi 0, %s284
    %s287 = sphi 0, %s286
    %s301 = sphi 0, %s287
    %s307 = sphi 0, %s309
    %s310 = sphi 0, %s307
    %s311 = sphi 0, %s310
    %s327 = sphi 0, %s311
  $region4: #{forward.14} parent=0 // loop_header_branch
    %22 = sbr.rel (%p20) target = $region8
  $region5: #{forward.14} parent=0 // loop_body
    %s24 = ssub.s32 %s19, 1
    %s25 = ssub.s32 %s19, 2
    %s26 = sadd.s32 %s19, 1
    %s27 = ssub.s32 %s19, %s26
    %p28 = scmp.eq.s32.totalorder %s27, 0
    %s30 = sadd.s32 %s29, 1
    %s31 = scalar_select %p28, %s29, %s30
    %p34 = pneg %p28
    %p35 = scmp.eq.s32.totalorder %s19, 7
    %p36 = por %p34, %p35
    %p37 = scmp.ne.s32.totalorder %s29, %s32
    %p38 = scmp.eq.s32.totalorder %s19, 0
    %p39 = por %p37, %p38
    %p40 = scmp.ne.s32.totalorder %s29, %s32
    %p41 = scmp.eq.s32.totalorder %s24, 7
    %p42 = por %p40, %p41
    %p43 = scmp.ne.s32.totalorder %s32, %s33
    %p44 = scmp.eq.s32.totalorder %s24, 0
    %p45 = por %p43, %p44
    %p46 = scmp.ne.s32.totalorder %s32, %s33
    %p47 = scmp.eq.s32.totalorder %s25, 7
    %p48 = por %p46, %p47
    %p50 = scmp.ne.s32.totalorder %s33, %s49
    %p51 = scmp.eq.s32.totalorder %s25, 0
    %p52 = por %p50, %p51
    %s54 = sadd.s32 %s53, 1
    %p57 = scmp.eq.s32.totalorder %s19, 7
    %p58 = scmp.ne.s32.totalorder %s53, %s55
    %p59 = scmp.eq.s32.totalorder %s19, 0
    %p60 = por %p58, %p59
    %p61 = scmp.ne.s32.totalorder %s53, %s55
    %p62 = scmp.eq.s32.totalorder %s24, 7
    %p63 = por %p61, %p62
    %p64 = scmp.ne.s32.totalorder %s55, %s56
    %p65 = scmp.eq.s32.totalorder %s24, 0
    %p66 = por %p64, %p65
    %p67 = scmp.ne.s32.totalorder %s55, %s56
    %p68 = scmp.eq.s32.totalorder %s25, 7
    %p69 = por %p67, %p68
    %p71 = scmp.ne.s32.totalorder %s56, %s70
    %p72 = scmp.eq.s32.totalorder %s25, 0
    %p73 = por %p71, %p72
    %s75 = sadd.s32 %s74, 1
    %p78 = scmp.eq.s32.totalorder %s19, 7
    %p79 = scmp.ne.s32.totalorder %s74, %s76
    %p80 = scmp.eq.s32.totalorder %s19, 0
    %p81 = por %p79, %p80
    %p82 = scmp.ne.s32.totalorder %s74, %s76
    %p83 = scmp.eq.s32.totalorder %s24, 7
    %p84 = por %p82, %p83
    %p85 = scmp.ne.s32.totalorder %s76, %s77
    %p86 = scmp.eq.s32.totalorder %s24, 0
    %p87 = por %p85, %p86
    %p88 = scmp.ne.s32.totalorder %s76, %s77
    %p89 = scmp.eq.s32.totalorder %s25, 7
    %p90 = por %p88, %p89
    %p92 = scmp.ne.s32.totalorder %s77, %s91
    %p93 = scmp.eq.s32.totalorder %s25, 0
    %p94 = por %p92, %p93
    %s96 = sadd.s32 %s95, 1
    %p99 = scmp.eq.s32.totalorder %s19, 7
    %p100 = scmp.ne.s32.totalorder %s95, %s97
    %p101 = scmp.eq.s32.totalorder %s19, 0
    %p102 = por %p100, %p101
    %p103 = scmp.ne.s32.totalorder %s95, %s97
    %p104 = scmp.eq.s32.totalorder %s24, 7
    %p105 = por %p103, %p104
    %p106 = scmp.ne.s32.totalorder %s97, %s98
    %p107 = scmp.eq.s32.totalorder %s24, 0
    %p108 = por %p106, %p107
    %p109 = scmp.ne.s32.totalorder %s97, %s98
    %p110 = scmp.eq.s32.totalorder %s25, 7
    %p111 = por %p109, %p110
    %p113 = scmp.ne.s32.totalorder %s98, %s112
    %p114 = scmp.eq.s32.totalorder %s25, 0
    %p115 = por %p113, %p114
    %s117 = sadd.s32 %s116, 1
    %p120 = scmp.eq.s32.totalorder %s19, 7
    %p121 = scmp.ne.s32.totalorder %s116, %s118
    %p122 = scmp.eq.s32.totalorder %s19, 0
    %p123 = por %p121, %p122
    %p124 = scmp.ne.s32.totalorder %s116, %s118
    %p125 = scmp.eq.s32.totalorder %s24, 7
    %p126 = por %p124, %p125
    %p127 = scmp.ne.s32.totalorder %s118, %s119
    %p128 = scmp.eq.s32.totalorder %s24, 0
    %p129 = por %p127, %p128
    %p130 = scmp.ne.s32.totalorder %s118, %s119
    %p131 = scmp.eq.s32.totalorder %s25, 7
    %p132 = por %p130, %p131
    %p134 = scmp.ne.s32.totalorder %s119, %s133
    %p135 = scmp.eq.s32.totalorder %s25, 0
    %p136 = por %p134, %p135
    %s138 = sadd.s32 %s137, 1
    %p141 = scmp.eq.s32.totalorder %s19, 7
    %p142 = scmp.ne.s32.totalorder %s137, %s139
    %p143 = scmp.eq.s32.totalorder %s19, 0
    %p144 = por %p142, %p143
    %p145 = scmp.ne.s32.totalorder %s137, %s139
    %p146 = scmp.eq.s32.totalorder %s24, 7
    %p147 = por %p145, %p146
    %p148 = scmp.ne.s32.totalorder %s139, %s140
    %p149 = scmp.eq.s32.totalorder %s24, 0
    %p150 = por %p148, %p149
    %p151 = scmp.ne.s32.totalorder %s139, %s140
    %p152 = scmp.eq.s32.totalorder %s25, 7
    %p153 = por %p151, %p152
    %p155 = scmp.ne.s32.totalorder %s140, %s154
    %p156 = scmp.eq.s32.totalorder %s25, 0
    %p157 = por %p155, %p156
    %s159 = sadd.s32 %s158, 1
    %p162 = scmp.eq.s32.totalorder %s19, 7
    %p163 = scmp.ne.s32.totalorder %s158, %s160
    %p164 = scmp.eq.s32.totalorder %s19, 0
    %p165 = por %p163, %p164
    %p166 = scmp.ne.s32.totalorder %s158, %s160
    %p167 = scmp.eq.s32.totalorder %s24, 7
    %p168 = por %p166, %p167
    %p169 = scmp.ne.s32.totalorder %s160, %s161
    %p170 = scmp.eq.s32.totalorder %s24, 0
    %p171 = por %p169, %p170
    %p172 = scmp.ne.s32.totalorder %s160, %s161
    %p173 = scmp.eq.s32.totalorder %s25, 7
    %p174 = por %p172, %p173
    %p176 = scmp.ne.s32.totalorder %s161, %s175
    %p177 = scmp.eq.s32.totalorder %s25, 0
    %p178 = por %p176, %p177
    %s180 = sadd.s32 %s179, 1
    %p183 = scmp.eq.s32.totalorder %s19, 7
    %p184 = scmp.ne.s32.totalorder %s179, %s181
    %p185 = scmp.eq.s32.totalorder %s19, 0
    %p186 = por %p184, %p185
    %p187 = scmp.ne.s32.totalorder %s179, %s181
    %p188 = scmp.eq.s32.totalorder %s24, 7
    %p189 = por %p187, %p188
    %p190 = scmp.ne.s32.totalorder %s181, %s182
    %p191 = scmp.eq.s32.totalorder %s24, 0
    %p192 = por %p190, %p191
    %p193 = scmp.ne.s32.totalorder %s181, %s182
    %p194 = scmp.eq.s32.totalorder %s25, 7
    %p195 = por %p193, %p194
    %p197 = scmp.ne.s32.totalorder %s182, %s196
    %p198 = scmp.eq.s32.totalorder %s25, 0
    %p199 = por %p197, %p198
    %s201 = sadd.s32 %s200, 1
    %p204 = scmp.eq.s32.totalorder %s19, 7
    %p205 = scmp.ne.s32.totalorder %s200, %s202
    %p206 = scmp.eq.s32.totalorder %s19, 0
    %p207 = por %p205, %p206
    %p208 = scmp.ne.s32.totalorder %s200, %s202
    %p209 = scmp.eq.s32.totalorder %s24, 7
    %p210 = por %p208, %p209
    %p211 = scmp.ne.s32.totalorder %s202, %s203
    %p212 = scmp.eq.s32.totalorder %s24, 0
    %p213 = por %p211, %p212
    %p214 = scmp.ne.s32.totalorder %s202, %s203
    %p215 = scmp.eq.s32.totalorder %s25, 7
    %p216 = por %p214, %p215
    %p218 = scmp.ne.s32.totalorder %s203, %s217
    %p219 = scmp.eq.s32.totalorder %s25, 0
    %p220 = por %p218, %p219
    %s222 = sadd.s32 %s221, 1
    %p225 = scmp.eq.s32.totalorder %s19, 7
    %p226 = scmp.ne.s32.totalorder %s221, %s223
    %p227 = scmp.eq.s32.totalorder %s19, 0
    %p228 = por %p226, %p227
    %p229 = scmp.ne.s32.totalorder %s221, %s223
    %p230 = scmp.eq.s32.totalorder %s24, 7
    %p231 = por %p229, %p230
    %p232 = scmp.ne.s32.totalorder %s223, %s224
    %p233 = scmp.eq.s32.totalorder %s24, 0
    %p234 = por %p232, %p233
    %p235 = scmp.ne.s32.totalorder %s223, %s224
    %p236 = scmp.eq.s32.totalorder %s25, 7
    %p237 = por %p235, %p236
    %p239 = scmp.ne.s32.totalorder %s224, %s238
    %p240 = scmp.eq.s32.totalorder %s25, 0
    %p241 = por %p239, %p240
    %s243 = sadd.s32 %s242, 1
    %p246 = scmp.eq.s32.totalorder %s19, 7
    %p247 = scmp.ne.s32.totalorder %s242, %s244
    %p248 = scmp.eq.s32.totalorder %s19, 0
    %p249 = por %p247, %p248
    %p250 = scmp.ne.s32.totalorder %s242, %s244
    %p251 = scmp.eq.s32.totalorder %s24, 7
    %p252 = por %p250, %p251
    %p253 = scmp.ne.s32.totalorder %s244, %s245
    %p254 = scmp.eq.s32.totalorder %s24, 0
    %p255 = por %p253, %p254
    %p256 = scmp.ne.s32.totalorder %s244, %s245
    %p257 = scmp.eq.s32.totalorder %s25, 7
    %p258 = por %p256, %p257
    %p260 = scmp.ne.s32.totalorder %s245, %s259
    %p261 = scmp.eq.s32.totalorder %s25, 0
    %p262 = por %p260, %p261
    %s264 = sadd.s32 %s263, 1
    %p267 = scmp.eq.s32.totalorder %s19, 7
    %p268 = scmp.ne.s32.totalorder %s263, %s265
    %p269 = scmp.eq.s32.totalorder %s19, 0
    %p270 = por %p268, %p269
    %p271 = scmp.ne.s32.totalorder %s263, %s265
    %p272 = scmp.eq.s32.totalorder %s24, 7
    %p273 = por %p271, %p272
    %p274 = scmp.ne.s32.totalorder %s265, %s266
    %p275 = scmp.eq.s32.totalorder %s24, 0
    %p276 = por %p274, %p275
    %p277 = scmp.ne.s32.totalorder %s265, %s266
    %p278 = scmp.eq.s32.totalorder %s25, 7
    %p279 = por %p277, %p278
    %p281 = scmp.ne.s32.totalorder %s266, %s280
    %p282 = scmp.eq.s32.totalorder %s25, 0
    %p283 = por %p281, %p282
    %s285 = sadd.s32 %s284, 1
    %p288 = scmp.eq.s32.totalorder %s19, 7
    %p289 = scmp.ne.s32.totalorder %s284, %s286
    %p290 = scmp.eq.s32.totalorder %s19, 0
    %p291 = por %p289, %p290
    %p292 = scmp.ne.s32.totalorder %s284, %s286
    %p293 = scmp.eq.s32.totalorder %s24, 7
    %p294 = por %p292, %p293
    %p295 = scmp.ne.s32.totalorder %s286, %s287
    %p296 = scmp.eq.s32.totalorder %s24, 0
    %p297 = por %p295, %p296
    %p298 = scmp.ne.s32.totalorder %s286, %s287
    %p299 = scmp.eq.s32.totalorder %s25, 7
    %p300 = por %p298, %p299
    %p302 = scmp.ne.s32.totalorder %s287, %s301
    %p303 = scmp.eq.s32.totalorder %s25, 0
    %p304 = por %p302, %p303
    %s305 = ssub.s32 %s19, %s26
    %p306 = scmp.eq.s32.totalorder %s305, 0
    %s308 = sadd.s32 %s307, 1
    %s309 = scalar_select %p306, %s307, %s308
    %p312 = pneg %p306
    %p313 = scmp.eq.s32.totalorder %s19, 7
    %p314 = por %p312, %p313
    %p315 = scmp.ne.s32.totalorder %s307, %s310
    %p316 = scmp.eq.s32.totalorder %s19, 0
    %p317 = por %p315, %p316
    %p318 = scmp.ne.s32.totalorder %s307, %s310
    %p319 = scmp.eq.s32.totalorder %s24, 7
    %p320 = por %p318, %p319
    %p321 = scmp.ne.s32.totalorder %s310, %s311
    %p322 = scmp.eq.s32.totalorder %s24, 0
    %p323 = por %p321, %p322
    %p324 = scmp.ne.s32.totalorder %s310, %s311
    %p325 = scmp.eq.s32.totalorder %s25, 7
    %p326 = por %p324, %p325
    %p328 = scmp.ne.s32.totalorder %s311, %s327
    %p329 = scmp.eq.s32.totalorder %s25, 0
    %p330 = por %p328, %p329
    %p331 = scmp.le.s32.totalorder 1, %s19
    %p332 = scmp.lt.s32.totalorder %s19, 9
    %p333 = pnand %p331, %p332
    %p334 = pneg %p333
    // Predicated region
    $region9: #{forward.14} parent=5 // pred_check
      _
    $region10: #{forward.14} parent=5 // pred_check_branch
      %336 = sbr.rel (%p333) target = $region12
    $region11: #{forward.14} parent=5 // pred_region
      %s337 = ssub.s32 %s19, 1
      // Predicated region
      $region13: #{forward.14} parent=11 // pred_check
        %p338 = pneg %p66
      $region14: #{forward.14} parent=11 // pred_check_branch
        %340 = sbr.rel (%p338) target = $region16
      $region15: #{forward.14} parent=11 // pred_region
        _
      $region16: #{forward.14} parent=11 // pred_fallthru
        _
      // Predicated region
      $region17: #{forward.14} parent=11 // pred_check
        %p341 = pneg %p87
      $region18: #{forward.14} parent=11 // pred_check_branch
        %343 = sbr.rel (%p341) target = $region20
      $region19: #{forward.14} parent=11 // pred_region
        _
      $region20: #{forward.14} parent=11 // pred_fallthru
        _
      // Predicated region
      $region21: #{forward.14} parent=11 // pred_check
        %p344 = pneg %p108
      $region22: #{forward.14} parent=11 // pred_check_branch
        %346 = sbr.rel (%p344) target = $region24
      $region23: #{forward.14} parent=11 // pred_region
        _
      $region24: #{forward.14} parent=11 // pred_fallthru
        _
      // Predicated region
      $region25: #{forward.14} parent=11 // pred_check
        %p347 = pneg %p129
      $region26: #{forward.14} parent=11 // pred_check_branch
        %349 = sbr.rel (%p347) target = $region28
      $region27: #{forward.14} parent=11 // pred_region
        _
      $region28: #{forward.14} parent=11 // pred_fallthru
        _
      // Predicated region
      $region29: #{forward.14} parent=11 // pred_check
        %p350 = pneg %p150
      $region30: #{forward.14} parent=11 // pred_check_branch
        %352 = sbr.rel (%p350) target = $region32
      $region31: #{forward.14} parent=11 // pred_region
        _
      $region32: #{forward.14} parent=11 // pred_fallthru
        _
      // Predicated region
      $region33: #{forward.14} parent=11 // pred_check
        %p353 = pneg %p171
      $region34: #{forward.14} parent=11 // pred_check_branch
        %355 = sbr.rel (%p353) target = $region36
      $region35: #{forward.14} parent=11 // pred_region
        _
      $region36: #{forward.14} parent=11 // pred_fallthru
        _
      // Predicated region
      $region37: #{forward.14} parent=11 // pred_check
        %p356 = pneg %p192
      $region38: #{forward.14} parent=11 // pred_check_branch
        %358 = sbr.rel (%p356) target = $region40
      $region39: #{forward.14} parent=11 // pred_region
        _
      $region40: #{forward.14} parent=11 // pred_fallthru
        _
      // Predicated region
      $region41: #{forward.14} parent=11 // pred_check
        %p359 = pneg %p213
      $region42: #{forward.14} parent=11 // pred_check_branch
        %361 = sbr.rel (%p359) target = $region44
      $region43: #{forward.14} parent=11 // pred_region
        _
      $region44: #{forward.14} parent=11 // pred_fallthru
        _
      // Predicated region
      $region45: #{forward.14} parent=11 // pred_check
        %p362 = pneg %p234
      $region46: #{forward.14} parent=11 // pred_check_branch
        %364 = sbr.rel (%p362) target = $region48
      $region47: #{forward.14} parent=11 // pred_region
        _
      $region48: #{forward.14} parent=11 // pred_fallthru
        _
      // Predicated region
      $region49: #{forward.14} parent=11 // pred_check
        %p365 = pneg %p255
      $region50: #{forward.14} parent=11 // pred_check_branch
        %367 = sbr.rel (%p365) target = $region52
      $region51: #{forward.14} parent=11 // pred_region
        _
      $region52: #{forward.14} parent=11 // pred_fallthru
        _
      // Predicated region
      $region53: #{forward.14} parent=11 // pred_check
        %p368 = pneg %p276
      $region54: #{forward.14} parent=11 // pred_check_branch
        %370 = sbr.rel (%p368) target = $region56
      $region55: #{forward.14} parent=11 // pred_region
        _
      $region56: #{forward.14} parent=11 // pred_fallthru
        _
      // Predicated region
      $region57: #{forward.14} parent=11 // pred_check
        %p371 = pneg %p297
      $region58: #{forward.14} parent=11 // pred_check_branch
        %373 = sbr.rel (%p371) target = $region60
      $region59: #{forward.14} parent=11 // pred_region
        _
      $region60: #{forward.14} parent=11 // pred_fallthru
        _
    $region12: #{forward.14} parent=5 // pred_fallthru
      _
    %p374 = scmp.lt.s32.totalorder %s19, 8
    // Predicated region
    $region61: #{forward.14} parent=5 // pred_check
      %p375 = pneg %p374
    $region62: #{forward.14} parent=5 // pred_check_branch
      %377 = sbr.rel (%p375) target = $region64
    $region63: #{forward.14} parent=5 // pred_region
      // Predicated region
      $region65: #{forward.14} parent=63 // pred_check
        %p378 = pneg %p39
      $region66: #{forward.14} parent=63 // pred_check_branch
        %380 = sbr.rel (%p378) target = $region68
      $region67: #{forward.14} parent=63 // pred_region
        %p381 = scmp.lt.s32.totalorder %s19, 7
        %s382 = scalar_select %p381, %s19, 7
        %s383 = smul.addr %s382, 3
        %s384 = smul.addr %s383, 8
        %s385 = scalar_lea.vmem %s0, %s384
      $region68: #{forward.14} parent=63 // pred_fallthru
        _
    $region64: #{forward.14} parent=5 // pred_fallthru
      _
    %p386 = scmp.le.s32.totalorder 1, %s19
    %p387 = scmp.lt.s32.totalorder %s19, 9
    %p388 = pnand %p386, %p387
    %p389 = pneg %p388
    // Predicated region
    $region69: #{forward.14} parent=5 // pred_check
      _
    $region70: #{forward.14} parent=5 // pred_check_branch
      %391 = sbr.rel (%p388) target = $region72
    $region71: #{forward.14} parent=5 // pred_region
      %s392 = ssub.s32 %s19, 1
      %p393 = scmp.lt.s32.totalorder %s24, 7
      %s394 = scalar_select %p393, %s24, 7
      %s395 = smul.addr %s394, 3
      %s396 = smul.addr %s395, 8
      %s397 = scalar_lea.vmem %s0, %s396
      %p398 = pneg %p45
      %p399 = pneg %p42
      %p400 = pneg %p66
      %p401 = pneg %p63
      %p402 = pneg %p87
      %p403 = pneg %p84
      %p404 = pneg %p108
      %p405 = pneg %p105
      %p406 = pneg %p129
      %p407 = pneg %p126
      %p408 = pneg %p150
      %p409 = pneg %p147
      %p410 = pneg %p171
      %p411 = pneg %p168
      %p412 = pneg %p192
      %p413 = pneg %p189
      %p414 = pneg %p213
      %p415 = pneg %p210
      %p416 = pneg %p234
      %p417 = pneg %p231
      %p418 = pneg %p255
      %p419 = pneg %p252
      %p420 = pneg %p276
      %p421 = pneg %p273
      %p422 = pneg %p297
      %p423 = pneg %p294
      %p424 = pneg %p323
      %p425 = pneg %p320
      %p426 = scmp.lt.s32.totalorder %s24, 7
      %s427 = scalar_select %p426, %s24, 7
      %s428 = smul.addr %s427, 3
      %s429 = smul.addr %s428, 8
      %s430 = scalar_lea.vmem %s13, %s429
      %p431 = scmp.lt.s32.totalorder %s24, 7
      %s432 = scalar_select %p431, %s24, 7
      %s433 = smul.addr %s432, 3
      %s434 = smul.addr %s433, 8
      %s435 = scalar_lea.vmem %s0, %s434
      %p436 = scmp.lt.s32.totalorder %s24, 7
      %s437 = scalar_select %p436, %s24, 7
      %s438 = smul.addr %s437, 3
      %s439 = smul.addr %s438, 8
      %s440 = scalar_lea.vmem %s13, %s439
      %v442 = vld [vmem:[%s435] sm:$0xff]
      %v443 = vld [vmem:[%s435 + $0x8] sm:$0xff]
      %v444 = vld [vmem:[%s435 + $0x10] sm:$0x1]
      %v445 = vld [vmem:[%s1] sm:$0x1]
      %v446 = vld [vmem:[%s2] sm:$0x1]
      %vm447 = vcmask 261120
      %v448 = vsel %vm447, %v442, 0.0
      %449 = vadd.xlane.f32.xlu0 %v448
      %v450 = vpop.xlane.xlu0 %449
      %v451 = vsel %vm447, %v443, 0.0
      %452 = vadd.xlane.f32.xlu0 %v451
      %v453 = vpop.xlane.xlu0 %452
      %vm454 = vcmask 253952
      %v455 = vsel %vm454, %v444, 0.0
      %456 = vadd.xlane.f32.xlu0 %v455
      %v457 = vpop.xlane.xlu0 %456
      %v458 = vrcp.pop 32.0
      %v459 = vmul.f32 %v450, %v458
      %v460 = vmul.f32 %v453, %v458
      %v461 = vmul.f32 %v457, %v458
      %v462 = vsub.f32 %v442, %v459
      %v463 = vsub.f32 %v443, %v460
      %v464 = vsub.f32 %v444, %v461
      %v465 = vmul.f32 %v462, %v462
      %v466 = vmul.f32 %v463, %v463
      %v467 = vmul.f32 %v464, %v464
      %v468 = vsel %vm447, %v465, 0.0
      %469 = vadd.xlane.f32.xlu0 %v468
      %v470 = vpop.xlane.xlu0 %469
      %v471 = vsel %vm447, %v466, 0.0
      %472 = vadd.xlane.f32.xlu0 %v471
      %v473 = vpop.xlane.xlu0 %472
      %v474 = vsel %vm454, %v467, 0.0
      %475 = vadd.xlane.f32.xlu0 %v474
      %v476 = vpop.xlane.xlu0 %475
      %v477 = vmul.f32 %v470, %v458
      %v478 = vmul.f32 %v473, %v458
      %v479 = vmul.f32 %v476, %v458
      %v480 = vadd.f32 %v477, 1e-05
      %v481 = vadd.f32 %v478, 1e-05
      %v482 = vadd.f32 %v479, 1e-05
      %v483 = vrsqrt.pop %v480
      %v484 = vrsqrt.pop %v481
      %v485 = vrsqrt.pop %v482
      %v486 = vmul.f32 %v462, %v483
      %v487 = vmul.f32 %v463, %v484
      %v488 = vmul.f32 %v464, %v485
      %v490 = vlaneseq
      %v491 = vshrl.u32 %v490, 7
      %v492 = vsub.s32 0, %v491
      %v493 = vrot.slane %v445, %v492
      %v495 = vmul.f32 %v486, %v493
      %v496 = vmul.f32 %v487, %v493
      %v497 = vmul.f32 %v488, %v493
      %v499 = vlaneseq
      %v500 = vshrl.u32 %v499, 7
      %v501 = vsub.s32 0, %v500
      %v502 = vrot.slane %v446, %v501
      %v504 = vadd.f32 %v495, %v502
      %v505 = vadd.f32 %v496, %v502
      %v506 = vadd.f32 %v497, %v502
      %v507 = vpack.c.bf16 %v505, %v504
      %v508 = vpack.c.bf16 %v506, %v506
      %v509 = vld [vmem:[%s3] sm:$0xf]
      %v510 = vld [vmem:[%s3 + $0x4] sm:$0xf]
      %v511 = vld [vmem:[%s3 + $0x8] sm:$0xf]
      %v512 = vld [vmem:[%s3 + $0xc] sm:$0xf]
      %v513 = vld [vmem:[%s4] sm:$0x1]
      %v515 = vlaneseq
      %v516 = vshrl.u32 %v515, 7
      %v517 = vsub.s32 0, %v516
      %v518 = vrot.slane %v513, %v517
      %v524 = vunpack.c.l.b16 %v509
      %v525 = vunpack.c.l.b16 %v510
      %v526 = vunpack.c.l.b16 %v511
      %v527 = vunpack.c.l.b16 %v512
      %v528 = vpack.c.b16 %v525, %v524
      %v529 = vpack.c.b16 %v527, %v526
      %v533 = vsel %vm447, %v507, 0
      %v536 = vsel %vm447, %v508, 0
      %538 = vmatprep.subr.bf16.mxu0 0
      %539 = vmatpush1.bf16.msra.mxu0 %v528
      %540 = vmatprep.subr.bf16.mxu0 0
      %541 = vmatpush1.bf16.msra.mxu0 %v529
      %542 = vmatprep.subr.bf16.mxu0 0
      %543 = vmatpush1.bf16.msra.mxu0 0
      %544 = vmatprep.subr.bf16.mxu0 0
      %545 = vmatpush1.bf16.msra.mxu0 0
      %546 = vmatprep.subr.bf16.mxu0 0
      %547 = vmatpush1.bf16.msra.mxu0 0
      %548 = vmatprep.subr.bf16.mxu0 0
      %549 = vmatpush1.bf16.msra.mxu0 0
      %550 = vmatprep.subr.bf16.mxu0 0
      %551 = vmatpush1.bf16.msra.mxu0 0
      %552 = vmatprep.subr.bf16.mxu0 0
      %553 = vmatpush1.bf16.msra.mxu0 0
      %554 = vmatprep.subr.bf16.mxu0 0
      %555 = vmatpush1.bf16.msra.mxu0 0
      %556 = vmatprep.subr.bf16.mxu0 0
      %557 = vmatpush1.bf16.msra.mxu0 0
      %558 = vmatprep.subr.bf16.mxu0 0
      %559 = vmatpush1.bf16.msra.mxu0 0
      %560 = vmatprep.subr.bf16.mxu0 0
      %561 = vmatpush1.bf16.msra.mxu0 0
      %562 = vmatprep.subr.bf16.mxu0 0
      %563 = vmatpush1.bf16.msra.mxu0 0
      %564 = vmatprep.subr.bf16.mxu0 0
      %565 = vmatpush1.bf16.msra.mxu0 0
      %566 = vmatprep.subr.bf16.mxu0 0
      %567 = vmatpush1.bf16.msra.mxu0 0
      %568 = vmatprep.subr.bf16.mxu0 0
      %569 = vmatpush1.bf16.msra.mxu0 0
      %570 = vmatprep.mubr.bf16.mxu0 0
      %571 = vmatmul.mubr.bf16.gmra.mrb[0].mxu0 %v533
      %v572 = vpop.f32.mrb[0].mxu0
      %v573 = vadd.f32 %v518, %v572
      %v574 = vpop.f32.mrb[0].mxu0
      %v575 = vpop.f32.mrb[0].mxu0
      %v576 = vadd.f32 %v518, %v575
      %v577 = vpop.f32.mrb[0].mxu0
      %578 = vmatprep.mubr.bf16.mxu0 0
      %579 = vmatmul.mubr.bf16.gmra.mrb[0].mxu0 %v536
      %v580 = vpop.f32.mrb[0].mxu0
      %v581 = vadd.f32 %v518, %v580
      %v582 = vpop.f32.mrb[0].mxu0
      %v583 = vpop.f32.mrb[0].mxu0
      %v584 = vpop.f32.mrb[0].mxu0
      %585 = vdwg.mxu0
      %v586 = vld [vmem:[%s5] sm:$0xf]
      %v587 = vld [vmem:[%s5 + $0x4] sm:$0xf]
      %v588 = vld [vmem:[%s5 + $0x8] sm:$0xf]
      %v589 = vld [vmem:[%s5 + $0xc] sm:$0xf]
      %v590 = vpack.c.bf16 %v576, %v573
      %v591 = vpack.c.bf16 %v581, %v581
      %594 = vrot.lane.b32.xlu0 %v590, 96
      %v595 = vpop.permute.xlu0 %594
      %596 = vrot.lane.b32.xlu0 %v591, 96
      %v597 = vpop.permute.xlu0 %596
      %vm598 = vcmask 64512
      %v600 = vsel %vm598, %v590, 0
      %v603 = vsel %vm598, %v591, 0
      %v606 = vsel %vm598, %v595, 0
      %v609 = vsel %vm598, %v597, 0
      %611 = vmatprep.subr.bf16.mxu0 0
      %612 = vmatpush1.bf16.xpose.msra.mxu0 %v606
      %613 = vmatprep.subr.bf16.mxu0 0
      %614 = vmatpush1.bf16.xpose.msra.mxu0 %v609
      %615 = vmatprep.subr.bf16.mxu0 0
      %616 = vmatpush1.bf16.xpose.msra.mxu0 0
      %617 = vmatprep.subr.bf16.mxu0 0
      %618 = vmatpush1.bf16.xpose.msra.mxu0 0
      %619 = vmatprep.subr.bf16.mxu0 0
      %620 = vmatpush1.bf16.xpose.msra.mxu0 0
      %621 = vmatprep.subr.bf16.mxu0 0
      %622 = vmatpush1.bf16.xpose.msra.mxu0 0
      %623 = vmatprep.subr.bf16.mxu0 0
      %624 = vmatpush1.bf16.xpose.msra.mxu0 0
      %625 = vmatprep.subr.bf16.mxu0 0
      %626 = vmatpush1.bf16.xpose.msra.mxu0 0
      %627 = vmatprep.subr.bf16.mxu0 0
      %628 = vmatpush1.bf16.xpose.msra.mxu0 0
      %629 = vmatprep.subr.bf16.mxu0 0
      %630 = vmatpush1.bf16.xpose.msra.mxu0 0
      %631 = vmatprep.subr.bf16.mxu0 0
      %632 = vmatpush1.bf16.xpose.msra.mxu0 0
      %633 = vmatprep.subr.bf16.mxu0 0
      %634 = vmatpush1.bf16.xpose.msra.mxu0 0
      %635 = vmatprep.subr.bf16.mxu0 0
      %636 = vmatpush1.bf16.xpose.msra.mxu0 0
      %637 = vmatprep.subr.bf16.mxu0 0
      %638 = vmatpush1.bf16.xpose.msra.mxu0 0
      %639 = vmatprep.subr.bf16.mxu0 0
      %640 = vmatpush1.bf16.xpose.msra.mxu0 0
      %641 = vmatprep.subr.bf16.mxu0 0
      %642 = vmatpush1.bf16.xpose.msra.mxu0 0
      %643 = vmatprep.mubr.bf16.mxu0 0
      %644 = vmatmul.mubr.bf16.gmra.mrb[0].mxu0 %v600
      %v645 = vpop.f32.mrb[0].mxu0
      %v646 = vadd.f32 0.0, %v645
      %v647 = vpop.f32.mrb[0].mxu0
      %v648 = vpop.f32.mrb[0].mxu0
      %v649 = vadd.f32 0.0, %v648
      %v650 = vpop.f32.mrb[0].mxu0
      %651 = vmatprep.mubr.bf16.mxu0 0
      %652 = vmatmul.mubr.bf16.gmra.mrb[0].mxu0 %v603
      %v653 = vpop.f32.mrb[0].mxu0
      %v654 = vadd.f32 0.0, %v653
      %v655 = vpop.f32.mrb[0].mxu0
      %v656 = vpop.f32.mrb[0].mxu0
      %v657 = vpop.f32.mrb[0].mxu0
      %658 = vdwg.mxu0
      %v659 = vmul.f32 %v646, 0.35355338
      %v660 = vmul.f32 %v649, 0.35355338
      %v661 = vmul.f32 %v654, 0.35355338
      %vm662 = vcmask 138240
      %v663 = vsel %vm662, %v659, -inf
      %664 = vmax.xlane.f32.xlu0 %v663
      %v665 = vpop.xlane.xlu0 %664
      %v666 = vsel %vm662, %v660, -inf
      %667 = vmax.xlane.f32.xlu0 %v666
      %v668 = vpop.xlane.xlu0 %667
      %vm669 = vcmask 131072
      %v670 = vsel %vm669, %v661, -inf
      %671 = vmax.xlane.f32.xlu0 %v670
      %v672 = vpop.xlane.xlu0 %671
      %v673 = vsub.f32 %v659, %v665
      %v674 = vsub.f32 %v660, %v668
      %v675 = vsub.f32 %v661, %v672
      %v676 = vmul.f32 %v673, 1.442695
      %v677 = vpow.pop %v676
      %v678 = vmul.f32 %v674, 1.442695
      %v679 = vpow.pop %v678
      %v680 = vmul.f32 %v675, 1.442695
      %v681 = vpow.pop %v680
      %v682 = vsel %vm662, %v677, 0.0
      %683 = vadd.xlane.f32.xlu0 %v682
      %v684 = vpop.xlane.xlu0 %683
      %v685 = vsel %vm662, %v679, 0.0
      %686 = vadd.xlane.f32.xlu0 %v685
      %v687 = vpop.xlane.xlu0 %686
      %v688 = vsel %vm669, %v681, 0.0
      %689 = vadd.xlane.f32.xlu0 %v688
      %v690 = vpop.xlane.xlu0 %689
      %v691 = vrcp.pop %v684
      %v692 = vrcp.pop %v687
      %v693 = vrcp.pop %v690
      %v694 = vmul.f32 %v677, %v691
      %v695 = vmul.f32 %v679, %v692
      %v696 = vmul.f32 %v681, %v693
      %v697 = vpack.c.bf16 %v695, %v694
      %v698 = vpack.c.bf16 %v696, %v696
      %699 = vrot.lane.b32.xlu0 %v590, 64
      %v700 = vpop.permute.xlu0 %699
      %701 = vrot.lane.b32.xlu0 %v591, 64
      %v702 = vpop.permute.xlu0 %701
      %v705 = vsel %vm662, %v697, 0
      %v708 = vsel %vm662, %v698, 0
      %vm710 = vcmask 1040384
      %v711 = vsel 0, 4294967295, 65535
      %v712 = vsel %vm710, %v711, 0
      %v714 = vand.u32 %v702, %v712
      %716 = vmatprep.subr.bf16.mxu0 0
      %717 = vmatpush1.bf16.msra.mxu0 %v700
      %718 = vmatprep.subr.bf16.mxu0 0
      %719 = vmatpush1.bf16.msra.mxu0 %v714
      %720 = vmatprep.subr.bf16.mxu0 0
      %721 = vmatpush1.bf16.msra.mxu0 0
      %722 = vmatprep.subr.bf16.mxu0 0
      %723 = vmatpush1.bf16.msra.mxu0 0
      %724 = vmatprep.subr.bf16.mxu0 0
      %725 = vmatpush1.bf16.msra.mxu0 0
      %726 = vmatprep.subr.bf16.mxu0 0
      %727 = vmatpush1.bf16.msra.mxu0 0
      %728 = vmatprep.subr.bf16.mxu0 0
      %729 = vmatpush1.bf16.msra.mxu0 0
      %730 = vmatprep.subr.bf16.mxu0 0
      %731 = vmatpush1.bf16.msra.mxu0 0
      %732 = vmatprep.subr.bf16.mxu0 0
      %733 = vmatpush1.bf16.msra.mxu0 0
      %734 = vmatprep.subr.bf16.mxu0 0
      %735 = vmatpush1.bf16.msra.mxu0 0
      %736 = vmatprep.subr.bf16.mxu0 0
      %737 = vmatpush1.bf16.msra.mxu0 0
      %738 = vmatprep.subr.bf16.mxu0 0
      %739 = vmatpush1.bf16.msra.mxu0 0
      %740 = vmatprep.subr.bf16.mxu0 0
      %741 = vmatpush1.bf16.msra.mxu0 0
      %742 = vmatprep.subr.bf16.mxu0 0
      %743 = vmatpush1.bf16.msra.mxu0 0
      %744 = vmatprep.subr.bf16.mxu0 0
      %745 = vmatpush1.bf16.msra.mxu0 0
      %746 = vmatprep.subr.bf16.mxu0 0
      %747 = vmatpush1.bf16.msra.mxu0 0
      %748 = vmatprep.mubr.bf16.mxu0 0
      %749 = vmatmul.mubr.bf16.gmra.mrb[0].mxu0 %v705
      %v750 = vpop.f32.mrb[0].mxu0
      %v751 = vadd.f32 0.0, %v750
      %v752 = vpop.f32.mrb[0].mxu0
      %v753 = vpop.f32.mrb[0].mxu0
      %v754 = vadd.f32 0.0, %v753
      %v755 = vpop.f32.mrb[0].mxu0
      %756 = vmatprep.mubr.bf16.mxu0 0
      %757 = vmatmul.mubr.bf16.gmra.mrb[0].mxu0 %v708
      %v758 = vpop.f32.mrb[0].mxu0
      %v759 = vadd.f32 0.0, %v758
      %v760 = vpop.f32.mrb[0].mxu0
      %v761 = vpop.f32.mrb[0].mxu0
      %v762 = vpop.f32.mrb[0].mxu0
      %763 = vdwg.mxu0
      %v764 = vpack.c.bf16 %v754, %v751
      %v765 = vpack.c.bf16 %v759, %v759
      %766 = vrot.lane.b32.xlu0 %v590, 120
      %v767 = vpop.permute.xlu0 %766
      %768 = vrot.lane.b32.xlu0 %v591, 120
      %v769 = vpop.permute.xlu0 %768
      %770 = vrot.lane.b32.xlu0 %v590, 88
      %v771 = vpop.permute.xlu0 %770
      %772 = vrot.lane.b32.xlu0 %v591, 88
      %v773 = vpop.permute.xlu0 %772
      %v775 = vsel %vm598, %v767, 0
      %v778 = vsel %vm598, %v769, 0
      %v781 = vsel %vm598, %v771, 0
      %v784 = vsel %vm598, %v773, 0
      %786 = vmatprep.subr.bf16.mxu0 0
      %787 = vmatpush1.bf16.xpose.msra.mxu0 %v781
      %788 = vmatprep.subr.bf16.mxu0 0
      %789 = vmatpush1.bf16.xpose.msra.mxu0 %v784
      %790 = vmatprep.subr.bf16.mxu0 0
      %791 = vmatpush1.bf16.xpose.msra.mxu0 0
      %792 = vmatprep.subr.bf16.mxu0 0
      %793 = vmatpush1.bf16.xpose.msra.mxu0 0
      %794 = vmatprep.subr.bf16.mxu0 0
      %795 = vmatpush1.bf16.xpose.msra.mxu0 0
      %796 = vmatprep.subr.bf16.mxu0 0
      %797 = vmatpush1.bf16.xpose.msra.mxu0 0
      %798 = vmatprep.subr.bf16.mxu0 0
      %799 = vmatpush1.bf16.xpose.msra.mxu0 0
      %800 = vmatprep.subr.bf16.mxu0 0
      %801 = vmatpush1.bf16.xpose.msra.mxu0 0
      %802 = vmatprep.subr.bf16.mxu0 0
      %803 = vmatpush1.bf16.xpose.msra.mxu0 0
      %804 = vmatprep.subr.bf16.mxu0 0
      %805 = vmatpush1.bf16.xpose.msra.mxu0 0
      %806 = vmatprep.subr.bf16.mxu0 0
      %807 = vmatpush1.bf16.xpose.msra.mxu0 0
      %808 = vmatprep.subr.bf16.mxu0 0
      %809 = vmatpush1.bf16.xpose.msra.mxu0 0
      %810 = vmatprep.subr.bf16.mxu0 0
      %811 = vmatpush1.bf16.xpose.msra.mxu0 0
      %812 = vmatprep.subr.bf16.mxu0 0
      %813 = vmatpush1.bf16.xpose.msra.mxu0 0
      %814 = vmatprep.subr.bf16.mxu0 0
      %815 = vmatpush1.bf16.xpose.msra.mxu0 0
      %816 = vmatprep.subr.bf16.mxu0 0
      %817 = vmatpush1.bf16.xpose.msra.mxu0 0
      %818 = vmatprep.mubr.bf16.mxu0 0
      %819 = vmatmul.mubr.bf16.gmra.mrb[0].mxu0 %v775
      %v820 = vpop.f32.mrb[0].mxu0
      %v821 = vadd.f32 0.0, %v820
      %v822 = vpop.f32.mrb[0].mxu0
      %v823 = vpop.f32.mrb[0].mxu0
      %v824 = vadd.f32 0.0, %v823
      %v825 = vpop.f32.mrb[0].mxu0
      %826 = vmatprep.mubr.bf16.mxu0 0
      %827 = vmatmul.mubr.bf16.gmra.mrb[0].mxu0 %v778
      %v828 = vpop.f32.mrb[0].mxu0
      %v829 = vadd.f32 0.0, %v828
      %v830 = vpop.f32.mrb[0].mxu0
      %v831 = vpop.f32.mrb[0].mxu0
      %v832 = vpop.f32.mrb[0].mxu0
      %833 = vdwg.mxu0
      %v834 = vmul.f32 %v821, 0.35355338
      %v835 = vmul.f32 %v824, 0.35355338
      %v836 = vmul.f32 %v829, 0.35355338
      %v837 = vsel %vm662, %v834, -inf
      %838 = vmax.xlane.f32.xlu0 %v837
      %v839 = vpop.xlane.xlu0 %838
      %v840 = vsel %vm662, %v835, -inf
      %841 = vmax.xlane.f32.xlu0 %v840
      %v842 = vpop.xlane.xlu0 %841
      %v843 = vsel %vm669, %v836, -inf
      %844 = vmax.xlane.f32.xlu0 %v843
      %v845 = vpop.xlane.xlu0 %844
      %v846 = vsub.f32 %v834, %v839
      %v847 = vsub.f32 %v835, %v842
      %v848 = vsub.f32 %v836, %v845
      %v849 = vmul.f32 %v846, 1.442695
      %v850 = vpow.pop %v849
      %v851 = vmul.f32 %v847, 1.442695
      %v852 = vpow.pop %v851
      %v853 = vmul.f32 %v848, 1.442695
      %v854 = vpow.pop %v853
      %v855 = vsel %vm662, %v850, 0.0
      %856 = vadd.xlane.f32.xlu0 %v855
      %v857 = vpop.xlane.xlu0 %856
      %v858 = vsel %vm662, %v852, 0.0
      %859 = vadd.xlane.f32.xlu0 %v858
      %v860 = vpop.xlane.xlu0 %859
      %v861 = vsel %vm669, %v854, 0.0
      %862 = vadd.xlane.f32.xlu0 %v861
      %v863 = vpop.xlane.xlu0 %862
      %v864 = vrcp.pop %v857
      %v865 = vrcp.pop %v860
      %v866 = vrcp.pop %v863
      %v867 = vmul.f32 %v850, %v864
      %v868 = vmul.f32 %v852, %v865
      %v869 = vmul.f32 %v854, %v866
      %v870 = vpack.c.bf16 %v868, %v867
      %v871 = vpack.c.bf16 %v869, %v869
      %872 = vrot.lane.b32.xlu0 %v590, 56
      %v873 = vpop.permute.xlu0 %872
      %874 = vrot.lane.b32.xlu0 %v591, 56
      %v875 = vpop.permute.xlu0 %874
      %v878 = vsel %vm662, %v870, 0
      %v881 = vsel %vm662, %v871, 0
      %v884 = vand.u32 %v875, %v712
      %886 = vmatprep.subr.bf16.mxu0 0
      %887 = vmatpush1.bf16.msra.mxu0 %v873
      %888 = vmatprep.subr.bf16.mxu0 0
      %889 = vmatpush1.bf16.msra.mxu0 %v884
      %890 = vmatprep.subr.bf16.mxu0 0
      %891 = vmatpush1.bf16.msra.mxu0 0
      %892 = vmatprep.subr.bf16.mxu0 0
      %893 = vmatpush1.bf16.msra.mxu0 0
      %894 = vmatprep.subr.bf16.mxu0 0
      %895 = vmatpush1.bf16.msra.mxu0 0
      %896 = vmatprep.subr.bf16.mxu0 0
      %897 = vmatpush1.bf16.msra.mxu0 0
      %898 = vmatprep.subr.bf16.mxu0 0
      %899 = vmatpush1.bf16.msra.mxu0 0
      %900 = vmatprep.subr.bf16.mxu0 0
      %901 = vmatpush1.bf16.msra.mxu0 0
      %902 = vmatprep.subr.bf16.mxu0 0
      %903 = vmatpush1.bf16.msra.mxu0 0
      %904 = vmatprep.subr.bf16.mxu0 0
      %905 = vmatpush1.bf16.msra.mxu0 0
      %906 = vmatprep.subr.bf16.mxu0 0
      %907 = vmatpush1.bf16.msra.mxu0 0
      %908 = vmatprep.subr.bf16.mxu0 0
      %909 = vmatpush1.bf16.msra.mxu0 0
      %910 = vmatprep.subr.bf16.mxu0 0
      %911 = vmatpush1.bf16.msra.mxu0 0
      %912 = vmatprep.subr.bf16.mxu0 0
      %913 = vmatpush1.bf16.msra.mxu0 0
      %914 = vmatprep.subr.bf16.mxu0 0
      %915 = vmatpush1.bf16.msra.mxu0 0
      %916 = vmatprep.subr.bf16.mxu0 0
      %917 = vmatpush1.bf16.msra.mxu0 0
      %918 = vmatprep.mubr.bf16.mxu0 0
      %919 = vmatmul.mubr.bf16.gmra.mrb[0].mxu0 %v878
      %v920 = vpop.f32.mrb[0].mxu0
      %v921 = vadd.f32 0.0, %v920
      %v922 = vpop.f32.mrb[0].mxu0
      %v923 = vpop.f32.mrb[0].mxu0
      %v924 = vadd.f32 0.0, %v923
      %v925 = vpop.f32.mrb[0].mxu0
      %926 = vmatprep.mubr.bf16.mxu0 0
      %927 = vmatmul.mubr.bf16.gmra.mrb[0].mxu0 %v881
      %v928 = vpop.f32.mrb[0].mxu0
      %v929 = vadd.f32 0.0, %v928
      %v930 = vpop.f32.mrb[0].mxu0
      %v931 = vpop.f32.mrb[0].mxu0
      %v932 = vpop.f32.mrb[0].mxu0
      %933 = vdwg.mxu0
      %v934 = vpack.c.bf16 %v924, %v921
      %v935 = vpack.c.bf16 %v929, %v929
      %v937 = vsel %vm598, %v934, 0
      %v940 = vsel %vm598, %v935, 0
      %vm942 = vcmask 1043456
      %v944 = vsel %vm942, %v587, 0
      %946 = vmatprep.subr.bf16.mxu0 0
      %947 = vmatpush1.bf16.msra.mxu0 %v944
      %948 = vmatprep.subr.bf16.mxu0 0
      %949 = vmatpush1.bf16.msra.mxu0 0
      %950 = vmatprep.subr.bf16.mxu0 0
      %951 = vmatpush1.bf16.msra.mxu0 0
      %952 = vmatprep.subr.bf16.mxu0 0
      %953 = vmatpush1.bf16.msra.mxu0 0
      %954 = vmatprep.subr.bf16.mxu0 0
      %955 = vmatpush1.bf16.msra.mxu0 0
      %956 = vmatprep.subr.bf16.mxu0 0
      %957 = vmatpush1.bf16.msra.mxu0 0
      %958 = vmatprep.subr.bf16.mxu0 0
      %959 = vmatpush1.bf16.msra.mxu0 0
      %960 = vmatprep.subr.bf16.mxu0 0
      %961 = vmatpush1.bf16.msra.mxu0 0
      %962 = vmatprep.subr.bf16.mxu0 0
      %963 = vmatpush1.bf16.msra.mxu0 0
      %964 = vmatprep.subr.bf16.mxu0 0
      %965 = vmatpush1.bf16.msra.mxu0 0
      %966 = vmatprep.subr.bf16.mxu0 0
      %967 = vmatpush1.bf16.msra.mxu0 0
      %968 = vmatprep.subr.bf16.mxu0 0
      %969 = vmatpush1.bf16.msra.mxu0 0
      %970 = vmatprep.subr.bf16.mxu0 0
      %971 = vmatpush1.bf16.msra.mxu0 0
      %972 = vmatprep.subr.bf16.mxu0 0
      %973 = vmatpush1.bf16.msra.mxu0 0
      %974 = vmatprep.subr.bf16.mxu0 0
      %975 = vmatpush1.bf16.msra.mxu0 0
      %976 = vmatprep.subr.bf16.mxu0 0
      %977 = vmatpush1.bf16.msra.mxu0 0
      %978 = vmatprep.mubr.bf16.mxu0 0
      %979 = vmatmul.mubr.bf16.gmra.mrb[0].mxu0 %v937
      %v980 = vpop.f32.mrb[0].mxu0
      %v981 = vadd.f32 0.0, %v980
      %v982 = vpop.f32.mrb[0].mxu0
      %v983 = vpop.f32.mrb[0].mxu0
      %v984 = vadd.f32 0.0, %v983
      %v985 = vpop.f32.mrb[0].mxu0
      %986 = vmatprep.mubr.bf16.mxu0 0
      %987 = vmatmul.mubr.bf16.gmra.mrb[0].mxu0 %v940
      %v988 = vpop.f32.mrb[0].mxu0
      %v989 = vadd.f32 0.0, %v988
      %v990 = vpop.f32.mrb[0].mxu0
      %v991 = vpop.f32.mrb[0].mxu0
      %v992 = vpop.f32.mrb[0].mxu0
      %993 = vdwg.mxu0
      %v995 = vsel %vm598, %v764, 0
      %v998 = vsel %vm598, %v765, 0
      %v1001 = vsel %vm942, %v586, 0
      %1003 = vmatprep.subr.bf16.mxu0 0
      %1004 = vmatpush1.bf16.msra.mxu0 %v1001
      %1005 = vmatprep.subr.bf16.mxu0 0
      %1006 = vmatpush1.bf16.msra.mxu0 0
      %1007 = vmatprep.subr.bf16.mxu0 0
      %1008 = vmatpush1.bf16.msra.mxu0 0
      %1009 = vmatprep.subr.bf16.mxu0 0
      %1010 = vmatpush1.bf16.msra.mxu0 0
      %1011 = vmatprep.subr.bf16.mxu0 0
      %1012 = vmatpush1.bf16.msra.mxu0 0
      %1013 = vmatprep.subr.bf16.mxu0 0
      %1014 = vmatpush1.bf16.msra.mxu0 0
      %1015 = vmatprep.subr.bf16.mxu0 0
      %1016 = vmatpush1.bf16.msra.mxu0 0
      %1017 = vmatprep.subr.bf16.mxu0 0
      %1018 = vmatpush1.bf16.msra.mxu0 0
      %1019 = vmatprep.subr.bf16.mxu0 0
      %1020 = vmatpush1.bf16.msra.mxu0 0
      %1021 = vmatprep.subr.bf16.mxu0 0
      %1022 = vmatpush1.bf16.msra.mxu0 0
      %1023 = vmatprep.subr.bf16.mxu0 0
      %1024 = vmatpush1.bf16.msra.mxu0 0
      %1025 = vmatprep.subr.bf16.mxu0 0
      %1026 = vmatpush1.bf16.msra.mxu0 0
      %1027 = vmatprep.subr.bf16.mxu0 0
      %1028 = vmatpush1.bf16.msra.mxu0 0
      %1029 = vmatprep.subr.bf16.mxu0 0
      %1030 = vmatpush1.bf16.msra.mxu0 0
      %1031 = vmatprep.subr.bf16.mxu0 0
      %1032 = vmatpush1.bf16.msra.mxu0 0
      %1033 = vmatprep.subr.bf16.mxu0 0
      %1034 = vmatpush1.bf16.msra.mxu0 0
      %1035 = vmatprep.mubr.bf16.mxu0 0
      %1036 = vmatmul.mubr.bf16.gmra.mrb[0].mxu0 %v995
      %v1037 = vpop.f32.mrb[0].mxu0
      %v1038 = vadd.f32 %v981, %v1037
      %v1039 = vpop.f32.mrb[0].mxu0
      %v1040 = vpop.f32.mrb[0].mxu0
      %v1041 = vadd.f32 %v984, %v1040
      %v1042 = vpop.f32.mrb[0].mxu0
      %1043 = vmatprep.mubr.bf16.mxu0 0
      %1044 = vmatmul.mubr.bf16.gmra.mrb[0].mxu0 %v998
      %v1045 = vpop.f32.mrb[0].mxu0
      %v1046 = vadd.f32 %v989, %v1045
      %v1047 = vpop.f32.mrb[0].mxu0
      %v1048 = vpop.f32.mrb[0].mxu0
      %v1049 = vpop.f32.mrb[0].mxu0
      %1050 = vdwg.mxu0
      %1051 = vrot.lane.b32.xlu0 %v590, 112
      %v1052 = vpop.permute.xlu0 %1051
      %1053 = vrot.lane.b32.xlu0 %v591, 112
      %v1054 = vpop.permute.xlu0 %1053
      %1055 = vrot.lane.b32.xlu0 %v590, 80
      %v1056 = vpop.permute.xlu0 %1055
      %1057 = vrot.lane.b32.xlu0 %v591, 80
      %v1058 = vpop.permute.xlu0 %1057
      %v1060 = vsel %vm598, %v1052, 0
      %v1063 = vsel %vm598, %v1054, 0
      %v1066 = vsel %vm598, %v1056, 0
      %v1069 = vsel %vm598, %v1058, 0
      %1071 = vmatprep.subr.bf16.mxu0 0
      %1072 = vmatpush1.bf16.xpose.msra.mxu0 %v1066
      %1073 = vmatprep.subr.bf16.mxu0 0
      %1074 = vmatpush1.bf16.xpose.msra.mxu0 %v1069
      %1075 = vmatprep.subr.bf16.mxu0 0
      %1076 = vmatpush1.bf16.xpose.msra.mxu0 0
      %1077 = vmatprep.subr.bf16.mxu0 0
      %1078 = vmatpush1.bf16.xpose.msra.mxu0 0
      %1079 = vmatprep.subr.bf16.mxu0 0
      %1080 = vmatpush1.bf16.xpose.msra.mxu0 0
      %1081 = vmatprep.subr.bf16.mxu0 0
      %1082 = vmatpush1.bf16.xpose.msra.mxu0 0
      %1083 = vmatprep.subr.bf16.mxu0 0
      %1084 = vmatpush1.bf16.xpose.msra.mxu0 0
      %1085 = vmatprep.subr.bf16.mxu0 0
      %1086 = vmatpush1.bf16.xpose.msra.mxu0 0
      %1087 = vmatprep.subr.bf16.mxu0 0
      %1088 = vmatpush1.bf16.xpose.msra.mxu0 0
      %1089 = vmatprep.subr.bf16.mxu0 0
      %1090 = vmatpush1.bf16.xpose.msra.mxu0 0
      %1091 = vmatprep.subr.bf16.mxu0 0
      %1092 = vmatpush1.bf16.xpose.msra.mxu0 0
      %1093 = vmatprep.subr.bf16.mxu0 0
      %1094 = vmatpush1.bf16.xpose.msra.mxu0 0
      %1095 = vmatprep.subr.bf16.mxu0 0
      %1096 = vmatpush1.bf16.xpose.msra.mxu0 0
      %1097 = vmatprep.subr.bf16.mxu0 0
      %1098 = vmatpush1.bf16.xpose.msra.mxu0 0
      %1099 = vmatprep.subr.bf16.mxu0 0
      %1100 = vmatpush1.bf16.xpose.msra.mxu0 0
      %1101 = vmatprep.subr.bf16.mxu0 0
      %1102 = vmatpush1.bf16.xpose.msra.mxu0 0
      %1103 = vmatprep.mubr.bf16.mxu0 0
      %1104 = vmatmul.mubr.bf16.gmra.mrb[0].mxu0 %v1060
      %v1105 = vpop.f32.mrb[0].mxu0
      %v1106 = vadd.f32 0.0, %v1105
      %v1107 = vpop.f32.mrb[0].mxu0
      %v1108 = vpop.f32.mrb[0].mxu0
      %v1109 = vadd.f32 0.0, %v1108
      %v1110 = vpop.f32.mrb[0].mxu0
      %1111 = vmatprep.mubr.bf16.mxu0 0
      %1112 = vmatmul.mubr.bf16.gmra.mrb[0].mxu0 %v1063
      %v1113 = vpop.f32.mrb[0].mxu0
      %v1114 = vadd.f32 0.0, %v1113
      %v1115 = vpop.f32.mrb[0].mxu0
      %v1116 = vpop.f32.mrb[0].mxu0
      %v1117 = vpop.f32.mrb[0].mxu0
      %1118 = vdwg.mxu0
      %v1119 = vmul.f32 %v1106, 0.35355338
      %v1120 = vmul.f32 %v1109, 0.35355338
      %v1121 = vmul.f32 %v1114, 0.35355338
      %v1122 = vsel %vm662, %v1119, -inf
      %1123 = vmax.xlane.f32.xlu0 %v1122
      %v1124 = vpop.xlane.xlu0 %1123
      %v1125 = vsel %vm662, %v1120, -inf
      %1126 = vmax.xlane.f32.xlu0 %v1125
      %v1127 = vpop.xlane.xlu0 %1126
      %v1128 = vsel %vm669, %v1121, -inf
      %1129 = vmax.xlane.f32.xlu0 %v1128
      %v1130 = vpop.xlane.xlu0 %1129
      %v1131 = vsub.f32 %v1119, %v1124
      %v1132 = vsub.f32 %v1120, %v1127
      %v1133 = vsub.f32 %v1121, %v1130
      %v1134 = vmul.f32 %v1131, 1.442695
      %v1135 = vpow.pop %v1134
      %v1136 = vmul.f32 %v1132, 1.442695
      %v1137 = vpow.pop %v1136
      %v1138 = vmul.f32 %v1133, 1.442695
      %v1139 = vpow.pop %v1138
      %v1140 = vsel %vm662, %v1135, 0.0
      %1141 = vadd.xlane.f32.xlu0 %v1140
      %v1142 = vpop.xlane.xlu0 %1141
      %v1143 = vsel %vm662, %v1137, 0.0
      %1144 = vadd.xlane.f32.xlu0 %v1143
      %v1145 = vpop.xlane.xlu0 %1144
      %v1146 = vsel %vm669, %v1139, 0.0
      %1147 = vadd.xlane.f32.xlu0 %v1146
      %v1148 = vpop.xlane.xlu0 %1147
      %v1149 = vrcp.pop %v1142
      %v1150 = vrcp.pop %v1145
      %v1151 = vrcp.pop %v1148
      %v1152 = vmul.f32 %v1135, %v1149
      %v1153 = vmul.f32 %v1137, %v1150
      %v1154 = vmul.f32 %v1139, %v1151
      %v1155 = vpack.c.bf16 %v1153, %v1152
      %v1156 = vpack.c.bf16 %v1154, %v1154
      %1157 = vrot.lane.b32.xlu0 %v590, 48
      %v1158 = vpop.permute.xlu0 %1157
      %1159 = vrot.lane.b32.xlu0 %v591, 48
      %v1160 = vpop.permute.xlu0 %1159
      %v1163 = vsel %vm662, %v1155, 0
      %v1166 = vsel %vm662, %v1156, 0
      %v1169 = vand.u32 %v1160, %v712
      %1171 = vmatprep.subr.bf16.mxu0 0
      %1172 = vmatpush1.bf16.msra.mxu0 %v1158
      %1173 = vmatprep.subr.bf16.mxu0 0
      %1174 = vmatpush1.bf16.msra.mxu0 %v1169
      %1175 = vmatprep.subr.bf16.mxu0 0
      %1176 = vmatpush1.bf16.msra.mxu0 0
      %1177 = vmatprep.subr.bf16.mxu0 0
      %1178 = vmatpush1.bf16.msra.mxu0 0
      %1179 = vmatprep.subr.bf16.mxu0 0
      %1180 = vmatpush1.bf16.msra.mxu0 0
      %1181 = vmatprep.subr.bf16.mxu0 0
      %1182 = vmatpush1.bf16.msra.mxu0 0
      %1183 = vmatprep.subr.bf16.mxu0 0
      %1184 = vmatpush1.bf16.msra.mxu0 0
      %1185 = vmatprep.subr.bf16.mxu0 0
      %1186 = vmatpush1.bf16.msra.mxu0 0
      %1187 = vmatprep.subr.bf16.mxu0 0
      %1188 = vmatpush1.bf16.msra.mxu0 0
      %1189 = vmatprep.subr.bf16.mxu0 0
      %1190 = vmatpush1.bf16.msra.mxu0 0
      %1191 = vmatprep.subr.bf16.mxu0 0
      %1192 = vmatpush1.bf16.msra.mxu0 0
      %1193 = vmatprep.subr.bf16.mxu0 0
      %1194 = vmatpush1.bf16.msra.mxu0 0
      %1195 = vmatprep.subr.bf16.mxu0 0
      %1196 = vmatpush1.bf16.msra.mxu0 0
      %1197 = vmatprep.subr.bf16.mxu0 0
      %1198 = vmatpush1.bf16.msra.mxu0 0
      %1199 = vmatprep.subr.bf16.mxu0 0
      %1200 = vmatpush1.bf16.msra.mxu0 0
      %1201 = vmatprep.subr.bf16.mxu0 0
      %1202 = vmatpush1.bf16.msra.mxu0 0
      %1203 = vmatprep.mubr.bf16.mxu0 0
      %1204 = vmatmul.mubr.bf16.gmra.mrb[0].mxu0 %v1163
      %v1205 = vpop.f32.mrb[0].mxu0
      %v1206 = vadd.f32 0.0, %v1205
      %v1207 = vpop.f32.mrb[0].mxu0
      %v1208 = vpop.f32.mrb[0].mxu0
      %v1209 = vadd.f32 0.0, %v1208
      %v1210 = vpop.f32.mrb[0].mxu0
      %1211 = vmatprep.mubr.bf16.mxu0 0
      %1212 = vmatmul.mubr.bf16.gmra.mrb[0].mxu0 %v1166
      %v1213 = vpop.f32.mrb[0].mxu0
      %v1214 = vadd.f32 0.0, %v1213
      %v1215 = vpop.f32.mrb[0].mxu0
      %v1216 = vpop.f32.mrb[0].mxu0
      %v1217 = vpop.f32.mrb[0].mxu0
      %1218 = vdwg.mxu0
      %v1219 = vpack.c.bf16 %v1209, %v1206
      %v1220 = vpack.c.bf16 %v1214, %v1214
      %v1222 = vsel %vm598, %v1219, 0
      %v1225 = vsel %vm598, %v1220, 0
      %v1228 = vsel %vm942, %v588, 0
      %1230 = vmatprep.subr.bf16.mxu0 0
      %1231 = vmatpush1.bf16.msra.mxu0 %v1228
      %1232 = vmatprep.subr.bf16.mxu0 0
      %1233 = vmatpush1.bf16.msra.mxu0 0
      %1234 = vmatprep.subr.bf16.mxu0 0
      %1235 = vmatpush1.bf16.msra.mxu0 0
      %1236 = vmatprep.subr.bf16.mxu0 0
      %1237 = vmatpush1.bf16.msra.mxu0 0
      %1238 = vmatprep.subr.bf16.mxu0 0
      %1239 = vmatpush1.bf16.msra.mxu0 0
      %1240 = vmatprep.subr.bf16.mxu0 0
      %1241 = vmatpush1.bf16.msra.mxu0 0
      %1242 = vmatprep.subr.bf16.mxu0 0
      %1243 = vmatpush1.bf16.msra.mxu0 0
      %1244 = vmatprep.subr.bf16.mxu0 0
      %1245 = vmatpush1.bf16.msra.mxu0 0
      %1246 = vmatprep.subr.bf16.mxu0 0
      %1247 = vmatpush1.bf16.msra.mxu0 0
      %1248 = vmatprep.subr.bf16.mxu0 0
      %1249 = vmatpush1.bf16.msra.mxu0 0
      %1250 = vmatprep.subr.bf16.mxu0 0
      %1251 = vmatpush1.bf16.msra.mxu0 0
      %1252 = vmatprep.subr.bf16.mxu0 0
      %1253 = vmatpush1.bf16.msra.mxu0 0
      %1254 = vmatprep.subr.bf16.mxu0 0
      %1255 = vmatpush1.bf16.msra.mxu0 0
      %1256 = vmatprep.subr.bf16.mxu0 0
      %1257 = vmatpush1.bf16.msra.mxu0 0
      %1258 = vmatprep.subr.bf16.mxu0 0
      %1259 = vmatpush1.bf16.msra.mxu0 0
      %1260 = vmatprep.subr.bf16.mxu0 0
      %1261 = vmatpush1.bf16.msra.mxu0 0
      %1262 = vmatprep.mubr.bf16.mxu0 0
      %1263 = vmatmul.mubr.bf16.gmra.mrb[0].mxu0 %v1222
      %v1264 = vpop.f32.mrb[0].mxu0
      %v1265 = vadd.f32 0.0, %v1264
      %v1266 = vpop.f32.mrb[0].mxu0
      %v1267 = vpop.f32.mrb[0].mxu0
      %v1268 = vadd.f32 0.0, %v1267
      %v1269 = vpop.f32.mrb[0].mxu0
      %1270 = vmatprep.mubr.bf16.mxu0 0
      %1271 = vmatmul.mubr.bf16.gmra.mrb[0].mxu0 %v1225
      %v1272 = vpop.f32.mrb[0].mxu0
      %v1273 = vadd.f32 0.0, %v1272
      %v1274 = vpop.f32.mrb[0].mxu0
      %v1275 = vpop.f32.mrb[0].mxu0
      %v1276 = vpop.f32.mrb[0].mxu0
      %1277 = vdwg.mxu0
      %v1278 = vadd.f32 %v1038, %v1265
      %v1279 = vadd.f32 %v1041, %v1268
      %v1280 = vadd.f32 %v1046, %v1273
      %1281 = vrot.lane.b32.xlu0 %v590, 104
      %v1282 = vpop.permute.xlu0 %1281
      %1283 = vrot.lane.b32.xlu0 %v591, 104
      %v1284 = vpop.permute.xlu0 %1283
      %1285 = vrot.lane.b32.xlu0 %v590, 72
      %v1286 = vpop.permute.xlu0 %1285
      %1287 = vrot.lane.b32.xlu0 %v591, 72
      %v1288 = vpop.permute.xlu0 %1287
      %v1290 = vsel %vm598, %v1282, 0
      %v1293 = vsel %vm598, %v1284, 0
      %v1296 = vsel %vm598, %v1286, 0
      %v1299 = vsel %vm598, %v1288, 0
      %1301 = vmatprep.subr.bf16.mxu0 0
      %1302 = vmatpush1.bf16.xpose.msra.mxu0 %v1296
      %1303 = vmatprep.subr.bf16.mxu0 0
      %1304 = vmatpush1.bf16.xpose.msra.mxu0 %v1299
      %1305 = vmatprep.subr.bf16.mxu0 0
      %1306 = vmatpush1.bf16.xpose.msra.mxu0 0
      %1307 = vmatprep.subr.bf16.mxu0 0
      %1308 = vmatpush1.bf16.xpose.msra.mxu0 0
      %1309 = vmatprep.subr.bf16.mxu0 0
      %1310 = vmatpush1.bf16.xpose.msra.mxu0 0
      %1311 = vmatprep.subr.bf16.mxu0 0
      %1312 = vmatpush1.bf16.xpose.msra.mxu0 0
      %1313 = vmatprep.subr.bf16.mxu0 0
      %1314 = vmatpush1.bf16.xpose.msra.mxu0 0
      %1315 = vmatprep.subr.bf16.mxu0 0
      %1316 = vmatpush1.bf16.xpose.msra.mxu0 0
      %1317 = vmatprep.subr.bf16.mxu0 0
      %1318 = vmatpush1.bf16.xpose.msra.mxu0 0
      %1319 = vmatprep.subr.bf16.mxu0 0
      %1320 = vmatpush1.bf16.xpose.msra.mxu0 0
      %1321 = vmatprep.subr.bf16.mxu0 0
      %1322 = vmatpush1.bf16.xpose.msra.mxu0 0
      %1323 = vmatprep.subr.bf16.mxu0 0
      %1324 = vmatpush1.bf16.xpose.msra.mxu0 0
      %1325 = vmatprep.subr.bf16.mxu0 0
      %1326 = vmatpush1.bf16.xpose.msra.mxu0 0
      %1327 = vmatprep.subr.bf16.mxu0 0
      %1328 = vmatpush1.bf16.xpose.msra.mxu0 0
      %1329 = vmatprep.subr.bf16.mxu0 0
      %1330 = vmatpush1.bf16.xpose.msra.mxu0 0
      %1331 = vmatprep.subr.bf16.mxu0 0
      %1332 = vmatpush1.bf16.xpose.msra.mxu0 0
      %1333 = vmatprep.mubr.bf16.mxu0 0
      %1334 = vmatmul.mubr.bf16.gmra.mrb[0].mxu0 %v1290
      %v1335 = vpop.f32.mrb[0].mxu0
      %v1336 = vadd.f32 0.0, %v1335
      %v1337 = vpop.f32.mrb[0].mxu0
      %v1338 = vpop.f32.mrb[0].mxu0
      %v1339 = vadd.f32 0.0, %v1338
      %v1340 = vpop.f32.mrb[0].mxu0
      %1341 = vmatprep.mubr.bf16.mxu0 0
      %1342 = vmatmul.mubr.bf16.gmra.mrb[0].mxu0 %v1293
      %v1343 = vpop.f32.mrb[0].mxu0
      %v1344 = vadd.f32 0.0, %v1343
      %v1345 = vpop.f32.mrb[0].mxu0
      %v1346 = vpop.f32.mrb[0].mxu0
      %v1347 = vpop.f32.mrb[0].mxu0
      %1348 = vdwg.mxu0
      %v1349 = vmul.f32 %v1336, 0.35355338
      %v1350 = vmul.f32 %v1339, 0.35355338
      %v1351 = vmul.f32 %v1344, 0.35355338
      %v1352 = vsel %vm662, %v1349, -inf
      %1353 = vmax.xlane.f32.xlu0 %v1352
      %v1354 = vpop.xlane.xlu0 %1353
      %v1355 = vsel %vm662, %v1350, -inf
      %1356 = vmax.xlane.f32.xlu0 %v1355
      %v1357 = vpop.xlane.xlu0 %1356
      %v1358 = vsel %vm669, %v1351, -inf
      %1359 = vmax.xlane.f32.xlu0 %v1358
      %v1360 = vpop.xlane.xlu0 %1359
      %v1361 = vsub.f32 %v1349, %v1354
      %v1362 = vsub.f32 %v1350, %v1357
      %v1363 = vsub.f32 %v1351, %v1360
      %v1364 = vmul.f32 %v1361, 1.442695
      %v1365 = vpow.pop %v1364
      %v1366 = vmul.f32 %v1362, 1.442695
      %v1367 = vpow.pop %v1366
      %v1368 = vmul.f32 %v1363, 1.442695
      %v1369 = vpow.pop %v1368
      %v1370 = vsel %vm662, %v1365, 0.0
      %1371 = vadd.xlane.f32.xlu0 %v1370
      %v1372 = vpop.xlane.xlu0 %1371
      %v1373 = vsel %vm662, %v1367, 0.0
      %1374 = vadd.xlane.f32.xlu0 %v1373
      %v1375 = vpop.xlane.xlu0 %1374
      %v1376 = vsel %vm669, %v1369, 0.0
      %1377 = vadd.xlane.f32.xlu0 %v1376
      %v1378 = vpop.xlane.xlu0 %1377
      %v1379 = vrcp.pop %v1372
      %v1380 = vrcp.pop %v1375
      %v1381 = vrcp.pop %v1378
      %v1382 = vmul.f32 %v1365, %v1379
      %v1383 = vmul.f32 %v1367, %v1380
      %v1384 = vmul.f32 %v1369, %v1381
      %v1385 = vpack.c.bf16 %v1383, %v1382
      %v1386 = vpack.c.bf16 %v1384, %v1384
      %1387 = vrot.lane.b32.xlu0 %v590, 40
      %v1388 = vpop.permute.xlu0 %1387
      %1389 = vrot.lane.b32.xlu0 %v591, 40
      %v1390 = vpop.permute.xlu0 %1389
      %v1393 = vsel %vm662, %v1385, 0
      %v1396 = vsel %vm662, %v1386, 0
      %v1399 = vand.u32 %v1390, %v712
      %1401 = vmatprep.subr.bf16.mxu0 0
      %1402 = vmatpush1.bf16.msra.mxu0 %v1388
      %1403 = vmatprep.subr.bf16.mxu0 0
      %1404 = vmatpush1.bf16.msra.mxu0 %v1399
      %1405 = vmatprep.subr.bf16.mxu0 0
      %1406 = vmatpush1.bf16.msra.mxu0 0
      %1407 = vmatprep.subr.bf16.mxu0 0
      %1408 = vmatpush1.bf16.msra.mxu0 0
      %1409 = vmatprep.subr.bf16.mxu0 0
      %1410 = vmatpush1.bf16.msra.mxu0 0
      %1411 = vmatprep.subr.bf16.mxu0 0
      %1412 = vmatpush1.bf16.msra.mxu0 0
      %1413 = vmatprep.subr.bf16.mxu0 0
      %1414 = vmatpush1.bf16.msra.mxu0 0
      %1415 = vmatprep.subr.bf16.mxu0 0
      %1416 = vmatpush1.bf16.msra.mxu0 0
      %1417 = vmatprep.subr.bf16.mxu0 0
      %1418 = vmatpush1.bf16.msra.mxu0 0
      %1419 = vmatprep.subr.bf16.mxu0 0
      %1420 = vmatpush1.bf16.msra.mxu0 0
      %1421 = vmatprep.subr.bf16.mxu0 0
      %1422 = vmatpush1.bf16.msra.mxu0 0
      %1423 = vmatprep.subr.bf16.mxu0 0
      %1424 = vmatpush1.bf16.msra.mxu0 0
      %1425 = vmatprep.subr.bf16.mxu0 0
      %1426 = vmatpush1.bf16.msra.mxu0 0
      %1427 = vmatprep.subr.bf16.mxu0 0
      %1428 = vmatpush1.bf16.msra.mxu0 0
      %1429 = vmatprep.subr.bf16.mxu0 0
      %1430 = vmatpush1.bf16.msra.mxu0 0
      %1431 = vmatprep.subr.bf16.mxu0 0
      %1432 = vmatpush1.bf16.msra.mxu0 0
      %1433 = vmatprep.mubr.bf16.mxu0 0
      %1434 = vmatmul.mubr.bf16.gmra.mrb[0].mxu0 %v1393
      %v1435 = vpop.f32.mrb[0].mxu0
      %v1436 = vadd.f32 0.0, %v1435
      %v1437 = vpop.f32.mrb[0].mxu0
      %v1438 = vpop.f32.mrb[0].mxu0
      %v1439 = vadd.f32 0.0, %v1438
      %v1440 = vpop.f32.mrb[0].mxu0
      %1441 = vmatprep.mubr.bf16.mxu0 0
      %1442 = vmatmul.mubr.bf16.gmra.mrb[0].mxu0 %v1396
      %v1443 = vpop.f32.mrb[0].mxu0
      %v1444 = vadd.f32 0.0, %v1443
      %v1445 = vpop.f32.mrb[0].mxu0
      %v1446 = vpop.f32.mrb[0].mxu0
      %v1447 = vpop.f32.mrb[0].mxu0
      %1448 = vdwg.mxu0
      %v1449 = vpack.c.bf16 %v1439, %v1436
      %v1450 = vpack.c.bf16 %v1444, %v1444
      %v1452 = vsel %vm598, %v1449, 0
      %v1455 = vsel %vm598, %v1450, 0
      %v1458 = vsel %vm942, %v589, 0
      %1460 = vmatprep.subr.bf16.mxu0 0
      %1461 = vmatpush1.bf16.msra.mxu0 %v1458
      %1462 = vmatprep.subr.bf16.mxu0 0
      %1463 = vmatpush1.bf16.msra.mxu0 0
      %1464 = vmatprep.subr.bf16.mxu0 0
      %1465 = vmatpush1.bf16.msra.mxu0 0
      %1466 = vmatprep.subr.bf16.mxu0 0
      %1467 = vmatpush1.bf16.msra.mxu0 0
      %1468 = vmatprep.subr.bf16.mxu0 0
      %1469 = vmatpush1.bf16.msra.mxu0 0
      %1470 = vmatprep.subr.bf16.mxu0 0
      %1471 = vmatpush1.bf16.msra.mxu0 0
      %1472 = vmatprep.subr.bf16.mxu0 0
      %1473 = vmatpush1.bf16.msra.mxu0 0
      %1474 = vmatprep.subr.bf16.mxu0 0
      %1475 = vmatpush1.bf16.msra.mxu0 0
      %1476 = vmatprep.subr.bf16.mxu0 0
      %1477 = vmatpush1.bf16.msra.mxu0 0
      %1478 = vmatprep.subr.bf16.mxu0 0
      %1479 = vmatpush1.bf16.msra.mxu0 0
      %1480 = vmatprep.subr.bf16.mxu0 0
      %1481 = vmatpush1.bf16.msra.mxu0 0
      %1482 = vmatprep.subr.bf16.mxu0 0
      %1483 = vmatpush1.bf16.msra.mxu0 0
      %1484 = vmatprep.subr.bf16.mxu0 0
      %1485 = vmatpush1.bf16.msra.mxu0 0
      %1486 = vmatprep.subr.bf16.mxu0 0
      %1487 = vmatpush1.bf16.msra.mxu0 0
      %1488 = vmatprep.subr.bf16.mxu0 0
      %1489 = vmatpush1.bf16.msra.mxu0 0
      %1490 = vmatprep.subr.bf16.mxu0 0
      %1491 = vmatpush1.bf16.msra.mxu0 0
      %1492 = vmatprep.mubr.bf16.mxu0 0
      %1493 = vmatmul.mubr.bf16.gmra.mrb[0].mxu0 %v1452
      %v1494 = vpop.f32.mrb[0].mxu0
      %v1495 = vadd.f32 0.0, %v1494
      %v1496 = vpop.f32.mrb[0].mxu0
      %v1497 = vpop.f32.mrb[0].mxu0
      %v1498 = vadd.f32 0.0, %v1497
      %v1499 = vpop.f32.mrb[0].mxu0
      %1500 = vmatprep.mubr.bf16.mxu0 0
      %1501 = vmatmul.mubr.bf16.gmra.mrb[0].mxu0 %v1455
      %v1502 = vpop.f32.mrb[0].mxu0
      %v1503 = vadd.f32 0.0, %v1502
      %v1504 = vpop.f32.mrb[0].mxu0
      %v1505 = vpop.f32.mrb[0].mxu0
      %v1506 = vpop.f32.mrb[0].mxu0
      %1507 = vdwg.mxu0
      %v1508 = vadd.f32 %v1278, %v1495
      %v1509 = vadd.f32 %v1279, %v1498
      %v1510 = vadd.f32 %v1280, %v1503
      %v1511 = vadd.f32 %v442, %v1508
      %v1512 = vadd.f32 %v443, %v1509
      %v1513 = vadd.f32 %v444, %v1510
      %v1514 = vld [vmem:[%s6] sm:$0x1]
      %v1516 = vlaneseq
      %v1517 = vshrl.u32 %v1516, 7
      %v1518 = vsub.s32 0, %v1517
      %v1519 = vrot.slane %v1514, %v1518
      %v1521 = vadd.f32 %v1511, %v1519
      %v1522 = vadd.f32 %v1512, %v1519
      %v1523 = vadd.f32 %v1513, %v1519
      %v1524 = vld [vmem:[%s7] sm:$0x1]
      %v1525 = vld [vmem:[%s8] sm:$0x1]
      %v1526 = vsel %vm447, %v1521, 0.0
      %1527 = vadd.xlane.f32.xlu0 %v1526
      %v1528 = vpop.xlane.xlu0 %1527
      %v1529 = vsel %vm447, %v1522, 0.0
      %1530 = vadd.xlane.f32.xlu0 %v1529
      %v1531 = vpop.xlane.xlu0 %1530
      %v1532 = vsel %vm454, %v1523, 0.0
      %1533 = vadd.xlane.f32.xlu0 %v1532
      %v1534 = vpop.xlane.xlu0 %1533
      %v1535 = vmul.f32 %v1528, %v458
      %v1536 = vmul.f32 %v1531, %v458
      %v1537 = vmul.f32 %v1534, %v458
      %v1538 = vsub.f32 %v1521, %v1535
      %v1539 = vsub.f32 %v1522, %v1536
      %v1540 = vsub.f32 %v1523, %v1537
      %v1541 = vmul.f32 %v1538, %v1538
      %v1542 = vmul.f32 %v1539, %v1539
      %v1543 = vmul.f32 %v1540, %v1540
      %v1544 = vsel %vm447, %v1541, 0.0
      %1545 = vadd.xlane.f32.xlu0 %v1544
      %v1546 = vpop.xlane.xlu0 %1545
      %v1547 = vsel %vm447, %v1542, 0.0
      %1548 = vadd.xlane.f32.xlu0 %v1547
      %v1549 = vpop.xlane.xlu0 %1548
      %v1550 = vsel %vm454, %v1543, 0.0
      %1551 = vadd.xlane.f32.xlu0 %v1550
      %v1552 = vpop.xlane.xlu0 %1551
      %v1553 = vmul.f32 %v1546, %v458
      %v1554 = vmul.f32 %v1549, %v458
      %v1555 = vmul.f32 %v1552, %v458
      %v1556 = vadd.f32 %v1553, 1e-05
      %v1557 = vadd.f32 %v1554, 1e-05
      %v1558 = vadd.f32 %v1555, 1e-05
      %v1559 = vrsqrt.pop %v1556
      %v1560 = vrsqrt.pop %v1557
      %v1561 = vrsqrt.pop %v1558
      %v1562 = vmul.f32 %v1538, %v1559
      %v1563 = vmul.f32 %v1539, %v1560
      %v1564 = vmul.f32 %v1540, %v1561
      %v1566 = vlaneseq
      %v1567 = vshrl.u32 %v1566, 7
      %v1568 = vsub.s32 0, %v1567
      %v1569 = vrot.slane %v1524, %v1568
      %v1571 = vmul.f32 %v1562, %v1569
      %v1572 = vmul.f32 %v1563, %v1569
      %v1573 = vmul.f32 %v1564, %v1569
      %v1575 = vlaneseq
      %v1576 = vshrl.u32 %v1575, 7
      %v1577 = vsub.s32 0, %v1576
      %v1578 = vrot.slane %v1525, %v1577
      %v1580 = vadd.f32 %v1571, %v1578
      %v1581 = vadd.f32 %v1572, %v1578
      %v1582 = vadd.f32 %v1573, %v1578
      %v1583 = vpack.c.bf16 %v1581, %v1580
      %v1584 = vpack.c.bf16 %v1582, %v1582
      %v1585 = vld [vmem:[%s9] sm:$0xf]
      %v1586 = vld [vmem:[%s9 + $0x4] sm:$0xf]
      %v1587 = vld [vmem:[%s9 + $0x8] sm:$0xf]
      %v1588 = vld [vmem:[%s9 + $0xc] sm:$0xf]
      %v1589 = vld [vmem:[%s10] sm:$0x1]
      %v1591 = vlaneseq
      %v1592 = vshrl.u32 %v1591, 7
      %v1593 = vsub.s32 0, %v1592
      %v1594 = vrot.slane %v1589, %v1593
      %v1600 = vunpack.c.l.b16 %v1585
      %v1601 = vunpack.c.l.b16 %v1586
      %v1602 = vunpack.c.l.b16 %v1587
      %v1603 = vunpack.c.l.b16 %v1588
      %v1604 = vpack.c.b16 %v1601, %v1600
      %v1605 = vpack.c.b16 %v1603, %v1602
      %v1609 = vsel %vm447, %v1583, 0
      %v1612 = vsel %vm447, %v1584, 0
      %1614 = vmatprep.subr.bf16.mxu0 0
      %1615 = vmatpush1.bf16.msra.mxu0 %v1604
      %1616 = vmatprep.subr.bf16.mxu0 0
      %1617 = vmatpush1.bf16.msra.mxu0 %v1605
      %1618 = vmatprep.subr.bf16.mxu0 0
      %1619 = vmatpush1.bf16.msra.mxu0 0
      %1620 = vmatprep.subr.bf16.mxu0 0
      %1621 = vmatpush1.bf16.msra.mxu0 0
      %1622 = vmatprep.subr.bf16.mxu0 0
      %1623 = vmatpush1.bf16.msra.mxu0 0
      %1624 = vmatprep.subr.bf16.mxu0 0
      %1625 = vmatpush1.bf16.msra.mxu0 0
      %1626 = vmatprep.subr.bf16.mxu0 0
      %1627 = vmatpush1.bf16.msra.mxu0 0
      %1628 = vmatprep.subr.bf16.mxu0 0
      %1629 = vmatpush1.bf16.msra.mxu0 0
      %1630 = vmatprep.subr.bf16.mxu0 0
      %1631 = vmatpush1.bf16.msra.mxu0 0
      %1632 = vmatprep.subr.bf16.mxu0 0
      %1633 = vmatpush1.bf16.msra.mxu0 0
      %1634 = vmatprep.subr.bf16.mxu0 0
      %1635 = vmatpush1.bf16.msra.mxu0 0
      %1636 = vmatprep.subr.bf16.mxu0 0
      %1637 = vmatpush1.bf16.msra.mxu0 0
      %1638 = vmatprep.subr.bf16.mxu0 0
      %1639 = vmatpush1.bf16.msra.mxu0 0
      %1640 = vmatprep.subr.bf16.mxu0 0
      %1641 = vmatpush1.bf16.msra.mxu0 0
      %1642 = vmatprep.subr.bf16.mxu0 0
      %1643 = vmatpush1.bf16.msra.mxu0 0
      %1644 = vmatprep.subr.bf16.mxu0 0
      %1645 = vmatpush1.bf16.msra.mxu0 0
      %1646 = vmatprep.mubr.bf16.mxu0 0
      %1647 = vmatmul.mubr.bf16.gmra.mrb[0].mxu0 %v1609
      %v1648 = vpop.f32.mrb[0].mxu0
      %v1649 = vadd.f32 %v1594, %v1648
      %v1650 = vpop.f32.mrb[0].mxu0
      %v1651 = vpop.f32.mrb[0].mxu0
      %v1652 = vadd.f32 %v1594, %v1651
      %v1653 = vpop.f32.mrb[0].mxu0
      %1654 = vmatprep.mubr.bf16.mxu0 0
      %1655 = vmatmul.mubr.bf16.gmra.mrb[0].mxu0 %v1612
      %v1656 = vpop.f32.mrb[0].mxu0
      %v1657 = vadd.f32 %v1594, %v1656
      %v1658 = vpop.f32.mrb[0].mxu0
      %v1659 = vpop.f32.mrb[0].mxu0
      %v1660 = vpop.f32.mrb[0].mxu0
      %1661 = vdwg.mxu0
      %v1662 = vmul.f32 %v1649, 0.5
      %v1663 = vmul.f32 %v1652, 0.5
      %v1664 = vmul.f32 %v1657, 0.5
      %v1665 = vmul.f32 %v1649, 0.70710677
      %v1666 = vmul.f32 %v1652, 0.70710677
      %v1667 = vmul.f32 %v1657, 0.70710677
      %v1668 = vand.u32 2147483647, %v1665
      %v1669 = vand.u32 2147483647, %v1666
      %v1670 = vand.u32 2147483647, %v1667
      %v1671 = vmul.f32 %v1668, 0.3275911
      %v1672 = vmul.f32 %v1669, 0.3275911
      %v1673 = vmul.f32 %v1670, 0.3275911
      %v1674 = vadd.f32 %v1671, 1.0
      %v1675 = vadd.f32 %v1672, 1.0
      %v1676 = vadd.f32 %v1673, 1.0
      %v1677 = vrcp.pop %v1674
      %v1678 = vmul.f32 1.0, %v1677
      %v1679 = vrcp.pop %v1675
      %v1680 = vmul.f32 1.0, %v1679
      %v1681 = vrcp.pop %v1676
      %v1682 = vmul.f32 1.0, %v1681
      %v1683 = vmul.f32 %v1678, 1.0614054
      %v1684 = vmul.f32 %v1680, 1.0614054
      %v1685 = vmul.f32 %v1682, 1.0614054
      %v1686 = vadd.f32 %v1683, -1.4531521
      %v1687 = vadd.f32 %v1684, -1.4531521
      %v1688 = vadd.f32 %v1685, -1.4531521
      %v1689 = vmul.f32 %v1686, %v1678
      %v1690 = vmul.f32 %v1687, %v1680
      %v1691 = vmul.f32 %v1688, %v1682
      %v1692 = vadd.f32 %v1689, 1.4214138
      %v1693 = vadd.f32 %v1690, 1.4214138
      %v1694 = vadd.f32 %v1691, 1.4214138
      %v1695 = vmul.f32 %v1692, %v1678
      %v1696 = vmul.f32 %v1693, %v1680
      %v1697 = vmul.f32 %v1694, %v1682
      %v1698 = vadd.f32 %v1695, -0.28449672
      %v1699 = vadd.f32 %v1696, -0.28449672
      %v1700 = vadd.f32 %v1697, -0.28449672
      %v1701 = vmul.f32 %v1698, %v1678
      %v1702 = vmul.f32 %v1699, %v1680
      %v1703 = vmul.f32 %v1700, %v1682
      %v1704 = vadd.f32 %v1701, 0.2548296
      %v1705 = vadd.f32 %v1702, 0.2548296
      %v1706 = vadd.f32 %v1703, 0.2548296
      %v1707 = vmul.f32 %v1704, %v1678
      %v1708 = vmul.f32 %v1705, %v1680
      %v1709 = vmul.f32 %v1706, %v1682
      %v1710 = vsub.f32 0.0, %v1668
      %v1711 = vsub.f32 0.0, %v1669
      %v1712 = vsub.f32 0.0, %v1670
      %v1713 = vmul.f32 %v1710, %v1668
      %v1714 = vmul.f32 %v1711, %v1669
      %v1715 = vmul.f32 %v1712, %v1670
      %v1716 = vmul.f32 %v1713, 1.442695
      %v1717 = vpow.pop %v1716
      %v1718 = vmul.f32 %v1714, 1.442695
      %v1719 = vpow.pop %v1718
      %v1720 = vmul.f32 %v1715, 1.442695
      %v1721 = vpow.pop %v1720
      %v1722 = vmul.f32 %v1707, %v1717
      %v1723 = vmul.f32 %v1708, %v1719
      %v1724 = vmul.f32 %v1709, %v1721
      %v1725 = vsub.f32 1.0, %v1722
      %v1726 = vsub.f32 1.0, %v1723
      %v1727 = vsub.f32 1.0, %v1724
      %vm1728 = vcmp.ge.f32.partialorder %v1665, 0.0
      %vm1729 = vcmp.ge.f32.partialorder %v1666, 0.0
      %vm1730 = vcmp.ge.f32.partialorder %v1667, 0.0
      %v1731 = vsub.f32 0.0, %v1725
      %v1732 = vsub.f32 0.0, %v1726
      %v1733 = vsub.f32 0.0, %v1727
      %v1734 = vsel %vm1728, %v1725, %v1731
      %v1735 = vsel %vm1729, %v1726, %v1732
      %v1736 = vsel %vm1730, %v1727, %v1733
      %v1737 = vadd.f32 %v1734, 1.0
      %v1738 = vadd.f32 %v1735, 1.0
      %v1739 = vadd.f32 %v1736, 1.0
      %v1740 = vmul.f32 %v1662, %v1737
      %v1741 = vmul.f32 %v1663, %v1738
      %v1742 = vmul.f32 %v1664, %v1739
      %v1743 = vpack.c.bf16 %v1741, %v1740
      %v1744 = vpack.c.bf16 %v1742, %v1742
      %v1745 = vld [vmem:[%s11] sm:$0xf]
      %v1746 = vld [vmem:[%s11 + $0x4] sm:$0xf]
      %v1747 = vld [vmem:[%s11 + $0x8] sm:$0xf]
      %v1748 = vld [vmem:[%s11 + $0xc] sm:$0xf]
      %v1749 = vld [vmem:[%s11 + $0x10] sm:$0xf]
      %v1750 = vld [vmem:[%s11 + $0x14] sm:$0xf]
      %v1751 = vld [vmem:[%s11 + $0x18] sm:$0xf]
      %v1752 = vld [vmem:[%s11 + $0x1c] sm:$0xf]
      %v1753 = vld [vmem:[%s11 + $0x20] sm:$0xf]
      %v1754 = vld [vmem:[%s11 + $0x24] sm:$0xf]
      %v1755 = vld [vmem:[%s11 + $0x28] sm:$0xf]
      %v1756 = vld [vmem:[%s11 + $0x2c] sm:$0xf]
      %v1757 = vld [vmem:[%s11 + $0x30] sm:$0xf]
      %v1758 = vld [vmem:[%s11 + $0x34] sm:$0xf]
      %v1759 = vld [vmem:[%s11 + $0x38] sm:$0xf]
      %v1760 = vld [vmem:[%s11 + $0x3c] sm:$0xf]
      %v1777 = vunpack.c.l.b16 %v1745
      %v1778 = vunpack.c.l.b16 %v1746
      %v1779 = vunpack.c.l.b16 %v1747
      %v1780 = vunpack.c.l.b16 %v1748
      %v1781 = vunpack.c.l.b16 %v1749
      %v1782 = vunpack.c.l.b16 %v1750
      %v1783 = vunpack.c.l.b16 %v1751
      %v1784 = vunpack.c.l.b16 %v1752
      %v1785 = vunpack.c.l.b16 %v1753
      %v1786 = vunpack.c.l.b16 %v1754
      %v1787 = vunpack.c.l.b16 %v1755
      %v1788 = vunpack.c.l.b16 %v1756
      %v1789 = vunpack.c.l.b16 %v1757
      %v1790 = vunpack.c.l.b16 %v1758
      %v1791 = vunpack.c.l.b16 %v1759
      %v1792 = vunpack.c.l.b16 %v1760
      %v1793 = vpack.c.b16 %v1778, %v1777
      %v1794 = vpack.c.b16 %v1780, %v1779
      %v1795 = vpack.c.b16 %v1782, %v1781
      %v1796 = vpack.c.b16 %v1784, %v1783
      %v1797 = vpack.c.b16 %v1786, %v1785
      %v1798 = vpack.c.b16 %v1788, %v1787
      %v1799 = vpack.c.b16 %v1790, %v1789
      %v1800 = vpack.c.b16 %v1792, %v1791
      %1809 = vmatprep.subr.bf16.mxu0 0
      %1810 = vmatpush1.bf16.msra.mxu0 %v1793
      %1811 = vmatprep.subr.bf16.mxu0 0
      %1812 = vmatpush1.bf16.msra.mxu0 %v1794
      %1813 = vmatprep.subr.bf16.mxu0 0
      %1814 = vmatpush1.bf16.msra.mxu0 %v1795
      %1815 = vmatprep.subr.bf16.mxu0 0
      %1816 = vmatpush1.bf16.msra.mxu0 %v1796
      %1817 = vmatprep.subr.bf16.mxu0 0
      %1818 = vmatpush1.bf16.msra.mxu0 %v1797
      %1819 = vmatprep.subr.bf16.mxu0 0
      %1820 = vmatpush1.bf16.msra.mxu0 %v1798
      %1821 = vmatprep.subr.bf16.mxu0 0
      %1822 = vmatpush1.bf16.msra.mxu0 %v1799
      %1823 = vmatprep.subr.bf16.mxu0 0
      %1824 = vmatpush1.bf16.msra.mxu0 %v1800
      %1825 = vmatprep.subr.bf16.mxu0 0
      %1826 = vmatpush1.bf16.msra.mxu0 0
      %1827 = vmatprep.subr.bf16.mxu0 0
      %1828 = vmatpush1.bf16.msra.mxu0 0
      %1829 = vmatprep.subr.bf16.mxu0 0
      %1830 = vmatpush1.bf16.msra.mxu0 0
      %1831 = vmatprep.subr.bf16.mxu0 0
      %1832 = vmatpush1.bf16.msra.mxu0 0
      %1833 = vmatprep.subr.bf16.mxu0 0
      %1834 = vmatpush1.bf16.msra.mxu0 0
      %1835 = vmatprep.subr.bf16.mxu0 0
      %1836 = vmatpush1.bf16.msra.mxu0 0
      %1837 = vmatprep.subr.bf16.mxu0 0
      %1838 = vmatpush1.bf16.msra.mxu0 0
      %1839 = vmatprep.subr.bf16.mxu0 0
      %1840 = vmatpush1.bf16.msra.mxu0 0
      %1841 = vmatprep.mubr.bf16.mxu0 0
      %1842 = vmatmul.mubr.bf16.gmra.mrb[0].mxu0 %v1743
      %v1843 = vpop.f32.mrb[0].mxu0
      %v1844 = vadd.f32 0.0, %v1843
      %v1845 = vpop.f32.mrb[0].mxu0
      %v1846 = vpop.f32.mrb[0].mxu0
      %v1847 = vadd.f32 0.0, %v1846
      %v1848 = vpop.f32.mrb[0].mxu0
      %1849 = vmatprep.mubr.bf16.mxu0 0
      %1850 = vmatmul.mubr.bf16.gmra.mrb[0].mxu0 %v1744
      %v1851 = vpop.f32.mrb[0].mxu0
      %v1852 = vadd.f32 0.0, %v1851
      %v1853 = vpop.f32.mrb[0].mxu0
      %v1854 = vpop.f32.mrb[0].mxu0
      %v1855 = vpop.f32.mrb[0].mxu0
      %1856 = vdwg.mxu0
      %v1857 = vadd.f32 %v1521, %v1844
      %v1858 = vadd.f32 %v1522, %v1847
      %v1859 = vadd.f32 %v1523, %v1852
      %v1860 = vld [vmem:[%s12] sm:$0x1]
      %v1862 = vlaneseq
      %v1863 = vshrl.u32 %v1862, 7
      %v1864 = vsub.s32 0, %v1863
      %v1865 = vrot.slane %v1860, %v1864
      %v1867 = vadd.f32 %v1857, %v1865
      %v1868 = vadd.f32 %v1858, %v1865
      %v1869 = vadd.f32 %v1859, %v1865
      %1870 = vst.msk [vmem:[%s440] sm:$0xff] %vm447, %v1867
      %1871 = vst.msk [vmem:[%s440 + $0x8] sm:$0xff] %vm447, %v1868
      %1872 = vst.msk [vmem:[%s440 + $0x10] sm:$0x1] %vm454, %v1869
      %p1873 = scmp.lt.s32.totalorder %s24, 7
      %s1874 = scalar_select %p1873, %s24, 7
      %s1875 = smul.addr %s1874, 3
      %s1876 = smul.addr %s1875, 8
      %s1877 = scalar_lea.vmem %s13, %s1876
      // Predicated region
      $region73: #{forward.14} parent=71 // pred_check
        %p1878 = pneg %p320
      $region74: #{forward.14} parent=71 // pred_check_branch
        %1880 = sbr.rel (%p1878) target = $region76
      $region75: #{forward.14} parent=71 // pred_region
        _
      $region76: #{forward.14} parent=71 // pred_fallthru
        _
    $region72: #{forward.14} parent=5 // pred_fallthru
      _
    %p1881 = scmp.le.s32.totalorder 2, %s19
    // Predicated region
    $region77: #{forward.14} parent=5 // pred_check
      %p1882 = pneg %p1881
    $region78: #{forward.14} parent=5 // pred_check_branch
      %1884 = sbr.rel (%p1882) target = $region80
    $region79: #{forward.14} parent=5 // pred_region
      %s1885 = ssub.s32 %s19, 2
      // Predicated region
      $region81: #{forward.14} parent=79 // pred_check
        %p1886 = pneg %p326
      $region82: #{forward.14} parent=79 // pred_check_branch
        %1888 = sbr.rel (%p1886) target = $region84
      $region83: #{forward.14} parent=79 // pred_region
        %p1889 = scmp.lt.s32.totalorder %s25, 7
        %s1890 = scalar_select %p1889, %s25, 7
        %s1891 = smul.addr %s1890, 3
        %s1892 = smul.addr %s1891, 8
        %s1893 = scalar_lea.vmem %s13, %s1892
      $region84: #{forward.14} parent=79 // pred_fallthru
        _
    $region80: #{forward.14} parent=5 // pred_fallthru
      _
  $region6: #{forward.14} parent=0 // loop_footer
    %s23 = sadd.s32 1, %s19
  $region7: #{forward.14} parent=0 // loop_footer_branch
    %18 = sbr.rel target = $region3
  $region8: #{forward.14} parent=0 // loop_exit
    _

// kernel: forward.17
$region0: #{forward.17}
  #allocation0 [shape = 'u32[]', space=smem, size = 0x4, offset = 0x4, fixed_abs, tag = 'smem constant byte address 0x4 - core index']
  #allocation1 [shape = 'u32[144,128]{1,0:T(1,128)}', space=vmem, size = 0x12000, scoped, tag = 'internal scratch']
  %s0 = inlined_call_operand.vmem [shape: f32[2,4,16,48], index: 0, kind: input, shape index: {}]
  %s1 = inlined_call_operand.vmem [shape: f32[2,16,48], index: 1, kind: input, shape index: {}]
  %s2 = inlined_call_operand.vmem [shape: f32[2,4,16], index: 2, kind: input, shape index: {}]
  %s3 = inlined_call_operand.hbm [shape: f32[1,1], index: 3, kind: output, shape index: {}]
  %s4 = sld [smem:[#allocation0]]
  $region22: #{forward.17} parent=0
    _
  %s6 = ssub.s32 1, %s4
  %s7 = scalar_select 0, %s6, %s4
  $region1: #{forward.17} parent=0
    #allocation2 [shape = 'u8[512]{0}', space=smem, size = 0x200, scoped, tag = 'output window, operand 0, single buffered']
    #allocation3 [shape = 's32[1]{0}', space=sflag, size = 0x4, scoped, tag = 'scoped memory for forward.17']
    %8 = vsyncpa [#allocation3], 0
    // Predicated region
    $region2: #{forward.17} parent=1 // pred_check
      _
    $region3: #{forward.17} parent=1 // pred_check_branch
      %10 = sbr.rel (0) target = $region5
    $region4: #{forward.17} parent=1 // pred_region
      _
    $region5: #{forward.17} parent=1 // pred_fallthru
      _
    // Predicated region
    $region6: #{forward.17} parent=1 // pred_check
      _
    $region7: #{forward.17} parent=1 // pred_check_branch
      %12 = sbr.rel (0) target = $region9
    $region8: #{forward.17} parent=1 // pred_region
      _
    $region9: #{forward.17} parent=1 // pred_fallthru
      _
    // Predicated region
    $region10: #{forward.17} parent=1 // pred_check
      _
    $region11: #{forward.17} parent=1 // pred_check_branch
      %14 = sbr.rel (0) target = $region13
    $region12: #{forward.17} parent=1 // pred_region
      _
    $region13: #{forward.17} parent=1 // pred_fallthru
      _
    %v15 = vld [vmem:[%s0] sm:$0xff]
    %v16 = vld [vmem:[%s0 + $0x8] sm:$0xff]
    %v17 = vld [vmem:[%s0 + $0x10] sm:$0xff]
    %v18 = vld [vmem:[%s0 + $0x18] sm:$0xff]
    %v19 = vld [vmem:[%s0 + $0x20] sm:$0xff]
    %v20 = vld [vmem:[%s0 + $0x28] sm:$0xff]
    %v21 = vld [vmem:[%s0 + $0x30] sm:$0xff]
    %v22 = vld [vmem:[%s0 + $0x38] sm:$0xff]
    %v23 = vld [vmem:[%s0 + $0x40] sm:$0xff]
    %v24 = vld [vmem:[%s0 + $0x48] sm:$0xff]
    %v25 = vld [vmem:[%s0 + $0x50] sm:$0xff]
    %v26 = vld [vmem:[%s0 + $0x58] sm:$0xff]
    %v27 = vld [vmem:[%s0 + $0x60] sm:$0xff]
    %v28 = vld [vmem:[%s0 + $0x68] sm:$0xff]
    %v29 = vld [vmem:[%s0 + $0x70] sm:$0xff]
    %v30 = vld [vmem:[%s0 + $0x78] sm:$0xff]
    %v31 = vld [vmem:[%s1] sm:$0xff]
    %v32 = vld [vmem:[%s1 + $0x8] sm:$0xff]
    %v33 = vld [vmem:[%s1 + $0x10] sm:$0xff]
    %v34 = vld [vmem:[%s1 + $0x18] sm:$0xff]
    %v35 = vld [vmem:[%s2] sm:$0xf]
    %v36 = vld [vmem:[%s2 + $0x4] sm:$0xf]
    %vm37 = vcmask 392192
    %v38 = vsel %vm37, %v31, 0.0
    %39 = vadd.xlane.f32.xlu0 %v38
    %v40 = vpop.xlane.xlu0 %39
    %v41 = vsel %vm37, %v32, 0.0
    %42 = vadd.xlane.f32.xlu0 %v41
    %v43 = vpop.xlane.xlu0 %42
    %v44 = vsel %vm37, %v33, 0.0
    %45 = vadd.xlane.f32.xlu0 %v44
    %v46 = vpop.xlane.xlu0 %45
    %v47 = vsel %vm37, %v34, 0.0
    %48 = vadd.xlane.f32.xlu0 %v47
    %v49 = vpop.xlane.xlu0 %48
    %v50 = vrcp.pop 48.0
    %v51 = vmul.f32 %v40, %v50
    %v52 = vmul.f32 %v43, %v50
    %v53 = vmul.f32 %v46, %v50
    %v54 = vmul.f32 %v49, %v50
    %v55 = vsub.f32 %v31, %v51
    %v56 = vsub.f32 %v32, %v52
    %v57 = vsub.f32 %v33, %v53
    %v58 = vsub.f32 %v34, %v54
    %v59 = vmul.f32 %v55, %v55
    %v60 = vmul.f32 %v56, %v56
    %v61 = vmul.f32 %v57, %v57
    %v62 = vmul.f32 %v58, %v58
    %v63 = vsel %vm37, %v59, 0.0
    %64 = vadd.xlane.f32.xlu0 %v63
    %v65 = vpop.xlane.xlu0 %64
    %v66 = vsel %vm37, %v60, 0.0
    %67 = vadd.xlane.f32.xlu0 %v66
    %v68 = vpop.xlane.xlu0 %67
    %v69 = vsel %vm37, %v61, 0.0
    %70 = vadd.xlane.f32.xlu0 %v69
    %v71 = vpop.xlane.xlu0 %70
    %v72 = vsel %vm37, %v62, 0.0
    %73 = vadd.xlane.f32.xlu0 %v72
    %v74 = vpop.xlane.xlu0 %73
    %v75 = vrcp.pop 47.0
    %v76 = vmul.f32 %v65, %v75
    %v77 = vmul.f32 %v68, %v75
    %v78 = vmul.f32 %v71, %v75
    %v79 = vmul.f32 %v74, %v75
    %v80 = vadd.f32 %v76, 1e-06
    %v81 = vadd.f32 %v77, 1e-06
    %v82 = vadd.f32 %v78, 1e-06
    %v83 = vadd.f32 %v79, 1e-06
    %v84 = vrsqrt.pop %v80
    %v85 = vrsqrt.pop %v81
    %v86 = vrsqrt.pop %v82
    %v87 = vrsqrt.pop %v83
    %v88 = vmul.f32 %v55, %v84
    %v89 = vmul.f32 %v56, %v85
    %v90 = vmul.f32 %v57, %v86
    %v91 = vmul.f32 %v58, %v87
    %v92 = vsub.f32 %v15, %v88
    %v93 = vsub.f32 %v16, %v89
    %v94 = vsub.f32 %v23, %v90
    %v95 = vsub.f32 %v24, %v91
    %v96 = vmul.f32 %v92, %v92
    %v97 = vmul.f32 %v93, %v93
    %v98 = vmul.f32 %v94, %v94
    %v99 = vmul.f32 %v95, %v95
    %v100 = vsel %vm37, %v96, 0.0
    %101 = vadd.xlane.f32.xlu0 %v100
    %v102 = vpop.xlane.xlu0 %101
    %v103 = vsel %vm37, %v97, 0.0
    %104 = vadd.xlane.f32.xlu0 %v103
    %v105 = vpop.xlane.xlu0 %104
    %v106 = vsel %vm37, %v98, 0.0
    %107 = vadd.xlane.f32.xlu0 %v106
    %v108 = vpop.xlane.xlu0 %107
    %v109 = vsel %vm37, %v99, 0.0
    %110 = vadd.xlane.f32.xlu0 %v109
    %v111 = vpop.xlane.xlu0 %110
    %v112 = vmul.f32 %v102, %v50
    %v113 = vmul.f32 %v105, %v50
    %v114 = vmul.f32 %v108, %v50
    %v115 = vmul.f32 %v111, %v50
    %v118 = vlaneseq
    %v119 = vshrl.u32 %v118, 7
    %v120 = vsub.s32 0, %v119
    %v121 = vrot.slane %v35, %v120
    %123 = vbcast.lane.b32.xlu0 %v121, 256
    %v124 = vpop.permute.xlu0 %123
    %s126 = sor.u32 256, 8
    %127 = vbcast.lane.b32.xlu0 %v121, %s126
    %v128 = vpop.permute.xlu0 %127
    %v129 = vlaneseq
    %v130 = vshrl.u32 %v129, 7
    %v131 = vsub.s32 0, %v130
    %v132 = vrot.slane %v36, %v131
    %134 = vbcast.lane.b32.xlu0 %v132, 256
    %v135 = vpop.permute.xlu0 %134
    %s137 = sor.u32 256, 8
    %138 = vbcast.lane.b32.xlu0 %v132, %s137
    %v139 = vpop.permute.xlu0 %138
    %v144 = vmul.f32 %v112, %v124
    %v145 = vmul.f32 %v113, %v128
    %v146 = vmul.f32 %v114, %v135
    %v147 = vmul.f32 %v115, %v139
    %152 = vset.pattern.permute.xlu0 0
    %153 = vperm.xlu0 %152, %v144
    %v154 = vpop.permute.xlu0 %153
    %155 = vset.pattern.permute.xlu0 0
    %156 = vperm.xlu0 %155, %v145
    %v157 = vpop.permute.xlu0 %156
    %158 = vset.pattern.permute.xlu0 0
    %159 = vperm.xlu0 %158, %v146
    %v160 = vpop.permute.xlu0 %159
    %161 = vset.pattern.permute.xlu0 0
    %162 = vperm.xlu0 %161, %v147
    %v163 = vpop.permute.xlu0 %162
    %v164 = vlaneseq
    %v165 = vand.u32 %v164, 127
    %v166 = vlaneseq
    %v167 = vshrl.u32 %v166, 7
    %v168 = vsub.s32 %v165, %v167
    %v169 = vrot.slane %v154, %v168
    %v170 = vadd.s32 %v165, 4294967288
    %v171 = vlaneseq
    %v172 = vshrl.u32 %v171, 7
    %v173 = vsub.s32 %v170, %v172
    %v174 = vrot.slane %v157, %v173
    %vm175 = vcmask 130112
    %v176 = vsel %vm175, %v174, %v169
    %v177 = vlaneseq
    %v178 = vshrl.u32 %v177, 7
    %v179 = vsub.s32 %v165, %v178
    %v180 = vrot.slane %v160, %v179
    %v181 = vlaneseq
    %v182 = vshrl.u32 %v181, 7
    %v183 = vsub.s32 %v170, %v182
    %v184 = vrot.slane %v163, %v183
    %v185 = vsel %vm175, %v184, %v180
    %vm186 = vcmask 1041409
    %v187 = vsel %vm186, %v185, %v176
    %vm189 = vcmask 123904
    %v190 = vsel %vm189, %v187, 0.0
    %191 = vadd.xlane.f32.xlu0 %v190
    %v192 = vpop.xlane.xlu0 %191
    %v193 = vrot.slane %v192, 4
    %v194 = vadd.f32 %v192, %v193
    %v195 = vrot.slane %v194, 2
    %v196 = vadd.f32 %v194, %v195
    %v197 = vrot.slane %v196, 1
    %v198 = vadd.f32 %v196, %v197
    %s199 = vtos %v198
    %s200 = sadd.f32 %s199, 0.0
    %v201 = vsub.f32 %v17, %v88
    %v202 = vsub.f32 %v18, %v89
    %v203 = vsub.f32 %v25, %v90
    %v204 = vsub.f32 %v26, %v91
    %v205 = vmul.f32 %v201, %v201
    %v206 = vmul.f32 %v202, %v202
    %v207 = vmul.f32 %v203, %v203
    %v208 = vmul.f32 %v204, %v204
    %v209 = vsel %vm37, %v205, 0.0
    %210 = vadd.xlane.f32.xlu0 %v209
    %v211 = vpop.xlane.xlu0 %210
    %v212 = vsel %vm37, %v206, 0.0
    %213 = vadd.xlane.f32.xlu0 %v212
    %v214 = vpop.xlane.xlu0 %213
    %v215 = vsel %vm37, %v207, 0.0
    %216 = vadd.xlane.f32.xlu0 %v215
    %v217 = vpop.xlane.xlu0 %216
    %v218 = vsel %vm37, %v208, 0.0
    %219 = vadd.xlane.f32.xlu0 %v218
    %v220 = vpop.xlane.xlu0 %219
    %v221 = vmul.f32 %v211, %v50
    %v222 = vmul.f32 %v214, %v50
    %v223 = vmul.f32 %v217, %v50
    %v224 = vmul.f32 %v220, %v50
    %v225 = vlaneseq
    %v226 = vshrl.u32 %v225, 7
    %v227 = vsub.s32 1, %v226
    %v228 = vrot.slane %v35, %v227
    %230 = vbcast.lane.b32.xlu0 %v228, 256
    %v231 = vpop.permute.xlu0 %230
    %s233 = sor.u32 256, 8
    %234 = vbcast.lane.b32.xlu0 %v228, %s233
    %v235 = vpop.permute.xlu0 %234
    %v236 = vlaneseq
    %v237 = vshrl.u32 %v236, 7
    %v238 = vsub.s32 1, %v237
    %v239 = vrot.slane %v36, %v238
    %241 = vbcast.lane.b32.xlu0 %v239, 256
    %v242 = vpop.permute.xlu0 %241
    %s244 = sor.u32 256, 8
    %245 = vbcast.lane.b32.xlu0 %v239, %s244
    %v246 = vpop.permute.xlu0 %245
    %v251 = vmul.f32 %v221, %v231
    %v252 = vmul.f32 %v222, %v235
    %v253 = vmul.f32 %v223, %v242
    %v254 = vmul.f32 %v224, %v246
    %259 = vset.pattern.permute.xlu0 0
    %260 = vperm.xlu0 %259, %v251
    %v261 = vpop.permute.xlu0 %260
    %262 = vset.pattern.permute.xlu0 0
    %263 = vperm.xlu0 %262, %v252
    %v264 = vpop.permute.xlu0 %263
    %265 = vset.pattern.permute.xlu0 0
    %266 = vperm.xlu0 %265, %v253
    %v267 = vpop.permute.xlu0 %266
    %268 = vset.pattern.permute.xlu0 0
    %269 = vperm.xlu0 %268, %v254
    %v270 = vpop.permute.xlu0 %269
    %v271 = vlaneseq
    %v272 = vshrl.u32 %v271, 7
    %v273 = vsub.s32 %v165, %v272
    %v274 = vrot.slane %v261, %v273
    %v275 = vlaneseq
    %v276 = vshrl.u32 %v275, 7
    %v277 = vsub.s32 %v170, %v276
    %v278 = vrot.slane %v264, %v277
    %v279 = vsel %vm175, %v278, %v274
    %v280 = vlaneseq
    %v281 = vshrl.u32 %v280, 7
    %v282 = vsub.s32 %v165, %v281
    %v283 = vrot.slane %v267, %v282
    %v284 = vlaneseq
    %v285 = vshrl.u32 %v284, 7
    %v286 = vsub.s32 %v170, %v285
    %v287 = vrot.slane %v270, %v286
    %v288 = vsel %vm175, %v287, %v283
    %v289 = vsel %vm186, %v288, %v279
    %v291 = vsel %vm189, %v289, 0.0
    %292 = vadd.xlane.f32.xlu0 %v291
    %v293 = vpop.xlane.xlu0 %292
    %v294 = vrot.slane %v293, 4
    %v295 = vadd.f32 %v293, %v294
    %v296 = vrot.slane %v295, 2
    %v297 = vadd.f32 %v295, %v296
    %v298 = vrot.slane %v297, 1
    %v299 = vadd.f32 %v297, %v298
    %s300 = vtos %v299
    %s301 = sadd.f32 %s200, %s300
    %v302 = vsub.f32 %v19, %v88
    %v303 = vsub.f32 %v20, %v89
    %v304 = vsub.f32 %v27, %v90
    %v305 = vsub.f32 %v28, %v91
    %v306 = vmul.f32 %v302, %v302
    %v307 = vmul.f32 %v303, %v303
    %v308 = vmul.f32 %v304, %v304
    %v309 = vmul.f32 %v305, %v305
    %v310 = vsel %vm37, %v306, 0.0
    %311 = vadd.xlane.f32.xlu0 %v310
    %v312 = vpop.xlane.xlu0 %311
    %v313 = vsel %vm37, %v307, 0.0
    %314 = vadd.xlane.f32.xlu0 %v313
    %v315 = vpop.xlane.xlu0 %314
    %v316 = vsel %vm37, %v308, 0.0
    %317 = vadd.xlane.f32.xlu0 %v316
    %v318 = vpop.xlane.xlu0 %317
    %v319 = vsel %vm37, %v309, 0.0
    %320 = vadd.xlane.f32.xlu0 %v319
    %v321 = vpop.xlane.xlu0 %320
    %v322 = vmul.f32 %v312, %v50
    %v323 = vmul.f32 %v315, %v50
    %v324 = vmul.f32 %v318, %v50
    %v325 = vmul.f32 %v321, %v50
    %v326 = vlaneseq
    %v327 = vshrl.u32 %v326, 7
    %v328 = vsub.s32 2, %v327
    %v329 = vrot.slane %v35, %v328
    %331 = vbcast.lane.b32.xlu0 %v329, 256
    %v332 = vpop.permute.xlu0 %331
    %s334 = sor.u32 256, 8
    %335 = vbcast.lane.b32.xlu0 %v329, %s334
    %v336 = vpop.permute.xlu0 %335
    %v337 = vlaneseq
    %v338 = vshrl.u32 %v337, 7
    %v339 = vsub.s32 2, %v338
    %v340 = vrot.slane %v36, %v339
    %342 = vbcast.lane.b32.xlu0 %v340, 256
    %v343 = vpop.permute.xlu0 %342
    %s345 = sor.u32 256, 8
    %346 = vbcast.lane.b32.xlu0 %v340, %s345
    %v347 = vpop.permute.xlu0 %346
    %v352 = vmul.f32 %v322, %v332
    %v353 = vmul.f32 %v323, %v336
    %v354 = vmul.f32 %v324, %v343
    %v355 = vmul.f32 %v325, %v347
    %360 = vset.pattern.permute.xlu0 0
    %361 = vperm.xlu0 %360, %v352
    %v362 = vpop.permute.xlu0 %361
    %363 = vset.pattern.permute.xlu0 0
    %364 = vperm.xlu0 %363, %v353
    %v365 = vpop.permute.xlu0 %364
    %366 = vset.pattern.permute.xlu0 0
    %367 = vperm.xlu0 %366, %v354
    %v368 = vpop.permute.xlu0 %367
    %369 = vset.pattern.permute.xlu0 0
    %370 = vperm.xlu0 %369, %v355
    %v371 = vpop.permute.xlu0 %370
    %v372 = vlaneseq
    %v373 = vshrl.u32 %v372, 7
    %v374 = vsub.s32 %v165, %v373
    %v375 = vrot.slane %v362, %v374
    %v376 = vlaneseq
    %v377 = vshrl.u32 %v376, 7
    %v378 = vsub.s32 %v170, %v377
    %v379 = vrot.slane %v365, %v378
    %v380 = vsel %vm175, %v379, %v375
    %v381 = vlaneseq
    %v382 = vshrl.u32 %v381, 7
    %v383 = vsub.s32 %v165, %v382
    %v384 = vrot.slane %v368, %v383
    %v385 = vlaneseq
    %v386 = vshrl.u32 %v385, 7
    %v387 = vsub.s32 %v170, %v386
    %v388 = vrot.slane %v371, %v387
    %v389 = vsel %vm175, %v388, %v384
    %v390 = vsel %vm186, %v389, %v380
    %v392 = vsel %vm189, %v390, 0.0
    %393 = vadd.xlane.f32.xlu0 %v392
    %v394 = vpop.xlane.xlu0 %393
    %v395 = vrot.slane %v394, 4
    %v396 = vadd.f32 %v394, %v395
    %v397 = vrot.slane %v396, 2
    %v398 = vadd.f32 %v396, %v397
    %v399 = vrot.slane %v398, 1
    %v400 = vadd.f32 %v398, %v399
    %s401 = vtos %v400
    %s402 = sadd.f32 %s301, %s401
    %v403 = vsub.f32 %v21, %v88
    %v404 = vsub.f32 %v22, %v89
    %v405 = vsub.f32 %v29, %v90
    %v406 = vsub.f32 %v30, %v91
    %v407 = vmul.f32 %v403, %v403
    %v408 = vmul.f32 %v404, %v404
    %v409 = vmul.f32 %v405, %v405
    %v410 = vmul.f32 %v406, %v406
    %v411 = vsel %vm37, %v407, 0.0
    %412 = vadd.xlane.f32.xlu0 %v411
    %v413 = vpop.xlane.xlu0 %412
    %v414 = vsel %vm37, %v408, 0.0
    %415 = vadd.xlane.f32.xlu0 %v414
    %v416 = vpop.xlane.xlu0 %415
    %v417 = vsel %vm37, %v409, 0.0
    %418 = vadd.xlane.f32.xlu0 %v417
    %v419 = vpop.xlane.xlu0 %418
    %v420 = vsel %vm37, %v410, 0.0
    %421 = vadd.xlane.f32.xlu0 %v420
    %v422 = vpop.xlane.xlu0 %421
    %v423 = vmul.f32 %v413, %v50
    %v424 = vmul.f32 %v416, %v50
    %v425 = vmul.f32 %v419, %v50
    %v426 = vmul.f32 %v422, %v50
    %v427 = vlaneseq
    %v428 = vshrl.u32 %v427, 7
    %v429 = vsub.s32 3, %v428
    %v430 = vrot.slane %v35, %v429
    %432 = vbcast.lane.b32.xlu0 %v430, 256
    %v433 = vpop.permute.xlu0 %432
    %s435 = sor.u32 256, 8
    %436 = vbcast.lane.b32.xlu0 %v430, %s435
    %v437 = vpop.permute.xlu0 %436
    %v438 = vlaneseq
    %v439 = vshrl.u32 %v438, 7
    %v440 = vsub.s32 3, %v439
    %v441 = vrot.slane %v36, %v440
    %443 = vbcast.lane.b32.xlu0 %v441, 256
    %v444 = vpop.permute.xlu0 %443
    %s446 = sor.u32 256, 8
    %447 = vbcast.lane.b32.xlu0 %v441, %s446
    %v448 = vpop.permute.xlu0 %447
    %v453 = vmul.f32 %v423, %v433
    %v454 = vmul.f32 %v424, %v437
    %v455 = vmul.f32 %v425, %v444
    %v456 = vmul.f32 %v426, %v448
    %461 = vset.pattern.permute.xlu0 0
    %462 = vperm.xlu0 %461, %v453
    %v463 = vpop.permute.xlu0 %462
    %464 = vset.pattern.permute.xlu0 0
    %465 = vperm.xlu0 %464, %v454
    %v466 = vpop.permute.xlu0 %465
    %467 = vset.pattern.permute.xlu0 0
    %468 = vperm.xlu0 %467, %v455
    %v469 = vpop.permute.xlu0 %468
    %470 = vset.pattern.permute.xlu0 0
    %471 = vperm.xlu0 %470, %v456
    %v472 = vpop.permute.xlu0 %471
    %v473 = vlaneseq
    %v474 = vshrl.u32 %v473, 7
    %v475 = vsub.s32 %v165, %v474
    %v476 = vrot.slane %v463, %v475
    %v477 = vlaneseq
    %v478 = vshrl.u32 %v477, 7
    %v479 = vsub.s32 %v170, %v478
    %v480 = vrot.slane %v466, %v479
    %v481 = vsel %vm175, %v480, %v476
    %v482 = vlaneseq
    %v483 = vshrl.u32 %v482, 7
    %v484 = vsub.s32 %v165, %v483
    %v485 = vrot.slane %v469, %v484
    %v486 = vlaneseq
    %v487 = vshrl.u32 %v486, 7
    %v488 = vsub.s32 %v170, %v487
    %v489 = vrot.slane %v472, %v488
    %v490 = vsel %vm175, %v489, %v485
    %v491 = vsel %vm186, %v490, %v481
    %v493 = vsel %vm189, %v491, 0.0
    %494 = vadd.xlane.f32.xlu0 %v493
    %v495 = vpop.xlane.xlu0 %494
    %v496 = vrot.slane %v495, 4
    %v497 = vadd.f32 %v495, %v496
    %v498 = vrot.slane %v497, 2
    %v499 = vadd.f32 %v497, %v498
    %v500 = vrot.slane %v499, 1
    %v501 = vadd.f32 %v499, %v500
    %s502 = vtos %v501
    %s503 = sadd.f32 %s402, %s502
    %vm504 = vcmask 125952
    %v505 = vsel %vm504, %v35, 0.0
    %v506 = vsel %vm504, %v36, 0.0
    %v507 = vadd.f32 %v505, %v506
    %508 = vadd.xlane.f32.xlu0 %v507
    %v509 = vpop.xlane.xlu0 %508
    %v510 = vrot.slane %v509, 4
    %v511 = vadd.f32 %v509, %v510
    %v512 = vrot.slane %v511, 2
    %v513 = vadd.f32 %v511, %v512
    %v514 = vrot.slane %v513, 1
    %v515 = vadd.f32 %v513, %v514
    %s516 = vtos %v515
    %v517 = vstv %s516
    %v518 = vrcp.pop %v517
    %s519 = vtos %v518
    %s520 = smul.f32 %s503, %s519
    %v521 = vrot.slane %v35, 1
    %v522 = vrot.slane %v36, 1
    %v525 = vmul.f32 %v35, %v521
    %v526 = vmul.f32 %v36, %v522
    %v527 = vsub.f32 %v15, %v17
    %v528 = vsub.f32 %v16, %v18
    %v529 = vsub.f32 %v23, %v25
    %v530 = vsub.f32 %v24, %v26
    %v531 = vand.u32 2147483647, %v527
    %v532 = vand.u32 2147483647, %v528
    %v533 = vand.u32 2147483647, %v529
    %v534 = vand.u32 2147483647, %v530
    %v535 = vlaneseq
    %v536 = vshrl.u32 %v535, 7
    %v537 = vsub.s32 0, %v536
    %v538 = vrot.slane %v525, %v537
    %540 = vbcast.lane.b32.xlu0 %v538, 256
    %v541 = vpop.permute.xlu0 %540
    %s543 = sor.u32 256, 8
    %544 = vbcast.lane.b32.xlu0 %v538, %s543
    %v545 = vpop.permute.xlu0 %544
    %v546 = vlaneseq
    %v547 = vshrl.u32 %v546, 7
    %v548 = vsub.s32 0, %v547
    %v549 = vrot.slane %v526, %v548
    %551 = vbcast.lane.b32.xlu0 %v549, 256
    %v552 = vpop.permute.xlu0 %551
    %s554 = sor.u32 256, 8
    %555 = vbcast.lane.b32.xlu0 %v549, %s554
    %v556 = vpop.permute.xlu0 %555
    %v557 = vmul.f32 %v531, %v541
    %v558 = vmul.f32 %v532, %v545
    %v559 = vmul.f32 %v533, %v552
    %v560 = vmul.f32 %v534, %v556
    %v561 = vsel %vm37, %v557, 0.0
    %v562 = vsel %vm37, %v558, 0.0
    %v563 = vadd.f32 %v561, %v562
    %v564 = vsel %vm37, %v559, 0.0
    %v565 = vadd.f32 %v563, %v564
    %v566 = vsel %vm37, %v560, 0.0
    %v567 = vadd.f32 %v565, %v566
    %568 = vadd.xlane.f32.xlu0 %v567
    %v569 = vpop.xlane.xlu0 %568
    %v570 = vrot.slane %v569, 4
    %v571 = vadd.f32 %v569, %v570
    %v572 = vrot.slane %v571, 2
    %v573 = vadd.f32 %v571, %v572
    %v574 = vrot.slane %v573, 1
    %v575 = vadd.f32 %v573, %v574
    %s576 = vtos %v575
    %s577 = sadd.f32 %s576, 0.0
    %v578 = vrot.slane %v35, 2
    %v579 = vrot.slane %v36, 2
    %v582 = vmul.f32 %v35, %v578
    %v583 = vmul.f32 %v36, %v579
    %v584 = vsub.f32 %v15, %v19
    %v585 = vsub.f32 %v16, %v20
    %v586 = vsub.f32 %v23, %v27
    %v587 = vsub.f32 %v24, %v28
    %v588 = vand.u32 2147483647, %v584
    %v589 = vand.u32 2147483647, %v585
    %v590 = vand.u32 2147483647, %v586
    %v591 = vand.u32 2147483647, %v587
    %v592 = vlaneseq
    %v593 = vshrl.u32 %v592, 7
    %v594 = vsub.s32 0, %v593
    %v595 = vrot.slane %v582, %v594
    %597 = vbcast.lane.b32.xlu0 %v595, 256
    %v598 = vpop.permute.xlu0 %597
    %s600 = sor.u32 256, 8
    %601 = vbcast.lane.b32.xlu0 %v595, %s600
    %v602 = vpop.permute.xlu0 %601
    %v603 = vlaneseq
    %v604 = vshrl.u32 %v603, 7
    %v605 = vsub.s32 0, %v604
    %v606 = vrot.slane %v583, %v605
    %608 = vbcast.lane.b32.xlu0 %v606, 256
    %v609 = vpop.permute.xlu0 %608
    %s611 = sor.u32 256, 8
    %612 = vbcast.lane.b32.xlu0 %v606, %s611
    %v613 = vpop.permute.xlu0 %612
    %v614 = vmul.f32 %v588, %v598
    %v615 = vmul.f32 %v589, %v602
    %v616 = vmul.f32 %v590, %v609
    %v617 = vmul.f32 %v591, %v613
    %v618 = vsel %vm37, %v614, 0.0
    %v619 = vsel %vm37, %v615, 0.0
    %v620 = vadd.f32 %v618, %v619
    %v621 = vsel %vm37, %v616, 0.0
    %v622 = vadd.f32 %v620, %v621
    %v623 = vsel %vm37, %v617, 0.0
    %v624 = vadd.f32 %v622, %v623
    %625 = vadd.xlane.f32.xlu0 %v624
    %v626 = vpop.xlane.xlu0 %625
    %v627 = vrot.slane %v626, 4
    %v628 = vadd.f32 %v626, %v627
    %v629 = vrot.slane %v628, 2
    %v630 = vadd.f32 %v628, %v629
    %v631 = vrot.slane %v630, 1
    %v632 = vadd.f32 %v630, %v631
    %s633 = vtos %v632
    %s634 = sadd.f32 %s577, %s633
    %v635 = vrot.slane %v35, 3
    %v636 = vrot.slane %v36, 3
    %v639 = vmul.f32 %v35, %v635
    %v640 = vmul.f32 %v36, %v636
    %v641 = vsub.f32 %v15, %v21
    %v642 = vsub.f32 %v16, %v22
    %v643 = vsub.f32 %v23, %v29
    %v644 = vsub.f32 %v24, %v30
    %v645 = vand.u32 2147483647, %v641
    %v646 = vand.u32 2147483647, %v642
    %v647 = vand.u32 2147483647, %v643
    %v648 = vand.u32 2147483647, %v644
    %v649 = vlaneseq
    %v650 = vshrl.u32 %v649, 7
    %v651 = vsub.s32 0, %v650
    %v652 = vrot.slane %v639, %v651
    %654 = vbcast.lane.b32.xlu0 %v652, 256
    %v655 = vpop.permute.xlu0 %654
    %s657 = sor.u32 256, 8
    %658 = vbcast.lane.b32.xlu0 %v652, %s657
    %v659 = vpop.permute.xlu0 %658
    %v660 = vlaneseq
    %v661 = vshrl.u32 %v660, 7
    %v662 = vsub.s32 0, %v661
    %v663 = vrot.slane %v640, %v662
    %665 = vbcast.lane.b32.xlu0 %v663, 256
    %v666 = vpop.permute.xlu0 %665
    %s668 = sor.u32 256, 8
    %669 = vbcast.lane.b32.xlu0 %v663, %s668
    %v670 = vpop.permute.xlu0 %669
    %v671 = vmul.f32 %v645, %v655
    %v672 = vmul.f32 %v646, %v659
    %v673 = vmul.f32 %v647, %v666
    %v674 = vmul.f32 %v648, %v670
    %v675 = vsel %vm37, %v671, 0.0
    %v676 = vsel %vm37, %v672, 0.0
    %v677 = vadd.f32 %v675, %v676
    %v678 = vsel %vm37, %v673, 0.0
    %v679 = vadd.f32 %v677, %v678
    %v680 = vsel %vm37, %v674, 0.0
    %v681 = vadd.f32 %v679, %v680
    %682 = vadd.xlane.f32.xlu0 %v681
    %v683 = vpop.xlane.xlu0 %682
    %v684 = vrot.slane %v683, 4
    %v685 = vadd.f32 %v683, %v684
    %v686 = vrot.slane %v685, 2
    %v687 = vadd.f32 %v685, %v686
    %v688 = vrot.slane %v687, 1
    %v689 = vadd.f32 %v687, %v688
    %s690 = vtos %v689
    %s691 = sadd.f32 %s634, %s690
    %v692 = vsub.f32 %v17, %v19
    %v693 = vsub.f32 %v18, %v20
    %v694 = vsub.f32 %v25, %v27
    %v695 = vsub.f32 %v26, %v28
    %v696 = vand.u32 2147483647, %v692
    %v697 = vand.u32 2147483647, %v693
    %v698 = vand.u32 2147483647, %v694
    %v699 = vand.u32 2147483647, %v695
    %v700 = vlaneseq
    %v701 = vshrl.u32 %v700, 7
    %v702 = vsub.s32 1, %v701
    %v703 = vrot.slane %v525, %v702
    %705 = vbcast.lane.b32.xlu0 %v703, 256
    %v706 = vpop.permute.xlu0 %705
    %s708 = sor.u32 256, 8
    %709 = vbcast.lane.b32.xlu0 %v703, %s708
    %v710 = vpop.permute.xlu0 %709
    %v711 = vlaneseq
    %v712 = vshrl.u32 %v711, 7
    %v713 = vsub.s32 1, %v712
    %v714 = vrot.slane %v526, %v713
    %716 = vbcast.lane.b32.xlu0 %v714, 256
    %v717 = vpop.permute.xlu0 %716
    %s719 = sor.u32 256, 8
    %720 = vbcast.lane.b32.xlu0 %v714, %s719
    %v721 = vpop.permute.xlu0 %720
    %v722 = vmul.f32 %v696, %v706
    %v723 = vmul.f32 %v697, %v710
    %v724 = vmul.f32 %v698, %v717
    %v725 = vmul.f32 %v699, %v721
    %v726 = vsel %vm37, %v722, 0.0
    %v727 = vsel %vm37, %v723, 0.0
    %v728 = vadd.f32 %v726, %v727
    %v729 = vsel %vm37, %v724, 0.0
    %v730 = vadd.f32 %v728, %v729
    %v731 = vsel %vm37, %v725, 0.0
    %v732 = vadd.f32 %v730, %v731
    %733 = vadd.xlane.f32.xlu0 %v732
    %v734 = vpop.xlane.xlu0 %733
    %v735 = vrot.slane %v734, 4
    %v736 = vadd.f32 %v734, %v735
    %v737 = vrot.slane %v736, 2
    %v738 = vadd.f32 %v736, %v737
    %v739 = vrot.slane %v738, 1
    %v740 = vadd.f32 %v738, %v739
    %s741 = vtos %v740
    %s742 = sadd.f32 %s691, %s741
    %v743 = vsub.f32 %v17, %v21
    %v744 = vsub.f32 %v18, %v22
    %v745 = vsub.f32 %v25, %v29
    %v746 = vsub.f32 %v26, %v30
    %v747 = vand.u32 2147483647, %v743
    %v748 = vand.u32 2147483647, %v744
    %v749 = vand.u32 2147483647, %v745
    %v750 = vand.u32 2147483647, %v746
    %v751 = vlaneseq
    %v752 = vshrl.u32 %v751, 7
    %v753 = vsub.s32 1, %v752
    %v754 = vrot.slane %v582, %v753
    %756 = vbcast.lane.b32.xlu0 %v754, 256
    %v757 = vpop.permute.xlu0 %756
    %s759 = sor.u32 256, 8
    %760 = vbcast.lane.b32.xlu0 %v754, %s759
    %v761 = vpop.permute.xlu0 %760
    %v762 = vlaneseq
    %v763 = vshrl.u32 %v762, 7
    %v764 = vsub.s32 1, %v763
    %v765 = vrot.slane %v583, %v764
    %767 = vbcast.lane.b32.xlu0 %v765, 256
    %v768 = vpop.permute.xlu0 %767
    %s770 = sor.u32 256, 8
    %771 = vbcast.lane.b32.xlu0 %v765, %s770
    %v772 = vpop.permute.xlu0 %771
    %v773 = vmul.f32 %v747, %v757
    %v774 = vmul.f32 %v748, %v761
    %v775 = vmul.f32 %v749, %v768
    %v776 = vmul.f32 %v750, %v772
    %v777 = vsel %vm37, %v773, 0.0
    %v778 = vsel %vm37, %v774, 0.0
    %v779 = vadd.f32 %v777, %v778
    %v780 = vsel %vm37, %v775, 0.0
    %v781 = vadd.f32 %v779, %v780
    %v782 = vsel %vm37, %v776, 0.0
    %v783 = vadd.f32 %v781, %v782
    %784 = vadd.xlane.f32.xlu0 %v783
    %v785 = vpop.xlane.xlu0 %784
    %v786 = vrot.slane %v785, 4
    %v787 = vadd.f32 %v785, %v786
    %v788 = vrot.slane %v787, 2
    %v789 = vadd.f32 %v787, %v788
    %v790 = vrot.slane %v789, 1
    %v791 = vadd.f32 %v789, %v790
    %s792 = vtos %v791
    %s793 = sadd.f32 %s742, %s792
    %v794 = vsub.f32 %v19, %v21
    %v795 = vsub.f32 %v20, %v22
    %v796 = vsub.f32 %v27, %v29
    %v797 = vsub.f32 %v28, %v30
    %v798 = vand.u32 2147483647, %v794
    %v799 = vand.u32 2147483647, %v795
    %v800 = vand.u32 2147483647, %v796
    %v801 = vand.u32 2147483647, %v797
    %v802 = vlaneseq
    %v803 = vshrl.u32 %v802, 7
    %v804 = vsub.s32 2, %v803
    %v805 = vrot.slane %v525, %v804
    %807 = vbcast.lane.b32.xlu0 %v805, 256
    %v808 = vpop.permute.xlu0 %807
    %s810 = sor.u32 256, 8
    %811 = vbcast.lane.b32.xlu0 %v805, %s810
    %v812 = vpop.permute.xlu0 %811
    %v813 = vlaneseq
    %v814 = vshrl.u32 %v813, 7
    %v815 = vsub.s32 2, %v814
    %v816 = vrot.slane %v526, %v815
    %818 = vbcast.lane.b32.xlu0 %v816, 256
    %v819 = vpop.permute.xlu0 %818
    %s821 = sor.u32 256, 8
    %822 = vbcast.lane.b32.xlu0 %v816, %s821
    %v823 = vpop.permute.xlu0 %822
    %v824 = vmul.f32 %v798, %v808
    %v825 = vmul.f32 %v799, %v812
    %v826 = vmul.f32 %v800, %v819
    %v827 = vmul.f32 %v801, %v823
    %v828 = vsel %vm37, %v824, 0.0
    %v829 = vsel %vm37, %v825, 0.0
    %v830 = vadd.f32 %v828, %v829
    %v831 = vsel %vm37, %v826, 0.0
    %v832 = vadd.f32 %v830, %v831
    %v833 = vsel %vm37, %v827, 0.0
    %v834 = vadd.f32 %v832, %v833
    %835 = vadd.xlane.f32.xlu0 %v834
    %v836 = vpop.xlane.xlu0 %835
    %v837 = vrot.slane %v836, 4
    %v838 = vadd.f32 %v836, %v837
    %v839 = vrot.slane %v838, 2
    %v840 = vadd.f32 %v838, %v839
    %v841 = vrot.slane %v840, 1
    %v842 = vadd.f32 %v840, %v841
    %s843 = vtos %v842
    %s844 = sadd.f32 %s793, %s843
    %s845 = smul.f32 %s844, 2.0
    %v846 = vrcp.pop 9216.0
    %s847 = vtos %v846
    %s848 = smul.f32 %s845, %s847
    %s849 = sadd.f32 %s520, %s848
    %s850 = scalar_lea.smem [#allocation2], 0
    %851 = sst [smem:[%s850]] %s849
    // Predicated region
    $region14: #{forward.17} parent=1 // pred_check
      _
    $region15: #{forward.17} parent=1 // pred_check_branch
      %853 = sbr.rel (0) target = $region17
    $region16: #{forward.17} parent=1 // pred_region
      %s855 = ssub.s32 16, 16
      %856 = vsyncadd [#allocation3], %s855
      %859 = dma.smem_to_hbm [#allocation2], 16, %s3, [#allocation3]
    $region17: #{forward.17} parent=1 // pred_fallthru
      _
    // Predicated region
    $region18: #{forward.17} parent=1 // pred_check
      _
    $region19: #{forward.17} parent=1 // pred_check_branch
      %861 = sbr.rel (0) target = $region21
    $region20: #{forward.17} parent=1 // pred_region
      %862 = dma.done [#allocation3], 16
    $region21: #{forward.17} parent=1 // pred_fallthru
      _
    %863 = sfence
    %864 = vsyncpa [#allocation3], 1

</llo_original>
